<compile_context>
chip_gen: v7x
topology: tpu7x:2x2x1
jax: 0.10.0
libtpu: 0.0.40
codegen_flags: <defaults>
</compile_context>

<pallas_src>
import math

import jax
import jax.numpy as jnp
from jax.experimental import pallas as pl
from jax.experimental.pallas import tpu as pltpu


def unet_decoder_block(x, weight, bias, *, block_rows=8):
    """ReLU(Conv2d(3x3, pad=1)(nearest_upsample_2x(x))) as a Pallas TPU kernel.

    x:      (N, Cin, H, W)    NCHW, like the PyTorch module.
    weight: (Cout, Cin, 3, 3) PyTorch Conv2d (OIHW) layout.
    bias:   (Cout,)
    returns (N, Cout, 2H, 2W) NCHW.
    """
    n, cin, h, w = x.shape
    cout = weight.shape[0]
    assert weight.shape == (cout, cin, 3, 3)
    ho, wo = 2 * h, 2 * w
    hp, wp = ho + 2, wo + 2          # conv padding=1 folded into the input

    # --- wrapper glue (fused by XLA into a single producer of the conv input) --
    # (N, Cin, H, W) -> (N, H, Cin, W): channel rows contiguous per spatial row.
    xt = jnp.transpose(x, (0, 2, 1, 3))
    # nearest 2x upsample of both spatial dims (out[y] = in[y // 2]).
    xu = jnp.repeat(jnp.repeat(xt, 2, axis=1), 2, axis=3)      # (N, Ho, Cin, Wo)
    # zero pad the spatial dims (the conv's padding=1).
    xp = jnp.pad(xu, ((0, 0), (1, 1), (0, 0), (1, 1)))          # (N, Hp, Cin, Wp)
    xp2 = xp.reshape(n, hp * cin, wp)                           # free reshape

    # weight[co, ci, ky, kx] -> (tap = 3*ky + kx, Cout, Cin)
    wt = jnp.transpose(weight, (2, 3, 0, 1)).reshape(9, cout, cin)
    b2 = bias.reshape(cout, 1)

    # Output rows per grid step; must divide Ho (Ho = 2H is always even).
    br = math.gcd(ho, max(int(block_rows), 1))

    def kernel(xp_ref, w_ref, b_ref, out_ref):
        # xp_ref : (Hp*Cin, Wp)  full padded image, resident across row-blocks
        # w_ref  : (9, Cout, Cin)
        # b_ref  : (Cout, 1)
        # out_ref: (br, Cout, Wo)
        base = pl.program_id(1) * br
        bias_v = b_ref[...]                                     # (Cout, 1)
        for yy in range(br):                                    # static unroll
            acc = jnp.zeros((cout, wo), jnp.float32)
            for ky in range(3):
                start = (base + yy + ky) * cin
                xmat = xp_ref[pl.ds(start, cin), :]             # (Cin, Wp)
                for kx in range(3):
                    acc = acc + jnp.dot(
                        w_ref[3 * ky + kx],                     # (Cout, Cin)
                        xmat[:, kx:kx + wo],                    # (Cin, Wo)
                        preferred_element_type=jnp.float32)
            row = jnp.maximum(acc + bias_v, 0.0)                # bias + ReLU
            out_ref[yy] = row.astype(out_ref.dtype)             # (Cout, Wo) store

    out = pl.pallas_call(
        kernel,
        out_shape=jax.ShapeDtypeStruct((n, ho, cout, wo), x.dtype),
        grid_spec=pltpu.PrefetchScalarGridSpec(
            num_scalar_prefetch=0,
            grid=(n, ho // br),
            in_specs=[
                pl.BlockSpec((None, hp * cin, wp), lambda i, j: (i, 0, 0)),
                pl.BlockSpec((9, cout, cin), lambda i, j: (0, 0, 0)),
                pl.BlockSpec((cout, 1), lambda i, j: (0, 0)),
            ],
            out_specs=pl.BlockSpec((None, br, cout, wo),
                                   lambda i, j: (i, j, 0, 0)),
        ),
        compiler_params=pltpu.CompilerParams(
            dimension_semantics=("parallel", "parallel"),
        ),
    )(xp2, wt, b2)

    # (N, Ho, Cout, Wo) -> NCHW (N, Cout, Ho, Wo), matching the PyTorch module.
    return jnp.transpose(out, (0, 2, 1, 3))


def _reference(x, weight, bias):
    """Pure-JAX reference: nearest 2x upsample -> 3x3 conv (pad=1) -> +bias -> ReLU."""
    up = jnp.repeat(jnp.repeat(x, 2, axis=2), 2, axis=3)
    out = jax.lax.conv_general_dilated(
        up, weight, window_strides=(1, 1), padding=((1, 1), (1, 1)),
        dimension_numbers=("NCHW", "OIHW", "NCHW"),
        precision=jax.lax.Precision.HIGHEST)
    out = out + bias[None, :, None, None]
    return jnp.maximum(out, 0.0)


if __name__ == "__main__":
    key = jax.random.PRNGKey(0)
    k1, k2, k3 = jax.random.split(key, 3)

    N, Cin, H, W = 2, 4, 16, 16
    Cout = 8

    x = jax.random.normal(k1, (N, Cin, H, W), dtype=jnp.float32)
    weight = 0.1 * jax.random.normal(k2, (Cout, Cin, 3, 3), dtype=jnp.float32)
    bias = 0.1 * jax.random.normal(k3, (Cout,), dtype=jnp.float32)

    fwd = jax.jit(unet_decoder_block)
    out = jax.block_until_ready(fwd(x, weight, bias))

    ref = _reference(x, weight, bias)
    assert out.shape == (N, Cout, 2 * H, 2 * W)
    assert out.dtype == jnp.float32
    assert jnp.allclose(out, ref, atol=2e-2, rtol=2e-2), \
        float(jnp.max(jnp.abs(out - ref)))

    print("KERNEL_OK")
</pallas_src>

<mosaic_0001>
module attributes {stable_mosaic.version = 11 : i64} {
  func.func @kernel(%arg0: i32, %arg1: i32, %arg2: memref<1x136x34xf32, #tpu.memory_space<vmem>>, %arg3: memref<9x8x4xf32, #tpu.memory_space<vmem>>, %arg4: memref<8x1xf32, #tpu.memory_space<vmem>>, %arg5: memref<1x8x8x32xf32, #tpu.memory_space<vmem>>) attributes {dimension_semantics = [#tpu.dimension_semantics<parallel>, #tpu.dimension_semantics<parallel>], iteration_bounds = array<i64: 2, 4>, scalar_prefetch = 0 : i64, scratch_operands = 0 : i64, tpu.core_type = #tpu.core_type<tc>, window_params = [{transform_indices = @transform_0, window_bounds = array<i64: 1, 136, 34>}, {pipeline_mode = #tpu.pipeline_mode<synchronous>, transform_indices = @transform_1, window_bounds = array<i64: 9, 8, 4>}, {pipeline_mode = #tpu.pipeline_mode<synchronous>, transform_indices = @transform_2, window_bounds = array<i64: 8, 1>}, {transform_indices = @transform_3, window_bounds = array<i64: 1, 8, 8, 32>}]} {
    %c8_i32 = arith.constant 8 : i32
    %0 = arith.muli %arg1, %c8_i32 : i32
    %c0 = arith.constant 0 : index
    %c0_0 = arith.constant 0 : index
    %1 = vector.load %arg4[%c0, %c0_0] : memref<8x1xf32, #tpu.memory_space<vmem>>, vector<8x1xf32>
    %cst = arith.constant 0.000000e+00 : f32
    %2 = vector.broadcast %cst : f32 to vector<8x32xf32>
    %c0_i32 = arith.constant 0 : i32
    %3 = arith.addi %0, %c0_i32 : i32
    %c0_i32_1 = arith.constant 0 : i32
    %4 = arith.addi %3, %c0_i32_1 : i32
    %c4_i32 = arith.constant 4 : i32
    %5 = arith.muli %4, %c4_i32 : i32
    %c0_2 = arith.constant 0 : index
    %6 = arith.index_cast %5 : i32 to index
    %c0_3 = arith.constant 0 : index
    %7 = vector.load %arg2[%c0_2, %6, %c0_3] : memref<1x136x34xf32, #tpu.memory_space<vmem>>, vector<1x4x34xf32>
    %8 = vector.shape_cast %7 : vector<1x4x34xf32> to vector<4x34xf32>
    %c0_4 = arith.constant 0 : index
    %c0_5 = arith.constant 0 : index
    %c0_6 = arith.constant 0 : index
    %9 = vector.load %arg3[%c0_4, %c0_5, %c0_6] : memref<9x8x4xf32, #tpu.memory_space<vmem>>, vector<1x8x4xf32>
    %10 = vector.shape_cast %9 : vector<1x8x4xf32> to vector<8x4xf32>
    %11 = vector.extract_strided_slice %8 {offsets = [0, 0], sizes = [4, 32], strides = [1, 1]} : vector<4x34xf32> to vector<4x32xf32>
    %cst_7 = arith.constant dense<0.000000e+00> : vector<8x32xf32>
    %12 = tpu.matmul %10, %11, %cst_7 {dimension_numbers = #tpu.dot_dimension_numbers<[1], [0], [0], [1], [0, 0, 1, 1], [], []>} : vector<8x4xf32>, vector<4x32xf32>, vector<8x32xf32> -> vector<8x32xf32>
    %13 = arith.addf %2, %12 : vector<8x32xf32>
    %c1 = arith.constant 1 : index
    %c0_8 = arith.constant 0 : index
    %c0_9 = arith.constant 0 : index
    %14 = vector.load %arg3[%c1, %c0_8, %c0_9] : memref<9x8x4xf32, #tpu.memory_space<vmem>>, vector<1x8x4xf32>
    %15 = vector.shape_cast %14 : vector<1x8x4xf32> to vector<8x4xf32>
    %16 = vector.extract_strided_slice %8 {offsets = [0, 1], sizes = [4, 32], strides = [1, 1]} : vector<4x34xf32> to vector<4x32xf32>
    %cst_10 = arith.constant dense<0.000000e+00> : vector<8x32xf32>
    %17 = tpu.matmul %15, %16, %cst_10 {dimension_numbers = #tpu.dot_dimension_numbers<[1], [0], [0], [1], [0, 0, 1, 1], [], []>} : vector<8x4xf32>, vector<4x32xf32>, vector<8x32xf32> -> vector<8x32xf32>
    %18 = arith.addf %13, %17 : vector<8x32xf32>
    %c2 = arith.constant 2 : index
    %c0_11 = arith.constant 0 : index
    %c0_12 = arith.constant 0 : index
    %19 = vector.load %arg3[%c2, %c0_11, %c0_12] : memref<9x8x4xf32, #tpu.memory_space<vmem>>, vector<1x8x4xf32>
    %20 = vector.shape_cast %19 : vector<1x8x4xf32> to vector<8x4xf32>
    %21 = vector.extract_strided_slice %8 {offsets = [0, 2], sizes = [4, 32], strides = [1, 1]} : vector<4x34xf32> to vector<4x32xf32>
    %cst_13 = arith.constant dense<0.000000e+00> : vector<8x32xf32>
    %22 = tpu.matmul %20, %21, %cst_13 {dimension_numbers = #tpu.dot_dimension_numbers<[1], [0], [0], [1], [0, 0, 1, 1], [], []>} : vector<8x4xf32>, vector<4x32xf32>, vector<8x32xf32> -> vector<8x32xf32>
    %23 = arith.addf %18, %22 : vector<8x32xf32>
    %c0_i32_14 = arith.constant 0 : i32
    %24 = arith.addi %0, %c0_i32_14 : i32
    %c1_i32 = arith.constant 1 : i32
    %25 = arith.addi %24, %c1_i32 : i32
    %c4_i32_15 = arith.constant 4 : i32
    %26 = arith.muli %25, %c4_i32_15 : i32
    %c0_16 = arith.constant 0 : index
    %27 = arith.index_cast %26 : i32 to index
    %c0_17 = arith.constant 0 : index
    %28 = vector.load %arg2[%c0_16, %27, %c0_17] : memref<1x136x34xf32, #tpu.memory_space<vmem>>, vector<1x4x34xf32>
    %29 = vector.shape_cast %28 : vector<1x4x34xf32> to vector<4x34xf32>
    %c3 = arith.constant 3 : index
    %c0_18 = arith.constant 0 : index
    %c0_19 = arith.constant 0 : index
    %30 = vector.load %arg3[%c3, %c0_18, %c0_19] : memref<9x8x4xf32, #tpu.memory_space<vmem>>, vector<1x8x4xf32>
    %31 = vector.shape_cast %30 : vector<1x8x4xf32> to vector<8x4xf32>
    %32 = vector.extract_strided_slice %29 {offsets = [0, 0], sizes = [4, 32], strides = [1, 1]} : vector<4x34xf32> to vector<4x32xf32>
    %cst_20 = arith.constant dense<0.000000e+00> : vector<8x32xf32>
    %33 = tpu.matmul %31, %32, %cst_20 {dimension_numbers = #tpu.dot_dimension_numbers<[1], [0], [0], [1], [0, 0, 1, 1], [], []>} : vector<8x4xf32>, vector<4x32xf32>, vector<8x32xf32> -> vector<8x32xf32>
    %34 = arith.addf %23, %33 : vector<8x32xf32>
    %c4 = arith.constant 4 : index
    %c0_21 = arith.constant 0 : index
    %c0_22 = arith.constant 0 : index
    %35 = vector.load %arg3[%c4, %c0_21, %c0_22] : memref<9x8x4xf32, #tpu.memory_space<vmem>>, vector<1x8x4xf32>
    %36 = vector.shape_cast %35 : vector<1x8x4xf32> to vector<8x4xf32>
    %37 = vector.extract_strided_slice %29 {offsets = [0, 1], sizes = [4, 32], strides = [1, 1]} : vector<4x34xf32> to vector<4x32xf32>
    %cst_23 = arith.constant dense<0.000000e+00> : vector<8x32xf32>
    %38 = tpu.matmul %36, %37, %cst_23 {dimension_numbers = #tpu.dot_dimension_numbers<[1], [0], [0], [1], [0, 0, 1, 1], [], []>} : vector<8x4xf32>, vector<4x32xf32>, vector<8x32xf32> -> vector<8x32xf32>
    %39 = arith.addf %34, %38 : vector<8x32xf32>
    %c5 = arith.constant 5 : index
    %c0_24 = arith.constant 0 : index
    %c0_25 = arith.constant 0 : index
    %40 = vector.load %arg3[%c5, %c0_24, %c0_25] : memref<9x8x4xf32, #tpu.memory_space<vmem>>, vector<1x8x4xf32>
    %41 = vector.shape_cast %40 : vector<1x8x4xf32> to vector<8x4xf32>
    %42 = vector.extract_strided_slice %29 {offsets = [0, 2], sizes = [4, 32], strides = [1, 1]} : vector<4x34xf32> to vector<4x32xf32>
    %cst_26 = arith.constant dense<0.000000e+00> : vector<8x32xf32>
    %43 = tpu.matmul %41, %42, %cst_26 {dimension_numbers = #tpu.dot_dimension_numbers<[1], [0], [0], [1], [0, 0, 1, 1], [], []>} : vector<8x4xf32>, vector<4x32xf32>, vector<8x32xf32> -> vector<8x32xf32>
    %44 = arith.addf %39, %43 : vector<8x32xf32>
    %c0_i32_27 = arith.constant 0 : i32
    %45 = arith.addi %0, %c0_i32_27 : i32
    %c2_i32 = arith.constant 2 : i32
    %46 = arith.addi %45, %c2_i32 : i32
    %c4_i32_28 = arith.constant 4 : i32
    %47 = arith.muli %46, %c4_i32_28 : i32
    %c0_29 = arith.constant 0 : index
    %48 = arith.index_cast %47 : i32 to index
    %c0_30 = arith.constant 0 : index
    %49 = vector.load %arg2[%c0_29, %48, %c0_30] : memref<1x136x34xf32, #tpu.memory_space<vmem>>, vector<1x4x34xf32>
    %50 = vector.shape_cast %49 : vector<1x4x34xf32> to vector<4x34xf32>
    %c6 = arith.constant 6 : index
    %c0_31 = arith.constant 0 : index
    %c0_32 = arith.constant 0 : index
    %51 = vector.load %arg3[%c6, %c0_31, %c0_32] : memref<9x8x4xf32, #tpu.memory_space<vmem>>, vector<1x8x4xf32>
    %52 = vector.shape_cast %51 : vector<1x8x4xf32> to vector<8x4xf32>
    %53 = vector.extract_strided_slice %50 {offsets = [0, 0], sizes = [4, 32], strides = [1, 1]} : vector<4x34xf32> to vector<4x32xf32>
    %cst_33 = arith.constant dense<0.000000e+00> : vector<8x32xf32>
    %54 = tpu.matmul %52, %53, %cst_33 {dimension_numbers = #tpu.dot_dimension_numbers<[1], [0], [0], [1], [0, 0, 1, 1], [], []>} : vector<8x4xf32>, vector<4x32xf32>, vector<8x32xf32> -> vector<8x32xf32>
    %55 = arith.addf %44, %54 : vector<8x32xf32>
    %c7 = arith.constant 7 : index
    %c0_34 = arith.constant 0 : index
    %c0_35 = arith.constant 0 : index
    %56 = vector.load %arg3[%c7, %c0_34, %c0_35] : memref<9x8x4xf32, #tpu.memory_space<vmem>>, vector<1x8x4xf32>
    %57 = vector.shape_cast %56 : vector<1x8x4xf32> to vector<8x4xf32>
    %58 = vector.extract_strided_slice %50 {offsets = [0, 1], sizes = [4, 32], strides = [1, 1]} : vector<4x34xf32> to vector<4x32xf32>
    %cst_36 = arith.constant dense<0.000000e+00> : vector<8x32xf32>
    %59 = tpu.matmul %57, %58, %cst_36 {dimension_numbers = #tpu.dot_dimension_numbers<[1], [0], [0], [1], [0, 0, 1, 1], [], []>} : vector<8x4xf32>, vector<4x32xf32>, vector<8x32xf32> -> vector<8x32xf32>
    %60 = arith.addf %55, %59 : vector<8x32xf32>
    %c8 = arith.constant 8 : index
    %c0_37 = arith.constant 0 : index
    %c0_38 = arith.constant 0 : index
    %61 = vector.load %arg3[%c8, %c0_37, %c0_38] : memref<9x8x4xf32, #tpu.memory_space<vmem>>, vector<1x8x4xf32>
    %62 = vector.shape_cast %61 : vector<1x8x4xf32> to vector<8x4xf32>
    %63 = vector.extract_strided_slice %50 {offsets = [0, 2], sizes = [4, 32], strides = [1, 1]} : vector<4x34xf32> to vector<4x32xf32>
    %cst_39 = arith.constant dense<0.000000e+00> : vector<8x32xf32>
    %64 = tpu.matmul %62, %63, %cst_39 {dimension_numbers = #tpu.dot_dimension_numbers<[1], [0], [0], [1], [0, 0, 1, 1], [], []>} : vector<8x4xf32>, vector<4x32xf32>, vector<8x32xf32> -> vector<8x32xf32>
    %65 = arith.addf %60, %64 : vector<8x32xf32>
    %66 = vector.broadcast %1 : vector<8x1xf32> to vector<8x32xf32>
    %67 = arith.addf %65, %66 : vector<8x32xf32>
    %cst_40 = arith.constant 0.000000e+00 : f32
    %68 = vector.broadcast %cst_40 : f32 to vector<8x32xf32>
    %69 = arith.maximumf %67, %68 : vector<8x32xf32>
    %c0_41 = arith.constant 0 : index
    %c0_42 = arith.constant 0 : index
    %c0_43 = arith.constant 0 : index
    %c0_44 = arith.constant 0 : index
    %70 = vector.load %arg5[%c0_41, %c0_42, %c0_43, %c0_44] : memref<1x8x8x32xf32, #tpu.memory_space<vmem>>, vector<1x1x8x32xf32>
    %71 = vector.shape_cast %70 : vector<1x1x8x32xf32> to vector<8x32xf32>
    %72 = vector.shape_cast %69 : vector<8x32xf32> to vector<1x1x8x32xf32>
    tpu.vector_store %arg5[%c0_41, %c0_42, %c0_43, %c0_44], %72 {strides = array<i32>} : memref<1x8x8x32xf32, #tpu.memory_space<vmem>>, vector<1x1x8x32xf32>,
    %cst_45 = arith.constant 0.000000e+00 : f32
    %73 = vector.broadcast %cst_45 : f32 to vector<8x32xf32>
    %c1_i32_46 = arith.constant 1 : i32
    %74 = arith.addi %0, %c1_i32_46 : i32
    %c0_i32_47 = arith.constant 0 : i32
    %75 = arith.addi %74, %c0_i32_47 : i32
    %c4_i32_48 = arith.constant 4 : i32
    %76 = arith.muli %75, %c4_i32_48 : i32
    %c0_49 = arith.constant 0 : index
    %77 = arith.index_cast %76 : i32 to index
    %c0_50 = arith.constant 0 : index
    %78 = vector.load %arg2[%c0_49, %77, %c0_50] : memref<1x136x34xf32, #tpu.memory_space<vmem>>, vector<1x4x34xf32>
    %79 = vector.shape_cast %78 : vector<1x4x34xf32> to vector<4x34xf32>
    %c0_51 = arith.constant 0 : index
    %c0_52 = arith.constant 0 : index
    %c0_53 = arith.constant 0 : index
    %80 = vector.load %arg3[%c0_51, %c0_52, %c0_53] : memref<9x8x4xf32, #tpu.memory_space<vmem>>, vector<1x8x4xf32>
    %81 = vector.shape_cast %80 : vector<1x8x4xf32> to vector<8x4xf32>
    %82 = vector.extract_strided_slice %79 {offsets = [0, 0], sizes = [4, 32], strides = [1, 1]} : vector<4x34xf32> to vector<4x32xf32>
    %cst_54 = arith.constant dense<0.000000e+00> : vector<8x32xf32>
    %83 = tpu.matmul %81, %82, %cst_54 {dimension_numbers = #tpu.dot_dimension_numbers<[1], [0], [0], [1], [0, 0, 1, 1], [], []>} : vector<8x4xf32>, vector<4x32xf32>, vector<8x32xf32> -> vector<8x32xf32>
    %84 = arith.addf %73, %83 : vector<8x32xf32>
    %c1_55 = arith.constant 1 : index
    %c0_56 = arith.constant 0 : index
    %c0_57 = arith.constant 0 : index
    %85 = vector.load %arg3[%c1_55, %c0_56, %c0_57] : memref<9x8x4xf32, #tpu.memory_space<vmem>>, vector<1x8x4xf32>
    %86 = vector.shape_cast %85 : vector<1x8x4xf32> to vector<8x4xf32>
    %87 = vector.extract_strided_slice %79 {offsets = [0, 1], sizes = [4, 32], strides = [1, 1]} : vector<4x34xf32> to vector<4x32xf32>
    %cst_58 = arith.constant dense<0.000000e+00> : vector<8x32xf32>
    %88 = tpu.matmul %86, %87, %cst_58 {dimension_numbers = #tpu.dot_dimension_numbers<[1], [0], [0], [1], [0, 0, 1, 1], [], []>} : vector<8x4xf32>, vector<4x32xf32>, vector<8x32xf32> -> vector<8x32xf32>
    %89 = arith.addf %84, %88 : vector<8x32xf32>
    %c2_59 = arith.constant 2 : index
    %c0_60 = arith.constant 0 : index
    %c0_61 = arith.constant 0 : index
    %90 = vector.load %arg3[%c2_59, %c0_60, %c0_61] : memref<9x8x4xf32, #tpu.memory_space<vmem>>, vector<1x8x4xf32>
    %91 = vector.shape_cast %90 : vector<1x8x4xf32> to vector<8x4xf32>
    %92 = vector.extract_strided_slice %79 {offsets = [0, 2], sizes = [4, 32], strides = [1, 1]} : vector<4x34xf32> to vector<4x32xf32>
    %cst_62 = arith.constant dense<0.000000e+00> : vector<8x32xf32>
    %93 = tpu.matmul %91, %92, %cst_62 {dimension_numbers = #tpu.dot_dimension_numbers<[1], [0], [0], [1], [0, 0, 1, 1], [], []>} : vector<8x4xf32>, vector<4x32xf32>, vector<8x32xf32> -> vector<8x32xf32>
    %94 = arith.addf %89, %93 : vector<8x32xf32>
    %c1_i32_63 = arith.constant 1 : i32
    %95 = arith.addi %0, %c1_i32_63 : i32
    %c1_i32_64 = arith.constant 1 : i32
    %96 = arith.addi %95, %c1_i32_64 : i32
    %c4_i32_65 = arith.constant 4 : i32
    %97 = arith.muli %96, %c4_i32_65 : i32
    %c0_66 = arith.constant 0 : index
    %98 = arith.index_cast %97 : i32 to index
    %c0_67 = arith.constant 0 : index
    %99 = vector.load %arg2[%c0_66, %98, %c0_67] : memref<1x136x34xf32, #tpu.memory_space<vmem>>, vector<1x4x34xf32>
    %100 = vector.shape_cast %99 : vector<1x4x34xf32> to vector<4x34xf32>
    %c3_68 = arith.constant 3 : index
    %c0_69 = arith.constant 0 : index
    %c0_70 = arith.constant 0 : index
    %101 = vector.load %arg3[%c3_68, %c0_69, %c0_70] : memref<9x8x4xf32, #tpu.memory_space<vmem>>, vector<1x8x4xf32>
    %102 = vector.shape_cast %101 : vector<1x8x4xf32> to vector<8x4xf32>
    %103 = vector.extract_strided_slice %100 {offsets = [0, 0], sizes = [4, 32], strides = [1, 1]} : vector<4x34xf32> to vector<4x32xf32>
    %cst_71 = arith.constant dense<0.000000e+00> : vector<8x32xf32>
    %104 = tpu.matmul %102, %103, %cst_71 {dimension_numbers = #tpu.dot_dimension_numbers<[1], [0], [0], [1], [0, 0, 1, 1], [], []>} : vector<8x4xf32>, vector<4x32xf32>, vector<8x32xf32> -> vector<8x32xf32>
    %105 = arith.addf %94, %104 : vector<8x32xf32>
    %c4_72 = arith.constant 4 : index
    %c0_73 = arith.constant 0 : index
    %c0_74 = arith.constant 0 : index
    %106 = vector.load %arg3[%c4_72, %c0_73, %c0_74] : memref<9x8x4xf32, #tpu.memory_space<vmem>>, vector<1x8x4xf32>
    %107 = vector.shape_cast %106 : vector<1x8x4xf32> to vector<8x4xf32>
    %108 = vector.extract_strided_slice %100 {offsets = [0, 1], sizes = [4, 32], strides = [1, 1]} : vector<4x34xf32> to vector<4x32xf32>
    %cst_75 = arith.constant dense<0.000000e+00> : vector<8x32xf32>
    %109 = tpu.matmul %107, %108, %cst_75 {dimension_numbers = #tpu.dot_dimension_numbers<[1], [0], [0], [1], [0, 0, 1, 1], [], []>} : vector<8x4xf32>, vector<4x32xf32>, vector<8x32xf32> -> vector<8x32xf32>
    %110 = arith.addf %105, %109 : vector<8x32xf32>
    %c5_76 = arith.constant 5 : index
    %c0_77 = arith.constant 0 : index
    %c0_78 = arith.constant 0 : index
    %111 = vector.load %arg3[%c5_76, %c0_77, %c0_78] : memref<9x8x4xf32, #tpu.memory_space<vmem>>, vector<1x8x4xf32>
    %112 = vector.shape_cast %111 : vector<1x8x4xf32> to vector<8x4xf32>
    %113 = vector.extract_strided_slice %100 {offsets = [0, 2], sizes = [4, 32], strides = [1, 1]} : vector<4x34xf32> to vector<4x32xf32>
    %cst_79 = arith.constant dense<0.000000e+00> : vector<8x32xf32>
    %114 = tpu.matmul %112, %113, %cst_79 {dimension_numbers = #tpu.dot_dimension_numbers<[1], [0], [0], [1], [0, 0, 1, 1], [], []>} : vector<8x4xf32>, vector<4x32xf32>, vector<8x32xf32> -> vector<8x32xf32>
    %115 = arith.addf %110, %114 : vector<8x32xf32>
    %c1_i32_80 = arith.constant 1 : i32
    %116 = arith.addi %0, %c1_i32_80 : i32
    %c2_i32_81 = arith.constant 2 : i32
    %117 = arith.addi %116, %c2_i32_81 : i32
    %c4_i32_82 = arith.constant 4 : i32
    %118 = arith.muli %117, %c4_i32_82 : i32
    %c0_83 = arith.constant 0 : index
    %119 = arith.index_cast %118 : i32 to index
    %c0_84 = arith.constant 0 : index
    %120 = vector.load %arg2[%c0_83, %119, %c0_84] : memref<1x136x34xf32, #tpu.memory_space<vmem>>, vector<1x4x34xf32>
    %121 = vector.shape_cast %120 : vector<1x4x34xf32> to vector<4x34xf32>
    %c6_85 = arith.constant 6 : index
    %c0_86 = arith.constant 0 : index
    %c0_87 = arith.constant 0 : index
    %122 = vector.load %arg3[%c6_85, %c0_86, %c0_87] : memref<9x8x4xf32, #tpu.memory_space<vmem>>, vector<1x8x4xf32>
    %123 = vector.shape_cast %122 : vector<1x8x4xf32> to vector<8x4xf32>
    %124 = vector.extract_strided_slice %121 {offsets = [0, 0], sizes = [4, 32], strides = [1, 1]} : vector<4x34xf32> to vector<4x32xf32>
    %cst_88 = arith.constant dense<0.000000e+00> : vector<8x32xf32>
    %125 = tpu.matmul %123, %124, %cst_88 {dimension_numbers = #tpu.dot_dimension_numbers<[1], [0], [0], [1], [0, 0, 1, 1], [], []>} : vector<8x4xf32>, vector<4x32xf32>, vector<8x32xf32> -> vector<8x32xf32>
    %126 = arith.addf %115, %125 : vector<8x32xf32>
    %c7_89 = arith.constant 7 : index
    %c0_90 = arith.constant 0 : index
    %c0_91 = arith.constant 0 : index
    %127 = vector.load %arg3[%c7_89, %c0_90, %c0_91] : memref<9x8x4xf32, #tpu.memory_space<vmem>>, vector<1x8x4xf32>
    %128 = vector.shape_cast %127 : vector<1x8x4xf32> to vector<8x4xf32>
    %129 = vector.extract_strided_slice %121 {offsets = [0, 1], sizes = [4, 32], strides = [1, 1]} : vector<4x34xf32> to vector<4x32xf32>
    %cst_92 = arith.constant dense<0.000000e+00> : vector<8x32xf32>
    %130 = tpu.matmul %128, %129, %cst_92 {dimension_numbers = #tpu.dot_dimension_numbers<[1], [0], [0], [1], [0, 0, 1, 1], [], []>} : vector<8x4xf32>, vector<4x32xf32>, vector<8x32xf32> -> vector<8x32xf32>
    %131 = arith.addf %126, %130 : vector<8x32xf32>
    %c8_93 = arith.constant 8 : index
    %c0_94 = arith.constant 0 : index
    %c0_95 = arith.constant 0 : index
    %132 = vector.load %arg3[%c8_93, %c0_94, %c0_95] : memref<9x8x4xf32, #tpu.memory_space<vmem>>, vector<1x8x4xf32>
    %133 = vector.shape_cast %132 : vector<1x8x4xf32> to vector<8x4xf32>
    %134 = vector.extract_strided_slice %121 {offsets = [0, 2], sizes = [4, 32], strides = [1, 1]} : vector<4x34xf32> to vector<4x32xf32>
    %cst_96 = arith.constant dense<0.000000e+00> : vector<8x32xf32>
    %135 = tpu.matmul %133, %134, %cst_96 {dimension_numbers = #tpu.dot_dimension_numbers<[1], [0], [0], [1], [0, 0, 1, 1], [], []>} : vector<8x4xf32>, vector<4x32xf32>, vector<8x32xf32> -> vector<8x32xf32>
    %136 = arith.addf %131, %135 : vector<8x32xf32>
    %137 = vector.broadcast %1 : vector<8x1xf32> to vector<8x32xf32>
    %138 = arith.addf %136, %137 : vector<8x32xf32>
    %cst_97 = arith.constant 0.000000e+00 : f32
    %139 = vector.broadcast %cst_97 : f32 to vector<8x32xf32>
    %140 = arith.maximumf %138, %139 : vector<8x32xf32>
    %c0_98 = arith.constant 0 : index
    %c1_99 = arith.constant 1 : index
    %c0_100 = arith.constant 0 : index
    %c0_101 = arith.constant 0 : index
    %141 = vector.load %arg5[%c0_98, %c1_99, %c0_100, %c0_101] : memref<1x8x8x32xf32, #tpu.memory_space<vmem>>, vector<1x1x8x32xf32>
    %142 = vector.shape_cast %141 : vector<1x1x8x32xf32> to vector<8x32xf32>
    %143 = vector.shape_cast %140 : vector<8x32xf32> to vector<1x1x8x32xf32>
    tpu.vector_store %arg5[%c0_98, %c1_99, %c0_100, %c0_101], %143 {strides = array<i32>} : memref<1x8x8x32xf32, #tpu.memory_space<vmem>>, vector<1x1x8x32xf32>,
    %cst_102 = arith.constant 0.000000e+00 : f32
    %144 = vector.broadcast %cst_102 : f32 to vector<8x32xf32>
    %c2_i32_103 = arith.constant 2 : i32
    %145 = arith.addi %0, %c2_i32_103 : i32
    %c0_i32_104 = arith.constant 0 : i32
    %146 = arith.addi %145, %c0_i32_104 : i32
    %c4_i32_105 = arith.constant 4 : i32
    %147 = arith.muli %146, %c4_i32_105 : i32
    %c0_106 = arith.constant 0 : index
    %148 = arith.index_cast %147 : i32 to index
    %c0_107 = arith.constant 0 : index
    %149 = vector.load %arg2[%c0_106, %148, %c0_107] : memref<1x136x34xf32, #tpu.memory_space<vmem>>, vector<1x4x34xf32>
    %150 = vector.shape_cast %149 : vector<1x4x34xf32> to vector<4x34xf32>
    %c0_108 = arith.constant 0 : index
    %c0_109 = arith.constant 0 : index
    %c0_110 = arith.constant 0 : index
    %151 = vector.load %arg3[%c0_108, %c0_109, %c0_110] : memref<9x8x4xf32, #tpu.memory_space<vmem>>, vector<1x8x4xf32>
    %152 = vector.shape_cast %151 : vector<1x8x4xf32> to vector<8x4xf32>
    %153 = vector.extract_strided_slice %150 {offsets = [0, 0], sizes = [4, 32], strides = [1, 1]} : vector<4x34xf32> to vector<4x32xf32>
    %cst_111 = arith.constant dense<0.000000e+00> : vector<8x32xf32>
    %154 = tpu.matmul %152, %153, %cst_111 {dimension_numbers = #tpu.dot_dimension_numbers<[1], [0], [0], [1], [0, 0, 1, 1], [], []>} : vector<8x4xf32>, vector<4x32xf32>, vector<8x32xf32> -> vector<8x32xf32>
    %155 = arith.addf %144, %154 : vector<8x32xf32>
    %c1_112 = arith.constant 1 : index
    %c0_113 = arith.constant 0 : index
    %c0_114 = arith.constant 0 : index
    %156 = vector.load %arg3[%c1_112, %c0_113, %c0_114] : memref<9x8x4xf32, #tpu.memory_space<vmem>>, vector<1x8x4xf32>
    %157 = vector.shape_cast %156 : vector<1x8x4xf32> to vector<8x4xf32>
    %158 = vector.extract_strided_slice %150 {offsets = [0, 1], sizes = [4, 32], strides = [1, 1]} : vector<4x34xf32> to vector<4x32xf32>
    %cst_115 = arith.constant dense<0.000000e+00> : vector<8x32xf32>
    %159 = tpu.matmul %157, %158, %cst_115 {dimension_numbers = #tpu.dot_dimension_numbers<[1], [0], [0], [1], [0, 0, 1, 1], [], []>} : vector<8x4xf32>, vector<4x32xf32>, vector<8x32xf32> -> vector<8x32xf32>
    %160 = arith.addf %155, %159 : vector<8x32xf32>
    %c2_116 = arith.constant 2 : index
    %c0_117 = arith.constant 0 : index
    %c0_118 = arith.constant 0 : index
    %161 = vector.load %arg3[%c2_116, %c0_117, %c0_118] : memref<9x8x4xf32, #tpu.memory_space<vmem>>, vector<1x8x4xf32>
    %162 = vector.shape_cast %161 : vector<1x8x4xf32> to vector<8x4xf32>
    %163 = vector.extract_strided_slice %150 {offsets = [0, 2], sizes = [4, 32], strides = [1, 1]} : vector<4x34xf32> to vector<4x32xf32>
    %cst_119 = arith.constant dense<0.000000e+00> : vector<8x32xf32>
    %164 = tpu.matmul %162, %163, %cst_119 {dimension_numbers = #tpu.dot_dimension_numbers<[1], [0], [0], [1], [0, 0, 1, 1], [], []>} : vector<8x4xf32>, vector<4x32xf32>, vector<8x32xf32> -> vector<8x32xf32>
    %165 = arith.addf %160, %164 : vector<8x32xf32>
    %c2_i32_120 = arith.constant 2 : i32
    %166 = arith.addi %0, %c2_i32_120 : i32
    %c1_i32_121 = arith.constant 1 : i32
    %167 = arith.addi %166, %c1_i32_121 : i32
    %c4_i32_122 = arith.constant 4 : i32
    %168 = arith.muli %167, %c4_i32_122 : i32
    %c0_123 = arith.constant 0 : index
    %169 = arith.index_cast %168 : i32 to index
    %c0_124 = arith.constant 0 : index
    %170 = vector.load %arg2[%c0_123, %169, %c0_124] : memref<1x136x34xf32, #tpu.memory_space<vmem>>, vector<1x4x34xf32>
    %171 = vector.shape_cast %170 : vector<1x4x34xf32> to vector<4x34xf32>
    %c3_125 = arith.constant 3 : index
    %c0_126 = arith.constant 0 : index
    %c0_127 = arith.constant 0 : index
    %172 = vector.load %arg3[%c3_125, %c0_126, %c0_127] : memref<9x8x4xf32, #tpu.memory_space<vmem>>, vector<1x8x4xf32>
    %173 = vector.shape_cast %172 : vector<1x8x4xf32> to vector<8x4xf32>
    %174 = vector.extract_strided_slice %171 {offsets = [0, 0], sizes = [4, 32], strides = [1, 1]} : vector<4x34xf32> to vector<4x32xf32>
    %cst_128 = arith.constant dense<0.000000e+00> : vector<8x32xf32>
    %175 = tpu.matmul %173, %174, %cst_128 {dimension_numbers = #tpu.dot_dimension_numbers<[1], [0], [0], [1], [0, 0, 1, 1], [], []>} : vector<8x4xf32>, vector<4x32xf32>, vector<8x32xf32> -> vector<8x32xf32>
    %176 = arith.addf %165, %175 : vector<8x32xf32>
    %c4_129 = arith.constant 4 : index
    %c0_130 = arith.constant 0 : index
    %c0_131 = arith.constant 0 : index
    %177 = vector.load %arg3[%c4_129, %c0_130, %c0_131] : memref<9x8x4xf32, #tpu.memory_space<vmem>>, vector<1x8x4xf32>
    %178 = vector.shape_cast %177 : vector<1x8x4xf32> to vector<8x4xf32>
    %179 = vector.extract_strided_slice %171 {offsets = [0, 1], sizes = [4, 32], strides = [1, 1]} : vector<4x34xf32> to vector<4x32xf32>
    %cst_132 = arith.constant dense<0.000000e+00> : vector<8x32xf32>
    %180 = tpu.matmul %178, %179, %cst_132 {dimension_numbers = #tpu.dot_dimension_numbers<[1], [0], [0], [1], [0, 0, 1, 1], [], []>} : vector<8x4xf32>, vector<4x32xf32>, vector<8x32xf32> -> vector<8x32xf32>
    %181 = arith.addf %176, %180 : vector<8x32xf32>
    %c5_133 = arith.constant 5 : index
    %c0_134 = arith.constant 0 : index
    %c0_135 = arith.constant 0 : index
    %182 = vector.load %arg3[%c5_133, %c0_134, %c0_135] : memref<9x8x4xf32, #tpu.memory_space<vmem>>, vector<1x8x4xf32>
    %183 = vector.shape_cast %182 : vector<1x8x4xf32> to vector<8x4xf32>
    %184 = vector.extract_strided_slice %171 {offsets = [0, 2], sizes = [4, 32], strides = [1, 1]} : vector<4x34xf32> to vector<4x32xf32>
    %cst_136 = arith.constant dense<0.000000e+00> : vector<8x32xf32>
    %185 = tpu.matmul %183, %184, %cst_136 {dimension_numbers = #tpu.dot_dimension_numbers<[1], [0], [0], [1], [0, 0, 1, 1], [], []>} : vector<8x4xf32>, vector<4x32xf32>, vector<8x32xf32> -> vector<8x32xf32>
    %186 = arith.addf %181, %185 : vector<8x32xf32>
    %c2_i32_137 = arith.constant 2 : i32
    %187 = arith.addi %0, %c2_i32_137 : i32
    %c2_i32_138 = arith.constant 2 : i32
    %188 = arith.addi %187, %c2_i32_138 : i32
    %c4_i32_139 = arith.constant 4 : i32
    %189 = arith.muli %188, %c4_i32_139 : i32
    %c0_140 = arith.constant 0 : index
    %190 = arith.index_cast %189 : i32 to index
    %c0_141 = arith.constant 0 : index
    %191 = vector.load %arg2[%c0_140, %190, %c0_141] : memref<1x136x34xf32, #tpu.memory_space<vmem>>, vector<1x4x34xf32>
    %192 = vector.shape_cast %191 : vector<1x4x34xf32> to vector<4x34xf32>
    %c6_142 = arith.constant 6 : index
    %c0_143 = arith.constant 0 : index
    %c0_144 = arith.constant 0 : index
    %193 = vector.load %arg3[%c6_142, %c0_143, %c0_144] : memref<9x8x4xf32, #tpu.memory_space<vmem>>, vector<1x8x4xf32>
    %194 = vector.shape_cast %193 : vector<1x8x4xf32> to vector<8x4xf32>
    %195 = vector.extract_strided_slice %192 {offsets = [0, 0], sizes = [4, 32], strides = [1, 1]} : vector<4x34xf32> to vector<4x32xf32>
    %cst_145 = arith.constant dense<0.000000e+00> : vector<8x32xf32>
    %196 = tpu.matmul %194, %195, %cst_145 {dimension_numbers = #tpu.dot_dimension_numbers<[1], [0], [0], [1], [0, 0, 1, 1], [], []>} : vector<8x4xf32>, vector<4x32xf32>, vector<8x32xf32> -> vector<8x32xf32>
    %197 = arith.addf %186, %196 : vector<8x32xf32>
    %c7_146 = arith.constant 7 : index
    %c0_147 = arith.constant 0 : index
    %c0_148 = arith.constant 0 : index
    %198 = vector.load %arg3[%c7_146, %c0_147, %c0_148] : memref<9x8x4xf32, #tpu.memory_space<vmem>>, vector<1x8x4xf32>
    %199 = vector.shape_cast %198 : vector<1x8x4xf32> to vector<8x4xf32>
    %200 = vector.extract_strided_slice %192 {offsets = [0, 1], sizes = [4, 32], strides = [1, 1]} : vector<4x34xf32> to vector<4x32xf32>
    %cst_149 = arith.constant dense<0.000000e+00> : vector<8x32xf32>
    %201 = tpu.matmul %199, %200, %cst_149 {dimension_numbers = #tpu.dot_dimension_numbers<[1], [0], [0], [1], [0, 0, 1, 1], [], []>} : vector<8x4xf32>, vector<4x32xf32>, vector<8x32xf32> -> vector<8x32xf32>
    %202 = arith.addf %197, %201 : vector<8x32xf32>
    %c8_150 = arith.constant 8 : index
    %c0_151 = arith.constant 0 : index
    %c0_152 = arith.constant 0 : index
    %203 = vector.load %arg3[%c8_150, %c0_151, %c0_152] : memref<9x8x4xf32, #tpu.memory_space<vmem>>, vector<1x8x4xf32>
    %204 = vector.shape_cast %203 : vector<1x8x4xf32> to vector<8x4xf32>
    %205 = vector.extract_strided_slice %192 {offsets = [0, 2], sizes = [4, 32], strides = [1, 1]} : vector<4x34xf32> to vector<4x32xf32>
    %cst_153 = arith.constant dense<0.000000e+00> : vector<8x32xf32>
    %206 = tpu.matmul %204, %205, %cst_153 {dimension_numbers = #tpu.dot_dimension_numbers<[1], [0], [0], [1], [0, 0, 1, 1], [], []>} : vector<8x4xf32>, vector<4x32xf32>, vector<8x32xf32> -> vector<8x32xf32>
    %207 = arith.addf %202, %206 : vector<8x32xf32>
    %208 = vector.broadcast %1 : vector<8x1xf32> to vector<8x32xf32>
    %209 = arith.addf %207, %208 : vector<8x32xf32>
    %cst_154 = arith.constant 0.000000e+00 : f32
    %210 = vector.broadcast %cst_154 : f32 to vector<8x32xf32>
    %211 = arith.maximumf %209, %210 : vector<8x32xf32>
    %c0_155 = arith.constant 0 : index
    %c2_156 = arith.constant 2 : index
    %c0_157 = arith.constant 0 : index
    %c0_158 = arith.constant 0 : index
    %212 = vector.load %arg5[%c0_155, %c2_156, %c0_157, %c0_158] : memref<1x8x8x32xf32, #tpu.memory_space<vmem>>, vector<1x1x8x32xf32>
    %213 = vector.shape_cast %212 : vector<1x1x8x32xf32> to vector<8x32xf32>
    %214 = vector.shape_cast %211 : vector<8x32xf32> to vector<1x1x8x32xf32>
    tpu.vector_store %arg5[%c0_155, %c2_156, %c0_157, %c0_158], %214 {strides = array<i32>} : memref<1x8x8x32xf32, #tpu.memory_space<vmem>>, vector<1x1x8x32xf32>,
    %cst_159 = arith.constant 0.000000e+00 : f32
    %215 = vector.broadcast %cst_159 : f32 to vector<8x32xf32>
    %c3_i32 = arith.constant 3 : i32
    %216 = arith.addi %0, %c3_i32 : i32
    %c0_i32_160 = arith.constant 0 : i32
    %217 = arith.addi %216, %c0_i32_160 : i32
    %c4_i32_161 = arith.constant 4 : i32
    %218 = arith.muli %217, %c4_i32_161 : i32
    %c0_162 = arith.constant 0 : index
    %219 = arith.index_cast %218 : i32 to index
    %c0_163 = arith.constant 0 : index
    %220 = vector.load %arg2[%c0_162, %219, %c0_163] : memref<1x136x34xf32, #tpu.memory_space<vmem>>, vector<1x4x34xf32>
    %221 = vector.shape_cast %220 : vector<1x4x34xf32> to vector<4x34xf32>
    %c0_164 = arith.constant 0 : index
    %c0_165 = arith.constant 0 : index
    %c0_166 = arith.constant 0 : index
    %222 = vector.load %arg3[%c0_164, %c0_165, %c0_166] : memref<9x8x4xf32, #tpu.memory_space<vmem>>, vector<1x8x4xf32>
    %223 = vector.shape_cast %222 : vector<1x8x4xf32> to vector<8x4xf32>
    %224 = vector.extract_strided_slice %221 {offsets = [0, 0], sizes = [4, 32], strides = [1, 1]} : vector<4x34xf32> to vector<4x32xf32>
    %cst_167 = arith.constant dense<0.000000e+00> : vector<8x32xf32>
    %225 = tpu.matmul %223, %224, %cst_167 {dimension_numbers = #tpu.dot_dimension_numbers<[1], [0], [0], [1], [0, 0, 1, 1], [], []>} : vector<8x4xf32>, vector<4x32xf32>, vector<8x32xf32> -> vector<8x32xf32>
    %226 = arith.addf %215, %225 : vector<8x32xf32>
    %c1_168 = arith.constant 1 : index
    %c0_169 = arith.constant 0 : index
    %c0_170 = arith.constant 0 : index
    %227 = vector.load %arg3[%c1_168, %c0_169, %c0_170] : memref<9x8x4xf32, #tpu.memory_space<vmem>>, vector<1x8x4xf32>
    %228 = vector.shape_cast %227 : vector<1x8x4xf32> to vector<8x4xf32>
    %229 = vector.extract_strided_slice %221 {offsets = [0, 1], sizes = [4, 32], strides = [1, 1]} : vector<4x34xf32> to vector<4x32xf32>
    %cst_171 = arith.constant dense<0.000000e+00> : vector<8x32xf32>
    %230 = tpu.matmul %228, %229, %cst_171 {dimension_numbers = #tpu.dot_dimension_numbers<[1], [0], [0], [1], [0, 0, 1, 1], [], []>} : vector<8x4xf32>, vector<4x32xf32>, vector<8x32xf32> -> vector<8x32xf32>
    %231 = arith.addf %226, %230 : vector<8x32xf32>
    %c2_172 = arith.constant 2 : index
    %c0_173 = arith.constant 0 : index
    %c0_174 = arith.constant 0 : index
    %232 = vector.load %arg3[%c2_172, %c0_173, %c0_174] : memref<9x8x4xf32, #tpu.memory_space<vmem>>, vector<1x8x4xf32>
    %233 = vector.shape_cast %232 : vector<1x8x4xf32> to vector<8x4xf32>
    %234 = vector.extract_strided_slice %221 {offsets = [0, 2], sizes = [4, 32], strides = [1, 1]} : vector<4x34xf32> to vector<4x32xf32>
    %cst_175 = arith.constant dense<0.000000e+00> : vector<8x32xf32>
    %235 = tpu.matmul %233, %234, %cst_175 {dimension_numbers = #tpu.dot_dimension_numbers<[1], [0], [0], [1], [0, 0, 1, 1], [], []>} : vector<8x4xf32>, vector<4x32xf32>, vector<8x32xf32> -> vector<8x32xf32>
    %236 = arith.addf %231, %235 : vector<8x32xf32>
    %c3_i32_176 = arith.constant 3 : i32
    %237 = arith.addi %0, %c3_i32_176 : i32
    %c1_i32_177 = arith.constant 1 : i32
    %238 = arith.addi %237, %c1_i32_177 : i32
    %c4_i32_178 = arith.constant 4 : i32
    %239 = arith.muli %238, %c4_i32_178 : i32
    %c0_179 = arith.constant 0 : index
    %240 = arith.index_cast %239 : i32 to index
    %c0_180 = arith.constant 0 : index
    %241 = vector.load %arg2[%c0_179, %240, %c0_180] : memref<1x136x34xf32, #tpu.memory_space<vmem>>, vector<1x4x34xf32>
    %242 = vector.shape_cast %241 : vector<1x4x34xf32> to vector<4x34xf32>
    %c3_181 = arith.constant 3 : index
    %c0_182 = arith.constant 0 : index
    %c0_183 = arith.constant 0 : index
    %243 = vector.load %arg3[%c3_181, %c0_182, %c0_183] : memref<9x8x4xf32, #tpu.memory_space<vmem>>, vector<1x8x4xf32>
    %244 = vector.shape_cast %243 : vector<1x8x4xf32> to vector<8x4xf32>
    %245 = vector.extract_strided_slice %242 {offsets = [0, 0], sizes = [4, 32], strides = [1, 1]} : vector<4x34xf32> to vector<4x32xf32>
    %cst_184 = arith.constant dense<0.000000e+00> : vector<8x32xf32>
    %246 = tpu.matmul %244, %245, %cst_184 {dimension_numbers = #tpu.dot_dimension_numbers<[1], [0], [0], [1], [0, 0, 1, 1], [], []>} : vector<8x4xf32>, vector<4x32xf32>, vector<8x32xf32> -> vector<8x32xf32>
    %247 = arith.addf %236, %246 : vector<8x32xf32>
    %c4_185 = arith.constant 4 : index
    %c0_186 = arith.constant 0 : index
    %c0_187 = arith.constant 0 : index
    %248 = vector.load %arg3[%c4_185, %c0_186, %c0_187] : memref<9x8x4xf32, #tpu.memory_space<vmem>>, vector<1x8x4xf32>
    %249 = vector.shape_cast %248 : vector<1x8x4xf32> to vector<8x4xf32>
    %250 = vector.extract_strided_slice %242 {offsets = [0, 1], sizes = [4, 32], strides = [1, 1]} : vector<4x34xf32> to vector<4x32xf32>
    %cst_188 = arith.constant dense<0.000000e+00> : vector<8x32xf32>
    %251 = tpu.matmul %249, %250, %cst_188 {dimension_numbers = #tpu.dot_dimension_numbers<[1], [0], [0], [1], [0, 0, 1, 1], [], []>} : vector<8x4xf32>, vector<4x32xf32>, vector<8x32xf32> -> vector<8x32xf32>
    %252 = arith.addf %247, %251 : vector<8x32xf32>
    %c5_189 = arith.constant 5 : index
    %c0_190 = arith.constant 0 : index
    %c0_191 = arith.constant 0 : index
    %253 = vector.load %arg3[%c5_189, %c0_190, %c0_191] : memref<9x8x4xf32, #tpu.memory_space<vmem>>, vector<1x8x4xf32>
    %254 = vector.shape_cast %253 : vector<1x8x4xf32> to vector<8x4xf32>
    %255 = vector.extract_strided_slice %242 {offsets = [0, 2], sizes = [4, 32], strides = [1, 1]} : vector<4x34xf32> to vector<4x32xf32>
    %cst_192 = arith.constant dense<0.000000e+00> : vector<8x32xf32>
    %256 = tpu.matmul %254, %255, %cst_192 {dimension_numbers = #tpu.dot_dimension_numbers<[1], [0], [0], [1], [0, 0, 1, 1], [], []>} : vector<8x4xf32>, vector<4x32xf32>, vector<8x32xf32> -> vector<8x32xf32>
    %257 = arith.addf %252, %256 : vector<8x32xf32>
    %c3_i32_193 = arith.constant 3 : i32
    %258 = arith.addi %0, %c3_i32_193 : i32
    %c2_i32_194 = arith.constant 2 : i32
    %259 = arith.addi %258, %c2_i32_194 : i32
    %c4_i32_195 = arith.constant 4 : i32
    %260 = arith.muli %259, %c4_i32_195 : i32
    %c0_196 = arith.constant 0 : index
    %261 = arith.index_cast %260 : i32 to index
    %c0_197 = arith.constant 0 : index
    %262 = vector.load %arg2[%c0_196, %261, %c0_197] : memref<1x136x34xf32, #tpu.memory_space<vmem>>, vector<1x4x34xf32>
    %263 = vector.shape_cast %262 : vector<1x4x34xf32> to vector<4x34xf32>
    %c6_198 = arith.constant 6 : index
    %c0_199 = arith.constant 0 : index
    %c0_200 = arith.constant 0 : index
    %264 = vector.load %arg3[%c6_198, %c0_199, %c0_200] : memref<9x8x4xf32, #tpu.memory_space<vmem>>, vector<1x8x4xf32>
    %265 = vector.shape_cast %264 : vector<1x8x4xf32> to vector<8x4xf32>
    %266 = vector.extract_strided_slice %263 {offsets = [0, 0], sizes = [4, 32], strides = [1, 1]} : vector<4x34xf32> to vector<4x32xf32>
    %cst_201 = arith.constant dense<0.000000e+00> : vector<8x32xf32>
    %267 = tpu.matmul %265, %266, %cst_201 {dimension_numbers = #tpu.dot_dimension_numbers<[1], [0], [0], [1], [0, 0, 1, 1], [], []>} : vector<8x4xf32>, vector<4x32xf32>, vector<8x32xf32> -> vector<8x32xf32>
    %268 = arith.addf %257, %267 : vector<8x32xf32>
    %c7_202 = arith.constant 7 : index
    %c0_203 = arith.constant 0 : index
    %c0_204 = arith.constant 0 : index
    %269 = vector.load %arg3[%c7_202, %c0_203, %c0_204] : memref<9x8x4xf32, #tpu.memory_space<vmem>>, vector<1x8x4xf32>
    %270 = vector.shape_cast %269 : vector<1x8x4xf32> to vector<8x4xf32>
    %271 = vector.extract_strided_slice %263 {offsets = [0, 1], sizes = [4, 32], strides = [1, 1]} : vector<4x34xf32> to vector<4x32xf32>
    %cst_205 = arith.constant dense<0.000000e+00> : vector<8x32xf32>
    %272 = tpu.matmul %270, %271, %cst_205 {dimension_numbers = #tpu.dot_dimension_numbers<[1], [0], [0], [1], [0, 0, 1, 1], [], []>} : vector<8x4xf32>, vector<4x32xf32>, vector<8x32xf32> -> vector<8x32xf32>
    %273 = arith.addf %268, %272 : vector<8x32xf32>
    %c8_206 = arith.constant 8 : index
    %c0_207 = arith.constant 0 : index
    %c0_208 = arith.constant 0 : index
    %274 = vector.load %arg3[%c8_206, %c0_207, %c0_208] : memref<9x8x4xf32, #tpu.memory_space<vmem>>, vector<1x8x4xf32>
    %275 = vector.shape_cast %274 : vector<1x8x4xf32> to vector<8x4xf32>
    %276 = vector.extract_strided_slice %263 {offsets = [0, 2], sizes = [4, 32], strides = [1, 1]} : vector<4x34xf32> to vector<4x32xf32>
    %cst_209 = arith.constant dense<0.000000e+00> : vector<8x32xf32>
    %277 = tpu.matmul %275, %276, %cst_209 {dimension_numbers = #tpu.dot_dimension_numbers<[1], [0], [0], [1], [0, 0, 1, 1], [], []>} : vector<8x4xf32>, vector<4x32xf32>, vector<8x32xf32> -> vector<8x32xf32>
    %278 = arith.addf %273, %277 : vector<8x32xf32>
    %279 = vector.broadcast %1 : vector<8x1xf32> to vector<8x32xf32>
    %280 = arith.addf %278, %279 : vector<8x32xf32>
    %cst_210 = arith.constant 0.000000e+00 : f32
    %281 = vector.broadcast %cst_210 : f32 to vector<8x32xf32>
    %282 = arith.maximumf %280, %281 : vector<8x32xf32>
    %c0_211 = arith.constant 0 : index
    %c3_212 = arith.constant 3 : index
    %c0_213 = arith.constant 0 : index
    %c0_214 = arith.constant 0 : index
    %283 = vector.load %arg5[%c0_211, %c3_212, %c0_213, %c0_214] : memref<1x8x8x32xf32, #tpu.memory_space<vmem>>, vector<1x1x8x32xf32>
    %284 = vector.shape_cast %283 : vector<1x1x8x32xf32> to vector<8x32xf32>
    %285 = vector.shape_cast %282 : vector<8x32xf32> to vector<1x1x8x32xf32>
    tpu.vector_store %arg5[%c0_211, %c3_212, %c0_213, %c0_214], %285 {strides = array<i32>} : memref<1x8x8x32xf32, #tpu.memory_space<vmem>>, vector<1x1x8x32xf32>,
    %cst_215 = arith.constant 0.000000e+00 : f32
    %286 = vector.broadcast %cst_215 : f32 to vector<8x32xf32>
    %c4_i32_216 = arith.constant 4 : i32
    %287 = arith.addi %0, %c4_i32_216 : i32
    %c0_i32_217 = arith.constant 0 : i32
    %288 = arith.addi %287, %c0_i32_217 : i32
    %c4_i32_218 = arith.constant 4 : i32
    %289 = arith.muli %288, %c4_i32_218 : i32
    %c0_219 = arith.constant 0 : index
    %290 = arith.index_cast %289 : i32 to index
    %c0_220 = arith.constant 0 : index
    %291 = vector.load %arg2[%c0_219, %290, %c0_220] : memref<1x136x34xf32, #tpu.memory_space<vmem>>, vector<1x4x34xf32>
    %292 = vector.shape_cast %291 : vector<1x4x34xf32> to vector<4x34xf32>
    %c0_221 = arith.constant 0 : index
    %c0_222 = arith.constant 0 : index
    %c0_223 = arith.constant 0 : index
    %293 = vector.load %arg3[%c0_221, %c0_222, %c0_223] : memref<9x8x4xf32, #tpu.memory_space<vmem>>, vector<1x8x4xf32>
    %294 = vector.shape_cast %293 : vector<1x8x4xf32> to vector<8x4xf32>
    %295 = vector.extract_strided_slice %292 {offsets = [0, 0], sizes = [4, 32], strides = [1, 1]} : vector<4x34xf32> to vector<4x32xf32>
    %cst_224 = arith.constant dense<0.000000e+00> : vector<8x32xf32>
    %296 = tpu.matmul %294, %295, %cst_224 {dimension_numbers = #tpu.dot_dimension_numbers<[1], [0], [0], [1], [0, 0, 1, 1], [], []>} : vector<8x4xf32>, vector<4x32xf32>, vector<8x32xf32> -> vector<8x32xf32>
    %297 = arith.addf %286, %296 : vector<8x32xf32>
    %c1_225 = arith.constant 1 : index
    %c0_226 = arith.constant 0 : index
    %c0_227 = arith.constant 0 : index
    %298 = vector.load %arg3[%c1_225, %c0_226, %c0_227] : memref<9x8x4xf32, #tpu.memory_space<vmem>>, vector<1x8x4xf32>
    %299 = vector.shape_cast %298 : vector<1x8x4xf32> to vector<8x4xf32>
    %300 = vector.extract_strided_slice %292 {offsets = [0, 1], sizes = [4, 32], strides = [1, 1]} : vector<4x34xf32> to vector<4x32xf32>
    %cst_228 = arith.constant dense<0.000000e+00> : vector<8x32xf32>
    %301 = tpu.matmul %299, %300, %cst_228 {dimension_numbers = #tpu.dot_dimension_numbers<[1], [0], [0], [1], [0, 0, 1, 1], [], []>} : vector<8x4xf32>, vector<4x32xf32>, vector<8x32xf32> -> vector<8x32xf32>
    %302 = arith.addf %297, %301 : vector<8x32xf32>
    %c2_229 = arith.constant 2 : index
    %c0_230 = arith.constant 0 : index
    %c0_231 = arith.constant 0 : index
    %303 = vector.load %arg3[%c2_229, %c0_230, %c0_231] : memref<9x8x4xf32, #tpu.memory_space<vmem>>, vector<1x8x4xf32>
    %304 = vector.shape_cast %303 : vector<1x8x4xf32> to vector<8x4xf32>
    %305 = vector.extract_strided_slice %292 {offsets = [0, 2], sizes = [4, 32], strides = [1, 1]} : vector<4x34xf32> to vector<4x32xf32>
    %cst_232 = arith.constant dense<0.000000e+00> : vector<8x32xf32>
    %306 = tpu.matmul %304, %305, %cst_232 {dimension_numbers = #tpu.dot_dimension_numbers<[1], [0], [0], [1], [0, 0, 1, 1], [], []>} : vector<8x4xf32>, vector<4x32xf32>, vector<8x32xf32> -> vector<8x32xf32>
    %307 = arith.addf %302, %306 : vector<8x32xf32>
    %c4_i32_233 = arith.constant 4 : i32
    %308 = arith.addi %0, %c4_i32_233 : i32
    %c1_i32_234 = arith.constant 1 : i32
    %309 = arith.addi %308, %c1_i32_234 : i32
    %c4_i32_235 = arith.constant 4 : i32
    %310 = arith.muli %309, %c4_i32_235 : i32
    %c0_236 = arith.constant 0 : index
    %311 = arith.index_cast %310 : i32 to index
    %c0_237 = arith.constant 0 : index
    %312 = vector.load %arg2[%c0_236, %311, %c0_237] : memref<1x136x34xf32, #tpu.memory_space<vmem>>, vector<1x4x34xf32>
    %313 = vector.shape_cast %312 : vector<1x4x34xf32> to vector<4x34xf32>
    %c3_238 = arith.constant 3 : index
    %c0_239 = arith.constant 0 : index
    %c0_240 = arith.constant 0 : index
    %314 = vector.load %arg3[%c3_238, %c0_239, %c0_240] : memref<9x8x4xf32, #tpu.memory_space<vmem>>, vector<1x8x4xf32>
    %315 = vector.shape_cast %314 : vector<1x8x4xf32> to vector<8x4xf32>
    %316 = vector.extract_strided_slice %313 {offsets = [0, 0], sizes = [4, 32], strides = [1, 1]} : vector<4x34xf32> to vector<4x32xf32>
    %cst_241 = arith.constant dense<0.000000e+00> : vector<8x32xf32>
    %317 = tpu.matmul %315, %316, %cst_241 {dimension_numbers = #tpu.dot_dimension_numbers<[1], [0], [0], [1], [0, 0, 1, 1], [], []>} : vector<8x4xf32>, vector<4x32xf32>, vector<8x32xf32> -> vector<8x32xf32>
    %318 = arith.addf %307, %317 : vector<8x32xf32>
    %c4_242 = arith.constant 4 : index
    %c0_243 = arith.constant 0 : index
    %c0_244 = arith.constant 0 : index
    %319 = vector.load %arg3[%c4_242, %c0_243, %c0_244] : memref<9x8x4xf32, #tpu.memory_space<vmem>>, vector<1x8x4xf32>
    %320 = vector.shape_cast %319 : vector<1x8x4xf32> to vector<8x4xf32>
    %321 = vector.extract_strided_slice %313 {offsets = [0, 1], sizes = [4, 32], strides = [1, 1]} : vector<4x34xf32> to vector<4x32xf32>
    %cst_245 = arith.constant dense<0.000000e+00> : vector<8x32xf32>
    %322 = tpu.matmul %320, %321, %cst_245 {dimension_numbers = #tpu.dot_dimension_numbers<[1], [0], [0], [1], [0, 0, 1, 1], [], []>} : vector<8x4xf32>, vector<4x32xf32>, vector<8x32xf32> -> vector<8x32xf32>
    %323 = arith.addf %318, %322 : vector<8x32xf32>
    %c5_246 = arith.constant 5 : index
    %c0_247 = arith.constant 0 : index
    %c0_248 = arith.constant 0 : index
    %324 = vector.load %arg3[%c5_246, %c0_247, %c0_248] : memref<9x8x4xf32, #tpu.memory_space<vmem>>, vector<1x8x4xf32>
    %325 = vector.shape_cast %324 : vector<1x8x4xf32> to vector<8x4xf32>
    %326 = vector.extract_strided_slice %313 {offsets = [0, 2], sizes = [4, 32], strides = [1, 1]} : vector<4x34xf32> to vector<4x32xf32>
    %cst_249 = arith.constant dense<0.000000e+00> : vector<8x32xf32>
    %327 = tpu.matmul %325, %326, %cst_249 {dimension_numbers = #tpu.dot_dimension_numbers<[1], [0], [0], [1], [0, 0, 1, 1], [], []>} : vector<8x4xf32>, vector<4x32xf32>, vector<8x32xf32> -> vector<8x32xf32>
    %328 = arith.addf %323, %327 : vector<8x32xf32>
    %c4_i32_250 = arith.constant 4 : i32
    %329 = arith.addi %0, %c4_i32_250 : i32
    %c2_i32_251 = arith.constant 2 : i32
    %330 = arith.addi %329, %c2_i32_251 : i32
    %c4_i32_252 = arith.constant 4 : i32
    %331 = arith.muli %330, %c4_i32_252 : i32
    %c0_253 = arith.constant 0 : index
    %332 = arith.index_cast %331 : i32 to index
    %c0_254 = arith.constant 0 : index
    %333 = vector.load %arg2[%c0_253, %332, %c0_254] : memref<1x136x34xf32, #tpu.memory_space<vmem>>, vector<1x4x34xf32>
    %334 = vector.shape_cast %333 : vector<1x4x34xf32> to vector<4x34xf32>
    %c6_255 = arith.constant 6 : index
    %c0_256 = arith.constant 0 : index
    %c0_257 = arith.constant 0 : index
    %335 = vector.load %arg3[%c6_255, %c0_256, %c0_257] : memref<9x8x4xf32, #tpu.memory_space<vmem>>, vector<1x8x4xf32>
    %336 = vector.shape_cast %335 : vector<1x8x4xf32> to vector<8x4xf32>
    %337 = vector.extract_strided_slice %334 {offsets = [0, 0], sizes = [4, 32], strides = [1, 1]} : vector<4x34xf32> to vector<4x32xf32>
    %cst_258 = arith.constant dense<0.000000e+00> : vector<8x32xf32>
    %338 = tpu.matmul %336, %337, %cst_258 {dimension_numbers = #tpu.dot_dimension_numbers<[1], [0], [0], [1], [0, 0, 1, 1], [], []>} : vector<8x4xf32>, vector<4x32xf32>, vector<8x32xf32> -> vector<8x32xf32>
    %339 = arith.addf %328, %338 : vector<8x32xf32>
    %c7_259 = arith.constant 7 : index
    %c0_260 = arith.constant 0 : index
    %c0_261 = arith.constant 0 : index
    %340 = vector.load %arg3[%c7_259, %c0_260, %c0_261] : memref<9x8x4xf32, #tpu.memory_space<vmem>>, vector<1x8x4xf32>
    %341 = vector.shape_cast %340 : vector<1x8x4xf32> to vector<8x4xf32>
    %342 = vector.extract_strided_slice %334 {offsets = [0, 1], sizes = [4, 32], strides = [1, 1]} : vector<4x34xf32> to vector<4x32xf32>
    %cst_262 = arith.constant dense<0.000000e+00> : vector<8x32xf32>
    %343 = tpu.matmul %341, %342, %cst_262 {dimension_numbers = #tpu.dot_dimension_numbers<[1], [0], [0], [1], [0, 0, 1, 1], [], []>} : vector<8x4xf32>, vector<4x32xf32>, vector<8x32xf32> -> vector<8x32xf32>
    %344 = arith.addf %339, %343 : vector<8x32xf32>
    %c8_263 = arith.constant 8 : index
    %c0_264 = arith.constant 0 : index
    %c0_265 = arith.constant 0 : index
    %345 = vector.load %arg3[%c8_263, %c0_264, %c0_265] : memref<9x8x4xf32, #tpu.memory_space<vmem>>, vector<1x8x4xf32>
    %346 = vector.shape_cast %345 : vector<1x8x4xf32> to vector<8x4xf32>
    %347 = vector.extract_strided_slice %334 {offsets = [0, 2], sizes = [4, 32], strides = [1, 1]} : vector<4x34xf32> to vector<4x32xf32>
    %cst_266 = arith.constant dense<0.000000e+00> : vector<8x32xf32>
    %348 = tpu.matmul %346, %347, %cst_266 {dimension_numbers = #tpu.dot_dimension_numbers<[1], [0], [0], [1], [0, 0, 1, 1], [], []>} : vector<8x4xf32>, vector<4x32xf32>, vector<8x32xf32> -> vector<8x32xf32>
    %349 = arith.addf %344, %348 : vector<8x32xf32>
    %350 = vector.broadcast %1 : vector<8x1xf32> to vector<8x32xf32>
    %351 = arith.addf %349, %350 : vector<8x32xf32>
    %cst_267 = arith.constant 0.000000e+00 : f32
    %352 = vector.broadcast %cst_267 : f32 to vector<8x32xf32>
    %353 = arith.maximumf %351, %352 : vector<8x32xf32>
    %c0_268 = arith.constant 0 : index
    %c4_269 = arith.constant 4 : index
    %c0_270 = arith.constant 0 : index
    %c0_271 = arith.constant 0 : index
    %354 = vector.load %arg5[%c0_268, %c4_269, %c0_270, %c0_271] : memref<1x8x8x32xf32, #tpu.memory_space<vmem>>, vector<1x1x8x32xf32>
    %355 = vector.shape_cast %354 : vector<1x1x8x32xf32> to vector<8x32xf32>
    %356 = vector.shape_cast %353 : vector<8x32xf32> to vector<1x1x8x32xf32>
    tpu.vector_store %arg5[%c0_268, %c4_269, %c0_270, %c0_271], %356 {strides = array<i32>} : memref<1x8x8x32xf32, #tpu.memory_space<vmem>>, vector<1x1x8x32xf32>,
    %cst_272 = arith.constant 0.000000e+00 : f32
    %357 = vector.broadcast %cst_272 : f32 to vector<8x32xf32>
    %c5_i32 = arith.constant 5 : i32
    %358 = arith.addi %0, %c5_i32 : i32
    %c0_i32_273 = arith.constant 0 : i32
    %359 = arith.addi %358, %c0_i32_273 : i32
    %c4_i32_274 = arith.constant 4 : i32
    %360 = arith.muli %359, %c4_i32_274 : i32
    %c0_275 = arith.constant 0 : index
    %361 = arith.index_cast %360 : i32 to index
    %c0_276 = arith.constant 0 : index
    %362 = vector.load %arg2[%c0_275, %361, %c0_276] : memref<1x136x34xf32, #tpu.memory_space<vmem>>, vector<1x4x34xf32>
    %363 = vector.shape_cast %362 : vector<1x4x34xf32> to vector<4x34xf32>
    %c0_277 = arith.constant 0 : index
    %c0_278 = arith.constant 0 : index
    %c0_279 = arith.constant 0 : index
    %364 = vector.load %arg3[%c0_277, %c0_278, %c0_279] : memref<9x8x4xf32, #tpu.memory_space<vmem>>, vector<1x8x4xf32>
    %365 = vector.shape_cast %364 : vector<1x8x4xf32> to vector<8x4xf32>
    %366 = vector.extract_strided_slice %363 {offsets = [0, 0], sizes = [4, 32], strides = [1, 1]} : vector<4x34xf32> to vector<4x32xf32>
    %cst_280 = arith.constant dense<0.000000e+00> : vector<8x32xf32>
    %367 = tpu.matmul %365, %366, %cst_280 {dimension_numbers = #tpu.dot_dimension_numbers<[1], [0], [0], [1], [0, 0, 1, 1], [], []>} : vector<8x4xf32>, vector<4x32xf32>, vector<8x32xf32> -> vector<8x32xf32>
    %368 = arith.addf %357, %367 : vector<8x32xf32>
    %c1_281 = arith.constant 1 : index
    %c0_282 = arith.constant 0 : index
    %c0_283 = arith.constant 0 : index
    %369 = vector.load %arg3[%c1_281, %c0_282, %c0_283] : memref<9x8x4xf32, #tpu.memory_space<vmem>>, vector<1x8x4xf32>
    %370 = vector.shape_cast %369 : vector<1x8x4xf32> to vector<8x4xf32>
    %371 = vector.extract_strided_slice %363 {offsets = [0, 1], sizes = [4, 32], strides = [1, 1]} : vector<4x34xf32> to vector<4x32xf32>
    %cst_284 = arith.constant dense<0.000000e+00> : vector<8x32xf32>
    %372 = tpu.matmul %370, %371, %cst_284 {dimension_numbers = #tpu.dot_dimension_numbers<[1], [0], [0], [1], [0, 0, 1, 1], [], []>} : vector<8x4xf32>, vector<4x32xf32>, vector<8x32xf32> -> vector<8x32xf32>
    %373 = arith.addf %368, %372 : vector<8x32xf32>
    %c2_285 = arith.constant 2 : index
    %c0_286 = arith.constant 0 : index
    %c0_287 = arith.constant 0 : index
    %374 = vector.load %arg3[%c2_285, %c0_286, %c0_287] : memref<9x8x4xf32, #tpu.memory_space<vmem>>, vector<1x8x4xf32>
    %375 = vector.shape_cast %374 : vector<1x8x4xf32> to vector<8x4xf32>
    %376 = vector.extract_strided_slice %363 {offsets = [0, 2], sizes = [4, 32], strides = [1, 1]} : vector<4x34xf32> to vector<4x32xf32>
    %cst_288 = arith.constant dense<0.000000e+00> : vector<8x32xf32>
    %377 = tpu.matmul %375, %376, %cst_288 {dimension_numbers = #tpu.dot_dimension_numbers<[1], [0], [0], [1], [0, 0, 1, 1], [], []>} : vector<8x4xf32>, vector<4x32xf32>, vector<8x32xf32> -> vector<8x32xf32>
    %378 = arith.addf %373, %377 : vector<8x32xf32>
    %c5_i32_289 = arith.constant 5 : i32
    %379 = arith.addi %0, %c5_i32_289 : i32
    %c1_i32_290 = arith.constant 1 : i32
    %380 = arith.addi %379, %c1_i32_290 : i32
    %c4_i32_291 = arith.constant 4 : i32
    %381 = arith.muli %380, %c4_i32_291 : i32
    %c0_292 = arith.constant 0 : index
    %382 = arith.index_cast %381 : i32 to index
    %c0_293 = arith.constant 0 : index
    %383 = vector.load %arg2[%c0_292, %382, %c0_293] : memref<1x136x34xf32, #tpu.memory_space<vmem>>, vector<1x4x34xf32>
    %384 = vector.shape_cast %383 : vector<1x4x34xf32> to vector<4x34xf32>
    %c3_294 = arith.constant 3 : index
    %c0_295 = arith.constant 0 : index
    %c0_296 = arith.constant 0 : index
    %385 = vector.load %arg3[%c3_294, %c0_295, %c0_296] : memref<9x8x4xf32, #tpu.memory_space<vmem>>, vector<1x8x4xf32>
    %386 = vector.shape_cast %385 : vector<1x8x4xf32> to vector<8x4xf32>
    %387 = vector.extract_strided_slice %384 {offsets = [0, 0], sizes = [4, 32], strides = [1, 1]} : vector<4x34xf32> to vector<4x32xf32>
    %cst_297 = arith.constant dense<0.000000e+00> : vector<8x32xf32>
    %388 = tpu.matmul %386, %387, %cst_297 {dimension_numbers = #tpu.dot_dimension_numbers<[1], [0], [0], [1], [0, 0, 1, 1], [], []>} : vector<8x4xf32>, vector<4x32xf32>, vector<8x32xf32> -> vector<8x32xf32>
    %389 = arith.addf %378, %388 : vector<8x32xf32>
    %c4_298 = arith.constant 4 : index
    %c0_299 = arith.constant 0 : index
    %c0_300 = arith.constant 0 : index
    %390 = vector.load %arg3[%c4_298, %c0_299, %c0_300] : memref<9x8x4xf32, #tpu.memory_space<vmem>>, vector<1x8x4xf32>
    %391 = vector.shape_cast %390 : vector<1x8x4xf32> to vector<8x4xf32>
    %392 = vector.extract_strided_slice %384 {offsets = [0, 1], sizes = [4, 32], strides = [1, 1]} : vector<4x34xf32> to vector<4x32xf32>
    %cst_301 = arith.constant dense<0.000000e+00> : vector<8x32xf32>
    %393 = tpu.matmul %391, %392, %cst_301 {dimension_numbers = #tpu.dot_dimension_numbers<[1], [0], [0], [1], [0, 0, 1, 1], [], []>} : vector<8x4xf32>, vector<4x32xf32>, vector<8x32xf32> -> vector<8x32xf32>
    %394 = arith.addf %389, %393 : vector<8x32xf32>
    %c5_302 = arith.constant 5 : index
    %c0_303 = arith.constant 0 : index
    %c0_304 = arith.constant 0 : index
    %395 = vector.load %arg3[%c5_302, %c0_303, %c0_304] : memref<9x8x4xf32, #tpu.memory_space<vmem>>, vector<1x8x4xf32>
    %396 = vector.shape_cast %395 : vector<1x8x4xf32> to vector<8x4xf32>
    %397 = vector.extract_strided_slice %384 {offsets = [0, 2], sizes = [4, 32], strides = [1, 1]} : vector<4x34xf32> to vector<4x32xf32>
    %cst_305 = arith.constant dense<0.000000e+00> : vector<8x32xf32>
    %398 = tpu.matmul %396, %397, %cst_305 {dimension_numbers = #tpu.dot_dimension_numbers<[1], [0], [0], [1], [0, 0, 1, 1], [], []>} : vector<8x4xf32>, vector<4x32xf32>, vector<8x32xf32> -> vector<8x32xf32>
    %399 = arith.addf %394, %398 : vector<8x32xf32>
    %c5_i32_306 = arith.constant 5 : i32
    %400 = arith.addi %0, %c5_i32_306 : i32
    %c2_i32_307 = arith.constant 2 : i32
    %401 = arith.addi %400, %c2_i32_307 : i32
    %c4_i32_308 = arith.constant 4 : i32
    %402 = arith.muli %401, %c4_i32_308 : i32
    %c0_309 = arith.constant 0 : index
    %403 = arith.index_cast %402 : i32 to index
    %c0_310 = arith.constant 0 : index
    %404 = vector.load %arg2[%c0_309, %403, %c0_310] : memref<1x136x34xf32, #tpu.memory_space<vmem>>, vector<1x4x34xf32>
    %405 = vector.shape_cast %404 : vector<1x4x34xf32> to vector<4x34xf32>
    %c6_311 = arith.constant 6 : index
    %c0_312 = arith.constant 0 : index
    %c0_313 = arith.constant 0 : index
    %406 = vector.load %arg3[%c6_311, %c0_312, %c0_313] : memref<9x8x4xf32, #tpu.memory_space<vmem>>, vector<1x8x4xf32>
    %407 = vector.shape_cast %406 : vector<1x8x4xf32> to vector<8x4xf32>
    %408 = vector.extract_strided_slice %405 {offsets = [0, 0], sizes = [4, 32], strides = [1, 1]} : vector<4x34xf32> to vector<4x32xf32>
    %cst_314 = arith.constant dense<0.000000e+00> : vector<8x32xf32>
    %409 = tpu.matmul %407, %408, %cst_314 {dimension_numbers = #tpu.dot_dimension_numbers<[1], [0], [0], [1], [0, 0, 1, 1], [], []>} : vector<8x4xf32>, vector<4x32xf32>, vector<8x32xf32> -> vector<8x32xf32>
    %410 = arith.addf %399, %409 : vector<8x32xf32>
    %c7_315 = arith.constant 7 : index
    %c0_316 = arith.constant 0 : index
    %c0_317 = arith.constant 0 : index
    %411 = vector.load %arg3[%c7_315, %c0_316, %c0_317] : memref<9x8x4xf32, #tpu.memory_space<vmem>>, vector<1x8x4xf32>
    %412 = vector.shape_cast %411 : vector<1x8x4xf32> to vector<8x4xf32>
    %413 = vector.extract_strided_slice %405 {offsets = [0, 1], sizes = [4, 32], strides = [1, 1]} : vector<4x34xf32> to vector<4x32xf32>
    %cst_318 = arith.constant dense<0.000000e+00> : vector<8x32xf32>
    %414 = tpu.matmul %412, %413, %cst_318 {dimension_numbers = #tpu.dot_dimension_numbers<[1], [0], [0], [1], [0, 0, 1, 1], [], []>} : vector<8x4xf32>, vector<4x32xf32>, vector<8x32xf32> -> vector<8x32xf32>
    %415 = arith.addf %410, %414 : vector<8x32xf32>
    %c8_319 = arith.constant 8 : index
    %c0_320 = arith.constant 0 : index
    %c0_321 = arith.constant 0 : index
    %416 = vector.load %arg3[%c8_319, %c0_320, %c0_321] : memref<9x8x4xf32, #tpu.memory_space<vmem>>, vector<1x8x4xf32>
    %417 = vector.shape_cast %416 : vector<1x8x4xf32> to vector<8x4xf32>
    %418 = vector.extract_strided_slice %405 {offsets = [0, 2], sizes = [4, 32], strides = [1, 1]} : vector<4x34xf32> to vector<4x32xf32>
    %cst_322 = arith.constant dense<0.000000e+00> : vector<8x32xf32>
    %419 = tpu.matmul %417, %418, %cst_322 {dimension_numbers = #tpu.dot_dimension_numbers<[1], [0], [0], [1], [0, 0, 1, 1], [], []>} : vector<8x4xf32>, vector<4x32xf32>, vector<8x32xf32> -> vector<8x32xf32>
    %420 = arith.addf %415, %419 : vector<8x32xf32>
    %421 = vector.broadcast %1 : vector<8x1xf32> to vector<8x32xf32>
    %422 = arith.addf %420, %421 : vector<8x32xf32>
    %cst_323 = arith.constant 0.000000e+00 : f32
    %423 = vector.broadcast %cst_323 : f32 to vector<8x32xf32>
    %424 = arith.maximumf %422, %423 : vector<8x32xf32>
    %c0_324 = arith.constant 0 : index
    %c5_325 = arith.constant 5 : index
    %c0_326 = arith.constant 0 : index
    %c0_327 = arith.constant 0 : index
    %425 = vector.load %arg5[%c0_324, %c5_325, %c0_326, %c0_327] : memref<1x8x8x32xf32, #tpu.memory_space<vmem>>, vector<1x1x8x32xf32>
    %426 = vector.shape_cast %425 : vector<1x1x8x32xf32> to vector<8x32xf32>
    %427 = vector.shape_cast %424 : vector<8x32xf32> to vector<1x1x8x32xf32>
    tpu.vector_store %arg5[%c0_324, %c5_325, %c0_326, %c0_327], %427 {strides = array<i32>} : memref<1x8x8x32xf32, #tpu.memory_space<vmem>>, vector<1x1x8x32xf32>,
    %cst_328 = arith.constant 0.000000e+00 : f32
    %428 = vector.broadcast %cst_328 : f32 to vector<8x32xf32>
    %c6_i32 = arith.constant 6 : i32
    %429 = arith.addi %0, %c6_i32 : i32
    %c0_i32_329 = arith.constant 0 : i32
    %430 = arith.addi %429, %c0_i32_329 : i32
    %c4_i32_330 = arith.constant 4 : i32
    %431 = arith.muli %430, %c4_i32_330 : i32
    %c0_331 = arith.constant 0 : index
    %432 = arith.index_cast %431 : i32 to index
    %c0_332 = arith.constant 0 : index
    %433 = vector.load %arg2[%c0_331, %432, %c0_332] : memref<1x136x34xf32, #tpu.memory_space<vmem>>, vector<1x4x34xf32>
    %434 = vector.shape_cast %433 : vector<1x4x34xf32> to vector<4x34xf32>
    %c0_333 = arith.constant 0 : index
    %c0_334 = arith.constant 0 : index
    %c0_335 = arith.constant 0 : index
    %435 = vector.load %arg3[%c0_333, %c0_334, %c0_335] : memref<9x8x4xf32, #tpu.memory_space<vmem>>, vector<1x8x4xf32>
    %436 = vector.shape_cast %435 : vector<1x8x4xf32> to vector<8x4xf32>
    %437 = vector.extract_strided_slice %434 {offsets = [0, 0], sizes = [4, 32], strides = [1, 1]} : vector<4x34xf32> to vector<4x32xf32>
    %cst_336 = arith.constant dense<0.000000e+00> : vector<8x32xf32>
    %438 = tpu.matmul %436, %437, %cst_336 {dimension_numbers = #tpu.dot_dimension_numbers<[1], [0], [0], [1], [0, 0, 1, 1], [], []>} : vector<8x4xf32>, vector<4x32xf32>, vector<8x32xf32> -> vector<8x32xf32>
    %439 = arith.addf %428, %438 : vector<8x32xf32>
    %c1_337 = arith.constant 1 : index
    %c0_338 = arith.constant 0 : index
    %c0_339 = arith.constant 0 : index
    %440 = vector.load %arg3[%c1_337, %c0_338, %c0_339] : memref<9x8x4xf32, #tpu.memory_space<vmem>>, vector<1x8x4xf32>
    %441 = vector.shape_cast %440 : vector<1x8x4xf32> to vector<8x4xf32>
    %442 = vector.extract_strided_slice %434 {offsets = [0, 1], sizes = [4, 32], strides = [1, 1]} : vector<4x34xf32> to vector<4x32xf32>
    %cst_340 = arith.constant dense<0.000000e+00> : vector<8x32xf32>
    %443 = tpu.matmul %441, %442, %cst_340 {dimension_numbers = #tpu.dot_dimension_numbers<[1], [0], [0], [1], [0, 0, 1, 1], [], []>} : vector<8x4xf32>, vector<4x32xf32>, vector<8x32xf32> -> vector<8x32xf32>
    %444 = arith.addf %439, %443 : vector<8x32xf32>
    %c2_341 = arith.constant 2 : index
    %c0_342 = arith.constant 0 : index
    %c0_343 = arith.constant 0 : index
    %445 = vector.load %arg3[%c2_341, %c0_342, %c0_343] : memref<9x8x4xf32, #tpu.memory_space<vmem>>, vector<1x8x4xf32>
    %446 = vector.shape_cast %445 : vector<1x8x4xf32> to vector<8x4xf32>
    %447 = vector.extract_strided_slice %434 {offsets = [0, 2], sizes = [4, 32], strides = [1, 1]} : vector<4x34xf32> to vector<4x32xf32>
    %cst_344 = arith.constant dense<0.000000e+00> : vector<8x32xf32>
    %448 = tpu.matmul %446, %447, %cst_344 {dimension_numbers = #tpu.dot_dimension_numbers<[1], [0], [0], [1], [0, 0, 1, 1], [], []>} : vector<8x4xf32>, vector<4x32xf32>, vector<8x32xf32> -> vector<8x32xf32>
    %449 = arith.addf %444, %448 : vector<8x32xf32>
    %c6_i32_345 = arith.constant 6 : i32
    %450 = arith.addi %0, %c6_i32_345 : i32
    %c1_i32_346 = arith.constant 1 : i32
    %451 = arith.addi %450, %c1_i32_346 : i32
    %c4_i32_347 = arith.constant 4 : i32
    %452 = arith.muli %451, %c4_i32_347 : i32
    %c0_348 = arith.constant 0 : index
    %453 = arith.index_cast %452 : i32 to index
    %c0_349 = arith.constant 0 : index
    %454 = vector.load %arg2[%c0_348, %453, %c0_349] : memref<1x136x34xf32, #tpu.memory_space<vmem>>, vector<1x4x34xf32>
    %455 = vector.shape_cast %454 : vector<1x4x34xf32> to vector<4x34xf32>
    %c3_350 = arith.constant 3 : index
    %c0_351 = arith.constant 0 : index
    %c0_352 = arith.constant 0 : index
    %456 = vector.load %arg3[%c3_350, %c0_351, %c0_352] : memref<9x8x4xf32, #tpu.memory_space<vmem>>, vector<1x8x4xf32>
    %457 = vector.shape_cast %456 : vector<1x8x4xf32> to vector<8x4xf32>
    %458 = vector.extract_strided_slice %455 {offsets = [0, 0], sizes = [4, 32], strides = [1, 1]} : vector<4x34xf32> to vector<4x32xf32>
    %cst_353 = arith.constant dense<0.000000e+00> : vector<8x32xf32>
    %459 = tpu.matmul %457, %458, %cst_353 {dimension_numbers = #tpu.dot_dimension_numbers<[1], [0], [0], [1], [0, 0, 1, 1], [], []>} : vector<8x4xf32>, vector<4x32xf32>, vector<8x32xf32> -> vector<8x32xf32>
    %460 = arith.addf %449, %459 : vector<8x32xf32>
    %c4_354 = arith.constant 4 : index
    %c0_355 = arith.constant 0 : index
    %c0_356 = arith.constant 0 : index
    %461 = vector.load %arg3[%c4_354, %c0_355, %c0_356] : memref<9x8x4xf32, #tpu.memory_space<vmem>>, vector<1x8x4xf32>
    %462 = vector.shape_cast %461 : vector<1x8x4xf32> to vector<8x4xf32>
    %463 = vector.extract_strided_slice %455 {offsets = [0, 1], sizes = [4, 32], strides = [1, 1]} : vector<4x34xf32> to vector<4x32xf32>
    %cst_357 = arith.constant dense<0.000000e+00> : vector<8x32xf32>
    %464 = tpu.matmul %462, %463, %cst_357 {dimension_numbers = #tpu.dot_dimension_numbers<[1], [0], [0], [1], [0, 0, 1, 1], [], []>} : vector<8x4xf32>, vector<4x32xf32>, vector<8x32xf32> -> vector<8x32xf32>
    %465 = arith.addf %460, %464 : vector<8x32xf32>
    %c5_358 = arith.constant 5 : index
    %c0_359 = arith.constant 0 : index
    %c0_360 = arith.constant 0 : index
    %466 = vector.load %arg3[%c5_358, %c0_359, %c0_360] : memref<9x8x4xf32, #tpu.memory_space<vmem>>, vector<1x8x4xf32>
    %467 = vector.shape_cast %466 : vector<1x8x4xf32> to vector<8x4xf32>
    %468 = vector.extract_strided_slice %455 {offsets = [0, 2], sizes = [4, 32], strides = [1, 1]} : vector<4x34xf32> to vector<4x32xf32>
    %cst_361 = arith.constant dense<0.000000e+00> : vector<8x32xf32>
    %469 = tpu.matmul %467, %468, %cst_361 {dimension_numbers = #tpu.dot_dimension_numbers<[1], [0], [0], [1], [0, 0, 1, 1], [], []>} : vector<8x4xf32>, vector<4x32xf32>, vector<8x32xf32> -> vector<8x32xf32>
    %470 = arith.addf %465, %469 : vector<8x32xf32>
    %c6_i32_362 = arith.constant 6 : i32
    %471 = arith.addi %0, %c6_i32_362 : i32
    %c2_i32_363 = arith.constant 2 : i32
    %472 = arith.addi %471, %c2_i32_363 : i32
    %c4_i32_364 = arith.constant 4 : i32
    %473 = arith.muli %472, %c4_i32_364 : i32
    %c0_365 = arith.constant 0 : index
    %474 = arith.index_cast %473 : i32 to index
    %c0_366 = arith.constant 0 : index
    %475 = vector.load %arg2[%c0_365, %474, %c0_366] : memref<1x136x34xf32, #tpu.memory_space<vmem>>, vector<1x4x34xf32>
    %476 = vector.shape_cast %475 : vector<1x4x34xf32> to vector<4x34xf32>
    %c6_367 = arith.constant 6 : index
    %c0_368 = arith.constant 0 : index
    %c0_369 = arith.constant 0 : index
    %477 = vector.load %arg3[%c6_367, %c0_368, %c0_369] : memref<9x8x4xf32, #tpu.memory_space<vmem>>, vector<1x8x4xf32>
    %478 = vector.shape_cast %477 : vector<1x8x4xf32> to vector<8x4xf32>
    %479 = vector.extract_strided_slice %476 {offsets = [0, 0], sizes = [4, 32], strides = [1, 1]} : vector<4x34xf32> to vector<4x32xf32>
    %cst_370 = arith.constant dense<0.000000e+00> : vector<8x32xf32>
    %480 = tpu.matmul %478, %479, %cst_370 {dimension_numbers = #tpu.dot_dimension_numbers<[1], [0], [0], [1], [0, 0, 1, 1], [], []>} : vector<8x4xf32>, vector<4x32xf32>, vector<8x32xf32> -> vector<8x32xf32>
    %481 = arith.addf %470, %480 : vector<8x32xf32>
    %c7_371 = arith.constant 7 : index
    %c0_372 = arith.constant 0 : index
    %c0_373 = arith.constant 0 : index
    %482 = vector.load %arg3[%c7_371, %c0_372, %c0_373] : memref<9x8x4xf32, #tpu.memory_space<vmem>>, vector<1x8x4xf32>
    %483 = vector.shape_cast %482 : vector<1x8x4xf32> to vector<8x4xf32>
    %484 = vector.extract_strided_slice %476 {offsets = [0, 1], sizes = [4, 32], strides = [1, 1]} : vector<4x34xf32> to vector<4x32xf32>
    %cst_374 = arith.constant dense<0.000000e+00> : vector<8x32xf32>
    %485 = tpu.matmul %483, %484, %cst_374 {dimension_numbers = #tpu.dot_dimension_numbers<[1], [0], [0], [1], [0, 0, 1, 1], [], []>} : vector<8x4xf32>, vector<4x32xf32>, vector<8x32xf32> -> vector<8x32xf32>
    %486 = arith.addf %481, %485 : vector<8x32xf32>
    %c8_375 = arith.constant 8 : index
    %c0_376 = arith.constant 0 : index
    %c0_377 = arith.constant 0 : index
    %487 = vector.load %arg3[%c8_375, %c0_376, %c0_377] : memref<9x8x4xf32, #tpu.memory_space<vmem>>, vector<1x8x4xf32>
    %488 = vector.shape_cast %487 : vector<1x8x4xf32> to vector<8x4xf32>
    %489 = vector.extract_strided_slice %476 {offsets = [0, 2], sizes = [4, 32], strides = [1, 1]} : vector<4x34xf32> to vector<4x32xf32>
    %cst_378 = arith.constant dense<0.000000e+00> : vector<8x32xf32>
    %490 = tpu.matmul %488, %489, %cst_378 {dimension_numbers = #tpu.dot_dimension_numbers<[1], [0], [0], [1], [0, 0, 1, 1], [], []>} : vector<8x4xf32>, vector<4x32xf32>, vector<8x32xf32> -> vector<8x32xf32>
    %491 = arith.addf %486, %490 : vector<8x32xf32>
    %492 = vector.broadcast %1 : vector<8x1xf32> to vector<8x32xf32>
    %493 = arith.addf %491, %492 : vector<8x32xf32>
    %cst_379 = arith.constant 0.000000e+00 : f32
    %494 = vector.broadcast %cst_379 : f32 to vector<8x32xf32>
    %495 = arith.maximumf %493, %494 : vector<8x32xf32>
    %c0_380 = arith.constant 0 : index
    %c6_381 = arith.constant 6 : index
    %c0_382 = arith.constant 0 : index
    %c0_383 = arith.constant 0 : index
    %496 = vector.load %arg5[%c0_380, %c6_381, %c0_382, %c0_383] : memref<1x8x8x32xf32, #tpu.memory_space<vmem>>, vector<1x1x8x32xf32>
    %497 = vector.shape_cast %496 : vector<1x1x8x32xf32> to vector<8x32xf32>
    %498 = vector.shape_cast %495 : vector<8x32xf32> to vector<1x1x8x32xf32>
    tpu.vector_store %arg5[%c0_380, %c6_381, %c0_382, %c0_383], %498 {strides = array<i32>} : memref<1x8x8x32xf32, #tpu.memory_space<vmem>>, vector<1x1x8x32xf32>,
    %cst_384 = arith.constant 0.000000e+00 : f32
    %499 = vector.broadcast %cst_384 : f32 to vector<8x32xf32>
    %c7_i32 = arith.constant 7 : i32
    %500 = arith.addi %0, %c7_i32 : i32
    %c0_i32_385 = arith.constant 0 : i32
    %501 = arith.addi %500, %c0_i32_385 : i32
    %c4_i32_386 = arith.constant 4 : i32
    %502 = arith.muli %501, %c4_i32_386 : i32
    %c0_387 = arith.constant 0 : index
    %503 = arith.index_cast %502 : i32 to index
    %c0_388 = arith.constant 0 : index
    %504 = vector.load %arg2[%c0_387, %503, %c0_388] : memref<1x136x34xf32, #tpu.memory_space<vmem>>, vector<1x4x34xf32>
    %505 = vector.shape_cast %504 : vector<1x4x34xf32> to vector<4x34xf32>
    %c0_389 = arith.constant 0 : index
    %c0_390 = arith.constant 0 : index
    %c0_391 = arith.constant 0 : index
    %506 = vector.load %arg3[%c0_389, %c0_390, %c0_391] : memref<9x8x4xf32, #tpu.memory_space<vmem>>, vector<1x8x4xf32>
    %507 = vector.shape_cast %506 : vector<1x8x4xf32> to vector<8x4xf32>
    %508 = vector.extract_strided_slice %505 {offsets = [0, 0], sizes = [4, 32], strides = [1, 1]} : vector<4x34xf32> to vector<4x32xf32>
    %cst_392 = arith.constant dense<0.000000e+00> : vector<8x32xf32>
    %509 = tpu.matmul %507, %508, %cst_392 {dimension_numbers = #tpu.dot_dimension_numbers<[1], [0], [0], [1], [0, 0, 1, 1], [], []>} : vector<8x4xf32>, vector<4x32xf32>, vector<8x32xf32> -> vector<8x32xf32>
    %510 = arith.addf %499, %509 : vector<8x32xf32>
    %c1_393 = arith.constant 1 : index
    %c0_394 = arith.constant 0 : index
    %c0_395 = arith.constant 0 : index
    %511 = vector.load %arg3[%c1_393, %c0_394, %c0_395] : memref<9x8x4xf32, #tpu.memory_space<vmem>>, vector<1x8x4xf32>
    %512 = vector.shape_cast %511 : vector<1x8x4xf32> to vector<8x4xf32>
    %513 = vector.extract_strided_slice %505 {offsets = [0, 1], sizes = [4, 32], strides = [1, 1]} : vector<4x34xf32> to vector<4x32xf32>
    %cst_396 = arith.constant dense<0.000000e+00> : vector<8x32xf32>
    %514 = tpu.matmul %512, %513, %cst_396 {dimension_numbers = #tpu.dot_dimension_numbers<[1], [0], [0], [1], [0, 0, 1, 1], [], []>} : vector<8x4xf32>, vector<4x32xf32>, vector<8x32xf32> -> vector<8x32xf32>
    %515 = arith.addf %510, %514 : vector<8x32xf32>
    %c2_397 = arith.constant 2 : index
    %c0_398 = arith.constant 0 : index
    %c0_399 = arith.constant 0 : index
    %516 = vector.load %arg3[%c2_397, %c0_398, %c0_399] : memref<9x8x4xf32, #tpu.memory_space<vmem>>, vector<1x8x4xf32>
    %517 = vector.shape_cast %516 : vector<1x8x4xf32> to vector<8x4xf32>
    %518 = vector.extract_strided_slice %505 {offsets = [0, 2], sizes = [4, 32], strides = [1, 1]} : vector<4x34xf32> to vector<4x32xf32>
    %cst_400 = arith.constant dense<0.000000e+00> : vector<8x32xf32>
    %519 = tpu.matmul %517, %518, %cst_400 {dimension_numbers = #tpu.dot_dimension_numbers<[1], [0], [0], [1], [0, 0, 1, 1], [], []>} : vector<8x4xf32>, vector<4x32xf32>, vector<8x32xf32> -> vector<8x32xf32>
    %520 = arith.addf %515, %519 : vector<8x32xf32>
    %c7_i32_401 = arith.constant 7 : i32
    %521 = arith.addi %0, %c7_i32_401 : i32
    %c1_i32_402 = arith.constant 1 : i32
    %522 = arith.addi %521, %c1_i32_402 : i32
    %c4_i32_403 = arith.constant 4 : i32
    %523 = arith.muli %522, %c4_i32_403 : i32
    %c0_404 = arith.constant 0 : index
    %524 = arith.index_cast %523 : i32 to index
    %c0_405 = arith.constant 0 : index
    %525 = vector.load %arg2[%c0_404, %524, %c0_405] : memref<1x136x34xf32, #tpu.memory_space<vmem>>, vector<1x4x34xf32>
    %526 = vector.shape_cast %525 : vector<1x4x34xf32> to vector<4x34xf32>
    %c3_406 = arith.constant 3 : index
    %c0_407 = arith.constant 0 : index
    %c0_408 = arith.constant 0 : index
    %527 = vector.load %arg3[%c3_406, %c0_407, %c0_408] : memref<9x8x4xf32, #tpu.memory_space<vmem>>, vector<1x8x4xf32>
    %528 = vector.shape_cast %527 : vector<1x8x4xf32> to vector<8x4xf32>
    %529 = vector.extract_strided_slice %526 {offsets = [0, 0], sizes = [4, 32], strides = [1, 1]} : vector<4x34xf32> to vector<4x32xf32>
    %cst_409 = arith.constant dense<0.000000e+00> : vector<8x32xf32>
    %530 = tpu.matmul %528, %529, %cst_409 {dimension_numbers = #tpu.dot_dimension_numbers<[1], [0], [0], [1], [0, 0, 1, 1], [], []>} : vector<8x4xf32>, vector<4x32xf32>, vector<8x32xf32> -> vector<8x32xf32>
    %531 = arith.addf %520, %530 : vector<8x32xf32>
    %c4_410 = arith.constant 4 : index
    %c0_411 = arith.constant 0 : index
    %c0_412 = arith.constant 0 : index
    %532 = vector.load %arg3[%c4_410, %c0_411, %c0_412] : memref<9x8x4xf32, #tpu.memory_space<vmem>>, vector<1x8x4xf32>
    %533 = vector.shape_cast %532 : vector<1x8x4xf32> to vector<8x4xf32>
    %534 = vector.extract_strided_slice %526 {offsets = [0, 1], sizes = [4, 32], strides = [1, 1]} : vector<4x34xf32> to vector<4x32xf32>
    %cst_413 = arith.constant dense<0.000000e+00> : vector<8x32xf32>
    %535 = tpu.matmul %533, %534, %cst_413 {dimension_numbers = #tpu.dot_dimension_numbers<[1], [0], [0], [1], [0, 0, 1, 1], [], []>} : vector<8x4xf32>, vector<4x32xf32>, vector<8x32xf32> -> vector<8x32xf32>
    %536 = arith.addf %531, %535 : vector<8x32xf32>
    %c5_414 = arith.constant 5 : index
    %c0_415 = arith.constant 0 : index
    %c0_416 = arith.constant 0 : index
    %537 = vector.load %arg3[%c5_414, %c0_415, %c0_416] : memref<9x8x4xf32, #tpu.memory_space<vmem>>, vector<1x8x4xf32>
    %538 = vector.shape_cast %537 : vector<1x8x4xf32> to vector<8x4xf32>
    %539 = vector.extract_strided_slice %526 {offsets = [0, 2], sizes = [4, 32], strides = [1, 1]} : vector<4x34xf32> to vector<4x32xf32>
    %cst_417 = arith.constant dense<0.000000e+00> : vector<8x32xf32>
    %540 = tpu.matmul %538, %539, %cst_417 {dimension_numbers = #tpu.dot_dimension_numbers<[1], [0], [0], [1], [0, 0, 1, 1], [], []>} : vector<8x4xf32>, vector<4x32xf32>, vector<8x32xf32> -> vector<8x32xf32>
    %541 = arith.addf %536, %540 : vector<8x32xf32>
    %c7_i32_418 = arith.constant 7 : i32
    %542 = arith.addi %0, %c7_i32_418 : i32
    %c2_i32_419 = arith.constant 2 : i32
    %543 = arith.addi %542, %c2_i32_419 : i32
    %c4_i32_420 = arith.constant 4 : i32
    %544 = arith.muli %543, %c4_i32_420 : i32
    %c0_421 = arith.constant 0 : index
    %545 = arith.index_cast %544 : i32 to index
    %c0_422 = arith.constant 0 : index
    %546 = vector.load %arg2[%c0_421, %545, %c0_422] : memref<1x136x34xf32, #tpu.memory_space<vmem>>, vector<1x4x34xf32>
    %547 = vector.shape_cast %546 : vector<1x4x34xf32> to vector<4x34xf32>
    %c6_423 = arith.constant 6 : index
    %c0_424 = arith.constant 0 : index
    %c0_425 = arith.constant 0 : index
    %548 = vector.load %arg3[%c6_423, %c0_424, %c0_425] : memref<9x8x4xf32, #tpu.memory_space<vmem>>, vector<1x8x4xf32>
    %549 = vector.shape_cast %548 : vector<1x8x4xf32> to vector<8x4xf32>
    %550 = vector.extract_strided_slice %547 {offsets = [0, 0], sizes = [4, 32], strides = [1, 1]} : vector<4x34xf32> to vector<4x32xf32>
    %cst_426 = arith.constant dense<0.000000e+00> : vector<8x32xf32>
    %551 = tpu.matmul %549, %550, %cst_426 {dimension_numbers = #tpu.dot_dimension_numbers<[1], [0], [0], [1], [0, 0, 1, 1], [], []>} : vector<8x4xf32>, vector<4x32xf32>, vector<8x32xf32> -> vector<8x32xf32>
    %552 = arith.addf %541, %551 : vector<8x32xf32>
    %c7_427 = arith.constant 7 : index
    %c0_428 = arith.constant 0 : index
    %c0_429 = arith.constant 0 : index
    %553 = vector.load %arg3[%c7_427, %c0_428, %c0_429] : memref<9x8x4xf32, #tpu.memory_space<vmem>>, vector<1x8x4xf32>
    %554 = vector.shape_cast %553 : vector<1x8x4xf32> to vector<8x4xf32>
    %555 = vector.extract_strided_slice %547 {offsets = [0, 1], sizes = [4, 32], strides = [1, 1]} : vector<4x34xf32> to vector<4x32xf32>
    %cst_430 = arith.constant dense<0.000000e+00> : vector<8x32xf32>
    %556 = tpu.matmul %554, %555, %cst_430 {dimension_numbers = #tpu.dot_dimension_numbers<[1], [0], [0], [1], [0, 0, 1, 1], [], []>} : vector<8x4xf32>, vector<4x32xf32>, vector<8x32xf32> -> vector<8x32xf32>
    %557 = arith.addf %552, %556 : vector<8x32xf32>
    %c8_431 = arith.constant 8 : index
    %c0_432 = arith.constant 0 : index
    %c0_433 = arith.constant 0 : index
    %558 = vector.load %arg3[%c8_431, %c0_432, %c0_433] : memref<9x8x4xf32, #tpu.memory_space<vmem>>, vector<1x8x4xf32>
    %559 = vector.shape_cast %558 : vector<1x8x4xf32> to vector<8x4xf32>
    %560 = vector.extract_strided_slice %547 {offsets = [0, 2], sizes = [4, 32], strides = [1, 1]} : vector<4x34xf32> to vector<4x32xf32>
    %cst_434 = arith.constant dense<0.000000e+00> : vector<8x32xf32>
    %561 = tpu.matmul %559, %560, %cst_434 {dimension_numbers = #tpu.dot_dimension_numbers<[1], [0], [0], [1], [0, 0, 1, 1], [], []>} : vector<8x4xf32>, vector<4x32xf32>, vector<8x32xf32> -> vector<8x32xf32>
    %562 = arith.addf %557, %561 : vector<8x32xf32>
    %563 = vector.broadcast %1 : vector<8x1xf32> to vector<8x32xf32>
    %564 = arith.addf %562, %563 : vector<8x32xf32>
    %cst_435 = arith.constant 0.000000e+00 : f32
    %565 = vector.broadcast %cst_435 : f32 to vector<8x32xf32>
    %566 = arith.maximumf %564, %565 : vector<8x32xf32>
    %c0_436 = arith.constant 0 : index
    %c7_437 = arith.constant 7 : index
    %c0_438 = arith.constant 0 : index
    %c0_439 = arith.constant 0 : index
    %567 = vector.load %arg5[%c0_436, %c7_437, %c0_438, %c0_439] : memref<1x8x8x32xf32, #tpu.memory_space<vmem>>, vector<1x1x8x32xf32>
    %568 = vector.shape_cast %567 : vector<1x1x8x32xf32> to vector<8x32xf32>
    %569 = vector.shape_cast %566 : vector<8x32xf32> to vector<1x1x8x32xf32>
    tpu.vector_store %arg5[%c0_436, %c7_437, %c0_438, %c0_439], %569 {strides = array<i32>} : memref<1x8x8x32xf32, #tpu.memory_space<vmem>>, vector<1x1x8x32xf32>,
    return
  }
  func.func @transform_0(%arg0: i32, %arg1: i32) -> (i32, i32, i32) {
    %c0_i32 = arith.constant 0 : i32
    %c0_i32_0 = arith.constant 0 : i32
    %c0_i32_1 = arith.constant 0 : i32
    return %arg0, %c0_i32, %c0_i32_0 : i32, i32, i32
  }
  func.func @transform_1(%arg0: i32, %arg1: i32) -> (i32, i32, i32) {
    %c0_i32 = arith.constant 0 : i32
    %c0_i32_0 = arith.constant 0 : i32
    %c0_i32_1 = arith.constant 0 : i32
    %c0_i32_2 = arith.constant 0 : i32
    return %c0_i32, %c0_i32_0, %c0_i32_1 : i32, i32, i32
  }
  func.func @transform_2(%arg0: i32, %arg1: i32) -> (i32, i32) {
    %c0_i32 = arith.constant 0 : i32
    %c0_i32_0 = arith.constant 0 : i32
    %c0_i32_1 = arith.constant 0 : i32
    return %c0_i32, %c0_i32_0 : i32, i32
  }
  func.func @transform_3(%arg0: i32, %arg1: i32) -> (i32, i32, i32, i32) {
    %c0_i32 = arith.constant 0 : i32
    %c0_i32_0 = arith.constant 0 : i32
    %c0_i32_1 = arith.constant 0 : i32
    return %arg0, %arg1, %c0_i32, %c0_i32_0 : i32, i32, i32, i32
  }
}

</mosaic_0001>

<llo_original>
// kernel: unet_decoder_block.1
$region0: #{unet_decoder_block.1}
  #allocation0 [shape = 'u32[]', space=smem, size = 0x4, offset = 0x4, fixed_abs, tag = 'smem constant byte address 0x4 - core index']
  #allocation1 [shape = 'u32[144,128]{1,0:T(1,128)}', space=vmem, size = 0x12000, scoped, tag = 'internal scratch']
  %s0 = inlined_call_operand.vmem [shape: f32[2,136,34], index: 0, kind: input, shape index: {}]
  %s1 = inlined_call_operand.vmem [shape: f32[9,8,4], index: 1, kind: input, shape index: {}]
  %s2 = inlined_call_operand.vmem [shape: f32[8,1], index: 2, kind: input, shape index: {}]
  %s3 = inlined_call_operand.vmem [shape: f32[2,32,8,32], index: 3, kind: output, shape index: {}]
  %s4 = sld [smem:[#allocation0]]
  $region45: #{unet_decoder_block.1} parent=0
    _
  %s6 = ssub.s32 1, %s4
  %s7 = scalar_select 0, %s6, %s4
  loop: start=0, step=1, limit=10
  $region2: #{unet_decoder_block.1} parent=0 // loop_pre_header
    _
  $region3: #{unet_decoder_block.1} parent=0 // loop_header
    %s9 = sphi 0, %s13
    %p10 = scmp.ge.s32.totalorder %s9, 10
    %s16 = sphi 0, %s28
    %s17 = sphi 0, %s24
    %s18 = sphi 0, %s16
    %s19 = sphi 0, %s17
    %s20 = sphi 0, %s18
    %s21 = sphi 0, %s19
    %s31 = sphi 0, %s33
    %s34 = sphi 0, %s31
    %s35 = sphi 0, %s34
    %s51 = sphi 0, %s35
    %s55 = sphi 0, %s55
    %s57 = sphi 0, %s55
    %s58 = sphi 0, %s57
    %s72 = sphi 0, %s58
    %s76 = sphi 0, %s76
    %s78 = sphi 0, %s76
    %s79 = sphi 0, %s78
    %s93 = sphi 0, %s79
    %s101 = sphi 0, %s103
    %s104 = sphi 0, %s101
    %s105 = sphi 0, %s104
    %s121 = sphi 0, %s105
  $region4: #{unet_decoder_block.1} parent=0 // loop_header_branch
    %12 = sbr.rel (%p10) target = $region8
  $region5: #{unet_decoder_block.1} parent=0 // loop_body
    %s14 = ssub.s32 %s9, 1
    %s15 = ssub.s32 %s9, 2
    %s22 = sadd.s32 1, %s17
    %p23 = scmp.ge.s32.totalorder %s22, 4
    %s24 = scalar_select %p23, 0, %s22
    %s25 = sadd.s32 1, %s16
    %s26 = scalar_select %p23, %s25, %s16
    %p27 = scmp.ge.s32.totalorder %s26, 2
    %s28 = scalar_select %p27, 0, %s26
    %s29 = ssub.s32 %s16, %s28
    %p30 = scmp.eq.s32.totalorder %s29, 0
    %s32 = sadd.s32 %s31, 1
    %s33 = scalar_select %p30, %s31, %s32
    %p36 = pneg %p30
    %p37 = scmp.eq.s32.totalorder %s9, 7
    %p38 = por %p36, %p37
    %p39 = scmp.ne.s32.totalorder %s31, %s34
    %p40 = scmp.eq.s32.totalorder %s9, 0
    %p41 = por %p39, %p40
    %p42 = scmp.ne.s32.totalorder %s31, %s34
    %p43 = scmp.eq.s32.totalorder %s14, 7
    %p44 = por %p42, %p43
    %p45 = scmp.ne.s32.totalorder %s34, %s35
    %p46 = scmp.eq.s32.totalorder %s14, 0
    %p47 = por %p45, %p46
    %p48 = scmp.ne.s32.totalorder %s34, %s35
    %p49 = scmp.eq.s32.totalorder %s15, 7
    %p50 = por %p48, %p49
    %p52 = scmp.ne.s32.totalorder %s35, %s51
    %p53 = scmp.eq.s32.totalorder %s15, 0
    %p54 = por %p52, %p53
    %s56 = sadd.s32 %s55, 1
    %p59 = scmp.eq.s32.totalorder %s9, 7
    %p60 = scmp.ne.s32.totalorder %s55, %s57
    %p61 = scmp.eq.s32.totalorder %s9, 0
    %p62 = por %p60, %p61
    %p63 = scmp.ne.s32.totalorder %s55, %s57
    %p64 = scmp.eq.s32.totalorder %s14, 7
    %p65 = por %p63, %p64
    %p66 = scmp.ne.s32.totalorder %s57, %s58
    %p67 = scmp.eq.s32.totalorder %s14, 0
    %p68 = por %p66, %p67
    %p69 = scmp.ne.s32.totalorder %s57, %s58
    %p70 = scmp.eq.s32.totalorder %s15, 7
    %p71 = por %p69, %p70
    %p73 = scmp.ne.s32.totalorder %s58, %s72
    %p74 = scmp.eq.s32.totalorder %s15, 0
    %p75 = por %p73, %p74
    %s77 = sadd.s32 %s76, 1
    %p80 = scmp.eq.s32.totalorder %s9, 7
    %p81 = scmp.ne.s32.totalorder %s76, %s78
    %p82 = scmp.eq.s32.totalorder %s9, 0
    %p83 = por %p81, %p82
    %p84 = scmp.ne.s32.totalorder %s76, %s78
    %p85 = scmp.eq.s32.totalorder %s14, 7
    %p86 = por %p84, %p85
    %p87 = scmp.ne.s32.totalorder %s78, %s79
    %p88 = scmp.eq.s32.totalorder %s14, 0
    %p89 = por %p87, %p88
    %p90 = scmp.ne.s32.totalorder %s78, %s79
    %p91 = scmp.eq.s32.totalorder %s15, 7
    %p92 = por %p90, %p91
    %p94 = scmp.ne.s32.totalorder %s79, %s93
    %p95 = scmp.eq.s32.totalorder %s15, 0
    %p96 = por %p94, %p95
    %s97 = ssub.s32 %s16, %s28
    %s98 = ssub.s32 %s17, %s24
    %s99 = sor.u32 %s97, %s98
    %p100 = scmp.eq.s32.totalorder %s99, 0
    %s102 = sadd.s32 %s101, 1
    %s103 = scalar_select %p100, %s101, %s102
    %p106 = pneg %p100
    %p107 = scmp.eq.s32.totalorder %s9, 7
    %p108 = por %p106, %p107
    %p109 = scmp.ne.s32.totalorder %s101, %s104
    %p110 = scmp.eq.s32.totalorder %s9, 0
    %p111 = por %p109, %p110
    %p112 = scmp.ne.s32.totalorder %s101, %s104
    %p113 = scmp.eq.s32.totalorder %s14, 7
    %p114 = por %p112, %p113
    %p115 = scmp.ne.s32.totalorder %s104, %s105
    %p116 = scmp.eq.s32.totalorder %s14, 0
    %p117 = por %p115, %p116
    %p118 = scmp.ne.s32.totalorder %s104, %s105
    %p119 = scmp.eq.s32.totalorder %s15, 7
    %p120 = por %p118, %p119
    %p122 = scmp.ne.s32.totalorder %s105, %s121
    %p123 = scmp.eq.s32.totalorder %s15, 0
    %p124 = por %p122, %p123
    %p125 = scmp.le.s32.totalorder 1, %s9
    %p126 = scmp.lt.s32.totalorder %s9, 9
    %p127 = pnand %p125, %p126
    %p128 = pneg %p127
    // Predicated region
    $region9: #{unet_decoder_block.1} parent=5 // pred_check
      _
    $region10: #{unet_decoder_block.1} parent=5 // pred_check_branch
      %130 = sbr.rel (%p127) target = $region12
    $region11: #{unet_decoder_block.1} parent=5 // pred_region
      %s131 = ssub.s32 %s9, 1
      // Predicated region
      $region13: #{unet_decoder_block.1} parent=11 // pred_check
        %p132 = pneg %p68
      $region14: #{unet_decoder_block.1} parent=11 // pred_check_branch
        %134 = sbr.rel (%p132) target = $region16
      $region15: #{unet_decoder_block.1} parent=11 // pred_region
        _
      $region16: #{unet_decoder_block.1} parent=11 // pred_fallthru
        _
      // Predicated region
      $region17: #{unet_decoder_block.1} parent=11 // pred_check
        %p135 = pneg %p89
      $region18: #{unet_decoder_block.1} parent=11 // pred_check_branch
        %137 = sbr.rel (%p135) target = $region20
      $region19: #{unet_decoder_block.1} parent=11 // pred_region
        _
      $region20: #{unet_decoder_block.1} parent=11 // pred_fallthru
        _
    $region12: #{unet_decoder_block.1} parent=5 // pred_fallthru
      _
    %p138 = scmp.lt.s32.totalorder %s9, 8
    // Predicated region
    $region21: #{unet_decoder_block.1} parent=5 // pred_check
      %p139 = pneg %p138
    $region22: #{unet_decoder_block.1} parent=5 // pred_check_branch
      %141 = sbr.rel (%p139) target = $region24
    $region23: #{unet_decoder_block.1} parent=5 // pred_region
      // Predicated region
      $region25: #{unet_decoder_block.1} parent=23 // pred_check
        %p142 = pneg %p41
      $region26: #{unet_decoder_block.1} parent=23 // pred_check_branch
        %144 = sbr.rel (%p142) target = $region28
      $region27: #{unet_decoder_block.1} parent=23 // pred_region
        %p145 = scmp.lt.s32.totalorder %s16, 1
        %s146 = scalar_select %p145, %s16, 1
        %s147 = smul.addr %s146, 17
        %s148 = smul.addr %s147, 8
        %s149 = scalar_lea.vmem %s0, %s148
      $region28: #{unet_decoder_block.1} parent=23 // pred_fallthru
        _
    $region24: #{unet_decoder_block.1} parent=5 // pred_fallthru
      _
    %p150 = scmp.le.s32.totalorder 1, %s9
    %p151 = scmp.lt.s32.totalorder %s9, 9
    %p152 = pnand %p150, %p151
    %p153 = pneg %p152
    // Predicated region
    $region29: #{unet_decoder_block.1} parent=5 // pred_check
      _
    $region30: #{unet_decoder_block.1} parent=5 // pred_check_branch
      %155 = sbr.rel (%p152) target = $region32
    $region31: #{unet_decoder_block.1} parent=5 // pred_region
      %s156 = ssub.s32 %s9, 1
      %p157 = scmp.lt.s32.totalorder %s18, 1
      %s158 = scalar_select %p157, %s18, 1
      %s159 = smul.addr %s158, 17
      %s160 = smul.addr %s159, 8
      %s161 = scalar_lea.vmem %s0, %s160
      %p162 = pneg %p47
      %p163 = pneg %p44
      %p164 = pneg %p68
      %p165 = pneg %p65
      %p166 = pneg %p89
      %p167 = pneg %p86
      %p168 = pneg %p117
      %p169 = pneg %p114
      %s170 = smul.u32 8, %s19
      %p171 = scmp.lt.s32.totalorder %s18, 1
      %s172 = scalar_select %p171, %s18, 1
      %p173 = scmp.lt.s32.totalorder %s170, 31
      %s174 = scalar_select %p173, %s170, 31
      %s175 = smul.addr %s172, 32
      %s176 = sadd.s32 %s174, %s175
      %s177 = smul.addr %s176, 8
      %s178 = scalar_lea.vmem %s3, %s177
      %p179 = scmp.lt.s32.totalorder %s18, 1
      %s180 = scalar_select %p179, %s18, 1
      %s181 = smul.addr %s180, 17
      %s182 = smul.addr %s181, 8
      %s183 = scalar_lea.vmem %s0, %s182
      %s184 = smul.u32 8, %s19
      %p185 = scmp.lt.s32.totalorder %s18, 1
      %s186 = scalar_select %p185, %s18, 1
      %p187 = scmp.lt.s32.totalorder %s184, 31
      %s188 = scalar_select %p187, %s184, 31
      %s189 = smul.addr %s186, 32
      %s190 = sadd.s32 %s188, %s189
      %s191 = smul.addr %s190, 8
      %s192 = scalar_lea.vmem %s3, %s191
      %s193 = smul.u32 8, %s19
      %s194 = smul.u32 %s19, 8
      %v195 = vld [vmem:[%s2] sm:$0xff]
      %s196 = smul.u32 %s19, 32
      %s197 = scalar_lea.vmem %s183, %s196
      %v198 = vld [vmem:[%s197] sm:$0xf]
      %v199 = vld [vmem:[%s1] sm:$0xff]
      %s200 = scalar_lea.vmem %s1, 8
      %v201 = vld [vmem:[%s200] sm:$0xff]
      %203 = vrot.lane.b32.xlu0 %v198, 127
      %v204 = vpop.permute.xlu0 %203
      %vm205 = vcmask 31744
      %v207 = vsel %vm205, %v201, 0
      %vm209 = vcmask 1043456
      %v210 = vsel %vm209, %v204, 0
      %212 = vmatprep.subr.mxu0 0.0
      %213 = vmatpush1.msra.mxu0 %v210
      %214 = vmatprep.subr.mxu0 0.0
      %215 = vmatpush1.msra.mxu0 0.0
      %216 = vmatprep.subr.mxu0 0.0
      %217 = vmatpush1.msra.mxu0 0.0
      %218 = vmatprep.subr.mxu0 0.0
      %219 = vmatpush1.msra.mxu0 0.0
      %220 = vmatprep.subr.mxu0 0.0
      %221 = vmatpush1.msra.mxu0 0.0
      %222 = vmatprep.subr.mxu0 0.0
      %223 = vmatpush1.msra.mxu0 0.0
      %224 = vmatprep.subr.mxu0 0.0
      %225 = vmatpush1.msra.mxu0 0.0
      %226 = vmatprep.subr.mxu0 0.0
      %227 = vmatpush1.msra.mxu0 0.0
      %228 = vmatprep.subr.mxu0 0.0
      %229 = vmatpush1.msra.mxu0 0.0
      %230 = vmatprep.subr.mxu0 0.0
      %231 = vmatpush1.msra.mxu0 0.0
      %232 = vmatprep.subr.mxu0 0.0
      %233 = vmatpush1.msra.mxu0 0.0
      %234 = vmatprep.subr.mxu0 0.0
      %235 = vmatpush1.msra.mxu0 0.0
      %236 = vmatprep.subr.mxu0 0.0
      %237 = vmatpush1.msra.mxu0 0.0
      %238 = vmatprep.subr.mxu0 0.0
      %239 = vmatpush1.msra.mxu0 0.0
      %240 = vmatprep.subr.mxu0 0.0
      %241 = vmatpush1.msra.mxu0 0.0
      %242 = vmatprep.subr.mxu0 0.0
      %243 = vmatpush1.msra.mxu0 0.0
      %244 = vmatprep.subr.mxu0 0.0
      %245 = vmatpush1.msra.mxu0 0.0
      %246 = vmatprep.subr.mxu0 0.0
      %247 = vmatpush1.msra.mxu0 0.0
      %248 = vmatprep.subr.mxu0 0.0
      %249 = vmatpush1.msra.mxu0 0.0
      %250 = vmatprep.subr.mxu0 0.0
      %251 = vmatpush1.msra.mxu0 0.0
      %252 = vmatprep.subr.mxu0 0.0
      %253 = vmatpush1.msra.mxu0 0.0
      %254 = vmatprep.subr.mxu0 0.0
      %255 = vmatpush1.msra.mxu0 0.0
      %256 = vmatprep.subr.mxu0 0.0
      %257 = vmatpush1.msra.mxu0 0.0
      %258 = vmatprep.subr.mxu0 0.0
      %259 = vmatpush1.msra.mxu0 0.0
      %260 = vmatprep.subr.mxu0 0.0
      %261 = vmatpush1.msra.mxu0 0.0
      %262 = vmatprep.subr.mxu0 0.0
      %263 = vmatpush1.msra.mxu0 0.0
      %264 = vmatprep.subr.mxu0 0.0
      %265 = vmatpush1.msra.mxu0 0.0
      %266 = vmatprep.subr.mxu0 0.0
      %267 = vmatpush1.msra.mxu0 0.0
      %268 = vmatprep.subr.mxu0 0.0
      %269 = vmatpush1.msra.mxu0 0.0
      %270 = vmatprep.subr.mxu0 0.0
      %271 = vmatpush1.msra.mxu0 0.0
      %272 = vmatprep.subr.mxu0 0.0
      %273 = vmatpush1.msra.mxu0 0.0
      %274 = vmatprep.subr.mxu0 0.0
      %275 = vmatpush1.msra.mxu0 0.0
      %276 = vmatprep.mubr.f32.mxu0 0.0
      %277 = vmatmul.mubr.f32.gmra.mrb[0].mxu0 %v207
      %v278 = vpop.f32.mrb[0].mxu0
      %v279 = vadd.f32 0.0, %v278
      %v280 = vpop.f32.mrb[0].mxu0
      %281 = vdwg.mxu0
      %v283 = vsel %vm205, %v199, 0
      %v285 = vsel %vm209, %v198, 0
      %287 = vmatprep.subr.mxu0 0.0
      %288 = vmatpush1.msra.mxu0 %v285
      %289 = vmatprep.subr.mxu0 0.0
      %290 = vmatpush1.msra.mxu0 0.0
      %291 = vmatprep.subr.mxu0 0.0
      %292 = vmatpush1.msra.mxu0 0.0
      %293 = vmatprep.subr.mxu0 0.0
      %294 = vmatpush1.msra.mxu0 0.0
      %295 = vmatprep.subr.mxu0 0.0
      %296 = vmatpush1.msra.mxu0 0.0
      %297 = vmatprep.subr.mxu0 0.0
      %298 = vmatpush1.msra.mxu0 0.0
      %299 = vmatprep.subr.mxu0 0.0
      %300 = vmatpush1.msra.mxu0 0.0
      %301 = vmatprep.subr.mxu0 0.0
      %302 = vmatpush1.msra.mxu0 0.0
      %303 = vmatprep.subr.mxu0 0.0
      %304 = vmatpush1.msra.mxu0 0.0
      %305 = vmatprep.subr.mxu0 0.0
      %306 = vmatpush1.msra.mxu0 0.0
      %307 = vmatprep.subr.mxu0 0.0
      %308 = vmatpush1.msra.mxu0 0.0
      %309 = vmatprep.subr.mxu0 0.0
      %310 = vmatpush1.msra.mxu0 0.0
      %311 = vmatprep.subr.mxu0 0.0
      %312 = vmatpush1.msra.mxu0 0.0
      %313 = vmatprep.subr.mxu0 0.0
      %314 = vmatpush1.msra.mxu0 0.0
      %315 = vmatprep.subr.mxu0 0.0
      %316 = vmatpush1.msra.mxu0 0.0
      %317 = vmatprep.subr.mxu0 0.0
      %318 = vmatpush1.msra.mxu0 0.0
      %319 = vmatprep.subr.mxu0 0.0
      %320 = vmatpush1.msra.mxu0 0.0
      %321 = vmatprep.subr.mxu0 0.0
      %322 = vmatpush1.msra.mxu0 0.0
      %323 = vmatprep.subr.mxu0 0.0
      %324 = vmatpush1.msra.mxu0 0.0
      %325 = vmatprep.subr.mxu0 0.0
      %326 = vmatpush1.msra.mxu0 0.0
      %327 = vmatprep.subr.mxu0 0.0
      %328 = vmatpush1.msra.mxu0 0.0
      %329 = vmatprep.subr.mxu0 0.0
      %330 = vmatpush1.msra.mxu0 0.0
      %331 = vmatprep.subr.mxu0 0.0
      %332 = vmatpush1.msra.mxu0 0.0
      %333 = vmatprep.subr.mxu0 0.0
      %334 = vmatpush1.msra.mxu0 0.0
      %335 = vmatprep.subr.mxu0 0.0
      %336 = vmatpush1.msra.mxu0 0.0
      %337 = vmatprep.subr.mxu0 0.0
      %338 = vmatpush1.msra.mxu0 0.0
      %339 = vmatprep.subr.mxu0 0.0
      %340 = vmatpush1.msra.mxu0 0.0
      %341 = vmatprep.subr.mxu0 0.0
      %342 = vmatpush1.msra.mxu0 0.0
      %343 = vmatprep.subr.mxu0 0.0
      %344 = vmatpush1.msra.mxu0 0.0
      %345 = vmatprep.subr.mxu0 0.0
      %346 = vmatpush1.msra.mxu0 0.0
      %347 = vmatprep.subr.mxu0 0.0
      %348 = vmatpush1.msra.mxu0 0.0
      %349 = vmatprep.subr.mxu0 0.0
      %350 = vmatpush1.msra.mxu0 0.0
      %351 = vmatprep.mubr.f32.mxu0 0.0
      %352 = vmatmul.mubr.f32.gmra.mrb[0].mxu0 %v283
      %v353 = vpop.f32.mrb[0].mxu0
      %v354 = vadd.f32 %v279, %v353
      %v355 = vpop.f32.mrb[0].mxu0
      %356 = vdwg.mxu0
      %s357 = scalar_lea.vmem %s1, 16
      %v358 = vld [vmem:[%s357] sm:$0xff]
      %359 = vrot.lane.b32.xlu0 %v198, 126
      %v360 = vpop.permute.xlu0 %359
      %v362 = vsel %vm205, %v358, 0
      %v364 = vsel %vm209, %v360, 0
      %366 = vmatprep.subr.mxu0 0.0
      %367 = vmatpush1.msra.mxu0 %v364
      %368 = vmatprep.subr.mxu0 0.0
      %369 = vmatpush1.msra.mxu0 0.0
      %370 = vmatprep.subr.mxu0 0.0
      %371 = vmatpush1.msra.mxu0 0.0
      %372 = vmatprep.subr.mxu0 0.0
      %373 = vmatpush1.msra.mxu0 0.0
      %374 = vmatprep.subr.mxu0 0.0
      %375 = vmatpush1.msra.mxu0 0.0
      %376 = vmatprep.subr.mxu0 0.0
      %377 = vmatpush1.msra.mxu0 0.0
      %378 = vmatprep.subr.mxu0 0.0
      %379 = vmatpush1.msra.mxu0 0.0
      %380 = vmatprep.subr.mxu0 0.0
      %381 = vmatpush1.msra.mxu0 0.0
      %382 = vmatprep.subr.mxu0 0.0
      %383 = vmatpush1.msra.mxu0 0.0
      %384 = vmatprep.subr.mxu0 0.0
      %385 = vmatpush1.msra.mxu0 0.0
      %386 = vmatprep.subr.mxu0 0.0
      %387 = vmatpush1.msra.mxu0 0.0
      %388 = vmatprep.subr.mxu0 0.0
      %389 = vmatpush1.msra.mxu0 0.0
      %390 = vmatprep.subr.mxu0 0.0
      %391 = vmatpush1.msra.mxu0 0.0
      %392 = vmatprep.subr.mxu0 0.0
      %393 = vmatpush1.msra.mxu0 0.0
      %394 = vmatprep.subr.mxu0 0.0
      %395 = vmatpush1.msra.mxu0 0.0
      %396 = vmatprep.subr.mxu0 0.0
      %397 = vmatpush1.msra.mxu0 0.0
      %398 = vmatprep.subr.mxu0 0.0
      %399 = vmatpush1.msra.mxu0 0.0
      %400 = vmatprep.subr.mxu0 0.0
      %401 = vmatpush1.msra.mxu0 0.0
      %402 = vmatprep.subr.mxu0 0.0
      %403 = vmatpush1.msra.mxu0 0.0
      %404 = vmatprep.subr.mxu0 0.0
      %405 = vmatpush1.msra.mxu0 0.0
      %406 = vmatprep.subr.mxu0 0.0
      %407 = vmatpush1.msra.mxu0 0.0
      %408 = vmatprep.subr.mxu0 0.0
      %409 = vmatpush1.msra.mxu0 0.0
      %410 = vmatprep.subr.mxu0 0.0
      %411 = vmatpush1.msra.mxu0 0.0
      %412 = vmatprep.subr.mxu0 0.0
      %413 = vmatpush1.msra.mxu0 0.0
      %414 = vmatprep.subr.mxu0 0.0
      %415 = vmatpush1.msra.mxu0 0.0
      %416 = vmatprep.subr.mxu0 0.0
      %417 = vmatpush1.msra.mxu0 0.0
      %418 = vmatprep.subr.mxu0 0.0
      %419 = vmatpush1.msra.mxu0 0.0
      %420 = vmatprep.subr.mxu0 0.0
      %421 = vmatpush1.msra.mxu0 0.0
      %422 = vmatprep.subr.mxu0 0.0
      %423 = vmatpush1.msra.mxu0 0.0
      %424 = vmatprep.subr.mxu0 0.0
      %425 = vmatpush1.msra.mxu0 0.0
      %426 = vmatprep.subr.mxu0 0.0
      %427 = vmatpush1.msra.mxu0 0.0
      %428 = vmatprep.subr.mxu0 0.0
      %429 = vmatpush1.msra.mxu0 0.0
      %430 = vmatprep.mubr.f32.mxu0 0.0
      %431 = vmatmul.mubr.f32.gmra.mrb[0].mxu0 %v362
      %v432 = vpop.f32.mrb[0].mxu0
      %v433 = vadd.f32 0.0, %v432
      %v434 = vpop.f32.mrb[0].mxu0
      %435 = vdwg.mxu0
      %v436 = vadd.f32 %v354, %v433
      %s437 = sadd.s32 %s194, 1
      %s438 = smul.u32 %s437, 4
      %s439 = scalar_lea.vmem %s183, %s438
      %v440 = vld [vmem:[%s439] sm:$0xf]
      %s441 = scalar_lea.vmem %s1, 24
      %v442 = vld [vmem:[%s441] sm:$0xff]
      %v444 = vsel %vm205, %v442, 0
      %v447 = vsel %vm209, %v440, 0
      %449 = vmatprep.subr.mxu0 0.0
      %450 = vmatpush1.msra.mxu0 %v447
      %451 = vmatprep.subr.mxu0 0.0
      %452 = vmatpush1.msra.mxu0 0.0
      %453 = vmatprep.subr.mxu0 0.0
      %454 = vmatpush1.msra.mxu0 0.0
      %455 = vmatprep.subr.mxu0 0.0
      %456 = vmatpush1.msra.mxu0 0.0
      %457 = vmatprep.subr.mxu0 0.0
      %458 = vmatpush1.msra.mxu0 0.0
      %459 = vmatprep.subr.mxu0 0.0
      %460 = vmatpush1.msra.mxu0 0.0
      %461 = vmatprep.subr.mxu0 0.0
      %462 = vmatpush1.msra.mxu0 0.0
      %463 = vmatprep.subr.mxu0 0.0
      %464 = vmatpush1.msra.mxu0 0.0
      %465 = vmatprep.subr.mxu0 0.0
      %466 = vmatpush1.msra.mxu0 0.0
      %467 = vmatprep.subr.mxu0 0.0
      %468 = vmatpush1.msra.mxu0 0.0
      %469 = vmatprep.subr.mxu0 0.0
      %470 = vmatpush1.msra.mxu0 0.0
      %471 = vmatprep.subr.mxu0 0.0
      %472 = vmatpush1.msra.mxu0 0.0
      %473 = vmatprep.subr.mxu0 0.0
      %474 = vmatpush1.msra.mxu0 0.0
      %475 = vmatprep.subr.mxu0 0.0
      %476 = vmatpush1.msra.mxu0 0.0
      %477 = vmatprep.subr.mxu0 0.0
      %478 = vmatpush1.msra.mxu0 0.0
      %479 = vmatprep.subr.mxu0 0.0
      %480 = vmatpush1.msra.mxu0 0.0
      %481 = vmatprep.subr.mxu0 0.0
      %482 = vmatpush1.msra.mxu0 0.0
      %483 = vmatprep.subr.mxu0 0.0
      %484 = vmatpush1.msra.mxu0 0.0
      %485 = vmatprep.subr.mxu0 0.0
      %486 = vmatpush1.msra.mxu0 0.0
      %487 = vmatprep.subr.mxu0 0.0
      %488 = vmatpush1.msra.mxu0 0.0
      %489 = vmatprep.subr.mxu0 0.0
      %490 = vmatpush1.msra.mxu0 0.0
      %491 = vmatprep.subr.mxu0 0.0
      %492 = vmatpush1.msra.mxu0 0.0
      %493 = vmatprep.subr.mxu0 0.0
      %494 = vmatpush1.msra.mxu0 0.0
      %495 = vmatprep.subr.mxu0 0.0
      %496 = vmatpush1.msra.mxu0 0.0
      %497 = vmatprep.subr.mxu0 0.0
      %498 = vmatpush1.msra.mxu0 0.0
      %499 = vmatprep.subr.mxu0 0.0
      %500 = vmatpush1.msra.mxu0 0.0
      %501 = vmatprep.subr.mxu0 0.0
      %502 = vmatpush1.msra.mxu0 0.0
      %503 = vmatprep.subr.mxu0 0.0
      %504 = vmatpush1.msra.mxu0 0.0
      %505 = vmatprep.subr.mxu0 0.0
      %506 = vmatpush1.msra.mxu0 0.0
      %507 = vmatprep.subr.mxu0 0.0
      %508 = vmatpush1.msra.mxu0 0.0
      %509 = vmatprep.subr.mxu0 0.0
      %510 = vmatpush1.msra.mxu0 0.0
      %511 = vmatprep.subr.mxu0 0.0
      %512 = vmatpush1.msra.mxu0 0.0
      %513 = vmatprep.mubr.f32.mxu0 0.0
      %514 = vmatmul.mubr.f32.gmra.mrb[0].mxu0 %v444
      %v515 = vpop.f32.mrb[0].mxu0
      %v516 = vadd.f32 0.0, %v515
      %v517 = vpop.f32.mrb[0].mxu0
      %518 = vdwg.mxu0
      %v519 = vadd.f32 %v436, %v516
      %s520 = scalar_lea.vmem %s1, 32
      %v521 = vld [vmem:[%s520] sm:$0xff]
      %522 = vrot.lane.b32.xlu0 %v440, 127
      %v523 = vpop.permute.xlu0 %522
      %v525 = vsel %vm205, %v521, 0
      %v527 = vsel %vm209, %v523, 0
      %529 = vmatprep.subr.mxu0 0.0
      %530 = vmatpush1.msra.mxu0 %v527
      %531 = vmatprep.subr.mxu0 0.0
      %532 = vmatpush1.msra.mxu0 0.0
      %533 = vmatprep.subr.mxu0 0.0
      %534 = vmatpush1.msra.mxu0 0.0
      %535 = vmatprep.subr.mxu0 0.0
      %536 = vmatpush1.msra.mxu0 0.0
      %537 = vmatprep.subr.mxu0 0.0
      %538 = vmatpush1.msra.mxu0 0.0
      %539 = vmatprep.subr.mxu0 0.0
      %540 = vmatpush1.msra.mxu0 0.0
      %541 = vmatprep.subr.mxu0 0.0
      %542 = vmatpush1.msra.mxu0 0.0
      %543 = vmatprep.subr.mxu0 0.0
      %544 = vmatpush1.msra.mxu0 0.0
      %545 = vmatprep.subr.mxu0 0.0
      %546 = vmatpush1.msra.mxu0 0.0
      %547 = vmatprep.subr.mxu0 0.0
      %548 = vmatpush1.msra.mxu0 0.0
      %549 = vmatprep.subr.mxu0 0.0
      %550 = vmatpush1.msra.mxu0 0.0
      %551 = vmatprep.subr.mxu0 0.0
      %552 = vmatpush1.msra.mxu0 0.0
      %553 = vmatprep.subr.mxu0 0.0
      %554 = vmatpush1.msra.mxu0 0.0
      %555 = vmatprep.subr.mxu0 0.0
      %556 = vmatpush1.msra.mxu0 0.0
      %557 = vmatprep.subr.mxu0 0.0
      %558 = vmatpush1.msra.mxu0 0.0
      %559 = vmatprep.subr.mxu0 0.0
      %560 = vmatpush1.msra.mxu0 0.0
      %561 = vmatprep.subr.mxu0 0.0
      %562 = vmatpush1.msra.mxu0 0.0
      %563 = vmatprep.subr.mxu0 0.0
      %564 = vmatpush1.msra.mxu0 0.0
      %565 = vmatprep.subr.mxu0 0.0
      %566 = vmatpush1.msra.mxu0 0.0
      %567 = vmatprep.subr.mxu0 0.0
      %568 = vmatpush1.msra.mxu0 0.0
      %569 = vmatprep.subr.mxu0 0.0
      %570 = vmatpush1.msra.mxu0 0.0
      %571 = vmatprep.subr.mxu0 0.0
      %572 = vmatpush1.msra.mxu0 0.0
      %573 = vmatprep.subr.mxu0 0.0
      %574 = vmatpush1.msra.mxu0 0.0
      %575 = vmatprep.subr.mxu0 0.0
      %576 = vmatpush1.msra.mxu0 0.0
      %577 = vmatprep.subr.mxu0 0.0
      %578 = vmatpush1.msra.mxu0 0.0
      %579 = vmatprep.subr.mxu0 0.0
      %580 = vmatpush1.msra.mxu0 0.0
      %581 = vmatprep.subr.mxu0 0.0
      %582 = vmatpush1.msra.mxu0 0.0
      %583 = vmatprep.subr.mxu0 0.0
      %584 = vmatpush1.msra.mxu0 0.0
      %585 = vmatprep.subr.mxu0 0.0
      %586 = vmatpush1.msra.mxu0 0.0
      %587 = vmatprep.subr.mxu0 0.0
      %588 = vmatpush1.msra.mxu0 0.0
      %589 = vmatprep.subr.mxu0 0.0
      %590 = vmatpush1.msra.mxu0 0.0
      %591 = vmatprep.subr.mxu0 0.0
      %592 = vmatpush1.msra.mxu0 0.0
      %593 = vmatprep.mubr.f32.mxu0 0.0
      %594 = vmatmul.mubr.f32.gmra.mrb[0].mxu0 %v525
      %v595 = vpop.f32.mrb[0].mxu0
      %v596 = vadd.f32 0.0, %v595
      %v597 = vpop.f32.mrb[0].mxu0
      %598 = vdwg.mxu0
      %v599 = vadd.f32 %v519, %v596
      %s600 = scalar_lea.vmem %s1, 40
      %v601 = vld [vmem:[%s600] sm:$0xff]
      %602 = vrot.lane.b32.xlu0 %v440, 126
      %v603 = vpop.permute.xlu0 %602
      %v605 = vsel %vm205, %v601, 0
      %v607 = vsel %vm209, %v603, 0
      %609 = vmatprep.subr.mxu0 0.0
      %610 = vmatpush1.msra.mxu0 %v607
      %611 = vmatprep.subr.mxu0 0.0
      %612 = vmatpush1.msra.mxu0 0.0
      %613 = vmatprep.subr.mxu0 0.0
      %614 = vmatpush1.msra.mxu0 0.0
      %615 = vmatprep.subr.mxu0 0.0
      %616 = vmatpush1.msra.mxu0 0.0
      %617 = vmatprep.subr.mxu0 0.0
      %618 = vmatpush1.msra.mxu0 0.0
      %619 = vmatprep.subr.mxu0 0.0
      %620 = vmatpush1.msra.mxu0 0.0
      %621 = vmatprep.subr.mxu0 0.0
      %622 = vmatpush1.msra.mxu0 0.0
      %623 = vmatprep.subr.mxu0 0.0
      %624 = vmatpush1.msra.mxu0 0.0
      %625 = vmatprep.subr.mxu0 0.0
      %626 = vmatpush1.msra.mxu0 0.0
      %627 = vmatprep.subr.mxu0 0.0
      %628 = vmatpush1.msra.mxu0 0.0
      %629 = vmatprep.subr.mxu0 0.0
      %630 = vmatpush1.msra.mxu0 0.0
      %631 = vmatprep.subr.mxu0 0.0
      %632 = vmatpush1.msra.mxu0 0.0
      %633 = vmatprep.subr.mxu0 0.0
      %634 = vmatpush1.msra.mxu0 0.0
      %635 = vmatprep.subr.mxu0 0.0
      %636 = vmatpush1.msra.mxu0 0.0
      %637 = vmatprep.subr.mxu0 0.0
      %638 = vmatpush1.msra.mxu0 0.0
      %639 = vmatprep.subr.mxu0 0.0
      %640 = vmatpush1.msra.mxu0 0.0
      %641 = vmatprep.subr.mxu0 0.0
      %642 = vmatpush1.msra.mxu0 0.0
      %643 = vmatprep.subr.mxu0 0.0
      %644 = vmatpush1.msra.mxu0 0.0
      %645 = vmatprep.subr.mxu0 0.0
      %646 = vmatpush1.msra.mxu0 0.0
      %647 = vmatprep.subr.mxu0 0.0
      %648 = vmatpush1.msra.mxu0 0.0
      %649 = vmatprep.subr.mxu0 0.0
      %650 = vmatpush1.msra.mxu0 0.0
      %651 = vmatprep.subr.mxu0 0.0
      %652 = vmatpush1.msra.mxu0 0.0
      %653 = vmatprep.subr.mxu0 0.0
      %654 = vmatpush1.msra.mxu0 0.0
      %655 = vmatprep.subr.mxu0 0.0
      %656 = vmatpush1.msra.mxu0 0.0
      %657 = vmatprep.subr.mxu0 0.0
      %658 = vmatpush1.msra.mxu0 0.0
      %659 = vmatprep.subr.mxu0 0.0
      %660 = vmatpush1.msra.mxu0 0.0
      %661 = vmatprep.subr.mxu0 0.0
      %662 = vmatpush1.msra.mxu0 0.0
      %663 = vmatprep.subr.mxu0 0.0
      %664 = vmatpush1.msra.mxu0 0.0
      %665 = vmatprep.subr.mxu0 0.0
      %666 = vmatpush1.msra.mxu0 0.0
      %667 = vmatprep.subr.mxu0 0.0
      %668 = vmatpush1.msra.mxu0 0.0
      %669 = vmatprep.subr.mxu0 0.0
      %670 = vmatpush1.msra.mxu0 0.0
      %671 = vmatprep.subr.mxu0 0.0
      %672 = vmatpush1.msra.mxu0 0.0
      %673 = vmatprep.mubr.f32.mxu0 0.0
      %674 = vmatmul.mubr.f32.gmra.mrb[0].mxu0 %v605
      %v675 = vpop.f32.mrb[0].mxu0
      %v676 = vadd.f32 0.0, %v675
      %v677 = vpop.f32.mrb[0].mxu0
      %678 = vdwg.mxu0
      %v679 = vadd.f32 %v599, %v676
      %s680 = sadd.s32 %s194, 2
      %s681 = smul.u32 %s680, 4
      %s682 = scalar_lea.vmem %s183, %s681
      %v683 = vld [vmem:[%s682] sm:$0xf]
      %s684 = scalar_lea.vmem %s1, 48
      %v685 = vld [vmem:[%s684] sm:$0xff]
      %v687 = vsel %vm205, %v685, 0
      %v690 = vsel %vm209, %v683, 0
      %692 = vmatprep.subr.mxu0 0.0
      %693 = vmatpush1.msra.mxu0 %v690
      %694 = vmatprep.subr.mxu0 0.0
      %695 = vmatpush1.msra.mxu0 0.0
      %696 = vmatprep.subr.mxu0 0.0
      %697 = vmatpush1.msra.mxu0 0.0
      %698 = vmatprep.subr.mxu0 0.0
      %699 = vmatpush1.msra.mxu0 0.0
      %700 = vmatprep.subr.mxu0 0.0
      %701 = vmatpush1.msra.mxu0 0.0
      %702 = vmatprep.subr.mxu0 0.0
      %703 = vmatpush1.msra.mxu0 0.0
      %704 = vmatprep.subr.mxu0 0.0
      %705 = vmatpush1.msra.mxu0 0.0
      %706 = vmatprep.subr.mxu0 0.0
      %707 = vmatpush1.msra.mxu0 0.0
      %708 = vmatprep.subr.mxu0 0.0
      %709 = vmatpush1.msra.mxu0 0.0
      %710 = vmatprep.subr.mxu0 0.0
      %711 = vmatpush1.msra.mxu0 0.0
      %712 = vmatprep.subr.mxu0 0.0
      %713 = vmatpush1.msra.mxu0 0.0
      %714 = vmatprep.subr.mxu0 0.0
      %715 = vmatpush1.msra.mxu0 0.0
      %716 = vmatprep.subr.mxu0 0.0
      %717 = vmatpush1.msra.mxu0 0.0
      %718 = vmatprep.subr.mxu0 0.0
      %719 = vmatpush1.msra.mxu0 0.0
      %720 = vmatprep.subr.mxu0 0.0
      %721 = vmatpush1.msra.mxu0 0.0
      %722 = vmatprep.subr.mxu0 0.0
      %723 = vmatpush1.msra.mxu0 0.0
      %724 = vmatprep.subr.mxu0 0.0
      %725 = vmatpush1.msra.mxu0 0.0
      %726 = vmatprep.subr.mxu0 0.0
      %727 = vmatpush1.msra.mxu0 0.0
      %728 = vmatprep.subr.mxu0 0.0
      %729 = vmatpush1.msra.mxu0 0.0
      %730 = vmatprep.subr.mxu0 0.0
      %731 = vmatpush1.msra.mxu0 0.0
      %732 = vmatprep.subr.mxu0 0.0
      %733 = vmatpush1.msra.mxu0 0.0
      %734 = vmatprep.subr.mxu0 0.0
      %735 = vmatpush1.msra.mxu0 0.0
      %736 = vmatprep.subr.mxu0 0.0
      %737 = vmatpush1.msra.mxu0 0.0
      %738 = vmatprep.subr.mxu0 0.0
      %739 = vmatpush1.msra.mxu0 0.0
      %740 = vmatprep.subr.mxu0 0.0
      %741 = vmatpush1.msra.mxu0 0.0
      %742 = vmatprep.subr.mxu0 0.0
      %743 = vmatpush1.msra.mxu0 0.0
      %744 = vmatprep.subr.mxu0 0.0
      %745 = vmatpush1.msra.mxu0 0.0
      %746 = vmatprep.subr.mxu0 0.0
      %747 = vmatpush1.msra.mxu0 0.0
      %748 = vmatprep.subr.mxu0 0.0
      %749 = vmatpush1.msra.mxu0 0.0
      %750 = vmatprep.subr.mxu0 0.0
      %751 = vmatpush1.msra.mxu0 0.0
      %752 = vmatprep.subr.mxu0 0.0
      %753 = vmatpush1.msra.mxu0 0.0
      %754 = vmatprep.subr.mxu0 0.0
      %755 = vmatpush1.msra.mxu0 0.0
      %756 = vmatprep.mubr.f32.mxu0 0.0
      %757 = vmatmul.mubr.f32.gmra.mrb[0].mxu0 %v687
      %v758 = vpop.f32.mrb[0].mxu0
      %v759 = vadd.f32 0.0, %v758
      %v760 = vpop.f32.mrb[0].mxu0
      %761 = vdwg.mxu0
      %v762 = vadd.f32 %v679, %v759
      %s763 = scalar_lea.vmem %s1, 56
      %v764 = vld [vmem:[%s763] sm:$0xff]
      %765 = vrot.lane.b32.xlu0 %v683, 127
      %v766 = vpop.permute.xlu0 %765
      %v768 = vsel %vm205, %v764, 0
      %v770 = vsel %vm209, %v766, 0
      %772 = vmatprep.subr.mxu0 0.0
      %773 = vmatpush1.msra.mxu0 %v770
      %774 = vmatprep.subr.mxu0 0.0
      %775 = vmatpush1.msra.mxu0 0.0
      %776 = vmatprep.subr.mxu0 0.0
      %777 = vmatpush1.msra.mxu0 0.0
      %778 = vmatprep.subr.mxu0 0.0
      %779 = vmatpush1.msra.mxu0 0.0
      %780 = vmatprep.subr.mxu0 0.0
      %781 = vmatpush1.msra.mxu0 0.0
      %782 = vmatprep.subr.mxu0 0.0
      %783 = vmatpush1.msra.mxu0 0.0
      %784 = vmatprep.subr.mxu0 0.0
      %785 = vmatpush1.msra.mxu0 0.0
      %786 = vmatprep.subr.mxu0 0.0
      %787 = vmatpush1.msra.mxu0 0.0
      %788 = vmatprep.subr.mxu0 0.0
      %789 = vmatpush1.msra.mxu0 0.0
      %790 = vmatprep.subr.mxu0 0.0
      %791 = vmatpush1.msra.mxu0 0.0
      %792 = vmatprep.subr.mxu0 0.0
      %793 = vmatpush1.msra.mxu0 0.0
      %794 = vmatprep.subr.mxu0 0.0
      %795 = vmatpush1.msra.mxu0 0.0
      %796 = vmatprep.subr.mxu0 0.0
      %797 = vmatpush1.msra.mxu0 0.0
      %798 = vmatprep.subr.mxu0 0.0
      %799 = vmatpush1.msra.mxu0 0.0
      %800 = vmatprep.subr.mxu0 0.0
      %801 = vmatpush1.msra.mxu0 0.0
      %802 = vmatprep.subr.mxu0 0.0
      %803 = vmatpush1.msra.mxu0 0.0
      %804 = vmatprep.subr.mxu0 0.0
      %805 = vmatpush1.msra.mxu0 0.0
      %806 = vmatprep.subr.mxu0 0.0
      %807 = vmatpush1.msra.mxu0 0.0
      %808 = vmatprep.subr.mxu0 0.0
      %809 = vmatpush1.msra.mxu0 0.0
      %810 = vmatprep.subr.mxu0 0.0
      %811 = vmatpush1.msra.mxu0 0.0
      %812 = vmatprep.subr.mxu0 0.0
      %813 = vmatpush1.msra.mxu0 0.0
      %814 = vmatprep.subr.mxu0 0.0
      %815 = vmatpush1.msra.mxu0 0.0
      %816 = vmatprep.subr.mxu0 0.0
      %817 = vmatpush1.msra.mxu0 0.0
      %818 = vmatprep.subr.mxu0 0.0
      %819 = vmatpush1.msra.mxu0 0.0
      %820 = vmatprep.subr.mxu0 0.0
      %821 = vmatpush1.msra.mxu0 0.0
      %822 = vmatprep.subr.mxu0 0.0
      %823 = vmatpush1.msra.mxu0 0.0
      %824 = vmatprep.subr.mxu0 0.0
      %825 = vmatpush1.msra.mxu0 0.0
      %826 = vmatprep.subr.mxu0 0.0
      %827 = vmatpush1.msra.mxu0 0.0
      %828 = vmatprep.subr.mxu0 0.0
      %829 = vmatpush1.msra.mxu0 0.0
      %830 = vmatprep.subr.mxu0 0.0
      %831 = vmatpush1.msra.mxu0 0.0
      %832 = vmatprep.subr.mxu0 0.0
      %833 = vmatpush1.msra.mxu0 0.0
      %834 = vmatprep.subr.mxu0 0.0
      %835 = vmatpush1.msra.mxu0 0.0
      %836 = vmatprep.mubr.f32.mxu0 0.0
      %837 = vmatmul.mubr.f32.gmra.mrb[0].mxu0 %v768
      %v838 = vpop.f32.mrb[0].mxu0
      %v839 = vadd.f32 0.0, %v838
      %v840 = vpop.f32.mrb[0].mxu0
      %841 = vdwg.mxu0
      %v842 = vadd.f32 %v762, %v839
      %s843 = scalar_lea.vmem %s1, 64
      %v844 = vld [vmem:[%s843] sm:$0xff]
      %845 = vrot.lane.b32.xlu0 %v683, 126
      %v846 = vpop.permute.xlu0 %845
      %v848 = vsel %vm205, %v844, 0
      %v850 = vsel %vm209, %v846, 0
      %852 = vmatprep.subr.mxu0 0.0
      %853 = vmatpush1.msra.mxu0 %v850
      %854 = vmatprep.subr.mxu0 0.0
      %855 = vmatpush1.msra.mxu0 0.0
      %856 = vmatprep.subr.mxu0 0.0
      %857 = vmatpush1.msra.mxu0 0.0
      %858 = vmatprep.subr.mxu0 0.0
      %859 = vmatpush1.msra.mxu0 0.0
      %860 = vmatprep.subr.mxu0 0.0
      %861 = vmatpush1.msra.mxu0 0.0
      %862 = vmatprep.subr.mxu0 0.0
      %863 = vmatpush1.msra.mxu0 0.0
      %864 = vmatprep.subr.mxu0 0.0
      %865 = vmatpush1.msra.mxu0 0.0
      %866 = vmatprep.subr.mxu0 0.0
      %867 = vmatpush1.msra.mxu0 0.0
      %868 = vmatprep.subr.mxu0 0.0
      %869 = vmatpush1.msra.mxu0 0.0
      %870 = vmatprep.subr.mxu0 0.0
      %871 = vmatpush1.msra.mxu0 0.0
      %872 = vmatprep.subr.mxu0 0.0
      %873 = vmatpush1.msra.mxu0 0.0
      %874 = vmatprep.subr.mxu0 0.0
      %875 = vmatpush1.msra.mxu0 0.0
      %876 = vmatprep.subr.mxu0 0.0
      %877 = vmatpush1.msra.mxu0 0.0
      %878 = vmatprep.subr.mxu0 0.0
      %879 = vmatpush1.msra.mxu0 0.0
      %880 = vmatprep.subr.mxu0 0.0
      %881 = vmatpush1.msra.mxu0 0.0
      %882 = vmatprep.subr.mxu0 0.0
      %883 = vmatpush1.msra.mxu0 0.0
      %884 = vmatprep.subr.mxu0 0.0
      %885 = vmatpush1.msra.mxu0 0.0
      %886 = vmatprep.subr.mxu0 0.0
      %887 = vmatpush1.msra.mxu0 0.0
      %888 = vmatprep.subr.mxu0 0.0
      %889 = vmatpush1.msra.mxu0 0.0
      %890 = vmatprep.subr.mxu0 0.0
      %891 = vmatpush1.msra.mxu0 0.0
      %892 = vmatprep.subr.mxu0 0.0
      %893 = vmatpush1.msra.mxu0 0.0
      %894 = vmatprep.subr.mxu0 0.0
      %895 = vmatpush1.msra.mxu0 0.0
      %896 = vmatprep.subr.mxu0 0.0
      %897 = vmatpush1.msra.mxu0 0.0
      %898 = vmatprep.subr.mxu0 0.0
      %899 = vmatpush1.msra.mxu0 0.0
      %900 = vmatprep.subr.mxu0 0.0
      %901 = vmatpush1.msra.mxu0 0.0
      %902 = vmatprep.subr.mxu0 0.0
      %903 = vmatpush1.msra.mxu0 0.0
      %904 = vmatprep.subr.mxu0 0.0
      %905 = vmatpush1.msra.mxu0 0.0
      %906 = vmatprep.subr.mxu0 0.0
      %907 = vmatpush1.msra.mxu0 0.0
      %908 = vmatprep.subr.mxu0 0.0
      %909 = vmatpush1.msra.mxu0 0.0
      %910 = vmatprep.subr.mxu0 0.0
      %911 = vmatpush1.msra.mxu0 0.0
      %912 = vmatprep.subr.mxu0 0.0
      %913 = vmatpush1.msra.mxu0 0.0
      %914 = vmatprep.subr.mxu0 0.0
      %915 = vmatpush1.msra.mxu0 0.0
      %916 = vmatprep.mubr.f32.mxu0 0.0
      %917 = vmatmul.mubr.f32.gmra.mrb[0].mxu0 %v848
      %v918 = vpop.f32.mrb[0].mxu0
      %v919 = vadd.f32 0.0, %v918
      %v920 = vpop.f32.mrb[0].mxu0
      %921 = vdwg.mxu0
      %v922 = vadd.f32 %v842, %v919
      %924 = vset.pattern.permute.xlu0 0
      %925 = vperm.xlu0 %924, %v195
      %v926 = vpop.permute.xlu0 %925
      %v928 = vadd.f32 %v922, %v926
      %v929 = vmax.f32 %v928, 0.0
      %vm930 = vcmask 261120
      %931 = vst.msk [vmem:[%s192] sm:$0xff] %vm930, %v929
      %v932 = vld [vmem:[%s439] sm:$0xf]
      %v933 = vld [vmem:[%s1] sm:$0xff]
      %v934 = vld [vmem:[%s200] sm:$0xff]
      %936 = vrot.lane.b32.xlu0 %v932, 127
      %v937 = vpop.permute.xlu0 %936
      %v939 = vsel %vm205, %v934, 0
      %v941 = vsel %vm209, %v937, 0
      %943 = vmatprep.subr.mxu0 0.0
      %944 = vmatpush1.msra.mxu0 %v941
      %945 = vmatprep.subr.mxu0 0.0
      %946 = vmatpush1.msra.mxu0 0.0
      %947 = vmatprep.subr.mxu0 0.0
      %948 = vmatpush1.msra.mxu0 0.0
      %949 = vmatprep.subr.mxu0 0.0
      %950 = vmatpush1.msra.mxu0 0.0
      %951 = vmatprep.subr.mxu0 0.0
      %952 = vmatpush1.msra.mxu0 0.0
      %953 = vmatprep.subr.mxu0 0.0
      %954 = vmatpush1.msra.mxu0 0.0
      %955 = vmatprep.subr.mxu0 0.0
      %956 = vmatpush1.msra.mxu0 0.0
      %957 = vmatprep.subr.mxu0 0.0
      %958 = vmatpush1.msra.mxu0 0.0
      %959 = vmatprep.subr.mxu0 0.0
      %960 = vmatpush1.msra.mxu0 0.0
      %961 = vmatprep.subr.mxu0 0.0
      %962 = vmatpush1.msra.mxu0 0.0
      %963 = vmatprep.subr.mxu0 0.0
      %964 = vmatpush1.msra.mxu0 0.0
      %965 = vmatprep.subr.mxu0 0.0
      %966 = vmatpush1.msra.mxu0 0.0
      %967 = vmatprep.subr.mxu0 0.0
      %968 = vmatpush1.msra.mxu0 0.0
      %969 = vmatprep.subr.mxu0 0.0
      %970 = vmatpush1.msra.mxu0 0.0
      %971 = vmatprep.subr.mxu0 0.0
      %972 = vmatpush1.msra.mxu0 0.0
      %973 = vmatprep.subr.mxu0 0.0
      %974 = vmatpush1.msra.mxu0 0.0
      %975 = vmatprep.subr.mxu0 0.0
      %976 = vmatpush1.msra.mxu0 0.0
      %977 = vmatprep.subr.mxu0 0.0
      %978 = vmatpush1.msra.mxu0 0.0
      %979 = vmatprep.subr.mxu0 0.0
      %980 = vmatpush1.msra.mxu0 0.0
      %981 = vmatprep.subr.mxu0 0.0
      %982 = vmatpush1.msra.mxu0 0.0
      %983 = vmatprep.subr.mxu0 0.0
      %984 = vmatpush1.msra.mxu0 0.0
      %985 = vmatprep.subr.mxu0 0.0
      %986 = vmatpush1.msra.mxu0 0.0
      %987 = vmatprep.subr.mxu0 0.0
      %988 = vmatpush1.msra.mxu0 0.0
      %989 = vmatprep.subr.mxu0 0.0
      %990 = vmatpush1.msra.mxu0 0.0
      %991 = vmatprep.subr.mxu0 0.0
      %992 = vmatpush1.msra.mxu0 0.0
      %993 = vmatprep.subr.mxu0 0.0
      %994 = vmatpush1.msra.mxu0 0.0
      %995 = vmatprep.subr.mxu0 0.0
      %996 = vmatpush1.msra.mxu0 0.0
      %997 = vmatprep.subr.mxu0 0.0
      %998 = vmatpush1.msra.mxu0 0.0
      %999 = vmatprep.subr.mxu0 0.0
      %1000 = vmatpush1.msra.mxu0 0.0
      %1001 = vmatprep.subr.mxu0 0.0
      %1002 = vmatpush1.msra.mxu0 0.0
      %1003 = vmatprep.subr.mxu0 0.0
      %1004 = vmatpush1.msra.mxu0 0.0
      %1005 = vmatprep.subr.mxu0 0.0
      %1006 = vmatpush1.msra.mxu0 0.0
      %1007 = vmatprep.mubr.f32.mxu0 0.0
      %1008 = vmatmul.mubr.f32.gmra.mrb[0].mxu0 %v939
      %v1009 = vpop.f32.mrb[0].mxu0
      %v1010 = vadd.f32 0.0, %v1009
      %v1011 = vpop.f32.mrb[0].mxu0
      %1012 = vdwg.mxu0
      %v1014 = vsel %vm205, %v933, 0
      %v1016 = vsel %vm209, %v932, 0
      %1018 = vmatprep.subr.mxu0 0.0
      %1019 = vmatpush1.msra.mxu0 %v1016
      %1020 = vmatprep.subr.mxu0 0.0
      %1021 = vmatpush1.msra.mxu0 0.0
      %1022 = vmatprep.subr.mxu0 0.0
      %1023 = vmatpush1.msra.mxu0 0.0
      %1024 = vmatprep.subr.mxu0 0.0
      %1025 = vmatpush1.msra.mxu0 0.0
      %1026 = vmatprep.subr.mxu0 0.0
      %1027 = vmatpush1.msra.mxu0 0.0
      %1028 = vmatprep.subr.mxu0 0.0
      %1029 = vmatpush1.msra.mxu0 0.0
      %1030 = vmatprep.subr.mxu0 0.0
      %1031 = vmatpush1.msra.mxu0 0.0
      %1032 = vmatprep.subr.mxu0 0.0
      %1033 = vmatpush1.msra.mxu0 0.0
      %1034 = vmatprep.subr.mxu0 0.0
      %1035 = vmatpush1.msra.mxu0 0.0
      %1036 = vmatprep.subr.mxu0 0.0
      %1037 = vmatpush1.msra.mxu0 0.0
      %1038 = vmatprep.subr.mxu0 0.0
      %1039 = vmatpush1.msra.mxu0 0.0
      %1040 = vmatprep.subr.mxu0 0.0
      %1041 = vmatpush1.msra.mxu0 0.0
      %1042 = vmatprep.subr.mxu0 0.0
      %1043 = vmatpush1.msra.mxu0 0.0
      %1044 = vmatprep.subr.mxu0 0.0
      %1045 = vmatpush1.msra.mxu0 0.0
      %1046 = vmatprep.subr.mxu0 0.0
      %1047 = vmatpush1.msra.mxu0 0.0
      %1048 = vmatprep.subr.mxu0 0.0
      %1049 = vmatpush1.msra.mxu0 0.0
      %1050 = vmatprep.subr.mxu0 0.0
      %1051 = vmatpush1.msra.mxu0 0.0
      %1052 = vmatprep.subr.mxu0 0.0
      %1053 = vmatpush1.msra.mxu0 0.0
      %1054 = vmatprep.subr.mxu0 0.0
      %1055 = vmatpush1.msra.mxu0 0.0
      %1056 = vmatprep.subr.mxu0 0.0
      %1057 = vmatpush1.msra.mxu0 0.0
      %1058 = vmatprep.subr.mxu0 0.0
      %1059 = vmatpush1.msra.mxu0 0.0
      %1060 = vmatprep.subr.mxu0 0.0
      %1061 = vmatpush1.msra.mxu0 0.0
      %1062 = vmatprep.subr.mxu0 0.0
      %1063 = vmatpush1.msra.mxu0 0.0
      %1064 = vmatprep.subr.mxu0 0.0
      %1065 = vmatpush1.msra.mxu0 0.0
      %1066 = vmatprep.subr.mxu0 0.0
      %1067 = vmatpush1.msra.mxu0 0.0
      %1068 = vmatprep.subr.mxu0 0.0
      %1069 = vmatpush1.msra.mxu0 0.0
      %1070 = vmatprep.subr.mxu0 0.0
      %1071 = vmatpush1.msra.mxu0 0.0
      %1072 = vmatprep.subr.mxu0 0.0
      %1073 = vmatpush1.msra.mxu0 0.0
      %1074 = vmatprep.subr.mxu0 0.0
      %1075 = vmatpush1.msra.mxu0 0.0
      %1076 = vmatprep.subr.mxu0 0.0
      %1077 = vmatpush1.msra.mxu0 0.0
      %1078 = vmatprep.subr.mxu0 0.0
      %1079 = vmatpush1.msra.mxu0 0.0
      %1080 = vmatprep.subr.mxu0 0.0
      %1081 = vmatpush1.msra.mxu0 0.0
      %1082 = vmatprep.mubr.f32.mxu0 0.0
      %1083 = vmatmul.mubr.f32.gmra.mrb[0].mxu0 %v1014
      %v1084 = vpop.f32.mrb[0].mxu0
      %v1085 = vadd.f32 %v1010, %v1084
      %v1086 = vpop.f32.mrb[0].mxu0
      %1087 = vdwg.mxu0
      %v1088 = vld [vmem:[%s357] sm:$0xff]
      %1089 = vrot.lane.b32.xlu0 %v932, 126
      %v1090 = vpop.permute.xlu0 %1089
      %v1092 = vsel %vm205, %v1088, 0
      %v1094 = vsel %vm209, %v1090, 0
      %1096 = vmatprep.subr.mxu0 0.0
      %1097 = vmatpush1.msra.mxu0 %v1094
      %1098 = vmatprep.subr.mxu0 0.0
      %1099 = vmatpush1.msra.mxu0 0.0
      %1100 = vmatprep.subr.mxu0 0.0
      %1101 = vmatpush1.msra.mxu0 0.0
      %1102 = vmatprep.subr.mxu0 0.0
      %1103 = vmatpush1.msra.mxu0 0.0
      %1104 = vmatprep.subr.mxu0 0.0
      %1105 = vmatpush1.msra.mxu0 0.0
      %1106 = vmatprep.subr.mxu0 0.0
      %1107 = vmatpush1.msra.mxu0 0.0
      %1108 = vmatprep.subr.mxu0 0.0
      %1109 = vmatpush1.msra.mxu0 0.0
      %1110 = vmatprep.subr.mxu0 0.0
      %1111 = vmatpush1.msra.mxu0 0.0
      %1112 = vmatprep.subr.mxu0 0.0
      %1113 = vmatpush1.msra.mxu0 0.0
      %1114 = vmatprep.subr.mxu0 0.0
      %1115 = vmatpush1.msra.mxu0 0.0
      %1116 = vmatprep.subr.mxu0 0.0
      %1117 = vmatpush1.msra.mxu0 0.0
      %1118 = vmatprep.subr.mxu0 0.0
      %1119 = vmatpush1.msra.mxu0 0.0
      %1120 = vmatprep.subr.mxu0 0.0
      %1121 = vmatpush1.msra.mxu0 0.0
      %1122 = vmatprep.subr.mxu0 0.0
      %1123 = vmatpush1.msra.mxu0 0.0
      %1124 = vmatprep.subr.mxu0 0.0
      %1125 = vmatpush1.msra.mxu0 0.0
      %1126 = vmatprep.subr.mxu0 0.0
      %1127 = vmatpush1.msra.mxu0 0.0
      %1128 = vmatprep.subr.mxu0 0.0
      %1129 = vmatpush1.msra.mxu0 0.0
      %1130 = vmatprep.subr.mxu0 0.0
      %1131 = vmatpush1.msra.mxu0 0.0
      %1132 = vmatprep.subr.mxu0 0.0
      %1133 = vmatpush1.msra.mxu0 0.0
      %1134 = vmatprep.subr.mxu0 0.0
      %1135 = vmatpush1.msra.mxu0 0.0
      %1136 = vmatprep.subr.mxu0 0.0
      %1137 = vmatpush1.msra.mxu0 0.0
      %1138 = vmatprep.subr.mxu0 0.0
      %1139 = vmatpush1.msra.mxu0 0.0
      %1140 = vmatprep.subr.mxu0 0.0
      %1141 = vmatpush1.msra.mxu0 0.0
      %1142 = vmatprep.subr.mxu0 0.0
      %1143 = vmatpush1.msra.mxu0 0.0
      %1144 = vmatprep.subr.mxu0 0.0
      %1145 = vmatpush1.msra.mxu0 0.0
      %1146 = vmatprep.subr.mxu0 0.0
      %1147 = vmatpush1.msra.mxu0 0.0
      %1148 = vmatprep.subr.mxu0 0.0
      %1149 = vmatpush1.msra.mxu0 0.0
      %1150 = vmatprep.subr.mxu0 0.0
      %1151 = vmatpush1.msra.mxu0 0.0
      %1152 = vmatprep.subr.mxu0 0.0
      %1153 = vmatpush1.msra.mxu0 0.0
      %1154 = vmatprep.subr.mxu0 0.0
      %1155 = vmatpush1.msra.mxu0 0.0
      %1156 = vmatprep.subr.mxu0 0.0
      %1157 = vmatpush1.msra.mxu0 0.0
      %1158 = vmatprep.subr.mxu0 0.0
      %1159 = vmatpush1.msra.mxu0 0.0
      %1160 = vmatprep.mubr.f32.mxu0 0.0
      %1161 = vmatmul.mubr.f32.gmra.mrb[0].mxu0 %v1092
      %v1162 = vpop.f32.mrb[0].mxu0
      %v1163 = vadd.f32 0.0, %v1162
      %v1164 = vpop.f32.mrb[0].mxu0
      %1165 = vdwg.mxu0
      %v1166 = vadd.f32 %v1085, %v1163
      %v1167 = vld [vmem:[%s682] sm:$0xf]
      %v1168 = vld [vmem:[%s441] sm:$0xff]
      %v1170 = vsel %vm205, %v1168, 0
      %v1173 = vsel %vm209, %v1167, 0
      %1175 = vmatprep.subr.mxu0 0.0
      %1176 = vmatpush1.msra.mxu0 %v1173
      %1177 = vmatprep.subr.mxu0 0.0
      %1178 = vmatpush1.msra.mxu0 0.0
      %1179 = vmatprep.subr.mxu0 0.0
      %1180 = vmatpush1.msra.mxu0 0.0
      %1181 = vmatprep.subr.mxu0 0.0
      %1182 = vmatpush1.msra.mxu0 0.0
      %1183 = vmatprep.subr.mxu0 0.0
      %1184 = vmatpush1.msra.mxu0 0.0
      %1185 = vmatprep.subr.mxu0 0.0
      %1186 = vmatpush1.msra.mxu0 0.0
      %1187 = vmatprep.subr.mxu0 0.0
      %1188 = vmatpush1.msra.mxu0 0.0
      %1189 = vmatprep.subr.mxu0 0.0
      %1190 = vmatpush1.msra.mxu0 0.0
      %1191 = vmatprep.subr.mxu0 0.0
      %1192 = vmatpush1.msra.mxu0 0.0
      %1193 = vmatprep.subr.mxu0 0.0
      %1194 = vmatpush1.msra.mxu0 0.0
      %1195 = vmatprep.subr.mxu0 0.0
      %1196 = vmatpush1.msra.mxu0 0.0
      %1197 = vmatprep.subr.mxu0 0.0
      %1198 = vmatpush1.msra.mxu0 0.0
      %1199 = vmatprep.subr.mxu0 0.0
      %1200 = vmatpush1.msra.mxu0 0.0
      %1201 = vmatprep.subr.mxu0 0.0
      %1202 = vmatpush1.msra.mxu0 0.0
      %1203 = vmatprep.subr.mxu0 0.0
      %1204 = vmatpush1.msra.mxu0 0.0
      %1205 = vmatprep.subr.mxu0 0.0
      %1206 = vmatpush1.msra.mxu0 0.0
      %1207 = vmatprep.subr.mxu0 0.0
      %1208 = vmatpush1.msra.mxu0 0.0
      %1209 = vmatprep.subr.mxu0 0.0
      %1210 = vmatpush1.msra.mxu0 0.0
      %1211 = vmatprep.subr.mxu0 0.0
      %1212 = vmatpush1.msra.mxu0 0.0
      %1213 = vmatprep.subr.mxu0 0.0
      %1214 = vmatpush1.msra.mxu0 0.0
      %1215 = vmatprep.subr.mxu0 0.0
      %1216 = vmatpush1.msra.mxu0 0.0
      %1217 = vmatprep.subr.mxu0 0.0
      %1218 = vmatpush1.msra.mxu0 0.0
      %1219 = vmatprep.subr.mxu0 0.0
      %1220 = vmatpush1.msra.mxu0 0.0
      %1221 = vmatprep.subr.mxu0 0.0
      %1222 = vmatpush1.msra.mxu0 0.0
      %1223 = vmatprep.subr.mxu0 0.0
      %1224 = vmatpush1.msra.mxu0 0.0
      %1225 = vmatprep.subr.mxu0 0.0
      %1226 = vmatpush1.msra.mxu0 0.0
      %1227 = vmatprep.subr.mxu0 0.0
      %1228 = vmatpush1.msra.mxu0 0.0
      %1229 = vmatprep.subr.mxu0 0.0
      %1230 = vmatpush1.msra.mxu0 0.0
      %1231 = vmatprep.subr.mxu0 0.0
      %1232 = vmatpush1.msra.mxu0 0.0
      %1233 = vmatprep.subr.mxu0 0.0
      %1234 = vmatpush1.msra.mxu0 0.0
      %1235 = vmatprep.subr.mxu0 0.0
      %1236 = vmatpush1.msra.mxu0 0.0
      %1237 = vmatprep.subr.mxu0 0.0
      %1238 = vmatpush1.msra.mxu0 0.0
      %1239 = vmatprep.mubr.f32.mxu0 0.0
      %1240 = vmatmul.mubr.f32.gmra.mrb[0].mxu0 %v1170
      %v1241 = vpop.f32.mrb[0].mxu0
      %v1242 = vadd.f32 0.0, %v1241
      %v1243 = vpop.f32.mrb[0].mxu0
      %1244 = vdwg.mxu0
      %v1245 = vadd.f32 %v1166, %v1242
      %v1246 = vld [vmem:[%s520] sm:$0xff]
      %1247 = vrot.lane.b32.xlu0 %v1167, 127
      %v1248 = vpop.permute.xlu0 %1247
      %v1250 = vsel %vm205, %v1246, 0
      %v1252 = vsel %vm209, %v1248, 0
      %1254 = vmatprep.subr.mxu0 0.0
      %1255 = vmatpush1.msra.mxu0 %v1252
      %1256 = vmatprep.subr.mxu0 0.0
      %1257 = vmatpush1.msra.mxu0 0.0
      %1258 = vmatprep.subr.mxu0 0.0
      %1259 = vmatpush1.msra.mxu0 0.0
      %1260 = vmatprep.subr.mxu0 0.0
      %1261 = vmatpush1.msra.mxu0 0.0
      %1262 = vmatprep.subr.mxu0 0.0
      %1263 = vmatpush1.msra.mxu0 0.0
      %1264 = vmatprep.subr.mxu0 0.0
      %1265 = vmatpush1.msra.mxu0 0.0
      %1266 = vmatprep.subr.mxu0 0.0
      %1267 = vmatpush1.msra.mxu0 0.0
      %1268 = vmatprep.subr.mxu0 0.0
      %1269 = vmatpush1.msra.mxu0 0.0
      %1270 = vmatprep.subr.mxu0 0.0
      %1271 = vmatpush1.msra.mxu0 0.0
      %1272 = vmatprep.subr.mxu0 0.0
      %1273 = vmatpush1.msra.mxu0 0.0
      %1274 = vmatprep.subr.mxu0 0.0
      %1275 = vmatpush1.msra.mxu0 0.0
      %1276 = vmatprep.subr.mxu0 0.0
      %1277 = vmatpush1.msra.mxu0 0.0
      %1278 = vmatprep.subr.mxu0 0.0
      %1279 = vmatpush1.msra.mxu0 0.0
      %1280 = vmatprep.subr.mxu0 0.0
      %1281 = vmatpush1.msra.mxu0 0.0
      %1282 = vmatprep.subr.mxu0 0.0
      %1283 = vmatpush1.msra.mxu0 0.0
      %1284 = vmatprep.subr.mxu0 0.0
      %1285 = vmatpush1.msra.mxu0 0.0
      %1286 = vmatprep.subr.mxu0 0.0
      %1287 = vmatpush1.msra.mxu0 0.0
      %1288 = vmatprep.subr.mxu0 0.0
      %1289 = vmatpush1.msra.mxu0 0.0
      %1290 = vmatprep.subr.mxu0 0.0
      %1291 = vmatpush1.msra.mxu0 0.0
      %1292 = vmatprep.subr.mxu0 0.0
      %1293 = vmatpush1.msra.mxu0 0.0
      %1294 = vmatprep.subr.mxu0 0.0
      %1295 = vmatpush1.msra.mxu0 0.0
      %1296 = vmatprep.subr.mxu0 0.0
      %1297 = vmatpush1.msra.mxu0 0.0
      %1298 = vmatprep.subr.mxu0 0.0
      %1299 = vmatpush1.msra.mxu0 0.0
      %1300 = vmatprep.subr.mxu0 0.0
      %1301 = vmatpush1.msra.mxu0 0.0
      %1302 = vmatprep.subr.mxu0 0.0
      %1303 = vmatpush1.msra.mxu0 0.0
      %1304 = vmatprep.subr.mxu0 0.0
      %1305 = vmatpush1.msra.mxu0 0.0
      %1306 = vmatprep.subr.mxu0 0.0
      %1307 = vmatpush1.msra.mxu0 0.0
      %1308 = vmatprep.subr.mxu0 0.0
      %1309 = vmatpush1.msra.mxu0 0.0
      %1310 = vmatprep.subr.mxu0 0.0
      %1311 = vmatpush1.msra.mxu0 0.0
      %1312 = vmatprep.subr.mxu0 0.0
      %1313 = vmatpush1.msra.mxu0 0.0
      %1314 = vmatprep.subr.mxu0 0.0
      %1315 = vmatpush1.msra.mxu0 0.0
      %1316 = vmatprep.subr.mxu0 0.0
      %1317 = vmatpush1.msra.mxu0 0.0
      %1318 = vmatprep.mubr.f32.mxu0 0.0
      %1319 = vmatmul.mubr.f32.gmra.mrb[0].mxu0 %v1250
      %v1320 = vpop.f32.mrb[0].mxu0
      %v1321 = vadd.f32 0.0, %v1320
      %v1322 = vpop.f32.mrb[0].mxu0
      %1323 = vdwg.mxu0
      %v1324 = vadd.f32 %v1245, %v1321
      %v1325 = vld [vmem:[%s600] sm:$0xff]
      %1326 = vrot.lane.b32.xlu0 %v1167, 126
      %v1327 = vpop.permute.xlu0 %1326
      %v1329 = vsel %vm205, %v1325, 0
      %v1331 = vsel %vm209, %v1327, 0
      %1333 = vmatprep.subr.mxu0 0.0
      %1334 = vmatpush1.msra.mxu0 %v1331
      %1335 = vmatprep.subr.mxu0 0.0
      %1336 = vmatpush1.msra.mxu0 0.0
      %1337 = vmatprep.subr.mxu0 0.0
      %1338 = vmatpush1.msra.mxu0 0.0
      %1339 = vmatprep.subr.mxu0 0.0
      %1340 = vmatpush1.msra.mxu0 0.0
      %1341 = vmatprep.subr.mxu0 0.0
      %1342 = vmatpush1.msra.mxu0 0.0
      %1343 = vmatprep.subr.mxu0 0.0
      %1344 = vmatpush1.msra.mxu0 0.0
      %1345 = vmatprep.subr.mxu0 0.0
      %1346 = vmatpush1.msra.mxu0 0.0
      %1347 = vmatprep.subr.mxu0 0.0
      %1348 = vmatpush1.msra.mxu0 0.0
      %1349 = vmatprep.subr.mxu0 0.0
      %1350 = vmatpush1.msra.mxu0 0.0
      %1351 = vmatprep.subr.mxu0 0.0
      %1352 = vmatpush1.msra.mxu0 0.0
      %1353 = vmatprep.subr.mxu0 0.0
      %1354 = vmatpush1.msra.mxu0 0.0
      %1355 = vmatprep.subr.mxu0 0.0
      %1356 = vmatpush1.msra.mxu0 0.0
      %1357 = vmatprep.subr.mxu0 0.0
      %1358 = vmatpush1.msra.mxu0 0.0
      %1359 = vmatprep.subr.mxu0 0.0
      %1360 = vmatpush1.msra.mxu0 0.0
      %1361 = vmatprep.subr.mxu0 0.0
      %1362 = vmatpush1.msra.mxu0 0.0
      %1363 = vmatprep.subr.mxu0 0.0
      %1364 = vmatpush1.msra.mxu0 0.0
      %1365 = vmatprep.subr.mxu0 0.0
      %1366 = vmatpush1.msra.mxu0 0.0
      %1367 = vmatprep.subr.mxu0 0.0
      %1368 = vmatpush1.msra.mxu0 0.0
      %1369 = vmatprep.subr.mxu0 0.0
      %1370 = vmatpush1.msra.mxu0 0.0
      %1371 = vmatprep.subr.mxu0 0.0
      %1372 = vmatpush1.msra.mxu0 0.0
      %1373 = vmatprep.subr.mxu0 0.0
      %1374 = vmatpush1.msra.mxu0 0.0
      %1375 = vmatprep.subr.mxu0 0.0
      %1376 = vmatpush1.msra.mxu0 0.0
      %1377 = vmatprep.subr.mxu0 0.0
      %1378 = vmatpush1.msra.mxu0 0.0
      %1379 = vmatprep.subr.mxu0 0.0
      %1380 = vmatpush1.msra.mxu0 0.0
      %1381 = vmatprep.subr.mxu0 0.0
      %1382 = vmatpush1.msra.mxu0 0.0
      %1383 = vmatprep.subr.mxu0 0.0
      %1384 = vmatpush1.msra.mxu0 0.0
      %1385 = vmatprep.subr.mxu0 0.0
      %1386 = vmatpush1.msra.mxu0 0.0
      %1387 = vmatprep.subr.mxu0 0.0
      %1388 = vmatpush1.msra.mxu0 0.0
      %1389 = vmatprep.subr.mxu0 0.0
      %1390 = vmatpush1.msra.mxu0 0.0
      %1391 = vmatprep.subr.mxu0 0.0
      %1392 = vmatpush1.msra.mxu0 0.0
      %1393 = vmatprep.subr.mxu0 0.0
      %1394 = vmatpush1.msra.mxu0 0.0
      %1395 = vmatprep.subr.mxu0 0.0
      %1396 = vmatpush1.msra.mxu0 0.0
      %1397 = vmatprep.mubr.f32.mxu0 0.0
      %1398 = vmatmul.mubr.f32.gmra.mrb[0].mxu0 %v1329
      %v1399 = vpop.f32.mrb[0].mxu0
      %v1400 = vadd.f32 0.0, %v1399
      %v1401 = vpop.f32.mrb[0].mxu0
      %1402 = vdwg.mxu0
      %v1403 = vadd.f32 %v1324, %v1400
      %s1404 = sadd.s32 %s194, 3
      %s1405 = smul.u32 %s1404, 4
      %s1406 = scalar_lea.vmem %s183, %s1405
      %v1407 = vld [vmem:[%s1406] sm:$0xf]
      %v1408 = vld [vmem:[%s684] sm:$0xff]
      %v1410 = vsel %vm205, %v1408, 0
      %v1413 = vsel %vm209, %v1407, 0
      %1415 = vmatprep.subr.mxu0 0.0
      %1416 = vmatpush1.msra.mxu0 %v1413
      %1417 = vmatprep.subr.mxu0 0.0
      %1418 = vmatpush1.msra.mxu0 0.0
      %1419 = vmatprep.subr.mxu0 0.0
      %1420 = vmatpush1.msra.mxu0 0.0
      %1421 = vmatprep.subr.mxu0 0.0
      %1422 = vmatpush1.msra.mxu0 0.0
      %1423 = vmatprep.subr.mxu0 0.0
      %1424 = vmatpush1.msra.mxu0 0.0
      %1425 = vmatprep.subr.mxu0 0.0
      %1426 = vmatpush1.msra.mxu0 0.0
      %1427 = vmatprep.subr.mxu0 0.0
      %1428 = vmatpush1.msra.mxu0 0.0
      %1429 = vmatprep.subr.mxu0 0.0
      %1430 = vmatpush1.msra.mxu0 0.0
      %1431 = vmatprep.subr.mxu0 0.0
      %1432 = vmatpush1.msra.mxu0 0.0
      %1433 = vmatprep.subr.mxu0 0.0
      %1434 = vmatpush1.msra.mxu0 0.0
      %1435 = vmatprep.subr.mxu0 0.0
      %1436 = vmatpush1.msra.mxu0 0.0
      %1437 = vmatprep.subr.mxu0 0.0
      %1438 = vmatpush1.msra.mxu0 0.0
      %1439 = vmatprep.subr.mxu0 0.0
      %1440 = vmatpush1.msra.mxu0 0.0
      %1441 = vmatprep.subr.mxu0 0.0
      %1442 = vmatpush1.msra.mxu0 0.0
      %1443 = vmatprep.subr.mxu0 0.0
      %1444 = vmatpush1.msra.mxu0 0.0
      %1445 = vmatprep.subr.mxu0 0.0
      %1446 = vmatpush1.msra.mxu0 0.0
      %1447 = vmatprep.subr.mxu0 0.0
      %1448 = vmatpush1.msra.mxu0 0.0
      %1449 = vmatprep.subr.mxu0 0.0
      %1450 = vmatpush1.msra.mxu0 0.0
      %1451 = vmatprep.subr.mxu0 0.0
      %1452 = vmatpush1.msra.mxu0 0.0
      %1453 = vmatprep.subr.mxu0 0.0
      %1454 = vmatpush1.msra.mxu0 0.0
      %1455 = vmatprep.subr.mxu0 0.0
      %1456 = vmatpush1.msra.mxu0 0.0
      %1457 = vmatprep.subr.mxu0 0.0
      %1458 = vmatpush1.msra.mxu0 0.0
      %1459 = vmatprep.subr.mxu0 0.0
      %1460 = vmatpush1.msra.mxu0 0.0
      %1461 = vmatprep.subr.mxu0 0.0
      %1462 = vmatpush1.msra.mxu0 0.0
      %1463 = vmatprep.subr.mxu0 0.0
      %1464 = vmatpush1.msra.mxu0 0.0
      %1465 = vmatprep.subr.mxu0 0.0
      %1466 = vmatpush1.msra.mxu0 0.0
      %1467 = vmatprep.subr.mxu0 0.0
      %1468 = vmatpush1.msra.mxu0 0.0
      %1469 = vmatprep.subr.mxu0 0.0
      %1470 = vmatpush1.msra.mxu0 0.0
      %1471 = vmatprep.subr.mxu0 0.0
      %1472 = vmatpush1.msra.mxu0 0.0
      %1473 = vmatprep.subr.mxu0 0.0
      %1474 = vmatpush1.msra.mxu0 0.0
      %1475 = vmatprep.subr.mxu0 0.0
      %1476 = vmatpush1.msra.mxu0 0.0
      %1477 = vmatprep.subr.mxu0 0.0
      %1478 = vmatpush1.msra.mxu0 0.0
      %1479 = vmatprep.mubr.f32.mxu0 0.0
      %1480 = vmatmul.mubr.f32.gmra.mrb[0].mxu0 %v1410
      %v1481 = vpop.f32.mrb[0].mxu0
      %v1482 = vadd.f32 0.0, %v1481
      %v1483 = vpop.f32.mrb[0].mxu0
      %1484 = vdwg.mxu0
      %v1485 = vadd.f32 %v1403, %v1482
      %v1486 = vld [vmem:[%s763] sm:$0xff]
      %1487 = vrot.lane.b32.xlu0 %v1407, 127
      %v1488 = vpop.permute.xlu0 %1487
      %v1490 = vsel %vm205, %v1486, 0
      %v1492 = vsel %vm209, %v1488, 0
      %1494 = vmatprep.subr.mxu0 0.0
      %1495 = vmatpush1.msra.mxu0 %v1492
      %1496 = vmatprep.subr.mxu0 0.0
      %1497 = vmatpush1.msra.mxu0 0.0
      %1498 = vmatprep.subr.mxu0 0.0
      %1499 = vmatpush1.msra.mxu0 0.0
      %1500 = vmatprep.subr.mxu0 0.0
      %1501 = vmatpush1.msra.mxu0 0.0
      %1502 = vmatprep.subr.mxu0 0.0
      %1503 = vmatpush1.msra.mxu0 0.0
      %1504 = vmatprep.subr.mxu0 0.0
      %1505 = vmatpush1.msra.mxu0 0.0
      %1506 = vmatprep.subr.mxu0 0.0
      %1507 = vmatpush1.msra.mxu0 0.0
      %1508 = vmatprep.subr.mxu0 0.0
      %1509 = vmatpush1.msra.mxu0 0.0
      %1510 = vmatprep.subr.mxu0 0.0
      %1511 = vmatpush1.msra.mxu0 0.0
      %1512 = vmatprep.subr.mxu0 0.0
      %1513 = vmatpush1.msra.mxu0 0.0
      %1514 = vmatprep.subr.mxu0 0.0
      %1515 = vmatpush1.msra.mxu0 0.0
      %1516 = vmatprep.subr.mxu0 0.0
      %1517 = vmatpush1.msra.mxu0 0.0
      %1518 = vmatprep.subr.mxu0 0.0
      %1519 = vmatpush1.msra.mxu0 0.0
      %1520 = vmatprep.subr.mxu0 0.0
      %1521 = vmatpush1.msra.mxu0 0.0
      %1522 = vmatprep.subr.mxu0 0.0
      %1523 = vmatpush1.msra.mxu0 0.0
      %1524 = vmatprep.subr.mxu0 0.0
      %1525 = vmatpush1.msra.mxu0 0.0
      %1526 = vmatprep.subr.mxu0 0.0
      %1527 = vmatpush1.msra.mxu0 0.0
      %1528 = vmatprep.subr.mxu0 0.0
      %1529 = vmatpush1.msra.mxu0 0.0
      %1530 = vmatprep.subr.mxu0 0.0
      %1531 = vmatpush1.msra.mxu0 0.0
      %1532 = vmatprep.subr.mxu0 0.0
      %1533 = vmatpush1.msra.mxu0 0.0
      %1534 = vmatprep.subr.mxu0 0.0
      %1535 = vmatpush1.msra.mxu0 0.0
      %1536 = vmatprep.subr.mxu0 0.0
      %1537 = vmatpush1.msra.mxu0 0.0
      %1538 = vmatprep.subr.mxu0 0.0
      %1539 = vmatpush1.msra.mxu0 0.0
      %1540 = vmatprep.subr.mxu0 0.0
      %1541 = vmatpush1.msra.mxu0 0.0
      %1542 = vmatprep.subr.mxu0 0.0
      %1543 = vmatpush1.msra.mxu0 0.0
      %1544 = vmatprep.subr.mxu0 0.0
      %1545 = vmatpush1.msra.mxu0 0.0
      %1546 = vmatprep.subr.mxu0 0.0
      %1547 = vmatpush1.msra.mxu0 0.0
      %1548 = vmatprep.subr.mxu0 0.0
      %1549 = vmatpush1.msra.mxu0 0.0
      %1550 = vmatprep.subr.mxu0 0.0
      %1551 = vmatpush1.msra.mxu0 0.0
      %1552 = vmatprep.subr.mxu0 0.0
      %1553 = vmatpush1.msra.mxu0 0.0
      %1554 = vmatprep.subr.mxu0 0.0
      %1555 = vmatpush1.msra.mxu0 0.0
      %1556 = vmatprep.subr.mxu0 0.0
      %1557 = vmatpush1.msra.mxu0 0.0
      %1558 = vmatprep.mubr.f32.mxu0 0.0
      %1559 = vmatmul.mubr.f32.gmra.mrb[0].mxu0 %v1490
      %v1560 = vpop.f32.mrb[0].mxu0
      %v1561 = vadd.f32 0.0, %v1560
      %v1562 = vpop.f32.mrb[0].mxu0
      %1563 = vdwg.mxu0
      %v1564 = vadd.f32 %v1485, %v1561
      %v1565 = vld [vmem:[%s843] sm:$0xff]
      %1566 = vrot.lane.b32.xlu0 %v1407, 126
      %v1567 = vpop.permute.xlu0 %1566
      %v1569 = vsel %vm205, %v1565, 0
      %v1571 = vsel %vm209, %v1567, 0
      %1573 = vmatprep.subr.mxu0 0.0
      %1574 = vmatpush1.msra.mxu0 %v1571
      %1575 = vmatprep.subr.mxu0 0.0
      %1576 = vmatpush1.msra.mxu0 0.0
      %1577 = vmatprep.subr.mxu0 0.0
      %1578 = vmatpush1.msra.mxu0 0.0
      %1579 = vmatprep.subr.mxu0 0.0
      %1580 = vmatpush1.msra.mxu0 0.0
      %1581 = vmatprep.subr.mxu0 0.0
      %1582 = vmatpush1.msra.mxu0 0.0
      %1583 = vmatprep.subr.mxu0 0.0
      %1584 = vmatpush1.msra.mxu0 0.0
      %1585 = vmatprep.subr.mxu0 0.0
      %1586 = vmatpush1.msra.mxu0 0.0
      %1587 = vmatprep.subr.mxu0 0.0
      %1588 = vmatpush1.msra.mxu0 0.0
      %1589 = vmatprep.subr.mxu0 0.0
      %1590 = vmatpush1.msra.mxu0 0.0
      %1591 = vmatprep.subr.mxu0 0.0
      %1592 = vmatpush1.msra.mxu0 0.0
      %1593 = vmatprep.subr.mxu0 0.0
      %1594 = vmatpush1.msra.mxu0 0.0
      %1595 = vmatprep.subr.mxu0 0.0
      %1596 = vmatpush1.msra.mxu0 0.0
      %1597 = vmatprep.subr.mxu0 0.0
      %1598 = vmatpush1.msra.mxu0 0.0
      %1599 = vmatprep.subr.mxu0 0.0
      %1600 = vmatpush1.msra.mxu0 0.0
      %1601 = vmatprep.subr.mxu0 0.0
      %1602 = vmatpush1.msra.mxu0 0.0
      %1603 = vmatprep.subr.mxu0 0.0
      %1604 = vmatpush1.msra.mxu0 0.0
      %1605 = vmatprep.subr.mxu0 0.0
      %1606 = vmatpush1.msra.mxu0 0.0
      %1607 = vmatprep.subr.mxu0 0.0
      %1608 = vmatpush1.msra.mxu0 0.0
      %1609 = vmatprep.subr.mxu0 0.0
      %1610 = vmatpush1.msra.mxu0 0.0
      %1611 = vmatprep.subr.mxu0 0.0
      %1612 = vmatpush1.msra.mxu0 0.0
      %1613 = vmatprep.subr.mxu0 0.0
      %1614 = vmatpush1.msra.mxu0 0.0
      %1615 = vmatprep.subr.mxu0 0.0
      %1616 = vmatpush1.msra.mxu0 0.0
      %1617 = vmatprep.subr.mxu0 0.0
      %1618 = vmatpush1.msra.mxu0 0.0
      %1619 = vmatprep.subr.mxu0 0.0
      %1620 = vmatpush1.msra.mxu0 0.0
      %1621 = vmatprep.subr.mxu0 0.0
      %1622 = vmatpush1.msra.mxu0 0.0
      %1623 = vmatprep.subr.mxu0 0.0
      %1624 = vmatpush1.msra.mxu0 0.0
      %1625 = vmatprep.subr.mxu0 0.0
      %1626 = vmatpush1.msra.mxu0 0.0
      %1627 = vmatprep.subr.mxu0 0.0
      %1628 = vmatpush1.msra.mxu0 0.0
      %1629 = vmatprep.subr.mxu0 0.0
      %1630 = vmatpush1.msra.mxu0 0.0
      %1631 = vmatprep.subr.mxu0 0.0
      %1632 = vmatpush1.msra.mxu0 0.0
      %1633 = vmatprep.subr.mxu0 0.0
      %1634 = vmatpush1.msra.mxu0 0.0
      %1635 = vmatprep.subr.mxu0 0.0
      %1636 = vmatpush1.msra.mxu0 0.0
      %1637 = vmatprep.mubr.f32.mxu0 0.0
      %1638 = vmatmul.mubr.f32.gmra.mrb[0].mxu0 %v1569
      %v1639 = vpop.f32.mrb[0].mxu0
      %v1640 = vadd.f32 0.0, %v1639
      %v1641 = vpop.f32.mrb[0].mxu0
      %1642 = vdwg.mxu0
      %v1643 = vadd.f32 %v1564, %v1640
      %v1644 = vadd.f32 %v1643, %v926
      %v1645 = vmax.f32 %v1644, 0.0
      %s1646 = scalar_lea.vmem %s192, 8
      %1647 = vst.msk [vmem:[%s1646] sm:$0xff] %vm930, %v1645
      %v1648 = vld [vmem:[%s682] sm:$0xf]
      %v1649 = vld [vmem:[%s1] sm:$0xff]
      %v1650 = vld [vmem:[%s200] sm:$0xff]
      %1652 = vrot.lane.b32.xlu0 %v1648, 127
      %v1653 = vpop.permute.xlu0 %1652
      %v1655 = vsel %vm205, %v1650, 0
      %v1657 = vsel %vm209, %v1653, 0
      %1659 = vmatprep.subr.mxu0 0.0
      %1660 = vmatpush1.msra.mxu0 %v1657
      %1661 = vmatprep.subr.mxu0 0.0
      %1662 = vmatpush1.msra.mxu0 0.0
      %1663 = vmatprep.subr.mxu0 0.0
      %1664 = vmatpush1.msra.mxu0 0.0
      %1665 = vmatprep.subr.mxu0 0.0
      %1666 = vmatpush1.msra.mxu0 0.0
      %1667 = vmatprep.subr.mxu0 0.0
      %1668 = vmatpush1.msra.mxu0 0.0
      %1669 = vmatprep.subr.mxu0 0.0
      %1670 = vmatpush1.msra.mxu0 0.0
      %1671 = vmatprep.subr.mxu0 0.0
      %1672 = vmatpush1.msra.mxu0 0.0
      %1673 = vmatprep.subr.mxu0 0.0
      %1674 = vmatpush1.msra.mxu0 0.0
      %1675 = vmatprep.subr.mxu0 0.0
      %1676 = vmatpush1.msra.mxu0 0.0
      %1677 = vmatprep.subr.mxu0 0.0
      %1678 = vmatpush1.msra.mxu0 0.0
      %1679 = vmatprep.subr.mxu0 0.0
      %1680 = vmatpush1.msra.mxu0 0.0
      %1681 = vmatprep.subr.mxu0 0.0
      %1682 = vmatpush1.msra.mxu0 0.0
      %1683 = vmatprep.subr.mxu0 0.0
      %1684 = vmatpush1.msra.mxu0 0.0
      %1685 = vmatprep.subr.mxu0 0.0
      %1686 = vmatpush1.msra.mxu0 0.0
      %1687 = vmatprep.subr.mxu0 0.0
      %1688 = vmatpush1.msra.mxu0 0.0
      %1689 = vmatprep.subr.mxu0 0.0
      %1690 = vmatpush1.msra.mxu0 0.0
      %1691 = vmatprep.subr.mxu0 0.0
      %1692 = vmatpush1.msra.mxu0 0.0
      %1693 = vmatprep.subr.mxu0 0.0
      %1694 = vmatpush1.msra.mxu0 0.0
      %1695 = vmatprep.subr.mxu0 0.0
      %1696 = vmatpush1.msra.mxu0 0.0
      %1697 = vmatprep.subr.mxu0 0.0
      %1698 = vmatpush1.msra.mxu0 0.0
      %1699 = vmatprep.subr.mxu0 0.0
      %1700 = vmatpush1.msra.mxu0 0.0
      %1701 = vmatprep.subr.mxu0 0.0
      %1702 = vmatpush1.msra.mxu0 0.0
      %1703 = vmatprep.subr.mxu0 0.0
      %1704 = vmatpush1.msra.mxu0 0.0
      %1705 = vmatprep.subr.mxu0 0.0
      %1706 = vmatpush1.msra.mxu0 0.0
      %1707 = vmatprep.subr.mxu0 0.0
      %1708 = vmatpush1.msra.mxu0 0.0
      %1709 = vmatprep.subr.mxu0 0.0
      %1710 = vmatpush1.msra.mxu0 0.0
      %1711 = vmatprep.subr.mxu0 0.0
      %1712 = vmatpush1.msra.mxu0 0.0
      %1713 = vmatprep.subr.mxu0 0.0
      %1714 = vmatpush1.msra.mxu0 0.0
      %1715 = vmatprep.subr.mxu0 0.0
      %1716 = vmatpush1.msra.mxu0 0.0
      %1717 = vmatprep.subr.mxu0 0.0
      %1718 = vmatpush1.msra.mxu0 0.0
      %1719 = vmatprep.subr.mxu0 0.0
      %1720 = vmatpush1.msra.mxu0 0.0
      %1721 = vmatprep.subr.mxu0 0.0
      %1722 = vmatpush1.msra.mxu0 0.0
      %1723 = vmatprep.mubr.f32.mxu0 0.0
      %1724 = vmatmul.mubr.f32.gmra.mrb[0].mxu0 %v1655
      %v1725 = vpop.f32.mrb[0].mxu0
      %v1726 = vadd.f32 0.0, %v1725
      %v1727 = vpop.f32.mrb[0].mxu0
      %1728 = vdwg.mxu0
      %v1730 = vsel %vm205, %v1649, 0
      %v1732 = vsel %vm209, %v1648, 0
      %1734 = vmatprep.subr.mxu0 0.0
      %1735 = vmatpush1.msra.mxu0 %v1732
      %1736 = vmatprep.subr.mxu0 0.0
      %1737 = vmatpush1.msra.mxu0 0.0
      %1738 = vmatprep.subr.mxu0 0.0
      %1739 = vmatpush1.msra.mxu0 0.0
      %1740 = vmatprep.subr.mxu0 0.0
      %1741 = vmatpush1.msra.mxu0 0.0
      %1742 = vmatprep.subr.mxu0 0.0
      %1743 = vmatpush1.msra.mxu0 0.0
      %1744 = vmatprep.subr.mxu0 0.0
      %1745 = vmatpush1.msra.mxu0 0.0
      %1746 = vmatprep.subr.mxu0 0.0
      %1747 = vmatpush1.msra.mxu0 0.0
      %1748 = vmatprep.subr.mxu0 0.0
      %1749 = vmatpush1.msra.mxu0 0.0
      %1750 = vmatprep.subr.mxu0 0.0
      %1751 = vmatpush1.msra.mxu0 0.0
      %1752 = vmatprep.subr.mxu0 0.0
      %1753 = vmatpush1.msra.mxu0 0.0
      %1754 = vmatprep.subr.mxu0 0.0
      %1755 = vmatpush1.msra.mxu0 0.0
      %1756 = vmatprep.subr.mxu0 0.0
      %1757 = vmatpush1.msra.mxu0 0.0
      %1758 = vmatprep.subr.mxu0 0.0
      %1759 = vmatpush1.msra.mxu0 0.0
      %1760 = vmatprep.subr.mxu0 0.0
      %1761 = vmatpush1.msra.mxu0 0.0
      %1762 = vmatprep.subr.mxu0 0.0
      %1763 = vmatpush1.msra.mxu0 0.0
      %1764 = vmatprep.subr.mxu0 0.0
      %1765 = vmatpush1.msra.mxu0 0.0
      %1766 = vmatprep.subr.mxu0 0.0
      %1767 = vmatpush1.msra.mxu0 0.0
      %1768 = vmatprep.subr.mxu0 0.0
      %1769 = vmatpush1.msra.mxu0 0.0
      %1770 = vmatprep.subr.mxu0 0.0
      %1771 = vmatpush1.msra.mxu0 0.0
      %1772 = vmatprep.subr.mxu0 0.0
      %1773 = vmatpush1.msra.mxu0 0.0
      %1774 = vmatprep.subr.mxu0 0.0
      %1775 = vmatpush1.msra.mxu0 0.0
      %1776 = vmatprep.subr.mxu0 0.0
      %1777 = vmatpush1.msra.mxu0 0.0
      %1778 = vmatprep.subr.mxu0 0.0
      %1779 = vmatpush1.msra.mxu0 0.0
      %1780 = vmatprep.subr.mxu0 0.0
      %1781 = vmatpush1.msra.mxu0 0.0
      %1782 = vmatprep.subr.mxu0 0.0
      %1783 = vmatpush1.msra.mxu0 0.0
      %1784 = vmatprep.subr.mxu0 0.0
      %1785 = vmatpush1.msra.mxu0 0.0
      %1786 = vmatprep.subr.mxu0 0.0
      %1787 = vmatpush1.msra.mxu0 0.0
      %1788 = vmatprep.subr.mxu0 0.0
      %1789 = vmatpush1.msra.mxu0 0.0
      %1790 = vmatprep.subr.mxu0 0.0
      %1791 = vmatpush1.msra.mxu0 0.0
      %1792 = vmatprep.subr.mxu0 0.0
      %1793 = vmatpush1.msra.mxu0 0.0
      %1794 = vmatprep.subr.mxu0 0.0
      %1795 = vmatpush1.msra.mxu0 0.0
      %1796 = vmatprep.subr.mxu0 0.0
      %1797 = vmatpush1.msra.mxu0 0.0
      %1798 = vmatprep.mubr.f32.mxu0 0.0
      %1799 = vmatmul.mubr.f32.gmra.mrb[0].mxu0 %v1730
      %v1800 = vpop.f32.mrb[0].mxu0
      %v1801 = vadd.f32 %v1726, %v1800
      %v1802 = vpop.f32.mrb[0].mxu0
      %1803 = vdwg.mxu0
      %v1804 = vld [vmem:[%s357] sm:$0xff]
      %1805 = vrot.lane.b32.xlu0 %v1648, 126
      %v1806 = vpop.permute.xlu0 %1805
      %v1808 = vsel %vm205, %v1804, 0
      %v1810 = vsel %vm209, %v1806, 0
      %1812 = vmatprep.subr.mxu0 0.0
      %1813 = vmatpush1.msra.mxu0 %v1810
      %1814 = vmatprep.subr.mxu0 0.0
      %1815 = vmatpush1.msra.mxu0 0.0
      %1816 = vmatprep.subr.mxu0 0.0
      %1817 = vmatpush1.msra.mxu0 0.0
      %1818 = vmatprep.subr.mxu0 0.0
      %1819 = vmatpush1.msra.mxu0 0.0
      %1820 = vmatprep.subr.mxu0 0.0
      %1821 = vmatpush1.msra.mxu0 0.0
      %1822 = vmatprep.subr.mxu0 0.0
      %1823 = vmatpush1.msra.mxu0 0.0
      %1824 = vmatprep.subr.mxu0 0.0
      %1825 = vmatpush1.msra.mxu0 0.0
      %1826 = vmatprep.subr.mxu0 0.0
      %1827 = vmatpush1.msra.mxu0 0.0
      %1828 = vmatprep.subr.mxu0 0.0
      %1829 = vmatpush1.msra.mxu0 0.0
      %1830 = vmatprep.subr.mxu0 0.0
      %1831 = vmatpush1.msra.mxu0 0.0
      %1832 = vmatprep.subr.mxu0 0.0
      %1833 = vmatpush1.msra.mxu0 0.0
      %1834 = vmatprep.subr.mxu0 0.0
      %1835 = vmatpush1.msra.mxu0 0.0
      %1836 = vmatprep.subr.mxu0 0.0
      %1837 = vmatpush1.msra.mxu0 0.0
      %1838 = vmatprep.subr.mxu0 0.0
      %1839 = vmatpush1.msra.mxu0 0.0
      %1840 = vmatprep.subr.mxu0 0.0
      %1841 = vmatpush1.msra.mxu0 0.0
      %1842 = vmatprep.subr.mxu0 0.0
      %1843 = vmatpush1.msra.mxu0 0.0
      %1844 = vmatprep.subr.mxu0 0.0
      %1845 = vmatpush1.msra.mxu0 0.0
      %1846 = vmatprep.subr.mxu0 0.0
      %1847 = vmatpush1.msra.mxu0 0.0
      %1848 = vmatprep.subr.mxu0 0.0
      %1849 = vmatpush1.msra.mxu0 0.0
      %1850 = vmatprep.subr.mxu0 0.0
      %1851 = vmatpush1.msra.mxu0 0.0
      %1852 = vmatprep.subr.mxu0 0.0
      %1853 = vmatpush1.msra.mxu0 0.0
      %1854 = vmatprep.subr.mxu0 0.0
      %1855 = vmatpush1.msra.mxu0 0.0
      %1856 = vmatprep.subr.mxu0 0.0
      %1857 = vmatpush1.msra.mxu0 0.0
      %1858 = vmatprep.subr.mxu0 0.0
      %1859 = vmatpush1.msra.mxu0 0.0
      %1860 = vmatprep.subr.mxu0 0.0
      %1861 = vmatpush1.msra.mxu0 0.0
      %1862 = vmatprep.subr.mxu0 0.0
      %1863 = vmatpush1.msra.mxu0 0.0
      %1864 = vmatprep.subr.mxu0 0.0
      %1865 = vmatpush1.msra.mxu0 0.0
      %1866 = vmatprep.subr.mxu0 0.0
      %1867 = vmatpush1.msra.mxu0 0.0
      %1868 = vmatprep.subr.mxu0 0.0
      %1869 = vmatpush1.msra.mxu0 0.0
      %1870 = vmatprep.subr.mxu0 0.0
      %1871 = vmatpush1.msra.mxu0 0.0
      %1872 = vmatprep.subr.mxu0 0.0
      %1873 = vmatpush1.msra.mxu0 0.0
      %1874 = vmatprep.subr.mxu0 0.0
      %1875 = vmatpush1.msra.mxu0 0.0
      %1876 = vmatprep.mubr.f32.mxu0 0.0
      %1877 = vmatmul.mubr.f32.gmra.mrb[0].mxu0 %v1808
      %v1878 = vpop.f32.mrb[0].mxu0
      %v1879 = vadd.f32 0.0, %v1878
      %v1880 = vpop.f32.mrb[0].mxu0
      %1881 = vdwg.mxu0
      %v1882 = vadd.f32 %v1801, %v1879
      %v1883 = vld [vmem:[%s1406] sm:$0xf]
      %v1884 = vld [vmem:[%s441] sm:$0xff]
      %v1886 = vsel %vm205, %v1884, 0
      %v1889 = vsel %vm209, %v1883, 0
      %1891 = vmatprep.subr.mxu0 0.0
      %1892 = vmatpush1.msra.mxu0 %v1889
      %1893 = vmatprep.subr.mxu0 0.0
      %1894 = vmatpush1.msra.mxu0 0.0
      %1895 = vmatprep.subr.mxu0 0.0
      %1896 = vmatpush1.msra.mxu0 0.0
      %1897 = vmatprep.subr.mxu0 0.0
      %1898 = vmatpush1.msra.mxu0 0.0
      %1899 = vmatprep.subr.mxu0 0.0
      %1900 = vmatpush1.msra.mxu0 0.0
      %1901 = vmatprep.subr.mxu0 0.0
      %1902 = vmatpush1.msra.mxu0 0.0
      %1903 = vmatprep.subr.mxu0 0.0
      %1904 = vmatpush1.msra.mxu0 0.0
      %1905 = vmatprep.subr.mxu0 0.0
      %1906 = vmatpush1.msra.mxu0 0.0
      %1907 = vmatprep.subr.mxu0 0.0
      %1908 = vmatpush1.msra.mxu0 0.0
      %1909 = vmatprep.subr.mxu0 0.0
      %1910 = vmatpush1.msra.mxu0 0.0
      %1911 = vmatprep.subr.mxu0 0.0
      %1912 = vmatpush1.msra.mxu0 0.0
      %1913 = vmatprep.subr.mxu0 0.0
      %1914 = vmatpush1.msra.mxu0 0.0
      %1915 = vmatprep.subr.mxu0 0.0
      %1916 = vmatpush1.msra.mxu0 0.0
      %1917 = vmatprep.subr.mxu0 0.0
      %1918 = vmatpush1.msra.mxu0 0.0
      %1919 = vmatprep.subr.mxu0 0.0
      %1920 = vmatpush1.msra.mxu0 0.0
      %1921 = vmatprep.subr.mxu0 0.0
      %1922 = vmatpush1.msra.mxu0 0.0
      %1923 = vmatprep.subr.mxu0 0.0
      %1924 = vmatpush1.msra.mxu0 0.0
      %1925 = vmatprep.subr.mxu0 0.0
      %1926 = vmatpush1.msra.mxu0 0.0
      %1927 = vmatprep.subr.mxu0 0.0
      %1928 = vmatpush1.msra.mxu0 0.0
      %1929 = vmatprep.subr.mxu0 0.0
      %1930 = vmatpush1.msra.mxu0 0.0
      %1931 = vmatprep.subr.mxu0 0.0
      %1932 = vmatpush1.msra.mxu0 0.0
      %1933 = vmatprep.subr.mxu0 0.0
      %1934 = vmatpush1.msra.mxu0 0.0
      %1935 = vmatprep.subr.mxu0 0.0
      %1936 = vmatpush1.msra.mxu0 0.0
      %1937 = vmatprep.subr.mxu0 0.0
      %1938 = vmatpush1.msra.mxu0 0.0
      %1939 = vmatprep.subr.mxu0 0.0
      %1940 = vmatpush1.msra.mxu0 0.0
      %1941 = vmatprep.subr.mxu0 0.0
      %1942 = vmatpush1.msra.mxu0 0.0
      %1943 = vmatprep.subr.mxu0 0.0
      %1944 = vmatpush1.msra.mxu0 0.0
      %1945 = vmatprep.subr.mxu0 0.0
      %1946 = vmatpush1.msra.mxu0 0.0
      %1947 = vmatprep.subr.mxu0 0.0
      %1948 = vmatpush1.msra.mxu0 0.0
      %1949 = vmatprep.subr.mxu0 0.0
      %1950 = vmatpush1.msra.mxu0 0.0
      %1951 = vmatprep.subr.mxu0 0.0
      %1952 = vmatpush1.msra.mxu0 0.0
      %1953 = vmatprep.subr.mxu0 0.0
      %1954 = vmatpush1.msra.mxu0 0.0
      %1955 = vmatprep.mubr.f32.mxu0 0.0
      %1956 = vmatmul.mubr.f32.gmra.mrb[0].mxu0 %v1886
      %v1957 = vpop.f32.mrb[0].mxu0
      %v1958 = vadd.f32 0.0, %v1957
      %v1959 = vpop.f32.mrb[0].mxu0
      %1960 = vdwg.mxu0
      %v1961 = vadd.f32 %v1882, %v1958
      %v1962 = vld [vmem:[%s520] sm:$0xff]
      %1963 = vrot.lane.b32.xlu0 %v1883, 127
      %v1964 = vpop.permute.xlu0 %1963
      %v1966 = vsel %vm205, %v1962, 0
      %v1968 = vsel %vm209, %v1964, 0
      %1970 = vmatprep.subr.mxu0 0.0
      %1971 = vmatpush1.msra.mxu0 %v1968
      %1972 = vmatprep.subr.mxu0 0.0
      %1973 = vmatpush1.msra.mxu0 0.0
      %1974 = vmatprep.subr.mxu0 0.0
      %1975 = vmatpush1.msra.mxu0 0.0
      %1976 = vmatprep.subr.mxu0 0.0
      %1977 = vmatpush1.msra.mxu0 0.0
      %1978 = vmatprep.subr.mxu0 0.0
      %1979 = vmatpush1.msra.mxu0 0.0
      %1980 = vmatprep.subr.mxu0 0.0
      %1981 = vmatpush1.msra.mxu0 0.0
      %1982 = vmatprep.subr.mxu0 0.0
      %1983 = vmatpush1.msra.mxu0 0.0
      %1984 = vmatprep.subr.mxu0 0.0
      %1985 = vmatpush1.msra.mxu0 0.0
      %1986 = vmatprep.subr.mxu0 0.0
      %1987 = vmatpush1.msra.mxu0 0.0
      %1988 = vmatprep.subr.mxu0 0.0
      %1989 = vmatpush1.msra.mxu0 0.0
      %1990 = vmatprep.subr.mxu0 0.0
      %1991 = vmatpush1.msra.mxu0 0.0
      %1992 = vmatprep.subr.mxu0 0.0
      %1993 = vmatpush1.msra.mxu0 0.0
      %1994 = vmatprep.subr.mxu0 0.0
      %1995 = vmatpush1.msra.mxu0 0.0
      %1996 = vmatprep.subr.mxu0 0.0
      %1997 = vmatpush1.msra.mxu0 0.0
      %1998 = vmatprep.subr.mxu0 0.0
      %1999 = vmatpush1.msra.mxu0 0.0
      %2000 = vmatprep.subr.mxu0 0.0
      %2001 = vmatpush1.msra.mxu0 0.0
      %2002 = vmatprep.subr.mxu0 0.0
      %2003 = vmatpush1.msra.mxu0 0.0
      %2004 = vmatprep.subr.mxu0 0.0
      %2005 = vmatpush1.msra.mxu0 0.0
      %2006 = vmatprep.subr.mxu0 0.0
      %2007 = vmatpush1.msra.mxu0 0.0
      %2008 = vmatprep.subr.mxu0 0.0
      %2009 = vmatpush1.msra.mxu0 0.0
      %2010 = vmatprep.subr.mxu0 0.0
      %2011 = vmatpush1.msra.mxu0 0.0
      %2012 = vmatprep.subr.mxu0 0.0
      %2013 = vmatpush1.msra.mxu0 0.0
      %2014 = vmatprep.subr.mxu0 0.0
      %2015 = vmatpush1.msra.mxu0 0.0
      %2016 = vmatprep.subr.mxu0 0.0
      %2017 = vmatpush1.msra.mxu0 0.0
      %2018 = vmatprep.subr.mxu0 0.0
      %2019 = vmatpush1.msra.mxu0 0.0
      %2020 = vmatprep.subr.mxu0 0.0
      %2021 = vmatpush1.msra.mxu0 0.0
      %2022 = vmatprep.subr.mxu0 0.0
      %2023 = vmatpush1.msra.mxu0 0.0
      %2024 = vmatprep.subr.mxu0 0.0
      %2025 = vmatpush1.msra.mxu0 0.0
      %2026 = vmatprep.subr.mxu0 0.0
      %2027 = vmatpush1.msra.mxu0 0.0
      %2028 = vmatprep.subr.mxu0 0.0
      %2029 = vmatpush1.msra.mxu0 0.0
      %2030 = vmatprep.subr.mxu0 0.0
      %2031 = vmatpush1.msra.mxu0 0.0
      %2032 = vmatprep.subr.mxu0 0.0
      %2033 = vmatpush1.msra.mxu0 0.0
      %2034 = vmatprep.mubr.f32.mxu0 0.0
      %2035 = vmatmul.mubr.f32.gmra.mrb[0].mxu0 %v1966
      %v2036 = vpop.f32.mrb[0].mxu0
      %v2037 = vadd.f32 0.0, %v2036
      %v2038 = vpop.f32.mrb[0].mxu0
      %2039 = vdwg.mxu0
      %v2040 = vadd.f32 %v1961, %v2037
      %v2041 = vld [vmem:[%s600] sm:$0xff]
      %2042 = vrot.lane.b32.xlu0 %v1883, 126
      %v2043 = vpop.permute.xlu0 %2042
      %v2045 = vsel %vm205, %v2041, 0
      %v2047 = vsel %vm209, %v2043, 0
      %2049 = vmatprep.subr.mxu0 0.0
      %2050 = vmatpush1.msra.mxu0 %v2047
      %2051 = vmatprep.subr.mxu0 0.0
      %2052 = vmatpush1.msra.mxu0 0.0
      %2053 = vmatprep.subr.mxu0 0.0
      %2054 = vmatpush1.msra.mxu0 0.0
      %2055 = vmatprep.subr.mxu0 0.0
      %2056 = vmatpush1.msra.mxu0 0.0
      %2057 = vmatprep.subr.mxu0 0.0
      %2058 = vmatpush1.msra.mxu0 0.0
      %2059 = vmatprep.subr.mxu0 0.0
      %2060 = vmatpush1.msra.mxu0 0.0
      %2061 = vmatprep.subr.mxu0 0.0
      %2062 = vmatpush1.msra.mxu0 0.0
      %2063 = vmatprep.subr.mxu0 0.0
      %2064 = vmatpush1.msra.mxu0 0.0
      %2065 = vmatprep.subr.mxu0 0.0
      %2066 = vmatpush1.msra.mxu0 0.0
      %2067 = vmatprep.subr.mxu0 0.0
      %2068 = vmatpush1.msra.mxu0 0.0
      %2069 = vmatprep.subr.mxu0 0.0
      %2070 = vmatpush1.msra.mxu0 0.0
      %2071 = vmatprep.subr.mxu0 0.0
      %2072 = vmatpush1.msra.mxu0 0.0
      %2073 = vmatprep.subr.mxu0 0.0
      %2074 = vmatpush1.msra.mxu0 0.0
      %2075 = vmatprep.subr.mxu0 0.0
      %2076 = vmatpush1.msra.mxu0 0.0
      %2077 = vmatprep.subr.mxu0 0.0
      %2078 = vmatpush1.msra.mxu0 0.0
      %2079 = vmatprep.subr.mxu0 0.0
      %2080 = vmatpush1.msra.mxu0 0.0
      %2081 = vmatprep.subr.mxu0 0.0
      %2082 = vmatpush1.msra.mxu0 0.0
      %2083 = vmatprep.subr.mxu0 0.0
      %2084 = vmatpush1.msra.mxu0 0.0
      %2085 = vmatprep.subr.mxu0 0.0
      %2086 = vmatpush1.msra.mxu0 0.0
      %2087 = vmatprep.subr.mxu0 0.0
      %2088 = vmatpush1.msra.mxu0 0.0
      %2089 = vmatprep.subr.mxu0 0.0
      %2090 = vmatpush1.msra.mxu0 0.0
      %2091 = vmatprep.subr.mxu0 0.0
      %2092 = vmatpush1.msra.mxu0 0.0
      %2093 = vmatprep.subr.mxu0 0.0
      %2094 = vmatpush1.msra.mxu0 0.0
      %2095 = vmatprep.subr.mxu0 0.0
      %2096 = vmatpush1.msra.mxu0 0.0
      %2097 = vmatprep.subr.mxu0 0.0
      %2098 = vmatpush1.msra.mxu0 0.0
      %2099 = vmatprep.subr.mxu0 0.0
      %2100 = vmatpush1.msra.mxu0 0.0
      %2101 = vmatprep.subr.mxu0 0.0
      %2102 = vmatpush1.msra.mxu0 0.0
      %2103 = vmatprep.subr.mxu0 0.0
      %2104 = vmatpush1.msra.mxu0 0.0
      %2105 = vmatprep.subr.mxu0 0.0
      %2106 = vmatpush1.msra.mxu0 0.0
      %2107 = vmatprep.subr.mxu0 0.0
      %2108 = vmatpush1.msra.mxu0 0.0
      %2109 = vmatprep.subr.mxu0 0.0
      %2110 = vmatpush1.msra.mxu0 0.0
      %2111 = vmatprep.subr.mxu0 0.0
      %2112 = vmatpush1.msra.mxu0 0.0
      %2113 = vmatprep.mubr.f32.mxu0 0.0
      %2114 = vmatmul.mubr.f32.gmra.mrb[0].mxu0 %v2045
      %v2115 = vpop.f32.mrb[0].mxu0
      %v2116 = vadd.f32 0.0, %v2115
      %v2117 = vpop.f32.mrb[0].mxu0
      %2118 = vdwg.mxu0
      %v2119 = vadd.f32 %v2040, %v2116
      %s2120 = sadd.s32 %s194, 4
      %s2121 = smul.u32 %s2120, 4
      %s2122 = scalar_lea.vmem %s183, %s2121
      %v2123 = vld [vmem:[%s2122] sm:$0xf]
      %v2124 = vld [vmem:[%s684] sm:$0xff]
      %v2126 = vsel %vm205, %v2124, 0
      %v2129 = vsel %vm209, %v2123, 0
      %2131 = vmatprep.subr.mxu0 0.0
      %2132 = vmatpush1.msra.mxu0 %v2129
      %2133 = vmatprep.subr.mxu0 0.0
      %2134 = vmatpush1.msra.mxu0 0.0
      %2135 = vmatprep.subr.mxu0 0.0
      %2136 = vmatpush1.msra.mxu0 0.0
      %2137 = vmatprep.subr.mxu0 0.0
      %2138 = vmatpush1.msra.mxu0 0.0
      %2139 = vmatprep.subr.mxu0 0.0
      %2140 = vmatpush1.msra.mxu0 0.0
      %2141 = vmatprep.subr.mxu0 0.0
      %2142 = vmatpush1.msra.mxu0 0.0
      %2143 = vmatprep.subr.mxu0 0.0
      %2144 = vmatpush1.msra.mxu0 0.0
      %2145 = vmatprep.subr.mxu0 0.0
      %2146 = vmatpush1.msra.mxu0 0.0
      %2147 = vmatprep.subr.mxu0 0.0
      %2148 = vmatpush1.msra.mxu0 0.0
      %2149 = vmatprep.subr.mxu0 0.0
      %2150 = vmatpush1.msra.mxu0 0.0
      %2151 = vmatprep.subr.mxu0 0.0
      %2152 = vmatpush1.msra.mxu0 0.0
      %2153 = vmatprep.subr.mxu0 0.0
      %2154 = vmatpush1.msra.mxu0 0.0
      %2155 = vmatprep.subr.mxu0 0.0
      %2156 = vmatpush1.msra.mxu0 0.0
      %2157 = vmatprep.subr.mxu0 0.0
      %2158 = vmatpush1.msra.mxu0 0.0
      %2159 = vmatprep.subr.mxu0 0.0
      %2160 = vmatpush1.msra.mxu0 0.0
      %2161 = vmatprep.subr.mxu0 0.0
      %2162 = vmatpush1.msra.mxu0 0.0
      %2163 = vmatprep.subr.mxu0 0.0
      %2164 = vmatpush1.msra.mxu0 0.0
      %2165 = vmatprep.subr.mxu0 0.0
      %2166 = vmatpush1.msra.mxu0 0.0
      %2167 = vmatprep.subr.mxu0 0.0
      %2168 = vmatpush1.msra.mxu0 0.0
      %2169 = vmatprep.subr.mxu0 0.0
      %2170 = vmatpush1.msra.mxu0 0.0
      %2171 = vmatprep.subr.mxu0 0.0
      %2172 = vmatpush1.msra.mxu0 0.0
      %2173 = vmatprep.subr.mxu0 0.0
      %2174 = vmatpush1.msra.mxu0 0.0
      %2175 = vmatprep.subr.mxu0 0.0
      %2176 = vmatpush1.msra.mxu0 0.0
      %2177 = vmatprep.subr.mxu0 0.0
      %2178 = vmatpush1.msra.mxu0 0.0
      %2179 = vmatprep.subr.mxu0 0.0
      %2180 = vmatpush1.msra.mxu0 0.0
      %2181 = vmatprep.subr.mxu0 0.0
      %2182 = vmatpush1.msra.mxu0 0.0
      %2183 = vmatprep.subr.mxu0 0.0
      %2184 = vmatpush1.msra.mxu0 0.0
      %2185 = vmatprep.subr.mxu0 0.0
      %2186 = vmatpush1.msra.mxu0 0.0
      %2187 = vmatprep.subr.mxu0 0.0
      %2188 = vmatpush1.msra.mxu0 0.0
      %2189 = vmatprep.subr.mxu0 0.0
      %2190 = vmatpush1.msra.mxu0 0.0
      %2191 = vmatprep.subr.mxu0 0.0
      %2192 = vmatpush1.msra.mxu0 0.0
      %2193 = vmatprep.subr.mxu0 0.0
      %2194 = vmatpush1.msra.mxu0 0.0
      %2195 = vmatprep.mubr.f32.mxu0 0.0
      %2196 = vmatmul.mubr.f32.gmra.mrb[0].mxu0 %v2126
      %v2197 = vpop.f32.mrb[0].mxu0
      %v2198 = vadd.f32 0.0, %v2197
      %v2199 = vpop.f32.mrb[0].mxu0
      %2200 = vdwg.mxu0
      %v2201 = vadd.f32 %v2119, %v2198
      %v2202 = vld [vmem:[%s763] sm:$0xff]
      %2203 = vrot.lane.b32.xlu0 %v2123, 127
      %v2204 = vpop.permute.xlu0 %2203
      %v2206 = vsel %vm205, %v2202, 0
      %v2208 = vsel %vm209, %v2204, 0
      %2210 = vmatprep.subr.mxu0 0.0
      %2211 = vmatpush1.msra.mxu0 %v2208
      %2212 = vmatprep.subr.mxu0 0.0
      %2213 = vmatpush1.msra.mxu0 0.0
      %2214 = vmatprep.subr.mxu0 0.0
      %2215 = vmatpush1.msra.mxu0 0.0
      %2216 = vmatprep.subr.mxu0 0.0
      %2217 = vmatpush1.msra.mxu0 0.0
      %2218 = vmatprep.subr.mxu0 0.0
      %2219 = vmatpush1.msra.mxu0 0.0
      %2220 = vmatprep.subr.mxu0 0.0
      %2221 = vmatpush1.msra.mxu0 0.0
      %2222 = vmatprep.subr.mxu0 0.0
      %2223 = vmatpush1.msra.mxu0 0.0
      %2224 = vmatprep.subr.mxu0 0.0
      %2225 = vmatpush1.msra.mxu0 0.0
      %2226 = vmatprep.subr.mxu0 0.0
      %2227 = vmatpush1.msra.mxu0 0.0
      %2228 = vmatprep.subr.mxu0 0.0
      %2229 = vmatpush1.msra.mxu0 0.0
      %2230 = vmatprep.subr.mxu0 0.0
      %2231 = vmatpush1.msra.mxu0 0.0
      %2232 = vmatprep.subr.mxu0 0.0
      %2233 = vmatpush1.msra.mxu0 0.0
      %2234 = vmatprep.subr.mxu0 0.0
      %2235 = vmatpush1.msra.mxu0 0.0
      %2236 = vmatprep.subr.mxu0 0.0
      %2237 = vmatpush1.msra.mxu0 0.0
      %2238 = vmatprep.subr.mxu0 0.0
      %2239 = vmatpush1.msra.mxu0 0.0
      %2240 = vmatprep.subr.mxu0 0.0
      %2241 = vmatpush1.msra.mxu0 0.0
      %2242 = vmatprep.subr.mxu0 0.0
      %2243 = vmatpush1.msra.mxu0 0.0
      %2244 = vmatprep.subr.mxu0 0.0
      %2245 = vmatpush1.msra.mxu0 0.0
      %2246 = vmatprep.subr.mxu0 0.0
      %2247 = vmatpush1.msra.mxu0 0.0
      %2248 = vmatprep.subr.mxu0 0.0
      %2249 = vmatpush1.msra.mxu0 0.0
      %2250 = vmatprep.subr.mxu0 0.0
      %2251 = vmatpush1.msra.mxu0 0.0
      %2252 = vmatprep.subr.mxu0 0.0
      %2253 = vmatpush1.msra.mxu0 0.0
      %2254 = vmatprep.subr.mxu0 0.0
      %2255 = vmatpush1.msra.mxu0 0.0
      %2256 = vmatprep.subr.mxu0 0.0
      %2257 = vmatpush1.msra.mxu0 0.0
      %2258 = vmatprep.subr.mxu0 0.0
      %2259 = vmatpush1.msra.mxu0 0.0
      %2260 = vmatprep.subr.mxu0 0.0
      %2261 = vmatpush1.msra.mxu0 0.0
      %2262 = vmatprep.subr.mxu0 0.0
      %2263 = vmatpush1.msra.mxu0 0.0
      %2264 = vmatprep.subr.mxu0 0.0
      %2265 = vmatpush1.msra.mxu0 0.0
      %2266 = vmatprep.subr.mxu0 0.0
      %2267 = vmatpush1.msra.mxu0 0.0
      %2268 = vmatprep.subr.mxu0 0.0
      %2269 = vmatpush1.msra.mxu0 0.0
      %2270 = vmatprep.subr.mxu0 0.0
      %2271 = vmatpush1.msra.mxu0 0.0
      %2272 = vmatprep.subr.mxu0 0.0
      %2273 = vmatpush1.msra.mxu0 0.0
      %2274 = vmatprep.mubr.f32.mxu0 0.0
      %2275 = vmatmul.mubr.f32.gmra.mrb[0].mxu0 %v2206
      %v2276 = vpop.f32.mrb[0].mxu0
      %v2277 = vadd.f32 0.0, %v2276
      %v2278 = vpop.f32.mrb[0].mxu0
      %2279 = vdwg.mxu0
      %v2280 = vadd.f32 %v2201, %v2277
      %v2281 = vld [vmem:[%s843] sm:$0xff]
      %2282 = vrot.lane.b32.xlu0 %v2123, 126
      %v2283 = vpop.permute.xlu0 %2282
      %v2285 = vsel %vm205, %v2281, 0
      %v2287 = vsel %vm209, %v2283, 0
      %2289 = vmatprep.subr.mxu0 0.0
      %2290 = vmatpush1.msra.mxu0 %v2287
      %2291 = vmatprep.subr.mxu0 0.0
      %2292 = vmatpush1.msra.mxu0 0.0
      %2293 = vmatprep.subr.mxu0 0.0
      %2294 = vmatpush1.msra.mxu0 0.0
      %2295 = vmatprep.subr.mxu0 0.0
      %2296 = vmatpush1.msra.mxu0 0.0
      %2297 = vmatprep.subr.mxu0 0.0
      %2298 = vmatpush1.msra.mxu0 0.0
      %2299 = vmatprep.subr.mxu0 0.0
      %2300 = vmatpush1.msra.mxu0 0.0
      %2301 = vmatprep.subr.mxu0 0.0
      %2302 = vmatpush1.msra.mxu0 0.0
      %2303 = vmatprep.subr.mxu0 0.0
      %2304 = vmatpush1.msra.mxu0 0.0
      %2305 = vmatprep.subr.mxu0 0.0
      %2306 = vmatpush1.msra.mxu0 0.0
      %2307 = vmatprep.subr.mxu0 0.0
      %2308 = vmatpush1.msra.mxu0 0.0
      %2309 = vmatprep.subr.mxu0 0.0
      %2310 = vmatpush1.msra.mxu0 0.0
      %2311 = vmatprep.subr.mxu0 0.0
      %2312 = vmatpush1.msra.mxu0 0.0
      %2313 = vmatprep.subr.mxu0 0.0
      %2314 = vmatpush1.msra.mxu0 0.0
      %2315 = vmatprep.subr.mxu0 0.0
      %2316 = vmatpush1.msra.mxu0 0.0
      %2317 = vmatprep.subr.mxu0 0.0
      %2318 = vmatpush1.msra.mxu0 0.0
      %2319 = vmatprep.subr.mxu0 0.0
      %2320 = vmatpush1.msra.mxu0 0.0
      %2321 = vmatprep.subr.mxu0 0.0
      %2322 = vmatpush1.msra.mxu0 0.0
      %2323 = vmatprep.subr.mxu0 0.0
      %2324 = vmatpush1.msra.mxu0 0.0
      %2325 = vmatprep.subr.mxu0 0.0
      %2326 = vmatpush1.msra.mxu0 0.0
      %2327 = vmatprep.subr.mxu0 0.0
      %2328 = vmatpush1.msra.mxu0 0.0
      %2329 = vmatprep.subr.mxu0 0.0
      %2330 = vmatpush1.msra.mxu0 0.0
      %2331 = vmatprep.subr.mxu0 0.0
      %2332 = vmatpush1.msra.mxu0 0.0
      %2333 = vmatprep.subr.mxu0 0.0
      %2334 = vmatpush1.msra.mxu0 0.0
      %2335 = vmatprep.subr.mxu0 0.0
      %2336 = vmatpush1.msra.mxu0 0.0
      %2337 = vmatprep.subr.mxu0 0.0
      %2338 = vmatpush1.msra.mxu0 0.0
      %2339 = vmatprep.subr.mxu0 0.0
      %2340 = vmatpush1.msra.mxu0 0.0
      %2341 = vmatprep.subr.mxu0 0.0
      %2342 = vmatpush1.msra.mxu0 0.0
      %2343 = vmatprep.subr.mxu0 0.0
      %2344 = vmatpush1.msra.mxu0 0.0
      %2345 = vmatprep.subr.mxu0 0.0
      %2346 = vmatpush1.msra.mxu0 0.0
      %2347 = vmatprep.subr.mxu0 0.0
      %2348 = vmatpush1.msra.mxu0 0.0
      %2349 = vmatprep.subr.mxu0 0.0
      %2350 = vmatpush1.msra.mxu0 0.0
      %2351 = vmatprep.subr.mxu0 0.0
      %2352 = vmatpush1.msra.mxu0 0.0
      %2353 = vmatprep.mubr.f32.mxu0 0.0
      %2354 = vmatmul.mubr.f32.gmra.mrb[0].mxu0 %v2285
      %v2355 = vpop.f32.mrb[0].mxu0
      %v2356 = vadd.f32 0.0, %v2355
      %v2357 = vpop.f32.mrb[0].mxu0
      %2358 = vdwg.mxu0
      %v2359 = vadd.f32 %v2280, %v2356
      %v2360 = vadd.f32 %v2359, %v926
      %v2361 = vmax.f32 %v2360, 0.0
      %s2362 = scalar_lea.vmem %s192, 16
      %2363 = vst.msk [vmem:[%s2362] sm:$0xff] %vm930, %v2361
      %v2364 = vld [vmem:[%s1406] sm:$0xf]
      %v2365 = vld [vmem:[%s1] sm:$0xff]
      %v2366 = vld [vmem:[%s200] sm:$0xff]
      %2368 = vrot.lane.b32.xlu0 %v2364, 127
      %v2369 = vpop.permute.xlu0 %2368
      %v2371 = vsel %vm205, %v2366, 0
      %v2373 = vsel %vm209, %v2369, 0
      %2375 = vmatprep.subr.mxu0 0.0
      %2376 = vmatpush1.msra.mxu0 %v2373
      %2377 = vmatprep.subr.mxu0 0.0
      %2378 = vmatpush1.msra.mxu0 0.0
      %2379 = vmatprep.subr.mxu0 0.0
      %2380 = vmatpush1.msra.mxu0 0.0
      %2381 = vmatprep.subr.mxu0 0.0
      %2382 = vmatpush1.msra.mxu0 0.0
      %2383 = vmatprep.subr.mxu0 0.0
      %2384 = vmatpush1.msra.mxu0 0.0
      %2385 = vmatprep.subr.mxu0 0.0
      %2386 = vmatpush1.msra.mxu0 0.0
      %2387 = vmatprep.subr.mxu0 0.0
      %2388 = vmatpush1.msra.mxu0 0.0
      %2389 = vmatprep.subr.mxu0 0.0
      %2390 = vmatpush1.msra.mxu0 0.0
      %2391 = vmatprep.subr.mxu0 0.0
      %2392 = vmatpush1.msra.mxu0 0.0
      %2393 = vmatprep.subr.mxu0 0.0
      %2394 = vmatpush1.msra.mxu0 0.0
      %2395 = vmatprep.subr.mxu0 0.0
      %2396 = vmatpush1.msra.mxu0 0.0
      %2397 = vmatprep.subr.mxu0 0.0
      %2398 = vmatpush1.msra.mxu0 0.0
      %2399 = vmatprep.subr.mxu0 0.0
      %2400 = vmatpush1.msra.mxu0 0.0
      %2401 = vmatprep.subr.mxu0 0.0
      %2402 = vmatpush1.msra.mxu0 0.0
      %2403 = vmatprep.subr.mxu0 0.0
      %2404 = vmatpush1.msra.mxu0 0.0
      %2405 = vmatprep.subr.mxu0 0.0
      %2406 = vmatpush1.msra.mxu0 0.0
      %2407 = vmatprep.subr.mxu0 0.0
      %2408 = vmatpush1.msra.mxu0 0.0
      %2409 = vmatprep.subr.mxu0 0.0
      %2410 = vmatpush1.msra.mxu0 0.0
      %2411 = vmatprep.subr.mxu0 0.0
      %2412 = vmatpush1.msra.mxu0 0.0
      %2413 = vmatprep.subr.mxu0 0.0
      %2414 = vmatpush1.msra.mxu0 0.0
      %2415 = vmatprep.subr.mxu0 0.0
      %2416 = vmatpush1.msra.mxu0 0.0
      %2417 = vmatprep.subr.mxu0 0.0
      %2418 = vmatpush1.msra.mxu0 0.0
      %2419 = vmatprep.subr.mxu0 0.0
      %2420 = vmatpush1.msra.mxu0 0.0
      %2421 = vmatprep.subr.mxu0 0.0
      %2422 = vmatpush1.msra.mxu0 0.0
      %2423 = vmatprep.subr.mxu0 0.0
      %2424 = vmatpush1.msra.mxu0 0.0
      %2425 = vmatprep.subr.mxu0 0.0
      %2426 = vmatpush1.msra.mxu0 0.0
      %2427 = vmatprep.subr.mxu0 0.0
      %2428 = vmatpush1.msra.mxu0 0.0
      %2429 = vmatprep.subr.mxu0 0.0
      %2430 = vmatpush1.msra.mxu0 0.0
      %2431 = vmatprep.subr.mxu0 0.0
      %2432 = vmatpush1.msra.mxu0 0.0
      %2433 = vmatprep.subr.mxu0 0.0
      %2434 = vmatpush1.msra.mxu0 0.0
      %2435 = vmatprep.subr.mxu0 0.0
      %2436 = vmatpush1.msra.mxu0 0.0
      %2437 = vmatprep.subr.mxu0 0.0
      %2438 = vmatpush1.msra.mxu0 0.0
      %2439 = vmatprep.mubr.f32.mxu0 0.0
      %2440 = vmatmul.mubr.f32.gmra.mrb[0].mxu0 %v2371
      %v2441 = vpop.f32.mrb[0].mxu0
      %v2442 = vadd.f32 0.0, %v2441
      %v2443 = vpop.f32.mrb[0].mxu0
      %2444 = vdwg.mxu0
      %v2446 = vsel %vm205, %v2365, 0
      %v2448 = vsel %vm209, %v2364, 0
      %2450 = vmatprep.subr.mxu0 0.0
      %2451 = vmatpush1.msra.mxu0 %v2448
      %2452 = vmatprep.subr.mxu0 0.0
      %2453 = vmatpush1.msra.mxu0 0.0
      %2454 = vmatprep.subr.mxu0 0.0
      %2455 = vmatpush1.msra.mxu0 0.0
      %2456 = vmatprep.subr.mxu0 0.0
      %2457 = vmatpush1.msra.mxu0 0.0
      %2458 = vmatprep.subr.mxu0 0.0
      %2459 = vmatpush1.msra.mxu0 0.0
      %2460 = vmatprep.subr.mxu0 0.0
      %2461 = vmatpush1.msra.mxu0 0.0
      %2462 = vmatprep.subr.mxu0 0.0
      %2463 = vmatpush1.msra.mxu0 0.0
      %2464 = vmatprep.subr.mxu0 0.0
      %2465 = vmatpush1.msra.mxu0 0.0
      %2466 = vmatprep.subr.mxu0 0.0
      %2467 = vmatpush1.msra.mxu0 0.0
      %2468 = vmatprep.subr.mxu0 0.0
      %2469 = vmatpush1.msra.mxu0 0.0
      %2470 = vmatprep.subr.mxu0 0.0
      %2471 = vmatpush1.msra.mxu0 0.0
      %2472 = vmatprep.subr.mxu0 0.0
      %2473 = vmatpush1.msra.mxu0 0.0
      %2474 = vmatprep.subr.mxu0 0.0
      %2475 = vmatpush1.msra.mxu0 0.0
      %2476 = vmatprep.subr.mxu0 0.0
      %2477 = vmatpush1.msra.mxu0 0.0
      %2478 = vmatprep.subr.mxu0 0.0
      %2479 = vmatpush1.msra.mxu0 0.0
      %2480 = vmatprep.subr.mxu0 0.0
      %2481 = vmatpush1.msra.mxu0 0.0
      %2482 = vmatprep.subr.mxu0 0.0
      %2483 = vmatpush1.msra.mxu0 0.0
      %2484 = vmatprep.subr.mxu0 0.0
      %2485 = vmatpush1.msra.mxu0 0.0
      %2486 = vmatprep.subr.mxu0 0.0
      %2487 = vmatpush1.msra.mxu0 0.0
      %2488 = vmatprep.subr.mxu0 0.0
      %2489 = vmatpush1.msra.mxu0 0.0
      %2490 = vmatprep.subr.mxu0 0.0
      %2491 = vmatpush1.msra.mxu0 0.0
      %2492 = vmatprep.subr.mxu0 0.0
      %2493 = vmatpush1.msra.mxu0 0.0
      %2494 = vmatprep.subr.mxu0 0.0
      %2495 = vmatpush1.msra.mxu0 0.0
      %2496 = vmatprep.subr.mxu0 0.0
      %2497 = vmatpush1.msra.mxu0 0.0
      %2498 = vmatprep.subr.mxu0 0.0
      %2499 = vmatpush1.msra.mxu0 0.0
      %2500 = vmatprep.subr.mxu0 0.0
      %2501 = vmatpush1.msra.mxu0 0.0
      %2502 = vmatprep.subr.mxu0 0.0
      %2503 = vmatpush1.msra.mxu0 0.0
      %2504 = vmatprep.subr.mxu0 0.0
      %2505 = vmatpush1.msra.mxu0 0.0
      %2506 = vmatprep.subr.mxu0 0.0
      %2507 = vmatpush1.msra.mxu0 0.0
      %2508 = vmatprep.subr.mxu0 0.0
      %2509 = vmatpush1.msra.mxu0 0.0
      %2510 = vmatprep.subr.mxu0 0.0
      %2511 = vmatpush1.msra.mxu0 0.0
      %2512 = vmatprep.subr.mxu0 0.0
      %2513 = vmatpush1.msra.mxu0 0.0
      %2514 = vmatprep.mubr.f32.mxu0 0.0
      %2515 = vmatmul.mubr.f32.gmra.mrb[0].mxu0 %v2446
      %v2516 = vpop.f32.mrb[0].mxu0
      %v2517 = vadd.f32 %v2442, %v2516
      %v2518 = vpop.f32.mrb[0].mxu0
      %2519 = vdwg.mxu0
      %v2520 = vld [vmem:[%s357] sm:$0xff]
      %2521 = vrot.lane.b32.xlu0 %v2364, 126
      %v2522 = vpop.permute.xlu0 %2521
      %v2524 = vsel %vm205, %v2520, 0
      %v2526 = vsel %vm209, %v2522, 0
      %2528 = vmatprep.subr.mxu0 0.0
      %2529 = vmatpush1.msra.mxu0 %v2526
      %2530 = vmatprep.subr.mxu0 0.0
      %2531 = vmatpush1.msra.mxu0 0.0
      %2532 = vmatprep.subr.mxu0 0.0
      %2533 = vmatpush1.msra.mxu0 0.0
      %2534 = vmatprep.subr.mxu0 0.0
      %2535 = vmatpush1.msra.mxu0 0.0
      %2536 = vmatprep.subr.mxu0 0.0
      %2537 = vmatpush1.msra.mxu0 0.0
      %2538 = vmatprep.subr.mxu0 0.0
      %2539 = vmatpush1.msra.mxu0 0.0
      %2540 = vmatprep.subr.mxu0 0.0
      %2541 = vmatpush1.msra.mxu0 0.0
      %2542 = vmatprep.subr.mxu0 0.0
      %2543 = vmatpush1.msra.mxu0 0.0
      %2544 = vmatprep.subr.mxu0 0.0
      %2545 = vmatpush1.msra.mxu0 0.0
      %2546 = vmatprep.subr.mxu0 0.0
      %2547 = vmatpush1.msra.mxu0 0.0
      %2548 = vmatprep.subr.mxu0 0.0
      %2549 = vmatpush1.msra.mxu0 0.0
      %2550 = vmatprep.subr.mxu0 0.0
      %2551 = vmatpush1.msra.mxu0 0.0
      %2552 = vmatprep.subr.mxu0 0.0
      %2553 = vmatpush1.msra.mxu0 0.0
      %2554 = vmatprep.subr.mxu0 0.0
      %2555 = vmatpush1.msra.mxu0 0.0
      %2556 = vmatprep.subr.mxu0 0.0
      %2557 = vmatpush1.msra.mxu0 0.0
      %2558 = vmatprep.subr.mxu0 0.0
      %2559 = vmatpush1.msra.mxu0 0.0
      %2560 = vmatprep.subr.mxu0 0.0
      %2561 = vmatpush1.msra.mxu0 0.0
      %2562 = vmatprep.subr.mxu0 0.0
      %2563 = vmatpush1.msra.mxu0 0.0
      %2564 = vmatprep.subr.mxu0 0.0
      %2565 = vmatpush1.msra.mxu0 0.0
      %2566 = vmatprep.subr.mxu0 0.0
      %2567 = vmatpush1.msra.mxu0 0.0
      %2568 = vmatprep.subr.mxu0 0.0
      %2569 = vmatpush1.msra.mxu0 0.0
      %2570 = vmatprep.subr.mxu0 0.0
      %2571 = vmatpush1.msra.mxu0 0.0
      %2572 = vmatprep.subr.mxu0 0.0
      %2573 = vmatpush1.msra.mxu0 0.0
      %2574 = vmatprep.subr.mxu0 0.0
      %2575 = vmatpush1.msra.mxu0 0.0
      %2576 = vmatprep.subr.mxu0 0.0
      %2577 = vmatpush1.msra.mxu0 0.0
      %2578 = vmatprep.subr.mxu0 0.0
      %2579 = vmatpush1.msra.mxu0 0.0
      %2580 = vmatprep.subr.mxu0 0.0
      %2581 = vmatpush1.msra.mxu0 0.0
      %2582 = vmatprep.subr.mxu0 0.0
      %2583 = vmatpush1.msra.mxu0 0.0
      %2584 = vmatprep.subr.mxu0 0.0
      %2585 = vmatpush1.msra.mxu0 0.0
      %2586 = vmatprep.subr.mxu0 0.0
      %2587 = vmatpush1.msra.mxu0 0.0
      %2588 = vmatprep.subr.mxu0 0.0
      %2589 = vmatpush1.msra.mxu0 0.0
      %2590 = vmatprep.subr.mxu0 0.0
      %2591 = vmatpush1.msra.mxu0 0.0
      %2592 = vmatprep.mubr.f32.mxu0 0.0
      %2593 = vmatmul.mubr.f32.gmra.mrb[0].mxu0 %v2524
      %v2594 = vpop.f32.mrb[0].mxu0
      %v2595 = vadd.f32 0.0, %v2594
      %v2596 = vpop.f32.mrb[0].mxu0
      %2597 = vdwg.mxu0
      %v2598 = vadd.f32 %v2517, %v2595
      %v2599 = vld [vmem:[%s2122] sm:$0xf]
      %v2600 = vld [vmem:[%s441] sm:$0xff]
      %v2602 = vsel %vm205, %v2600, 0
      %v2605 = vsel %vm209, %v2599, 0
      %2607 = vmatprep.subr.mxu0 0.0
      %2608 = vmatpush1.msra.mxu0 %v2605
      %2609 = vmatprep.subr.mxu0 0.0
      %2610 = vmatpush1.msra.mxu0 0.0
      %2611 = vmatprep.subr.mxu0 0.0
      %2612 = vmatpush1.msra.mxu0 0.0
      %2613 = vmatprep.subr.mxu0 0.0
      %2614 = vmatpush1.msra.mxu0 0.0
      %2615 = vmatprep.subr.mxu0 0.0
      %2616 = vmatpush1.msra.mxu0 0.0
      %2617 = vmatprep.subr.mxu0 0.0
      %2618 = vmatpush1.msra.mxu0 0.0
      %2619 = vmatprep.subr.mxu0 0.0
      %2620 = vmatpush1.msra.mxu0 0.0
      %2621 = vmatprep.subr.mxu0 0.0
      %2622 = vmatpush1.msra.mxu0 0.0
      %2623 = vmatprep.subr.mxu0 0.0
      %2624 = vmatpush1.msra.mxu0 0.0
      %2625 = vmatprep.subr.mxu0 0.0
      %2626 = vmatpush1.msra.mxu0 0.0
      %2627 = vmatprep.subr.mxu0 0.0
      %2628 = vmatpush1.msra.mxu0 0.0
      %2629 = vmatprep.subr.mxu0 0.0
      %2630 = vmatpush1.msra.mxu0 0.0
      %2631 = vmatprep.subr.mxu0 0.0
      %2632 = vmatpush1.msra.mxu0 0.0
      %2633 = vmatprep.subr.mxu0 0.0
      %2634 = vmatpush1.msra.mxu0 0.0
      %2635 = vmatprep.subr.mxu0 0.0
      %2636 = vmatpush1.msra.mxu0 0.0
      %2637 = vmatprep.subr.mxu0 0.0
      %2638 = vmatpush1.msra.mxu0 0.0
      %2639 = vmatprep.subr.mxu0 0.0
      %2640 = vmatpush1.msra.mxu0 0.0
      %2641 = vmatprep.subr.mxu0 0.0
      %2642 = vmatpush1.msra.mxu0 0.0
      %2643 = vmatprep.subr.mxu0 0.0
      %2644 = vmatpush1.msra.mxu0 0.0
      %2645 = vmatprep.subr.mxu0 0.0
      %2646 = vmatpush1.msra.mxu0 0.0
      %2647 = vmatprep.subr.mxu0 0.0
      %2648 = vmatpush1.msra.mxu0 0.0
      %2649 = vmatprep.subr.mxu0 0.0
      %2650 = vmatpush1.msra.mxu0 0.0
      %2651 = vmatprep.subr.mxu0 0.0
      %2652 = vmatpush1.msra.mxu0 0.0
      %2653 = vmatprep.subr.mxu0 0.0
      %2654 = vmatpush1.msra.mxu0 0.0
      %2655 = vmatprep.subr.mxu0 0.0
      %2656 = vmatpush1.msra.mxu0 0.0
      %2657 = vmatprep.subr.mxu0 0.0
      %2658 = vmatpush1.msra.mxu0 0.0
      %2659 = vmatprep.subr.mxu0 0.0
      %2660 = vmatpush1.msra.mxu0 0.0
      %2661 = vmatprep.subr.mxu0 0.0
      %2662 = vmatpush1.msra.mxu0 0.0
      %2663 = vmatprep.subr.mxu0 0.0
      %2664 = vmatpush1.msra.mxu0 0.0
      %2665 = vmatprep.subr.mxu0 0.0
      %2666 = vmatpush1.msra.mxu0 0.0
      %2667 = vmatprep.subr.mxu0 0.0
      %2668 = vmatpush1.msra.mxu0 0.0
      %2669 = vmatprep.subr.mxu0 0.0
      %2670 = vmatpush1.msra.mxu0 0.0
      %2671 = vmatprep.mubr.f32.mxu0 0.0
      %2672 = vmatmul.mubr.f32.gmra.mrb[0].mxu0 %v2602
      %v2673 = vpop.f32.mrb[0].mxu0
      %v2674 = vadd.f32 0.0, %v2673
      %v2675 = vpop.f32.mrb[0].mxu0
      %2676 = vdwg.mxu0
      %v2677 = vadd.f32 %v2598, %v2674
      %v2678 = vld [vmem:[%s520] sm:$0xff]
      %2679 = vrot.lane.b32.xlu0 %v2599, 127
      %v2680 = vpop.permute.xlu0 %2679
      %v2682 = vsel %vm205, %v2678, 0
      %v2684 = vsel %vm209, %v2680, 0
      %2686 = vmatprep.subr.mxu0 0.0
      %2687 = vmatpush1.msra.mxu0 %v2684
      %2688 = vmatprep.subr.mxu0 0.0
      %2689 = vmatpush1.msra.mxu0 0.0
      %2690 = vmatprep.subr.mxu0 0.0
      %2691 = vmatpush1.msra.mxu0 0.0
      %2692 = vmatprep.subr.mxu0 0.0
      %2693 = vmatpush1.msra.mxu0 0.0
      %2694 = vmatprep.subr.mxu0 0.0
      %2695 = vmatpush1.msra.mxu0 0.0
      %2696 = vmatprep.subr.mxu0 0.0
      %2697 = vmatpush1.msra.mxu0 0.0
      %2698 = vmatprep.subr.mxu0 0.0
      %2699 = vmatpush1.msra.mxu0 0.0
      %2700 = vmatprep.subr.mxu0 0.0
      %2701 = vmatpush1.msra.mxu0 0.0
      %2702 = vmatprep.subr.mxu0 0.0
      %2703 = vmatpush1.msra.mxu0 0.0
      %2704 = vmatprep.subr.mxu0 0.0
      %2705 = vmatpush1.msra.mxu0 0.0
      %2706 = vmatprep.subr.mxu0 0.0
      %2707 = vmatpush1.msra.mxu0 0.0
      %2708 = vmatprep.subr.mxu0 0.0
      %2709 = vmatpush1.msra.mxu0 0.0
      %2710 = vmatprep.subr.mxu0 0.0
      %2711 = vmatpush1.msra.mxu0 0.0
      %2712 = vmatprep.subr.mxu0 0.0
      %2713 = vmatpush1.msra.mxu0 0.0
      %2714 = vmatprep.subr.mxu0 0.0
      %2715 = vmatpush1.msra.mxu0 0.0
      %2716 = vmatprep.subr.mxu0 0.0
      %2717 = vmatpush1.msra.mxu0 0.0
      %2718 = vmatprep.subr.mxu0 0.0
      %2719 = vmatpush1.msra.mxu0 0.0
      %2720 = vmatprep.subr.mxu0 0.0
      %2721 = vmatpush1.msra.mxu0 0.0
      %2722 = vmatprep.subr.mxu0 0.0
      %2723 = vmatpush1.msra.mxu0 0.0
      %2724 = vmatprep.subr.mxu0 0.0
      %2725 = vmatpush1.msra.mxu0 0.0
      %2726 = vmatprep.subr.mxu0 0.0
      %2727 = vmatpush1.msra.mxu0 0.0
      %2728 = vmatprep.subr.mxu0 0.0
      %2729 = vmatpush1.msra.mxu0 0.0
      %2730 = vmatprep.subr.mxu0 0.0
      %2731 = vmatpush1.msra.mxu0 0.0
      %2732 = vmatprep.subr.mxu0 0.0
      %2733 = vmatpush1.msra.mxu0 0.0
      %2734 = vmatprep.subr.mxu0 0.0
      %2735 = vmatpush1.msra.mxu0 0.0
      %2736 = vmatprep.subr.mxu0 0.0
      %2737 = vmatpush1.msra.mxu0 0.0
      %2738 = vmatprep.subr.mxu0 0.0
      %2739 = vmatpush1.msra.mxu0 0.0
      %2740 = vmatprep.subr.mxu0 0.0
      %2741 = vmatpush1.msra.mxu0 0.0
      %2742 = vmatprep.subr.mxu0 0.0
      %2743 = vmatpush1.msra.mxu0 0.0
      %2744 = vmatprep.subr.mxu0 0.0
      %2745 = vmatpush1.msra.mxu0 0.0
      %2746 = vmatprep.subr.mxu0 0.0
      %2747 = vmatpush1.msra.mxu0 0.0
      %2748 = vmatprep.subr.mxu0 0.0
      %2749 = vmatpush1.msra.mxu0 0.0
      %2750 = vmatprep.mubr.f32.mxu0 0.0
      %2751 = vmatmul.mubr.f32.gmra.mrb[0].mxu0 %v2682
      %v2752 = vpop.f32.mrb[0].mxu0
      %v2753 = vadd.f32 0.0, %v2752
      %v2754 = vpop.f32.mrb[0].mxu0
      %2755 = vdwg.mxu0
      %v2756 = vadd.f32 %v2677, %v2753
      %v2757 = vld [vmem:[%s600] sm:$0xff]
      %2758 = vrot.lane.b32.xlu0 %v2599, 126
      %v2759 = vpop.permute.xlu0 %2758
      %v2761 = vsel %vm205, %v2757, 0
      %v2763 = vsel %vm209, %v2759, 0
      %2765 = vmatprep.subr.mxu0 0.0
      %2766 = vmatpush1.msra.mxu0 %v2763
      %2767 = vmatprep.subr.mxu0 0.0
      %2768 = vmatpush1.msra.mxu0 0.0
      %2769 = vmatprep.subr.mxu0 0.0
      %2770 = vmatpush1.msra.mxu0 0.0
      %2771 = vmatprep.subr.mxu0 0.0
      %2772 = vmatpush1.msra.mxu0 0.0
      %2773 = vmatprep.subr.mxu0 0.0
      %2774 = vmatpush1.msra.mxu0 0.0
      %2775 = vmatprep.subr.mxu0 0.0
      %2776 = vmatpush1.msra.mxu0 0.0
      %2777 = vmatprep.subr.mxu0 0.0
      %2778 = vmatpush1.msra.mxu0 0.0
      %2779 = vmatprep.subr.mxu0 0.0
      %2780 = vmatpush1.msra.mxu0 0.0
      %2781 = vmatprep.subr.mxu0 0.0
      %2782 = vmatpush1.msra.mxu0 0.0
      %2783 = vmatprep.subr.mxu0 0.0
      %2784 = vmatpush1.msra.mxu0 0.0
      %2785 = vmatprep.subr.mxu0 0.0
      %2786 = vmatpush1.msra.mxu0 0.0
      %2787 = vmatprep.subr.mxu0 0.0
      %2788 = vmatpush1.msra.mxu0 0.0
      %2789 = vmatprep.subr.mxu0 0.0
      %2790 = vmatpush1.msra.mxu0 0.0
      %2791 = vmatprep.subr.mxu0 0.0
      %2792 = vmatpush1.msra.mxu0 0.0
      %2793 = vmatprep.subr.mxu0 0.0
      %2794 = vmatpush1.msra.mxu0 0.0
      %2795 = vmatprep.subr.mxu0 0.0
      %2796 = vmatpush1.msra.mxu0 0.0
      %2797 = vmatprep.subr.mxu0 0.0
      %2798 = vmatpush1.msra.mxu0 0.0
      %2799 = vmatprep.subr.mxu0 0.0
      %2800 = vmatpush1.msra.mxu0 0.0
      %2801 = vmatprep.subr.mxu0 0.0
      %2802 = vmatpush1.msra.mxu0 0.0
      %2803 = vmatprep.subr.mxu0 0.0
      %2804 = vmatpush1.msra.mxu0 0.0
      %2805 = vmatprep.subr.mxu0 0.0
      %2806 = vmatpush1.msra.mxu0 0.0
      %2807 = vmatprep.subr.mxu0 0.0
      %2808 = vmatpush1.msra.mxu0 0.0
      %2809 = vmatprep.subr.mxu0 0.0
      %2810 = vmatpush1.msra.mxu0 0.0
      %2811 = vmatprep.subr.mxu0 0.0
      %2812 = vmatpush1.msra.mxu0 0.0
      %2813 = vmatprep.subr.mxu0 0.0
      %2814 = vmatpush1.msra.mxu0 0.0
      %2815 = vmatprep.subr.mxu0 0.0
      %2816 = vmatpush1.msra.mxu0 0.0
      %2817 = vmatprep.subr.mxu0 0.0
      %2818 = vmatpush1.msra.mxu0 0.0
      %2819 = vmatprep.subr.mxu0 0.0
      %2820 = vmatpush1.msra.mxu0 0.0
      %2821 = vmatprep.subr.mxu0 0.0
      %2822 = vmatpush1.msra.mxu0 0.0
      %2823 = vmatprep.subr.mxu0 0.0
      %2824 = vmatpush1.msra.mxu0 0.0
      %2825 = vmatprep.subr.mxu0 0.0
      %2826 = vmatpush1.msra.mxu0 0.0
      %2827 = vmatprep.subr.mxu0 0.0
      %2828 = vmatpush1.msra.mxu0 0.0
      %2829 = vmatprep.mubr.f32.mxu0 0.0
      %2830 = vmatmul.mubr.f32.gmra.mrb[0].mxu0 %v2761
      %v2831 = vpop.f32.mrb[0].mxu0
      %v2832 = vadd.f32 0.0, %v2831
      %v2833 = vpop.f32.mrb[0].mxu0
      %2834 = vdwg.mxu0
      %v2835 = vadd.f32 %v2756, %v2832
      %s2836 = sadd.s32 %s194, 5
      %s2837 = smul.u32 %s2836, 4
      %s2838 = scalar_lea.vmem %s183, %s2837
      %v2839 = vld [vmem:[%s2838] sm:$0xf]
      %v2840 = vld [vmem:[%s684] sm:$0xff]
      %v2842 = vsel %vm205, %v2840, 0
      %v2845 = vsel %vm209, %v2839, 0
      %2847 = vmatprep.subr.mxu0 0.0
      %2848 = vmatpush1.msra.mxu0 %v2845
      %2849 = vmatprep.subr.mxu0 0.0
      %2850 = vmatpush1.msra.mxu0 0.0
      %2851 = vmatprep.subr.mxu0 0.0
      %2852 = vmatpush1.msra.mxu0 0.0
      %2853 = vmatprep.subr.mxu0 0.0
      %2854 = vmatpush1.msra.mxu0 0.0
      %2855 = vmatprep.subr.mxu0 0.0
      %2856 = vmatpush1.msra.mxu0 0.0
      %2857 = vmatprep.subr.mxu0 0.0
      %2858 = vmatpush1.msra.mxu0 0.0
      %2859 = vmatprep.subr.mxu0 0.0
      %2860 = vmatpush1.msra.mxu0 0.0
      %2861 = vmatprep.subr.mxu0 0.0
      %2862 = vmatpush1.msra.mxu0 0.0
      %2863 = vmatprep.subr.mxu0 0.0
      %2864 = vmatpush1.msra.mxu0 0.0
      %2865 = vmatprep.subr.mxu0 0.0
      %2866 = vmatpush1.msra.mxu0 0.0
      %2867 = vmatprep.subr.mxu0 0.0
      %2868 = vmatpush1.msra.mxu0 0.0
      %2869 = vmatprep.subr.mxu0 0.0
      %2870 = vmatpush1.msra.mxu0 0.0
      %2871 = vmatprep.subr.mxu0 0.0
      %2872 = vmatpush1.msra.mxu0 0.0
      %2873 = vmatprep.subr.mxu0 0.0
      %2874 = vmatpush1.msra.mxu0 0.0
      %2875 = vmatprep.subr.mxu0 0.0
      %2876 = vmatpush1.msra.mxu0 0.0
      %2877 = vmatprep.subr.mxu0 0.0
      %2878 = vmatpush1.msra.mxu0 0.0
      %2879 = vmatprep.subr.mxu0 0.0
      %2880 = vmatpush1.msra.mxu0 0.0
      %2881 = vmatprep.subr.mxu0 0.0
      %2882 = vmatpush1.msra.mxu0 0.0
      %2883 = vmatprep.subr.mxu0 0.0
      %2884 = vmatpush1.msra.mxu0 0.0
      %2885 = vmatprep.subr.mxu0 0.0
      %2886 = vmatpush1.msra.mxu0 0.0
      %2887 = vmatprep.subr.mxu0 0.0
      %2888 = vmatpush1.msra.mxu0 0.0
      %2889 = vmatprep.subr.mxu0 0.0
      %2890 = vmatpush1.msra.mxu0 0.0
      %2891 = vmatprep.subr.mxu0 0.0
      %2892 = vmatpush1.msra.mxu0 0.0
      %2893 = vmatprep.subr.mxu0 0.0
      %2894 = vmatpush1.msra.mxu0 0.0
      %2895 = vmatprep.subr.mxu0 0.0
      %2896 = vmatpush1.msra.mxu0 0.0
      %2897 = vmatprep.subr.mxu0 0.0
      %2898 = vmatpush1.msra.mxu0 0.0
      %2899 = vmatprep.subr.mxu0 0.0
      %2900 = vmatpush1.msra.mxu0 0.0
      %2901 = vmatprep.subr.mxu0 0.0
      %2902 = vmatpush1.msra.mxu0 0.0
      %2903 = vmatprep.subr.mxu0 0.0
      %2904 = vmatpush1.msra.mxu0 0.0
      %2905 = vmatprep.subr.mxu0 0.0
      %2906 = vmatpush1.msra.mxu0 0.0
      %2907 = vmatprep.subr.mxu0 0.0
      %2908 = vmatpush1.msra.mxu0 0.0
      %2909 = vmatprep.subr.mxu0 0.0
      %2910 = vmatpush1.msra.mxu0 0.0
      %2911 = vmatprep.mubr.f32.mxu0 0.0
      %2912 = vmatmul.mubr.f32.gmra.mrb[0].mxu0 %v2842
      %v2913 = vpop.f32.mrb[0].mxu0
      %v2914 = vadd.f32 0.0, %v2913
      %v2915 = vpop.f32.mrb[0].mxu0
      %2916 = vdwg.mxu0
      %v2917 = vadd.f32 %v2835, %v2914
      %v2918 = vld [vmem:[%s763] sm:$0xff]
      %2919 = vrot.lane.b32.xlu0 %v2839, 127
      %v2920 = vpop.permute.xlu0 %2919
      %v2922 = vsel %vm205, %v2918, 0
      %v2924 = vsel %vm209, %v2920, 0
      %2926 = vmatprep.subr.mxu0 0.0
      %2927 = vmatpush1.msra.mxu0 %v2924
      %2928 = vmatprep.subr.mxu0 0.0
      %2929 = vmatpush1.msra.mxu0 0.0
      %2930 = vmatprep.subr.mxu0 0.0
      %2931 = vmatpush1.msra.mxu0 0.0
      %2932 = vmatprep.subr.mxu0 0.0
      %2933 = vmatpush1.msra.mxu0 0.0
      %2934 = vmatprep.subr.mxu0 0.0
      %2935 = vmatpush1.msra.mxu0 0.0
      %2936 = vmatprep.subr.mxu0 0.0
      %2937 = vmatpush1.msra.mxu0 0.0
      %2938 = vmatprep.subr.mxu0 0.0
      %2939 = vmatpush1.msra.mxu0 0.0
      %2940 = vmatprep.subr.mxu0 0.0
      %2941 = vmatpush1.msra.mxu0 0.0
      %2942 = vmatprep.subr.mxu0 0.0
      %2943 = vmatpush1.msra.mxu0 0.0
      %2944 = vmatprep.subr.mxu0 0.0
      %2945 = vmatpush1.msra.mxu0 0.0
      %2946 = vmatprep.subr.mxu0 0.0
      %2947 = vmatpush1.msra.mxu0 0.0
      %2948 = vmatprep.subr.mxu0 0.0
      %2949 = vmatpush1.msra.mxu0 0.0
      %2950 = vmatprep.subr.mxu0 0.0
      %2951 = vmatpush1.msra.mxu0 0.0
      %2952 = vmatprep.subr.mxu0 0.0
      %2953 = vmatpush1.msra.mxu0 0.0
      %2954 = vmatprep.subr.mxu0 0.0
      %2955 = vmatpush1.msra.mxu0 0.0
      %2956 = vmatprep.subr.mxu0 0.0
      %2957 = vmatpush1.msra.mxu0 0.0
      %2958 = vmatprep.subr.mxu0 0.0
      %2959 = vmatpush1.msra.mxu0 0.0
      %2960 = vmatprep.subr.mxu0 0.0
      %2961 = vmatpush1.msra.mxu0 0.0
      %2962 = vmatprep.subr.mxu0 0.0
      %2963 = vmatpush1.msra.mxu0 0.0
      %2964 = vmatprep.subr.mxu0 0.0
      %2965 = vmatpush1.msra.mxu0 0.0
      %2966 = vmatprep.subr.mxu0 0.0
      %2967 = vmatpush1.msra.mxu0 0.0
      %2968 = vmatprep.subr.mxu0 0.0
      %2969 = vmatpush1.msra.mxu0 0.0
      %2970 = vmatprep.subr.mxu0 0.0
      %2971 = vmatpush1.msra.mxu0 0.0
      %2972 = vmatprep.subr.mxu0 0.0
      %2973 = vmatpush1.msra.mxu0 0.0
      %2974 = vmatprep.subr.mxu0 0.0
      %2975 = vmatpush1.msra.mxu0 0.0
      %2976 = vmatprep.subr.mxu0 0.0
      %2977 = vmatpush1.msra.mxu0 0.0
      %2978 = vmatprep.subr.mxu0 0.0
      %2979 = vmatpush1.msra.mxu0 0.0
      %2980 = vmatprep.subr.mxu0 0.0
      %2981 = vmatpush1.msra.mxu0 0.0
      %2982 = vmatprep.subr.mxu0 0.0
      %2983 = vmatpush1.msra.mxu0 0.0
      %2984 = vmatprep.subr.mxu0 0.0
      %2985 = vmatpush1.msra.mxu0 0.0
      %2986 = vmatprep.subr.mxu0 0.0
      %2987 = vmatpush1.msra.mxu0 0.0
      %2988 = vmatprep.subr.mxu0 0.0
      %2989 = vmatpush1.msra.mxu0 0.0
      %2990 = vmatprep.mubr.f32.mxu0 0.0
      %2991 = vmatmul.mubr.f32.gmra.mrb[0].mxu0 %v2922
      %v2992 = vpop.f32.mrb[0].mxu0
      %v2993 = vadd.f32 0.0, %v2992
      %v2994 = vpop.f32.mrb[0].mxu0
      %2995 = vdwg.mxu0
      %v2996 = vadd.f32 %v2917, %v2993
      %v2997 = vld [vmem:[%s843] sm:$0xff]
      %2998 = vrot.lane.b32.xlu0 %v2839, 126
      %v2999 = vpop.permute.xlu0 %2998
      %v3001 = vsel %vm205, %v2997, 0
      %v3003 = vsel %vm209, %v2999, 0
      %3005 = vmatprep.subr.mxu0 0.0
      %3006 = vmatpush1.msra.mxu0 %v3003
      %3007 = vmatprep.subr.mxu0 0.0
      %3008 = vmatpush1.msra.mxu0 0.0
      %3009 = vmatprep.subr.mxu0 0.0
      %3010 = vmatpush1.msra.mxu0 0.0
      %3011 = vmatprep.subr.mxu0 0.0
      %3012 = vmatpush1.msra.mxu0 0.0
      %3013 = vmatprep.subr.mxu0 0.0
      %3014 = vmatpush1.msra.mxu0 0.0
      %3015 = vmatprep.subr.mxu0 0.0
      %3016 = vmatpush1.msra.mxu0 0.0
      %3017 = vmatprep.subr.mxu0 0.0
      %3018 = vmatpush1.msra.mxu0 0.0
      %3019 = vmatprep.subr.mxu0 0.0
      %3020 = vmatpush1.msra.mxu0 0.0
      %3021 = vmatprep.subr.mxu0 0.0
      %3022 = vmatpush1.msra.mxu0 0.0
      %3023 = vmatprep.subr.mxu0 0.0
      %3024 = vmatpush1.msra.mxu0 0.0
      %3025 = vmatprep.subr.mxu0 0.0
      %3026 = vmatpush1.msra.mxu0 0.0
      %3027 = vmatprep.subr.mxu0 0.0
      %3028 = vmatpush1.msra.mxu0 0.0
      %3029 = vmatprep.subr.mxu0 0.0
      %3030 = vmatpush1.msra.mxu0 0.0
      %3031 = vmatprep.subr.mxu0 0.0
      %3032 = vmatpush1.msra.mxu0 0.0
      %3033 = vmatprep.subr.mxu0 0.0
      %3034 = vmatpush1.msra.mxu0 0.0
      %3035 = vmatprep.subr.mxu0 0.0
      %3036 = vmatpush1.msra.mxu0 0.0
      %3037 = vmatprep.subr.mxu0 0.0
      %3038 = vmatpush1.msra.mxu0 0.0
      %3039 = vmatprep.subr.mxu0 0.0
      %3040 = vmatpush1.msra.mxu0 0.0
      %3041 = vmatprep.subr.mxu0 0.0
      %3042 = vmatpush1.msra.mxu0 0.0
      %3043 = vmatprep.subr.mxu0 0.0
      %3044 = vmatpush1.msra.mxu0 0.0
      %3045 = vmatprep.subr.mxu0 0.0
      %3046 = vmatpush1.msra.mxu0 0.0
      %3047 = vmatprep.subr.mxu0 0.0
      %3048 = vmatpush1.msra.mxu0 0.0
      %3049 = vmatprep.subr.mxu0 0.0
      %3050 = vmatpush1.msra.mxu0 0.0
      %3051 = vmatprep.subr.mxu0 0.0
      %3052 = vmatpush1.msra.mxu0 0.0
      %3053 = vmatprep.subr.mxu0 0.0
      %3054 = vmatpush1.msra.mxu0 0.0
      %3055 = vmatprep.subr.mxu0 0.0
      %3056 = vmatpush1.msra.mxu0 0.0
      %3057 = vmatprep.subr.mxu0 0.0
      %3058 = vmatpush1.msra.mxu0 0.0
      %3059 = vmatprep.subr.mxu0 0.0
      %3060 = vmatpush1.msra.mxu0 0.0
      %3061 = vmatprep.subr.mxu0 0.0
      %3062 = vmatpush1.msra.mxu0 0.0
      %3063 = vmatprep.subr.mxu0 0.0
      %3064 = vmatpush1.msra.mxu0 0.0
      %3065 = vmatprep.subr.mxu0 0.0
      %3066 = vmatpush1.msra.mxu0 0.0
      %3067 = vmatprep.subr.mxu0 0.0
      %3068 = vmatpush1.msra.mxu0 0.0
      %3069 = vmatprep.mubr.f32.mxu0 0.0
      %3070 = vmatmul.mubr.f32.gmra.mrb[0].mxu0 %v3001
      %v3071 = vpop.f32.mrb[0].mxu0
      %v3072 = vadd.f32 0.0, %v3071
      %v3073 = vpop.f32.mrb[0].mxu0
      %3074 = vdwg.mxu0
      %v3075 = vadd.f32 %v2996, %v3072
      %v3076 = vadd.f32 %v3075, %v926
      %v3077 = vmax.f32 %v3076, 0.0
      %s3078 = scalar_lea.vmem %s192, 24
      %3079 = vst.msk [vmem:[%s3078] sm:$0xff] %vm930, %v3077
      %v3080 = vld [vmem:[%s2122] sm:$0xf]
      %v3081 = vld [vmem:[%s1] sm:$0xff]
      %v3082 = vld [vmem:[%s200] sm:$0xff]
      %3084 = vrot.lane.b32.xlu0 %v3080, 127
      %v3085 = vpop.permute.xlu0 %3084
      %v3087 = vsel %vm205, %v3082, 0
      %v3089 = vsel %vm209, %v3085, 0
      %3091 = vmatprep.subr.mxu0 0.0
      %3092 = vmatpush1.msra.mxu0 %v3089
      %3093 = vmatprep.subr.mxu0 0.0
      %3094 = vmatpush1.msra.mxu0 0.0
      %3095 = vmatprep.subr.mxu0 0.0
      %3096 = vmatpush1.msra.mxu0 0.0
      %3097 = vmatprep.subr.mxu0 0.0
      %3098 = vmatpush1.msra.mxu0 0.0
      %3099 = vmatprep.subr.mxu0 0.0
      %3100 = vmatpush1.msra.mxu0 0.0
      %3101 = vmatprep.subr.mxu0 0.0
      %3102 = vmatpush1.msra.mxu0 0.0
      %3103 = vmatprep.subr.mxu0 0.0
      %3104 = vmatpush1.msra.mxu0 0.0
      %3105 = vmatprep.subr.mxu0 0.0
      %3106 = vmatpush1.msra.mxu0 0.0
      %3107 = vmatprep.subr.mxu0 0.0
      %3108 = vmatpush1.msra.mxu0 0.0
      %3109 = vmatprep.subr.mxu0 0.0
      %3110 = vmatpush1.msra.mxu0 0.0
      %3111 = vmatprep.subr.mxu0 0.0
      %3112 = vmatpush1.msra.mxu0 0.0
      %3113 = vmatprep.subr.mxu0 0.0
      %3114 = vmatpush1.msra.mxu0 0.0
      %3115 = vmatprep.subr.mxu0 0.0
      %3116 = vmatpush1.msra.mxu0 0.0
      %3117 = vmatprep.subr.mxu0 0.0
      %3118 = vmatpush1.msra.mxu0 0.0
      %3119 = vmatprep.subr.mxu0 0.0
      %3120 = vmatpush1.msra.mxu0 0.0
      %3121 = vmatprep.subr.mxu0 0.0
      %3122 = vmatpush1.msra.mxu0 0.0
      %3123 = vmatprep.subr.mxu0 0.0
      %3124 = vmatpush1.msra.mxu0 0.0
      %3125 = vmatprep.subr.mxu0 0.0
      %3126 = vmatpush1.msra.mxu0 0.0
      %3127 = vmatprep.subr.mxu0 0.0
      %3128 = vmatpush1.msra.mxu0 0.0
      %3129 = vmatprep.subr.mxu0 0.0
      %3130 = vmatpush1.msra.mxu0 0.0
      %3131 = vmatprep.subr.mxu0 0.0
      %3132 = vmatpush1.msra.mxu0 0.0
      %3133 = vmatprep.subr.mxu0 0.0
      %3134 = vmatpush1.msra.mxu0 0.0
      %3135 = vmatprep.subr.mxu0 0.0
      %3136 = vmatpush1.msra.mxu0 0.0
      %3137 = vmatprep.subr.mxu0 0.0
      %3138 = vmatpush1.msra.mxu0 0.0
      %3139 = vmatprep.subr.mxu0 0.0
      %3140 = vmatpush1.msra.mxu0 0.0
      %3141 = vmatprep.subr.mxu0 0.0
      %3142 = vmatpush1.msra.mxu0 0.0
      %3143 = vmatprep.subr.mxu0 0.0
      %3144 = vmatpush1.msra.mxu0 0.0
      %3145 = vmatprep.subr.mxu0 0.0
      %3146 = vmatpush1.msra.mxu0 0.0
      %3147 = vmatprep.subr.mxu0 0.0
      %3148 = vmatpush1.msra.mxu0 0.0
      %3149 = vmatprep.subr.mxu0 0.0
      %3150 = vmatpush1.msra.mxu0 0.0
      %3151 = vmatprep.subr.mxu0 0.0
      %3152 = vmatpush1.msra.mxu0 0.0
      %3153 = vmatprep.subr.mxu0 0.0
      %3154 = vmatpush1.msra.mxu0 0.0
      %3155 = vmatprep.mubr.f32.mxu0 0.0
      %3156 = vmatmul.mubr.f32.gmra.mrb[0].mxu0 %v3087
      %v3157 = vpop.f32.mrb[0].mxu0
      %v3158 = vadd.f32 0.0, %v3157
      %v3159 = vpop.f32.mrb[0].mxu0
      %3160 = vdwg.mxu0
      %v3162 = vsel %vm205, %v3081, 0
      %v3164 = vsel %vm209, %v3080, 0
      %3166 = vmatprep.subr.mxu0 0.0
      %3167 = vmatpush1.msra.mxu0 %v3164
      %3168 = vmatprep.subr.mxu0 0.0
      %3169 = vmatpush1.msra.mxu0 0.0
      %3170 = vmatprep.subr.mxu0 0.0
      %3171 = vmatpush1.msra.mxu0 0.0
      %3172 = vmatprep.subr.mxu0 0.0
      %3173 = vmatpush1.msra.mxu0 0.0
      %3174 = vmatprep.subr.mxu0 0.0
      %3175 = vmatpush1.msra.mxu0 0.0
      %3176 = vmatprep.subr.mxu0 0.0
      %3177 = vmatpush1.msra.mxu0 0.0
      %3178 = vmatprep.subr.mxu0 0.0
      %3179 = vmatpush1.msra.mxu0 0.0
      %3180 = vmatprep.subr.mxu0 0.0
      %3181 = vmatpush1.msra.mxu0 0.0
      %3182 = vmatprep.subr.mxu0 0.0
      %3183 = vmatpush1.msra.mxu0 0.0
      %3184 = vmatprep.subr.mxu0 0.0
      %3185 = vmatpush1.msra.mxu0 0.0
      %3186 = vmatprep.subr.mxu0 0.0
      %3187 = vmatpush1.msra.mxu0 0.0
      %3188 = vmatprep.subr.mxu0 0.0
      %3189 = vmatpush1.msra.mxu0 0.0
      %3190 = vmatprep.subr.mxu0 0.0
      %3191 = vmatpush1.msra.mxu0 0.0
      %3192 = vmatprep.subr.mxu0 0.0
      %3193 = vmatpush1.msra.mxu0 0.0
      %3194 = vmatprep.subr.mxu0 0.0
      %3195 = vmatpush1.msra.mxu0 0.0
      %3196 = vmatprep.subr.mxu0 0.0
      %3197 = vmatpush1.msra.mxu0 0.0
      %3198 = vmatprep.subr.mxu0 0.0
      %3199 = vmatpush1.msra.mxu0 0.0
      %3200 = vmatprep.subr.mxu0 0.0
      %3201 = vmatpush1.msra.mxu0 0.0
      %3202 = vmatprep.subr.mxu0 0.0
      %3203 = vmatpush1.msra.mxu0 0.0
      %3204 = vmatprep.subr.mxu0 0.0
      %3205 = vmatpush1.msra.mxu0 0.0
      %3206 = vmatprep.subr.mxu0 0.0
      %3207 = vmatpush1.msra.mxu0 0.0
      %3208 = vmatprep.subr.mxu0 0.0
      %3209 = vmatpush1.msra.mxu0 0.0
      %3210 = vmatprep.subr.mxu0 0.0
      %3211 = vmatpush1.msra.mxu0 0.0
      %3212 = vmatprep.subr.mxu0 0.0
      %3213 = vmatpush1.msra.mxu0 0.0
      %3214 = vmatprep.subr.mxu0 0.0
      %3215 = vmatpush1.msra.mxu0 0.0
      %3216 = vmatprep.subr.mxu0 0.0
      %3217 = vmatpush1.msra.mxu0 0.0
      %3218 = vmatprep.subr.mxu0 0.0
      %3219 = vmatpush1.msra.mxu0 0.0
      %3220 = vmatprep.subr.mxu0 0.0
      %3221 = vmatpush1.msra.mxu0 0.0
      %3222 = vmatprep.subr.mxu0 0.0
      %3223 = vmatpush1.msra.mxu0 0.0
      %3224 = vmatprep.subr.mxu0 0.0
      %3225 = vmatpush1.msra.mxu0 0.0
      %3226 = vmatprep.subr.mxu0 0.0
      %3227 = vmatpush1.msra.mxu0 0.0
      %3228 = vmatprep.subr.mxu0 0.0
      %3229 = vmatpush1.msra.mxu0 0.0
      %3230 = vmatprep.mubr.f32.mxu0 0.0
      %3231 = vmatmul.mubr.f32.gmra.mrb[0].mxu0 %v3162
      %v3232 = vpop.f32.mrb[0].mxu0
      %v3233 = vadd.f32 %v3158, %v3232
      %v3234 = vpop.f32.mrb[0].mxu0
      %3235 = vdwg.mxu0
      %v3236 = vld [vmem:[%s357] sm:$0xff]
      %3237 = vrot.lane.b32.xlu0 %v3080, 126
      %v3238 = vpop.permute.xlu0 %3237
      %v3240 = vsel %vm205, %v3236, 0
      %v3242 = vsel %vm209, %v3238, 0
      %3244 = vmatprep.subr.mxu0 0.0
      %3245 = vmatpush1.msra.mxu0 %v3242
      %3246 = vmatprep.subr.mxu0 0.0
      %3247 = vmatpush1.msra.mxu0 0.0
      %3248 = vmatprep.subr.mxu0 0.0
      %3249 = vmatpush1.msra.mxu0 0.0
      %3250 = vmatprep.subr.mxu0 0.0
      %3251 = vmatpush1.msra.mxu0 0.0
      %3252 = vmatprep.subr.mxu0 0.0
      %3253 = vmatpush1.msra.mxu0 0.0
      %3254 = vmatprep.subr.mxu0 0.0
      %3255 = vmatpush1.msra.mxu0 0.0
      %3256 = vmatprep.subr.mxu0 0.0
      %3257 = vmatpush1.msra.mxu0 0.0
      %3258 = vmatprep.subr.mxu0 0.0
      %3259 = vmatpush1.msra.mxu0 0.0
      %3260 = vmatprep.subr.mxu0 0.0
      %3261 = vmatpush1.msra.mxu0 0.0
      %3262 = vmatprep.subr.mxu0 0.0
      %3263 = vmatpush1.msra.mxu0 0.0
      %3264 = vmatprep.subr.mxu0 0.0
      %3265 = vmatpush1.msra.mxu0 0.0
      %3266 = vmatprep.subr.mxu0 0.0
      %3267 = vmatpush1.msra.mxu0 0.0
      %3268 = vmatprep.subr.mxu0 0.0
      %3269 = vmatpush1.msra.mxu0 0.0
      %3270 = vmatprep.subr.mxu0 0.0
      %3271 = vmatpush1.msra.mxu0 0.0
      %3272 = vmatprep.subr.mxu0 0.0
      %3273 = vmatpush1.msra.mxu0 0.0
      %3274 = vmatprep.subr.mxu0 0.0
      %3275 = vmatpush1.msra.mxu0 0.0
      %3276 = vmatprep.subr.mxu0 0.0
      %3277 = vmatpush1.msra.mxu0 0.0
      %3278 = vmatprep.subr.mxu0 0.0
      %3279 = vmatpush1.msra.mxu0 0.0
      %3280 = vmatprep.subr.mxu0 0.0
      %3281 = vmatpush1.msra.mxu0 0.0
      %3282 = vmatprep.subr.mxu0 0.0
      %3283 = vmatpush1.msra.mxu0 0.0
      %3284 = vmatprep.subr.mxu0 0.0
      %3285 = vmatpush1.msra.mxu0 0.0
      %3286 = vmatprep.subr.mxu0 0.0
      %3287 = vmatpush1.msra.mxu0 0.0
      %3288 = vmatprep.subr.mxu0 0.0
      %3289 = vmatpush1.msra.mxu0 0.0
      %3290 = vmatprep.subr.mxu0 0.0
      %3291 = vmatpush1.msra.mxu0 0.0
      %3292 = vmatprep.subr.mxu0 0.0
      %3293 = vmatpush1.msra.mxu0 0.0
      %3294 = vmatprep.subr.mxu0 0.0
      %3295 = vmatpush1.msra.mxu0 0.0
      %3296 = vmatprep.subr.mxu0 0.0
      %3297 = vmatpush1.msra.mxu0 0.0
      %3298 = vmatprep.subr.mxu0 0.0
      %3299 = vmatpush1.msra.mxu0 0.0
      %3300 = vmatprep.subr.mxu0 0.0
      %3301 = vmatpush1.msra.mxu0 0.0
      %3302 = vmatprep.subr.mxu0 0.0
      %3303 = vmatpush1.msra.mxu0 0.0
      %3304 = vmatprep.subr.mxu0 0.0
      %3305 = vmatpush1.msra.mxu0 0.0
      %3306 = vmatprep.subr.mxu0 0.0
      %3307 = vmatpush1.msra.mxu0 0.0
      %3308 = vmatprep.mubr.f32.mxu0 0.0
      %3309 = vmatmul.mubr.f32.gmra.mrb[0].mxu0 %v3240
      %v3310 = vpop.f32.mrb[0].mxu0
      %v3311 = vadd.f32 0.0, %v3310
      %v3312 = vpop.f32.mrb[0].mxu0
      %3313 = vdwg.mxu0
      %v3314 = vadd.f32 %v3233, %v3311
      %v3315 = vld [vmem:[%s2838] sm:$0xf]
      %v3316 = vld [vmem:[%s441] sm:$0xff]
      %v3318 = vsel %vm205, %v3316, 0
      %v3321 = vsel %vm209, %v3315, 0
      %3323 = vmatprep.subr.mxu0 0.0
      %3324 = vmatpush1.msra.mxu0 %v3321
      %3325 = vmatprep.subr.mxu0 0.0
      %3326 = vmatpush1.msra.mxu0 0.0
      %3327 = vmatprep.subr.mxu0 0.0
      %3328 = vmatpush1.msra.mxu0 0.0
      %3329 = vmatprep.subr.mxu0 0.0
      %3330 = vmatpush1.msra.mxu0 0.0
      %3331 = vmatprep.subr.mxu0 0.0
      %3332 = vmatpush1.msra.mxu0 0.0
      %3333 = vmatprep.subr.mxu0 0.0
      %3334 = vmatpush1.msra.mxu0 0.0
      %3335 = vmatprep.subr.mxu0 0.0
      %3336 = vmatpush1.msra.mxu0 0.0
      %3337 = vmatprep.subr.mxu0 0.0
      %3338 = vmatpush1.msra.mxu0 0.0
      %3339 = vmatprep.subr.mxu0 0.0
      %3340 = vmatpush1.msra.mxu0 0.0
      %3341 = vmatprep.subr.mxu0 0.0
      %3342 = vmatpush1.msra.mxu0 0.0
      %3343 = vmatprep.subr.mxu0 0.0
      %3344 = vmatpush1.msra.mxu0 0.0
      %3345 = vmatprep.subr.mxu0 0.0
      %3346 = vmatpush1.msra.mxu0 0.0
      %3347 = vmatprep.subr.mxu0 0.0
      %3348 = vmatpush1.msra.mxu0 0.0
      %3349 = vmatprep.subr.mxu0 0.0
      %3350 = vmatpush1.msra.mxu0 0.0
      %3351 = vmatprep.subr.mxu0 0.0
      %3352 = vmatpush1.msra.mxu0 0.0
      %3353 = vmatprep.subr.mxu0 0.0
      %3354 = vmatpush1.msra.mxu0 0.0
      %3355 = vmatprep.subr.mxu0 0.0
      %3356 = vmatpush1.msra.mxu0 0.0
      %3357 = vmatprep.subr.mxu0 0.0
      %3358 = vmatpush1.msra.mxu0 0.0
      %3359 = vmatprep.subr.mxu0 0.0
      %3360 = vmatpush1.msra.mxu0 0.0
      %3361 = vmatprep.subr.mxu0 0.0
      %3362 = vmatpush1.msra.mxu0 0.0
      %3363 = vmatprep.subr.mxu0 0.0
      %3364 = vmatpush1.msra.mxu0 0.0
      %3365 = vmatprep.subr.mxu0 0.0
      %3366 = vmatpush1.msra.mxu0 0.0
      %3367 = vmatprep.subr.mxu0 0.0
      %3368 = vmatpush1.msra.mxu0 0.0
      %3369 = vmatprep.subr.mxu0 0.0
      %3370 = vmatpush1.msra.mxu0 0.0
      %3371 = vmatprep.subr.mxu0 0.0
      %3372 = vmatpush1.msra.mxu0 0.0
      %3373 = vmatprep.subr.mxu0 0.0
      %3374 = vmatpush1.msra.mxu0 0.0
      %3375 = vmatprep.subr.mxu0 0.0
      %3376 = vmatpush1.msra.mxu0 0.0
      %3377 = vmatprep.subr.mxu0 0.0
      %3378 = vmatpush1.msra.mxu0 0.0
      %3379 = vmatprep.subr.mxu0 0.0
      %3380 = vmatpush1.msra.mxu0 0.0
      %3381 = vmatprep.subr.mxu0 0.0
      %3382 = vmatpush1.msra.mxu0 0.0
      %3383 = vmatprep.subr.mxu0 0.0
      %3384 = vmatpush1.msra.mxu0 0.0
      %3385 = vmatprep.subr.mxu0 0.0
      %3386 = vmatpush1.msra.mxu0 0.0
      %3387 = vmatprep.mubr.f32.mxu0 0.0
      %3388 = vmatmul.mubr.f32.gmra.mrb[0].mxu0 %v3318
      %v3389 = vpop.f32.mrb[0].mxu0
      %v3390 = vadd.f32 0.0, %v3389
      %v3391 = vpop.f32.mrb[0].mxu0
      %3392 = vdwg.mxu0
      %v3393 = vadd.f32 %v3314, %v3390
      %v3394 = vld [vmem:[%s520] sm:$0xff]
      %3395 = vrot.lane.b32.xlu0 %v3315, 127
      %v3396 = vpop.permute.xlu0 %3395
      %v3398 = vsel %vm205, %v3394, 0
      %v3400 = vsel %vm209, %v3396, 0
      %3402 = vmatprep.subr.mxu0 0.0
      %3403 = vmatpush1.msra.mxu0 %v3400
      %3404 = vmatprep.subr.mxu0 0.0
      %3405 = vmatpush1.msra.mxu0 0.0
      %3406 = vmatprep.subr.mxu0 0.0
      %3407 = vmatpush1.msra.mxu0 0.0
      %3408 = vmatprep.subr.mxu0 0.0
      %3409 = vmatpush1.msra.mxu0 0.0
      %3410 = vmatprep.subr.mxu0 0.0
      %3411 = vmatpush1.msra.mxu0 0.0
      %3412 = vmatprep.subr.mxu0 0.0
      %3413 = vmatpush1.msra.mxu0 0.0
      %3414 = vmatprep.subr.mxu0 0.0
      %3415 = vmatpush1.msra.mxu0 0.0
      %3416 = vmatprep.subr.mxu0 0.0
      %3417 = vmatpush1.msra.mxu0 0.0
      %3418 = vmatprep.subr.mxu0 0.0
      %3419 = vmatpush1.msra.mxu0 0.0
      %3420 = vmatprep.subr.mxu0 0.0
      %3421 = vmatpush1.msra.mxu0 0.0
      %3422 = vmatprep.subr.mxu0 0.0
      %3423 = vmatpush1.msra.mxu0 0.0
      %3424 = vmatprep.subr.mxu0 0.0
      %3425 = vmatpush1.msra.mxu0 0.0
      %3426 = vmatprep.subr.mxu0 0.0
      %3427 = vmatpush1.msra.mxu0 0.0
      %3428 = vmatprep.subr.mxu0 0.0
      %3429 = vmatpush1.msra.mxu0 0.0
      %3430 = vmatprep.subr.mxu0 0.0
      %3431 = vmatpush1.msra.mxu0 0.0
      %3432 = vmatprep.subr.mxu0 0.0
      %3433 = vmatpush1.msra.mxu0 0.0
      %3434 = vmatprep.subr.mxu0 0.0
      %3435 = vmatpush1.msra.mxu0 0.0
      %3436 = vmatprep.subr.mxu0 0.0
      %3437 = vmatpush1.msra.mxu0 0.0
      %3438 = vmatprep.subr.mxu0 0.0
      %3439 = vmatpush1.msra.mxu0 0.0
      %3440 = vmatprep.subr.mxu0 0.0
      %3441 = vmatpush1.msra.mxu0 0.0
      %3442 = vmatprep.subr.mxu0 0.0
      %3443 = vmatpush1.msra.mxu0 0.0
      %3444 = vmatprep.subr.mxu0 0.0
      %3445 = vmatpush1.msra.mxu0 0.0
      %3446 = vmatprep.subr.mxu0 0.0
      %3447 = vmatpush1.msra.mxu0 0.0
      %3448 = vmatprep.subr.mxu0 0.0
      %3449 = vmatpush1.msra.mxu0 0.0
      %3450 = vmatprep.subr.mxu0 0.0
      %3451 = vmatpush1.msra.mxu0 0.0
      %3452 = vmatprep.subr.mxu0 0.0
      %3453 = vmatpush1.msra.mxu0 0.0
      %3454 = vmatprep.subr.mxu0 0.0
      %3455 = vmatpush1.msra.mxu0 0.0
      %3456 = vmatprep.subr.mxu0 0.0
      %3457 = vmatpush1.msra.mxu0 0.0
      %3458 = vmatprep.subr.mxu0 0.0
      %3459 = vmatpush1.msra.mxu0 0.0
      %3460 = vmatprep.subr.mxu0 0.0
      %3461 = vmatpush1.msra.mxu0 0.0
      %3462 = vmatprep.subr.mxu0 0.0
      %3463 = vmatpush1.msra.mxu0 0.0
      %3464 = vmatprep.subr.mxu0 0.0
      %3465 = vmatpush1.msra.mxu0 0.0
      %3466 = vmatprep.mubr.f32.mxu0 0.0
      %3467 = vmatmul.mubr.f32.gmra.mrb[0].mxu0 %v3398
      %v3468 = vpop.f32.mrb[0].mxu0
      %v3469 = vadd.f32 0.0, %v3468
      %v3470 = vpop.f32.mrb[0].mxu0
      %3471 = vdwg.mxu0
      %v3472 = vadd.f32 %v3393, %v3469
      %v3473 = vld [vmem:[%s600] sm:$0xff]
      %3474 = vrot.lane.b32.xlu0 %v3315, 126
      %v3475 = vpop.permute.xlu0 %3474
      %v3477 = vsel %vm205, %v3473, 0
      %v3479 = vsel %vm209, %v3475, 0
      %3481 = vmatprep.subr.mxu0 0.0
      %3482 = vmatpush1.msra.mxu0 %v3479
      %3483 = vmatprep.subr.mxu0 0.0
      %3484 = vmatpush1.msra.mxu0 0.0
      %3485 = vmatprep.subr.mxu0 0.0
      %3486 = vmatpush1.msra.mxu0 0.0
      %3487 = vmatprep.subr.mxu0 0.0
      %3488 = vmatpush1.msra.mxu0 0.0
      %3489 = vmatprep.subr.mxu0 0.0
      %3490 = vmatpush1.msra.mxu0 0.0
      %3491 = vmatprep.subr.mxu0 0.0
      %3492 = vmatpush1.msra.mxu0 0.0
      %3493 = vmatprep.subr.mxu0 0.0
      %3494 = vmatpush1.msra.mxu0 0.0
      %3495 = vmatprep.subr.mxu0 0.0
      %3496 = vmatpush1.msra.mxu0 0.0
      %3497 = vmatprep.subr.mxu0 0.0
      %3498 = vmatpush1.msra.mxu0 0.0
      %3499 = vmatprep.subr.mxu0 0.0
      %3500 = vmatpush1.msra.mxu0 0.0
      %3501 = vmatprep.subr.mxu0 0.0
      %3502 = vmatpush1.msra.mxu0 0.0
      %3503 = vmatprep.subr.mxu0 0.0
      %3504 = vmatpush1.msra.mxu0 0.0
      %3505 = vmatprep.subr.mxu0 0.0
      %3506 = vmatpush1.msra.mxu0 0.0
      %3507 = vmatprep.subr.mxu0 0.0
      %3508 = vmatpush1.msra.mxu0 0.0
      %3509 = vmatprep.subr.mxu0 0.0
      %3510 = vmatpush1.msra.mxu0 0.0
      %3511 = vmatprep.subr.mxu0 0.0
      %3512 = vmatpush1.msra.mxu0 0.0
      %3513 = vmatprep.subr.mxu0 0.0
      %3514 = vmatpush1.msra.mxu0 0.0
      %3515 = vmatprep.subr.mxu0 0.0
      %3516 = vmatpush1.msra.mxu0 0.0
      %3517 = vmatprep.subr.mxu0 0.0
      %3518 = vmatpush1.msra.mxu0 0.0
      %3519 = vmatprep.subr.mxu0 0.0
      %3520 = vmatpush1.msra.mxu0 0.0
      %3521 = vmatprep.subr.mxu0 0.0
      %3522 = vmatpush1.msra.mxu0 0.0
      %3523 = vmatprep.subr.mxu0 0.0
      %3524 = vmatpush1.msra.mxu0 0.0
      %3525 = vmatprep.subr.mxu0 0.0
      %3526 = vmatpush1.msra.mxu0 0.0
      %3527 = vmatprep.subr.mxu0 0.0
      %3528 = vmatpush1.msra.mxu0 0.0
      %3529 = vmatprep.subr.mxu0 0.0
      %3530 = vmatpush1.msra.mxu0 0.0
      %3531 = vmatprep.subr.mxu0 0.0
      %3532 = vmatpush1.msra.mxu0 0.0
      %3533 = vmatprep.subr.mxu0 0.0
      %3534 = vmatpush1.msra.mxu0 0.0
      %3535 = vmatprep.subr.mxu0 0.0
      %3536 = vmatpush1.msra.mxu0 0.0
      %3537 = vmatprep.subr.mxu0 0.0
      %3538 = vmatpush1.msra.mxu0 0.0
      %3539 = vmatprep.subr.mxu0 0.0
      %3540 = vmatpush1.msra.mxu0 0.0
      %3541 = vmatprep.subr.mxu0 0.0
      %3542 = vmatpush1.msra.mxu0 0.0
      %3543 = vmatprep.subr.mxu0 0.0
      %3544 = vmatpush1.msra.mxu0 0.0
      %3545 = vmatprep.mubr.f32.mxu0 0.0
      %3546 = vmatmul.mubr.f32.gmra.mrb[0].mxu0 %v3477
      %v3547 = vpop.f32.mrb[0].mxu0
      %v3548 = vadd.f32 0.0, %v3547
      %v3549 = vpop.f32.mrb[0].mxu0
      %3550 = vdwg.mxu0
      %v3551 = vadd.f32 %v3472, %v3548
      %s3552 = sadd.s32 %s194, 6
      %s3553 = smul.u32 %s3552, 4
      %s3554 = scalar_lea.vmem %s183, %s3553
      %v3555 = vld [vmem:[%s3554] sm:$0xf]
      %v3556 = vld [vmem:[%s684] sm:$0xff]
      %v3558 = vsel %vm205, %v3556, 0
      %v3561 = vsel %vm209, %v3555, 0
      %3563 = vmatprep.subr.mxu0 0.0
      %3564 = vmatpush1.msra.mxu0 %v3561
      %3565 = vmatprep.subr.mxu0 0.0
      %3566 = vmatpush1.msra.mxu0 0.0
      %3567 = vmatprep.subr.mxu0 0.0
      %3568 = vmatpush1.msra.mxu0 0.0
      %3569 = vmatprep.subr.mxu0 0.0
      %3570 = vmatpush1.msra.mxu0 0.0
      %3571 = vmatprep.subr.mxu0 0.0
      %3572 = vmatpush1.msra.mxu0 0.0
      %3573 = vmatprep.subr.mxu0 0.0
      %3574 = vmatpush1.msra.mxu0 0.0
      %3575 = vmatprep.subr.mxu0 0.0
      %3576 = vmatpush1.msra.mxu0 0.0
      %3577 = vmatprep.subr.mxu0 0.0
      %3578 = vmatpush1.msra.mxu0 0.0
      %3579 = vmatprep.subr.mxu0 0.0
      %3580 = vmatpush1.msra.mxu0 0.0
      %3581 = vmatprep.subr.mxu0 0.0
      %3582 = vmatpush1.msra.mxu0 0.0
      %3583 = vmatprep.subr.mxu0 0.0
      %3584 = vmatpush1.msra.mxu0 0.0
      %3585 = vmatprep.subr.mxu0 0.0
      %3586 = vmatpush1.msra.mxu0 0.0
      %3587 = vmatprep.subr.mxu0 0.0
      %3588 = vmatpush1.msra.mxu0 0.0
      %3589 = vmatprep.subr.mxu0 0.0
      %3590 = vmatpush1.msra.mxu0 0.0
      %3591 = vmatprep.subr.mxu0 0.0
      %3592 = vmatpush1.msra.mxu0 0.0
      %3593 = vmatprep.subr.mxu0 0.0
      %3594 = vmatpush1.msra.mxu0 0.0
      %3595 = vmatprep.subr.mxu0 0.0
      %3596 = vmatpush1.msra.mxu0 0.0
      %3597 = vmatprep.subr.mxu0 0.0
      %3598 = vmatpush1.msra.mxu0 0.0
      %3599 = vmatprep.subr.mxu0 0.0
      %3600 = vmatpush1.msra.mxu0 0.0
      %3601 = vmatprep.subr.mxu0 0.0
      %3602 = vmatpush1.msra.mxu0 0.0
      %3603 = vmatprep.subr.mxu0 0.0
      %3604 = vmatpush1.msra.mxu0 0.0
      %3605 = vmatprep.subr.mxu0 0.0
      %3606 = vmatpush1.msra.mxu0 0.0
      %3607 = vmatprep.subr.mxu0 0.0
      %3608 = vmatpush1.msra.mxu0 0.0
      %3609 = vmatprep.subr.mxu0 0.0
      %3610 = vmatpush1.msra.mxu0 0.0
      %3611 = vmatprep.subr.mxu0 0.0
      %3612 = vmatpush1.msra.mxu0 0.0
      %3613 = vmatprep.subr.mxu0 0.0
      %3614 = vmatpush1.msra.mxu0 0.0
      %3615 = vmatprep.subr.mxu0 0.0
      %3616 = vmatpush1.msra.mxu0 0.0
      %3617 = vmatprep.subr.mxu0 0.0
      %3618 = vmatpush1.msra.mxu0 0.0
      %3619 = vmatprep.subr.mxu0 0.0
      %3620 = vmatpush1.msra.mxu0 0.0
      %3621 = vmatprep.subr.mxu0 0.0
      %3622 = vmatpush1.msra.mxu0 0.0
      %3623 = vmatprep.subr.mxu0 0.0
      %3624 = vmatpush1.msra.mxu0 0.0
      %3625 = vmatprep.subr.mxu0 0.0
      %3626 = vmatpush1.msra.mxu0 0.0
      %3627 = vmatprep.mubr.f32.mxu0 0.0
      %3628 = vmatmul.mubr.f32.gmra.mrb[0].mxu0 %v3558
      %v3629 = vpop.f32.mrb[0].mxu0
      %v3630 = vadd.f32 0.0, %v3629
      %v3631 = vpop.f32.mrb[0].mxu0
      %3632 = vdwg.mxu0
      %v3633 = vadd.f32 %v3551, %v3630
      %v3634 = vld [vmem:[%s763] sm:$0xff]
      %3635 = vrot.lane.b32.xlu0 %v3555, 127
      %v3636 = vpop.permute.xlu0 %3635
      %v3638 = vsel %vm205, %v3634, 0
      %v3640 = vsel %vm209, %v3636, 0
      %3642 = vmatprep.subr.mxu0 0.0
      %3643 = vmatpush1.msra.mxu0 %v3640
      %3644 = vmatprep.subr.mxu0 0.0
      %3645 = vmatpush1.msra.mxu0 0.0
      %3646 = vmatprep.subr.mxu0 0.0
      %3647 = vmatpush1.msra.mxu0 0.0
      %3648 = vmatprep.subr.mxu0 0.0
      %3649 = vmatpush1.msra.mxu0 0.0
      %3650 = vmatprep.subr.mxu0 0.0
      %3651 = vmatpush1.msra.mxu0 0.0
      %3652 = vmatprep.subr.mxu0 0.0
      %3653 = vmatpush1.msra.mxu0 0.0
      %3654 = vmatprep.subr.mxu0 0.0
      %3655 = vmatpush1.msra.mxu0 0.0
      %3656 = vmatprep.subr.mxu0 0.0
      %3657 = vmatpush1.msra.mxu0 0.0
      %3658 = vmatprep.subr.mxu0 0.0
      %3659 = vmatpush1.msra.mxu0 0.0
      %3660 = vmatprep.subr.mxu0 0.0
      %3661 = vmatpush1.msra.mxu0 0.0
      %3662 = vmatprep.subr.mxu0 0.0
      %3663 = vmatpush1.msra.mxu0 0.0
      %3664 = vmatprep.subr.mxu0 0.0
      %3665 = vmatpush1.msra.mxu0 0.0
      %3666 = vmatprep.subr.mxu0 0.0
      %3667 = vmatpush1.msra.mxu0 0.0
      %3668 = vmatprep.subr.mxu0 0.0
      %3669 = vmatpush1.msra.mxu0 0.0
      %3670 = vmatprep.subr.mxu0 0.0
      %3671 = vmatpush1.msra.mxu0 0.0
      %3672 = vmatprep.subr.mxu0 0.0
      %3673 = vmatpush1.msra.mxu0 0.0
      %3674 = vmatprep.subr.mxu0 0.0
      %3675 = vmatpush1.msra.mxu0 0.0
      %3676 = vmatprep.subr.mxu0 0.0
      %3677 = vmatpush1.msra.mxu0 0.0
      %3678 = vmatprep.subr.mxu0 0.0
      %3679 = vmatpush1.msra.mxu0 0.0
      %3680 = vmatprep.subr.mxu0 0.0
      %3681 = vmatpush1.msra.mxu0 0.0
      %3682 = vmatprep.subr.mxu0 0.0
      %3683 = vmatpush1.msra.mxu0 0.0
      %3684 = vmatprep.subr.mxu0 0.0
      %3685 = vmatpush1.msra.mxu0 0.0
      %3686 = vmatprep.subr.mxu0 0.0
      %3687 = vmatpush1.msra.mxu0 0.0
      %3688 = vmatprep.subr.mxu0 0.0
      %3689 = vmatpush1.msra.mxu0 0.0
      %3690 = vmatprep.subr.mxu0 0.0
      %3691 = vmatpush1.msra.mxu0 0.0
      %3692 = vmatprep.subr.mxu0 0.0
      %3693 = vmatpush1.msra.mxu0 0.0
      %3694 = vmatprep.subr.mxu0 0.0
      %3695 = vmatpush1.msra.mxu0 0.0
      %3696 = vmatprep.subr.mxu0 0.0
      %3697 = vmatpush1.msra.mxu0 0.0
      %3698 = vmatprep.subr.mxu0 0.0
      %3699 = vmatpush1.msra.mxu0 0.0
      %3700 = vmatprep.subr.mxu0 0.0
      %3701 = vmatpush1.msra.mxu0 0.0
      %3702 = vmatprep.subr.mxu0 0.0
      %3703 = vmatpush1.msra.mxu0 0.0
      %3704 = vmatprep.subr.mxu0 0.0
      %3705 = vmatpush1.msra.mxu0 0.0
      %3706 = vmatprep.mubr.f32.mxu0 0.0
      %3707 = vmatmul.mubr.f32.gmra.mrb[0].mxu0 %v3638
      %v3708 = vpop.f32.mrb[0].mxu0
      %v3709 = vadd.f32 0.0, %v3708
      %v3710 = vpop.f32.mrb[0].mxu0
      %3711 = vdwg.mxu0
      %v3712 = vadd.f32 %v3633, %v3709
      %v3713 = vld [vmem:[%s843] sm:$0xff]
      %3714 = vrot.lane.b32.xlu0 %v3555, 126
      %v3715 = vpop.permute.xlu0 %3714
      %v3717 = vsel %vm205, %v3713, 0
      %v3719 = vsel %vm209, %v3715, 0
      %3721 = vmatprep.subr.mxu0 0.0
      %3722 = vmatpush1.msra.mxu0 %v3719
      %3723 = vmatprep.subr.mxu0 0.0
      %3724 = vmatpush1.msra.mxu0 0.0
      %3725 = vmatprep.subr.mxu0 0.0
      %3726 = vmatpush1.msra.mxu0 0.0
      %3727 = vmatprep.subr.mxu0 0.0
      %3728 = vmatpush1.msra.mxu0 0.0
      %3729 = vmatprep.subr.mxu0 0.0
      %3730 = vmatpush1.msra.mxu0 0.0
      %3731 = vmatprep.subr.mxu0 0.0
      %3732 = vmatpush1.msra.mxu0 0.0
      %3733 = vmatprep.subr.mxu0 0.0
      %3734 = vmatpush1.msra.mxu0 0.0
      %3735 = vmatprep.subr.mxu0 0.0
      %3736 = vmatpush1.msra.mxu0 0.0
      %3737 = vmatprep.subr.mxu0 0.0
      %3738 = vmatpush1.msra.mxu0 0.0
      %3739 = vmatprep.subr.mxu0 0.0
      %3740 = vmatpush1.msra.mxu0 0.0
      %3741 = vmatprep.subr.mxu0 0.0
      %3742 = vmatpush1.msra.mxu0 0.0
      %3743 = vmatprep.subr.mxu0 0.0
      %3744 = vmatpush1.msra.mxu0 0.0
      %3745 = vmatprep.subr.mxu0 0.0
      %3746 = vmatpush1.msra.mxu0 0.0
      %3747 = vmatprep.subr.mxu0 0.0
      %3748 = vmatpush1.msra.mxu0 0.0
      %3749 = vmatprep.subr.mxu0 0.0
      %3750 = vmatpush1.msra.mxu0 0.0
      %3751 = vmatprep.subr.mxu0 0.0
      %3752 = vmatpush1.msra.mxu0 0.0
      %3753 = vmatprep.subr.mxu0 0.0
      %3754 = vmatpush1.msra.mxu0 0.0
      %3755 = vmatprep.subr.mxu0 0.0
      %3756 = vmatpush1.msra.mxu0 0.0
      %3757 = vmatprep.subr.mxu0 0.0
      %3758 = vmatpush1.msra.mxu0 0.0
      %3759 = vmatprep.subr.mxu0 0.0
      %3760 = vmatpush1.msra.mxu0 0.0
      %3761 = vmatprep.subr.mxu0 0.0
      %3762 = vmatpush1.msra.mxu0 0.0
      %3763 = vmatprep.subr.mxu0 0.0
      %3764 = vmatpush1.msra.mxu0 0.0
      %3765 = vmatprep.subr.mxu0 0.0
      %3766 = vmatpush1.msra.mxu0 0.0
      %3767 = vmatprep.subr.mxu0 0.0
      %3768 = vmatpush1.msra.mxu0 0.0
      %3769 = vmatprep.subr.mxu0 0.0
      %3770 = vmatpush1.msra.mxu0 0.0
      %3771 = vmatprep.subr.mxu0 0.0
      %3772 = vmatpush1.msra.mxu0 0.0
      %3773 = vmatprep.subr.mxu0 0.0
      %3774 = vmatpush1.msra.mxu0 0.0
      %3775 = vmatprep.subr.mxu0 0.0
      %3776 = vmatpush1.msra.mxu0 0.0
      %3777 = vmatprep.subr.mxu0 0.0
      %3778 = vmatpush1.msra.mxu0 0.0
      %3779 = vmatprep.subr.mxu0 0.0
      %3780 = vmatpush1.msra.mxu0 0.0
      %3781 = vmatprep.subr.mxu0 0.0
      %3782 = vmatpush1.msra.mxu0 0.0
      %3783 = vmatprep.subr.mxu0 0.0
      %3784 = vmatpush1.msra.mxu0 0.0
      %3785 = vmatprep.mubr.f32.mxu0 0.0
      %3786 = vmatmul.mubr.f32.gmra.mrb[0].mxu0 %v3717
      %v3787 = vpop.f32.mrb[0].mxu0
      %v3788 = vadd.f32 0.0, %v3787
      %v3789 = vpop.f32.mrb[0].mxu0
      %3790 = vdwg.mxu0
      %v3791 = vadd.f32 %v3712, %v3788
      %v3792 = vadd.f32 %v3791, %v926
      %v3793 = vmax.f32 %v3792, 0.0
      %s3794 = scalar_lea.vmem %s192, 32
      %3795 = vst.msk [vmem:[%s3794] sm:$0xff] %vm930, %v3793
      %v3796 = vld [vmem:[%s2838] sm:$0xf]
      %v3797 = vld [vmem:[%s1] sm:$0xff]
      %v3798 = vld [vmem:[%s200] sm:$0xff]
      %3800 = vrot.lane.b32.xlu0 %v3796, 127
      %v3801 = vpop.permute.xlu0 %3800
      %v3803 = vsel %vm205, %v3798, 0
      %v3805 = vsel %vm209, %v3801, 0
      %3807 = vmatprep.subr.mxu0 0.0
      %3808 = vmatpush1.msra.mxu0 %v3805
      %3809 = vmatprep.subr.mxu0 0.0
      %3810 = vmatpush1.msra.mxu0 0.0
      %3811 = vmatprep.subr.mxu0 0.0
      %3812 = vmatpush1.msra.mxu0 0.0
      %3813 = vmatprep.subr.mxu0 0.0
      %3814 = vmatpush1.msra.mxu0 0.0
      %3815 = vmatprep.subr.mxu0 0.0
      %3816 = vmatpush1.msra.mxu0 0.0
      %3817 = vmatprep.subr.mxu0 0.0
      %3818 = vmatpush1.msra.mxu0 0.0
      %3819 = vmatprep.subr.mxu0 0.0
      %3820 = vmatpush1.msra.mxu0 0.0
      %3821 = vmatprep.subr.mxu0 0.0
      %3822 = vmatpush1.msra.mxu0 0.0
      %3823 = vmatprep.subr.mxu0 0.0
      %3824 = vmatpush1.msra.mxu0 0.0
      %3825 = vmatprep.subr.mxu0 0.0
      %3826 = vmatpush1.msra.mxu0 0.0
      %3827 = vmatprep.subr.mxu0 0.0
      %3828 = vmatpush1.msra.mxu0 0.0
      %3829 = vmatprep.subr.mxu0 0.0
      %3830 = vmatpush1.msra.mxu0 0.0
      %3831 = vmatprep.subr.mxu0 0.0
      %3832 = vmatpush1.msra.mxu0 0.0
      %3833 = vmatprep.subr.mxu0 0.0
      %3834 = vmatpush1.msra.mxu0 0.0
      %3835 = vmatprep.subr.mxu0 0.0
      %3836 = vmatpush1.msra.mxu0 0.0
      %3837 = vmatprep.subr.mxu0 0.0
      %3838 = vmatpush1.msra.mxu0 0.0
      %3839 = vmatprep.subr.mxu0 0.0
      %3840 = vmatpush1.msra.mxu0 0.0
      %3841 = vmatprep.subr.mxu0 0.0
      %3842 = vmatpush1.msra.mxu0 0.0
      %3843 = vmatprep.subr.mxu0 0.0
      %3844 = vmatpush1.msra.mxu0 0.0
      %3845 = vmatprep.subr.mxu0 0.0
      %3846 = vmatpush1.msra.mxu0 0.0
      %3847 = vmatprep.subr.mxu0 0.0
      %3848 = vmatpush1.msra.mxu0 0.0
      %3849 = vmatprep.subr.mxu0 0.0
      %3850 = vmatpush1.msra.mxu0 0.0
      %3851 = vmatprep.subr.mxu0 0.0
      %3852 = vmatpush1.msra.mxu0 0.0
      %3853 = vmatprep.subr.mxu0 0.0
      %3854 = vmatpush1.msra.mxu0 0.0
      %3855 = vmatprep.subr.mxu0 0.0
      %3856 = vmatpush1.msra.mxu0 0.0
      %3857 = vmatprep.subr.mxu0 0.0
      %3858 = vmatpush1.msra.mxu0 0.0
      %3859 = vmatprep.subr.mxu0 0.0
      %3860 = vmatpush1.msra.mxu0 0.0
      %3861 = vmatprep.subr.mxu0 0.0
      %3862 = vmatpush1.msra.mxu0 0.0
      %3863 = vmatprep.subr.mxu0 0.0
      %3864 = vmatpush1.msra.mxu0 0.0
      %3865 = vmatprep.subr.mxu0 0.0
      %3866 = vmatpush1.msra.mxu0 0.0
      %3867 = vmatprep.subr.mxu0 0.0
      %3868 = vmatpush1.msra.mxu0 0.0
      %3869 = vmatprep.subr.mxu0 0.0
      %3870 = vmatpush1.msra.mxu0 0.0
      %3871 = vmatprep.mubr.f32.mxu0 0.0
      %3872 = vmatmul.mubr.f32.gmra.mrb[0].mxu0 %v3803
      %v3873 = vpop.f32.mrb[0].mxu0
      %v3874 = vadd.f32 0.0, %v3873
      %v3875 = vpop.f32.mrb[0].mxu0
      %3876 = vdwg.mxu0
      %v3878 = vsel %vm205, %v3797, 0
      %v3880 = vsel %vm209, %v3796, 0
      %3882 = vmatprep.subr.mxu0 0.0
      %3883 = vmatpush1.msra.mxu0 %v3880
      %3884 = vmatprep.subr.mxu0 0.0
      %3885 = vmatpush1.msra.mxu0 0.0
      %3886 = vmatprep.subr.mxu0 0.0
      %3887 = vmatpush1.msra.mxu0 0.0
      %3888 = vmatprep.subr.mxu0 0.0
      %3889 = vmatpush1.msra.mxu0 0.0
      %3890 = vmatprep.subr.mxu0 0.0
      %3891 = vmatpush1.msra.mxu0 0.0
      %3892 = vmatprep.subr.mxu0 0.0
      %3893 = vmatpush1.msra.mxu0 0.0
      %3894 = vmatprep.subr.mxu0 0.0
      %3895 = vmatpush1.msra.mxu0 0.0
      %3896 = vmatprep.subr.mxu0 0.0
      %3897 = vmatpush1.msra.mxu0 0.0
      %3898 = vmatprep.subr.mxu0 0.0
      %3899 = vmatpush1.msra.mxu0 0.0
      %3900 = vmatprep.subr.mxu0 0.0
      %3901 = vmatpush1.msra.mxu0 0.0
      %3902 = vmatprep.subr.mxu0 0.0
      %3903 = vmatpush1.msra.mxu0 0.0
      %3904 = vmatprep.subr.mxu0 0.0
      %3905 = vmatpush1.msra.mxu0 0.0
      %3906 = vmatprep.subr.mxu0 0.0
      %3907 = vmatpush1.msra.mxu0 0.0
      %3908 = vmatprep.subr.mxu0 0.0
      %3909 = vmatpush1.msra.mxu0 0.0
      %3910 = vmatprep.subr.mxu0 0.0
      %3911 = vmatpush1.msra.mxu0 0.0
      %3912 = vmatprep.subr.mxu0 0.0
      %3913 = vmatpush1.msra.mxu0 0.0
      %3914 = vmatprep.subr.mxu0 0.0
      %3915 = vmatpush1.msra.mxu0 0.0
      %3916 = vmatprep.subr.mxu0 0.0
      %3917 = vmatpush1.msra.mxu0 0.0
      %3918 = vmatprep.subr.mxu0 0.0
      %3919 = vmatpush1.msra.mxu0 0.0
      %3920 = vmatprep.subr.mxu0 0.0
      %3921 = vmatpush1.msra.mxu0 0.0
      %3922 = vmatprep.subr.mxu0 0.0
      %3923 = vmatpush1.msra.mxu0 0.0
      %3924 = vmatprep.subr.mxu0 0.0
      %3925 = vmatpush1.msra.mxu0 0.0
      %3926 = vmatprep.subr.mxu0 0.0
      %3927 = vmatpush1.msra.mxu0 0.0
      %3928 = vmatprep.subr.mxu0 0.0
      %3929 = vmatpush1.msra.mxu0 0.0
      %3930 = vmatprep.subr.mxu0 0.0
      %3931 = vmatpush1.msra.mxu0 0.0
      %3932 = vmatprep.subr.mxu0 0.0
      %3933 = vmatpush1.msra.mxu0 0.0
      %3934 = vmatprep.subr.mxu0 0.0
      %3935 = vmatpush1.msra.mxu0 0.0
      %3936 = vmatprep.subr.mxu0 0.0
      %3937 = vmatpush1.msra.mxu0 0.0
      %3938 = vmatprep.subr.mxu0 0.0
      %3939 = vmatpush1.msra.mxu0 0.0
      %3940 = vmatprep.subr.mxu0 0.0
      %3941 = vmatpush1.msra.mxu0 0.0
      %3942 = vmatprep.subr.mxu0 0.0
      %3943 = vmatpush1.msra.mxu0 0.0
      %3944 = vmatprep.subr.mxu0 0.0
      %3945 = vmatpush1.msra.mxu0 0.0
      %3946 = vmatprep.mubr.f32.mxu0 0.0
      %3947 = vmatmul.mubr.f32.gmra.mrb[0].mxu0 %v3878
      %v3948 = vpop.f32.mrb[0].mxu0
      %v3949 = vadd.f32 %v3874, %v3948
      %v3950 = vpop.f32.mrb[0].mxu0
      %3951 = vdwg.mxu0
      %v3952 = vld [vmem:[%s357] sm:$0xff]
      %3953 = vrot.lane.b32.xlu0 %v3796, 126
      %v3954 = vpop.permute.xlu0 %3953
      %v3956 = vsel %vm205, %v3952, 0
      %v3958 = vsel %vm209, %v3954, 0
      %3960 = vmatprep.subr.mxu0 0.0
      %3961 = vmatpush1.msra.mxu0 %v3958
      %3962 = vmatprep.subr.mxu0 0.0
      %3963 = vmatpush1.msra.mxu0 0.0
      %3964 = vmatprep.subr.mxu0 0.0
      %3965 = vmatpush1.msra.mxu0 0.0
      %3966 = vmatprep.subr.mxu0 0.0
      %3967 = vmatpush1.msra.mxu0 0.0
      %3968 = vmatprep.subr.mxu0 0.0
      %3969 = vmatpush1.msra.mxu0 0.0
      %3970 = vmatprep.subr.mxu0 0.0
      %3971 = vmatpush1.msra.mxu0 0.0
      %3972 = vmatprep.subr.mxu0 0.0
      %3973 = vmatpush1.msra.mxu0 0.0
      %3974 = vmatprep.subr.mxu0 0.0
      %3975 = vmatpush1.msra.mxu0 0.0
      %3976 = vmatprep.subr.mxu0 0.0
      %3977 = vmatpush1.msra.mxu0 0.0
      %3978 = vmatprep.subr.mxu0 0.0
      %3979 = vmatpush1.msra.mxu0 0.0
      %3980 = vmatprep.subr.mxu0 0.0
      %3981 = vmatpush1.msra.mxu0 0.0
      %3982 = vmatprep.subr.mxu0 0.0
      %3983 = vmatpush1.msra.mxu0 0.0
      %3984 = vmatprep.subr.mxu0 0.0
      %3985 = vmatpush1.msra.mxu0 0.0
      %3986 = vmatprep.subr.mxu0 0.0
      %3987 = vmatpush1.msra.mxu0 0.0
      %3988 = vmatprep.subr.mxu0 0.0
      %3989 = vmatpush1.msra.mxu0 0.0
      %3990 = vmatprep.subr.mxu0 0.0
      %3991 = vmatpush1.msra.mxu0 0.0
      %3992 = vmatprep.subr.mxu0 0.0
      %3993 = vmatpush1.msra.mxu0 0.0
      %3994 = vmatprep.subr.mxu0 0.0
      %3995 = vmatpush1.msra.mxu0 0.0
      %3996 = vmatprep.subr.mxu0 0.0
      %3997 = vmatpush1.msra.mxu0 0.0
      %3998 = vmatprep.subr.mxu0 0.0
      %3999 = vmatpush1.msra.mxu0 0.0
      %4000 = vmatprep.subr.mxu0 0.0
      %4001 = vmatpush1.msra.mxu0 0.0
      %4002 = vmatprep.subr.mxu0 0.0
      %4003 = vmatpush1.msra.mxu0 0.0
      %4004 = vmatprep.subr.mxu0 0.0
      %4005 = vmatpush1.msra.mxu0 0.0
      %4006 = vmatprep.subr.mxu0 0.0
      %4007 = vmatpush1.msra.mxu0 0.0
      %4008 = vmatprep.subr.mxu0 0.0
      %4009 = vmatpush1.msra.mxu0 0.0
      %4010 = vmatprep.subr.mxu0 0.0
      %4011 = vmatpush1.msra.mxu0 0.0
      %4012 = vmatprep.subr.mxu0 0.0
      %4013 = vmatpush1.msra.mxu0 0.0
      %4014 = vmatprep.subr.mxu0 0.0
      %4015 = vmatpush1.msra.mxu0 0.0
      %4016 = vmatprep.subr.mxu0 0.0
      %4017 = vmatpush1.msra.mxu0 0.0
      %4018 = vmatprep.subr.mxu0 0.0
      %4019 = vmatpush1.msra.mxu0 0.0
      %4020 = vmatprep.subr.mxu0 0.0
      %4021 = vmatpush1.msra.mxu0 0.0
      %4022 = vmatprep.subr.mxu0 0.0
      %4023 = vmatpush1.msra.mxu0 0.0
      %4024 = vmatprep.mubr.f32.mxu0 0.0
      %4025 = vmatmul.mubr.f32.gmra.mrb[0].mxu0 %v3956
      %v4026 = vpop.f32.mrb[0].mxu0
      %v4027 = vadd.f32 0.0, %v4026
      %v4028 = vpop.f32.mrb[0].mxu0
      %4029 = vdwg.mxu0
      %v4030 = vadd.f32 %v3949, %v4027
      %v4031 = vld [vmem:[%s3554] sm:$0xf]
      %v4032 = vld [vmem:[%s441] sm:$0xff]
      %v4034 = vsel %vm205, %v4032, 0
      %v4037 = vsel %vm209, %v4031, 0
      %4039 = vmatprep.subr.mxu0 0.0
      %4040 = vmatpush1.msra.mxu0 %v4037
      %4041 = vmatprep.subr.mxu0 0.0
      %4042 = vmatpush1.msra.mxu0 0.0
      %4043 = vmatprep.subr.mxu0 0.0
      %4044 = vmatpush1.msra.mxu0 0.0
      %4045 = vmatprep.subr.mxu0 0.0
      %4046 = vmatpush1.msra.mxu0 0.0
      %4047 = vmatprep.subr.mxu0 0.0
      %4048 = vmatpush1.msra.mxu0 0.0
      %4049 = vmatprep.subr.mxu0 0.0
      %4050 = vmatpush1.msra.mxu0 0.0
      %4051 = vmatprep.subr.mxu0 0.0
      %4052 = vmatpush1.msra.mxu0 0.0
      %4053 = vmatprep.subr.mxu0 0.0
      %4054 = vmatpush1.msra.mxu0 0.0
      %4055 = vmatprep.subr.mxu0 0.0
      %4056 = vmatpush1.msra.mxu0 0.0
      %4057 = vmatprep.subr.mxu0 0.0
      %4058 = vmatpush1.msra.mxu0 0.0
      %4059 = vmatprep.subr.mxu0 0.0
      %4060 = vmatpush1.msra.mxu0 0.0
      %4061 = vmatprep.subr.mxu0 0.0
      %4062 = vmatpush1.msra.mxu0 0.0
      %4063 = vmatprep.subr.mxu0 0.0
      %4064 = vmatpush1.msra.mxu0 0.0
      %4065 = vmatprep.subr.mxu0 0.0
      %4066 = vmatpush1.msra.mxu0 0.0
      %4067 = vmatprep.subr.mxu0 0.0
      %4068 = vmatpush1.msra.mxu0 0.0
      %4069 = vmatprep.subr.mxu0 0.0
      %4070 = vmatpush1.msra.mxu0 0.0
      %4071 = vmatprep.subr.mxu0 0.0
      %4072 = vmatpush1.msra.mxu0 0.0
      %4073 = vmatprep.subr.mxu0 0.0
      %4074 = vmatpush1.msra.mxu0 0.0
      %4075 = vmatprep.subr.mxu0 0.0
      %4076 = vmatpush1.msra.mxu0 0.0
      %4077 = vmatprep.subr.mxu0 0.0
      %4078 = vmatpush1.msra.mxu0 0.0
      %4079 = vmatprep.subr.mxu0 0.0
      %4080 = vmatpush1.msra.mxu0 0.0
      %4081 = vmatprep.subr.mxu0 0.0
      %4082 = vmatpush1.msra.mxu0 0.0
      %4083 = vmatprep.subr.mxu0 0.0
      %4084 = vmatpush1.msra.mxu0 0.0
      %4085 = vmatprep.subr.mxu0 0.0
      %4086 = vmatpush1.msra.mxu0 0.0
      %4087 = vmatprep.subr.mxu0 0.0
      %4088 = vmatpush1.msra.mxu0 0.0
      %4089 = vmatprep.subr.mxu0 0.0
      %4090 = vmatpush1.msra.mxu0 0.0
      %4091 = vmatprep.subr.mxu0 0.0
      %4092 = vmatpush1.msra.mxu0 0.0
      %4093 = vmatprep.subr.mxu0 0.0
      %4094 = vmatpush1.msra.mxu0 0.0
      %4095 = vmatprep.subr.mxu0 0.0
      %4096 = vmatpush1.msra.mxu0 0.0
      %4097 = vmatprep.subr.mxu0 0.0
      %4098 = vmatpush1.msra.mxu0 0.0
      %4099 = vmatprep.subr.mxu0 0.0
      %4100 = vmatpush1.msra.mxu0 0.0
      %4101 = vmatprep.subr.mxu0 0.0
      %4102 = vmatpush1.msra.mxu0 0.0
      %4103 = vmatprep.mubr.f32.mxu0 0.0
      %4104 = vmatmul.mubr.f32.gmra.mrb[0].mxu0 %v4034
      %v4105 = vpop.f32.mrb[0].mxu0
      %v4106 = vadd.f32 0.0, %v4105
      %v4107 = vpop.f32.mrb[0].mxu0
      %4108 = vdwg.mxu0
      %v4109 = vadd.f32 %v4030, %v4106
      %v4110 = vld [vmem:[%s520] sm:$0xff]
      %4111 = vrot.lane.b32.xlu0 %v4031, 127
      %v4112 = vpop.permute.xlu0 %4111
      %v4114 = vsel %vm205, %v4110, 0
      %v4116 = vsel %vm209, %v4112, 0
      %4118 = vmatprep.subr.mxu0 0.0
      %4119 = vmatpush1.msra.mxu0 %v4116
      %4120 = vmatprep.subr.mxu0 0.0
      %4121 = vmatpush1.msra.mxu0 0.0
      %4122 = vmatprep.subr.mxu0 0.0
      %4123 = vmatpush1.msra.mxu0 0.0
      %4124 = vmatprep.subr.mxu0 0.0
      %4125 = vmatpush1.msra.mxu0 0.0
      %4126 = vmatprep.subr.mxu0 0.0
      %4127 = vmatpush1.msra.mxu0 0.0
      %4128 = vmatprep.subr.mxu0 0.0
      %4129 = vmatpush1.msra.mxu0 0.0
      %4130 = vmatprep.subr.mxu0 0.0
      %4131 = vmatpush1.msra.mxu0 0.0
      %4132 = vmatprep.subr.mxu0 0.0
      %4133 = vmatpush1.msra.mxu0 0.0
      %4134 = vmatprep.subr.mxu0 0.0
      %4135 = vmatpush1.msra.mxu0 0.0
      %4136 = vmatprep.subr.mxu0 0.0
      %4137 = vmatpush1.msra.mxu0 0.0
      %4138 = vmatprep.subr.mxu0 0.0
      %4139 = vmatpush1.msra.mxu0 0.0
      %4140 = vmatprep.subr.mxu0 0.0
      %4141 = vmatpush1.msra.mxu0 0.0
      %4142 = vmatprep.subr.mxu0 0.0
      %4143 = vmatpush1.msra.mxu0 0.0
      %4144 = vmatprep.subr.mxu0 0.0
      %4145 = vmatpush1.msra.mxu0 0.0
      %4146 = vmatprep.subr.mxu0 0.0
      %4147 = vmatpush1.msra.mxu0 0.0
      %4148 = vmatprep.subr.mxu0 0.0
      %4149 = vmatpush1.msra.mxu0 0.0
      %4150 = vmatprep.subr.mxu0 0.0
      %4151 = vmatpush1.msra.mxu0 0.0
      %4152 = vmatprep.subr.mxu0 0.0
      %4153 = vmatpush1.msra.mxu0 0.0
      %4154 = vmatprep.subr.mxu0 0.0
      %4155 = vmatpush1.msra.mxu0 0.0
      %4156 = vmatprep.subr.mxu0 0.0
      %4157 = vmatpush1.msra.mxu0 0.0
      %4158 = vmatprep.subr.mxu0 0.0
      %4159 = vmatpush1.msra.mxu0 0.0
      %4160 = vmatprep.subr.mxu0 0.0
      %4161 = vmatpush1.msra.mxu0 0.0
      %4162 = vmatprep.subr.mxu0 0.0
      %4163 = vmatpush1.msra.mxu0 0.0
      %4164 = vmatprep.subr.mxu0 0.0
      %4165 = vmatpush1.msra.mxu0 0.0
      %4166 = vmatprep.subr.mxu0 0.0
      %4167 = vmatpush1.msra.mxu0 0.0
      %4168 = vmatprep.subr.mxu0 0.0
      %4169 = vmatpush1.msra.mxu0 0.0
      %4170 = vmatprep.subr.mxu0 0.0
      %4171 = vmatpush1.msra.mxu0 0.0
      %4172 = vmatprep.subr.mxu0 0.0
      %4173 = vmatpush1.msra.mxu0 0.0
      %4174 = vmatprep.subr.mxu0 0.0
      %4175 = vmatpush1.msra.mxu0 0.0
      %4176 = vmatprep.subr.mxu0 0.0
      %4177 = vmatpush1.msra.mxu0 0.0
      %4178 = vmatprep.subr.mxu0 0.0
      %4179 = vmatpush1.msra.mxu0 0.0
      %4180 = vmatprep.subr.mxu0 0.0
      %4181 = vmatpush1.msra.mxu0 0.0
      %4182 = vmatprep.mubr.f32.mxu0 0.0
      %4183 = vmatmul.mubr.f32.gmra.mrb[0].mxu0 %v4114
      %v4184 = vpop.f32.mrb[0].mxu0
      %v4185 = vadd.f32 0.0, %v4184
      %v4186 = vpop.f32.mrb[0].mxu0
      %4187 = vdwg.mxu0
      %v4188 = vadd.f32 %v4109, %v4185
      %v4189 = vld [vmem:[%s600] sm:$0xff]
      %4190 = vrot.lane.b32.xlu0 %v4031, 126
      %v4191 = vpop.permute.xlu0 %4190
      %v4193 = vsel %vm205, %v4189, 0
      %v4195 = vsel %vm209, %v4191, 0
      %4197 = vmatprep.subr.mxu0 0.0
      %4198 = vmatpush1.msra.mxu0 %v4195
      %4199 = vmatprep.subr.mxu0 0.0
      %4200 = vmatpush1.msra.mxu0 0.0
      %4201 = vmatprep.subr.mxu0 0.0
      %4202 = vmatpush1.msra.mxu0 0.0
      %4203 = vmatprep.subr.mxu0 0.0
      %4204 = vmatpush1.msra.mxu0 0.0
      %4205 = vmatprep.subr.mxu0 0.0
      %4206 = vmatpush1.msra.mxu0 0.0
      %4207 = vmatprep.subr.mxu0 0.0
      %4208 = vmatpush1.msra.mxu0 0.0
      %4209 = vmatprep.subr.mxu0 0.0
      %4210 = vmatpush1.msra.mxu0 0.0
      %4211 = vmatprep.subr.mxu0 0.0
      %4212 = vmatpush1.msra.mxu0 0.0
      %4213 = vmatprep.subr.mxu0 0.0
      %4214 = vmatpush1.msra.mxu0 0.0
      %4215 = vmatprep.subr.mxu0 0.0
      %4216 = vmatpush1.msra.mxu0 0.0
      %4217 = vmatprep.subr.mxu0 0.0
      %4218 = vmatpush1.msra.mxu0 0.0
      %4219 = vmatprep.subr.mxu0 0.0
      %4220 = vmatpush1.msra.mxu0 0.0
      %4221 = vmatprep.subr.mxu0 0.0
      %4222 = vmatpush1.msra.mxu0 0.0
      %4223 = vmatprep.subr.mxu0 0.0
      %4224 = vmatpush1.msra.mxu0 0.0
      %4225 = vmatprep.subr.mxu0 0.0
      %4226 = vmatpush1.msra.mxu0 0.0
      %4227 = vmatprep.subr.mxu0 0.0
      %4228 = vmatpush1.msra.mxu0 0.0
      %4229 = vmatprep.subr.mxu0 0.0
      %4230 = vmatpush1.msra.mxu0 0.0
      %4231 = vmatprep.subr.mxu0 0.0
      %4232 = vmatpush1.msra.mxu0 0.0
      %4233 = vmatprep.subr.mxu0 0.0
      %4234 = vmatpush1.msra.mxu0 0.0
      %4235 = vmatprep.subr.mxu0 0.0
      %4236 = vmatpush1.msra.mxu0 0.0
      %4237 = vmatprep.subr.mxu0 0.0
      %4238 = vmatpush1.msra.mxu0 0.0
      %4239 = vmatprep.subr.mxu0 0.0
      %4240 = vmatpush1.msra.mxu0 0.0
      %4241 = vmatprep.subr.mxu0 0.0
      %4242 = vmatpush1.msra.mxu0 0.0
      %4243 = vmatprep.subr.mxu0 0.0
      %4244 = vmatpush1.msra.mxu0 0.0
      %4245 = vmatprep.subr.mxu0 0.0
      %4246 = vmatpush1.msra.mxu0 0.0
      %4247 = vmatprep.subr.mxu0 0.0
      %4248 = vmatpush1.msra.mxu0 0.0
      %4249 = vmatprep.subr.mxu0 0.0
      %4250 = vmatpush1.msra.mxu0 0.0
      %4251 = vmatprep.subr.mxu0 0.0
      %4252 = vmatpush1.msra.mxu0 0.0
      %4253 = vmatprep.subr.mxu0 0.0
      %4254 = vmatpush1.msra.mxu0 0.0
      %4255 = vmatprep.subr.mxu0 0.0
      %4256 = vmatpush1.msra.mxu0 0.0
      %4257 = vmatprep.subr.mxu0 0.0
      %4258 = vmatpush1.msra.mxu0 0.0
      %4259 = vmatprep.subr.mxu0 0.0
      %4260 = vmatpush1.msra.mxu0 0.0
      %4261 = vmatprep.mubr.f32.mxu0 0.0
      %4262 = vmatmul.mubr.f32.gmra.mrb[0].mxu0 %v4193
      %v4263 = vpop.f32.mrb[0].mxu0
      %v4264 = vadd.f32 0.0, %v4263
      %v4265 = vpop.f32.mrb[0].mxu0
      %4266 = vdwg.mxu0
      %v4267 = vadd.f32 %v4188, %v4264
      %s4268 = sadd.s32 %s194, 7
      %s4269 = smul.u32 %s4268, 4
      %s4270 = scalar_lea.vmem %s183, %s4269
      %v4271 = vld [vmem:[%s4270] sm:$0xf]
      %v4272 = vld [vmem:[%s684] sm:$0xff]
      %v4274 = vsel %vm205, %v4272, 0
      %v4277 = vsel %vm209, %v4271, 0
      %4279 = vmatprep.subr.mxu0 0.0
      %4280 = vmatpush1.msra.mxu0 %v4277
      %4281 = vmatprep.subr.mxu0 0.0
      %4282 = vmatpush1.msra.mxu0 0.0
      %4283 = vmatprep.subr.mxu0 0.0
      %4284 = vmatpush1.msra.mxu0 0.0
      %4285 = vmatprep.subr.mxu0 0.0
      %4286 = vmatpush1.msra.mxu0 0.0
      %4287 = vmatprep.subr.mxu0 0.0
      %4288 = vmatpush1.msra.mxu0 0.0
      %4289 = vmatprep.subr.mxu0 0.0
      %4290 = vmatpush1.msra.mxu0 0.0
      %4291 = vmatprep.subr.mxu0 0.0
      %4292 = vmatpush1.msra.mxu0 0.0
      %4293 = vmatprep.subr.mxu0 0.0
      %4294 = vmatpush1.msra.mxu0 0.0
      %4295 = vmatprep.subr.mxu0 0.0
      %4296 = vmatpush1.msra.mxu0 0.0
      %4297 = vmatprep.subr.mxu0 0.0
      %4298 = vmatpush1.msra.mxu0 0.0
      %4299 = vmatprep.subr.mxu0 0.0
      %4300 = vmatpush1.msra.mxu0 0.0
      %4301 = vmatprep.subr.mxu0 0.0
      %4302 = vmatpush1.msra.mxu0 0.0
      %4303 = vmatprep.subr.mxu0 0.0
      %4304 = vmatpush1.msra.mxu0 0.0
      %4305 = vmatprep.subr.mxu0 0.0
      %4306 = vmatpush1.msra.mxu0 0.0
      %4307 = vmatprep.subr.mxu0 0.0
      %4308 = vmatpush1.msra.mxu0 0.0
      %4309 = vmatprep.subr.mxu0 0.0
      %4310 = vmatpush1.msra.mxu0 0.0
      %4311 = vmatprep.subr.mxu0 0.0
      %4312 = vmatpush1.msra.mxu0 0.0
      %4313 = vmatprep.subr.mxu0 0.0
      %4314 = vmatpush1.msra.mxu0 0.0
      %4315 = vmatprep.subr.mxu0 0.0
      %4316 = vmatpush1.msra.mxu0 0.0
      %4317 = vmatprep.subr.mxu0 0.0
      %4318 = vmatpush1.msra.mxu0 0.0
      %4319 = vmatprep.subr.mxu0 0.0
      %4320 = vmatpush1.msra.mxu0 0.0
      %4321 = vmatprep.subr.mxu0 0.0
      %4322 = vmatpush1.msra.mxu0 0.0
      %4323 = vmatprep.subr.mxu0 0.0
      %4324 = vmatpush1.msra.mxu0 0.0
      %4325 = vmatprep.subr.mxu0 0.0
      %4326 = vmatpush1.msra.mxu0 0.0
      %4327 = vmatprep.subr.mxu0 0.0
      %4328 = vmatpush1.msra.mxu0 0.0
      %4329 = vmatprep.subr.mxu0 0.0
      %4330 = vmatpush1.msra.mxu0 0.0
      %4331 = vmatprep.subr.mxu0 0.0
      %4332 = vmatpush1.msra.mxu0 0.0
      %4333 = vmatprep.subr.mxu0 0.0
      %4334 = vmatpush1.msra.mxu0 0.0
      %4335 = vmatprep.subr.mxu0 0.0
      %4336 = vmatpush1.msra.mxu0 0.0
      %4337 = vmatprep.subr.mxu0 0.0
      %4338 = vmatpush1.msra.mxu0 0.0
      %4339 = vmatprep.subr.mxu0 0.0
      %4340 = vmatpush1.msra.mxu0 0.0
      %4341 = vmatprep.subr.mxu0 0.0
      %4342 = vmatpush1.msra.mxu0 0.0
      %4343 = vmatprep.mubr.f32.mxu0 0.0
      %4344 = vmatmul.mubr.f32.gmra.mrb[0].mxu0 %v4274
      %v4345 = vpop.f32.mrb[0].mxu0
      %v4346 = vadd.f32 0.0, %v4345
      %v4347 = vpop.f32.mrb[0].mxu0
      %4348 = vdwg.mxu0
      %v4349 = vadd.f32 %v4267, %v4346
      %v4350 = vld [vmem:[%s763] sm:$0xff]
      %4351 = vrot.lane.b32.xlu0 %v4271, 127
      %v4352 = vpop.permute.xlu0 %4351
      %v4354 = vsel %vm205, %v4350, 0
      %v4356 = vsel %vm209, %v4352, 0
      %4358 = vmatprep.subr.mxu0 0.0
      %4359 = vmatpush1.msra.mxu0 %v4356
      %4360 = vmatprep.subr.mxu0 0.0
      %4361 = vmatpush1.msra.mxu0 0.0
      %4362 = vmatprep.subr.mxu0 0.0
      %4363 = vmatpush1.msra.mxu0 0.0
      %4364 = vmatprep.subr.mxu0 0.0
      %4365 = vmatpush1.msra.mxu0 0.0
      %4366 = vmatprep.subr.mxu0 0.0
      %4367 = vmatpush1.msra.mxu0 0.0
      %4368 = vmatprep.subr.mxu0 0.0
      %4369 = vmatpush1.msra.mxu0 0.0
      %4370 = vmatprep.subr.mxu0 0.0
      %4371 = vmatpush1.msra.mxu0 0.0
      %4372 = vmatprep.subr.mxu0 0.0
      %4373 = vmatpush1.msra.mxu0 0.0
      %4374 = vmatprep.subr.mxu0 0.0
      %4375 = vmatpush1.msra.mxu0 0.0
      %4376 = vmatprep.subr.mxu0 0.0
      %4377 = vmatpush1.msra.mxu0 0.0
      %4378 = vmatprep.subr.mxu0 0.0
      %4379 = vmatpush1.msra.mxu0 0.0
      %4380 = vmatprep.subr.mxu0 0.0
      %4381 = vmatpush1.msra.mxu0 0.0
      %4382 = vmatprep.subr.mxu0 0.0
      %4383 = vmatpush1.msra.mxu0 0.0
      %4384 = vmatprep.subr.mxu0 0.0
      %4385 = vmatpush1.msra.mxu0 0.0
      %4386 = vmatprep.subr.mxu0 0.0
      %4387 = vmatpush1.msra.mxu0 0.0
      %4388 = vmatprep.subr.mxu0 0.0
      %4389 = vmatpush1.msra.mxu0 0.0
      %4390 = vmatprep.subr.mxu0 0.0
      %4391 = vmatpush1.msra.mxu0 0.0
      %4392 = vmatprep.subr.mxu0 0.0
      %4393 = vmatpush1.msra.mxu0 0.0
      %4394 = vmatprep.subr.mxu0 0.0
      %4395 = vmatpush1.msra.mxu0 0.0
      %4396 = vmatprep.subr.mxu0 0.0
      %4397 = vmatpush1.msra.mxu0 0.0
      %4398 = vmatprep.subr.mxu0 0.0
      %4399 = vmatpush1.msra.mxu0 0.0
      %4400 = vmatprep.subr.mxu0 0.0
      %4401 = vmatpush1.msra.mxu0 0.0
      %4402 = vmatprep.subr.mxu0 0.0
      %4403 = vmatpush1.msra.mxu0 0.0
      %4404 = vmatprep.subr.mxu0 0.0
      %4405 = vmatpush1.msra.mxu0 0.0
      %4406 = vmatprep.subr.mxu0 0.0
      %4407 = vmatpush1.msra.mxu0 0.0
      %4408 = vmatprep.subr.mxu0 0.0
      %4409 = vmatpush1.msra.mxu0 0.0
      %4410 = vmatprep.subr.mxu0 0.0
      %4411 = vmatpush1.msra.mxu0 0.0
      %4412 = vmatprep.subr.mxu0 0.0
      %4413 = vmatpush1.msra.mxu0 0.0
      %4414 = vmatprep.subr.mxu0 0.0
      %4415 = vmatpush1.msra.mxu0 0.0
      %4416 = vmatprep.subr.mxu0 0.0
      %4417 = vmatpush1.msra.mxu0 0.0
      %4418 = vmatprep.subr.mxu0 0.0
      %4419 = vmatpush1.msra.mxu0 0.0
      %4420 = vmatprep.subr.mxu0 0.0
      %4421 = vmatpush1.msra.mxu0 0.0
      %4422 = vmatprep.mubr.f32.mxu0 0.0
      %4423 = vmatmul.mubr.f32.gmra.mrb[0].mxu0 %v4354
      %v4424 = vpop.f32.mrb[0].mxu0
      %v4425 = vadd.f32 0.0, %v4424
      %v4426 = vpop.f32.mrb[0].mxu0
      %4427 = vdwg.mxu0
      %v4428 = vadd.f32 %v4349, %v4425
      %v4429 = vld [vmem:[%s843] sm:$0xff]
      %4430 = vrot.lane.b32.xlu0 %v4271, 126
      %v4431 = vpop.permute.xlu0 %4430
      %v4433 = vsel %vm205, %v4429, 0
      %v4435 = vsel %vm209, %v4431, 0
      %4437 = vmatprep.subr.mxu0 0.0
      %4438 = vmatpush1.msra.mxu0 %v4435
      %4439 = vmatprep.subr.mxu0 0.0
      %4440 = vmatpush1.msra.mxu0 0.0
      %4441 = vmatprep.subr.mxu0 0.0
      %4442 = vmatpush1.msra.mxu0 0.0
      %4443 = vmatprep.subr.mxu0 0.0
      %4444 = vmatpush1.msra.mxu0 0.0
      %4445 = vmatprep.subr.mxu0 0.0
      %4446 = vmatpush1.msra.mxu0 0.0
      %4447 = vmatprep.subr.mxu0 0.0
      %4448 = vmatpush1.msra.mxu0 0.0
      %4449 = vmatprep.subr.mxu0 0.0
      %4450 = vmatpush1.msra.mxu0 0.0
      %4451 = vmatprep.subr.mxu0 0.0
      %4452 = vmatpush1.msra.mxu0 0.0
      %4453 = vmatprep.subr.mxu0 0.0
      %4454 = vmatpush1.msra.mxu0 0.0
      %4455 = vmatprep.subr.mxu0 0.0
      %4456 = vmatpush1.msra.mxu0 0.0
      %4457 = vmatprep.subr.mxu0 0.0
      %4458 = vmatpush1.msra.mxu0 0.0
      %4459 = vmatprep.subr.mxu0 0.0
      %4460 = vmatpush1.msra.mxu0 0.0
      %4461 = vmatprep.subr.mxu0 0.0
      %4462 = vmatpush1.msra.mxu0 0.0
      %4463 = vmatprep.subr.mxu0 0.0
      %4464 = vmatpush1.msra.mxu0 0.0
      %4465 = vmatprep.subr.mxu0 0.0
      %4466 = vmatpush1.msra.mxu0 0.0
      %4467 = vmatprep.subr.mxu0 0.0
      %4468 = vmatpush1.msra.mxu0 0.0
      %4469 = vmatprep.subr.mxu0 0.0
      %4470 = vmatpush1.msra.mxu0 0.0
      %4471 = vmatprep.subr.mxu0 0.0
      %4472 = vmatpush1.msra.mxu0 0.0
      %4473 = vmatprep.subr.mxu0 0.0
      %4474 = vmatpush1.msra.mxu0 0.0
      %4475 = vmatprep.subr.mxu0 0.0
      %4476 = vmatpush1.msra.mxu0 0.0
      %4477 = vmatprep.subr.mxu0 0.0
      %4478 = vmatpush1.msra.mxu0 0.0
      %4479 = vmatprep.subr.mxu0 0.0
      %4480 = vmatpush1.msra.mxu0 0.0
      %4481 = vmatprep.subr.mxu0 0.0
      %4482 = vmatpush1.msra.mxu0 0.0
      %4483 = vmatprep.subr.mxu0 0.0
      %4484 = vmatpush1.msra.mxu0 0.0
      %4485 = vmatprep.subr.mxu0 0.0
      %4486 = vmatpush1.msra.mxu0 0.0
      %4487 = vmatprep.subr.mxu0 0.0
      %4488 = vmatpush1.msra.mxu0 0.0
      %4489 = vmatprep.subr.mxu0 0.0
      %4490 = vmatpush1.msra.mxu0 0.0
      %4491 = vmatprep.subr.mxu0 0.0
      %4492 = vmatpush1.msra.mxu0 0.0
      %4493 = vmatprep.subr.mxu0 0.0
      %4494 = vmatpush1.msra.mxu0 0.0
      %4495 = vmatprep.subr.mxu0 0.0
      %4496 = vmatpush1.msra.mxu0 0.0
      %4497 = vmatprep.subr.mxu0 0.0
      %4498 = vmatpush1.msra.mxu0 0.0
      %4499 = vmatprep.subr.mxu0 0.0
      %4500 = vmatpush1.msra.mxu0 0.0
      %4501 = vmatprep.mubr.f32.mxu0 0.0
      %4502 = vmatmul.mubr.f32.gmra.mrb[0].mxu0 %v4433
      %v4503 = vpop.f32.mrb[0].mxu0
      %v4504 = vadd.f32 0.0, %v4503
      %v4505 = vpop.f32.mrb[0].mxu0
      %4506 = vdwg.mxu0
      %v4507 = vadd.f32 %v4428, %v4504
      %v4508 = vadd.f32 %v4507, %v926
      %v4509 = vmax.f32 %v4508, 0.0
      %s4510 = scalar_lea.vmem %s192, 40
      %4511 = vst.msk [vmem:[%s4510] sm:$0xff] %vm930, %v4509
      %v4512 = vld [vmem:[%s3554] sm:$0xf]
      %v4513 = vld [vmem:[%s1] sm:$0xff]
      %v4514 = vld [vmem:[%s200] sm:$0xff]
      %4516 = vrot.lane.b32.xlu0 %v4512, 127
      %v4517 = vpop.permute.xlu0 %4516
      %v4519 = vsel %vm205, %v4514, 0
      %v4521 = vsel %vm209, %v4517, 0
      %4523 = vmatprep.subr.mxu0 0.0
      %4524 = vmatpush1.msra.mxu0 %v4521
      %4525 = vmatprep.subr.mxu0 0.0
      %4526 = vmatpush1.msra.mxu0 0.0
      %4527 = vmatprep.subr.mxu0 0.0
      %4528 = vmatpush1.msra.mxu0 0.0
      %4529 = vmatprep.subr.mxu0 0.0
      %4530 = vmatpush1.msra.mxu0 0.0
      %4531 = vmatprep.subr.mxu0 0.0
      %4532 = vmatpush1.msra.mxu0 0.0
      %4533 = vmatprep.subr.mxu0 0.0
      %4534 = vmatpush1.msra.mxu0 0.0
      %4535 = vmatprep.subr.mxu0 0.0
      %4536 = vmatpush1.msra.mxu0 0.0
      %4537 = vmatprep.subr.mxu0 0.0
      %4538 = vmatpush1.msra.mxu0 0.0
      %4539 = vmatprep.subr.mxu0 0.0
      %4540 = vmatpush1.msra.mxu0 0.0
      %4541 = vmatprep.subr.mxu0 0.0
      %4542 = vmatpush1.msra.mxu0 0.0
      %4543 = vmatprep.subr.mxu0 0.0
      %4544 = vmatpush1.msra.mxu0 0.0
      %4545 = vmatprep.subr.mxu0 0.0
      %4546 = vmatpush1.msra.mxu0 0.0
      %4547 = vmatprep.subr.mxu0 0.0
      %4548 = vmatpush1.msra.mxu0 0.0
      %4549 = vmatprep.subr.mxu0 0.0
      %4550 = vmatpush1.msra.mxu0 0.0
      %4551 = vmatprep.subr.mxu0 0.0
      %4552 = vmatpush1.msra.mxu0 0.0
      %4553 = vmatprep.subr.mxu0 0.0
      %4554 = vmatpush1.msra.mxu0 0.0
      %4555 = vmatprep.subr.mxu0 0.0
      %4556 = vmatpush1.msra.mxu0 0.0
      %4557 = vmatprep.subr.mxu0 0.0
      %4558 = vmatpush1.msra.mxu0 0.0
      %4559 = vmatprep.subr.mxu0 0.0
      %4560 = vmatpush1.msra.mxu0 0.0
      %4561 = vmatprep.subr.mxu0 0.0
      %4562 = vmatpush1.msra.mxu0 0.0
      %4563 = vmatprep.subr.mxu0 0.0
      %4564 = vmatpush1.msra.mxu0 0.0
      %4565 = vmatprep.subr.mxu0 0.0
      %4566 = vmatpush1.msra.mxu0 0.0
      %4567 = vmatprep.subr.mxu0 0.0
      %4568 = vmatpush1.msra.mxu0 0.0
      %4569 = vmatprep.subr.mxu0 0.0
      %4570 = vmatpush1.msra.mxu0 0.0
      %4571 = vmatprep.subr.mxu0 0.0
      %4572 = vmatpush1.msra.mxu0 0.0
      %4573 = vmatprep.subr.mxu0 0.0
      %4574 = vmatpush1.msra.mxu0 0.0
      %4575 = vmatprep.subr.mxu0 0.0
      %4576 = vmatpush1.msra.mxu0 0.0
      %4577 = vmatprep.subr.mxu0 0.0
      %4578 = vmatpush1.msra.mxu0 0.0
      %4579 = vmatprep.subr.mxu0 0.0
      %4580 = vmatpush1.msra.mxu0 0.0
      %4581 = vmatprep.subr.mxu0 0.0
      %4582 = vmatpush1.msra.mxu0 0.0
      %4583 = vmatprep.subr.mxu0 0.0
      %4584 = vmatpush1.msra.mxu0 0.0
      %4585 = vmatprep.subr.mxu0 0.0
      %4586 = vmatpush1.msra.mxu0 0.0
      %4587 = vmatprep.mubr.f32.mxu0 0.0
      %4588 = vmatmul.mubr.f32.gmra.mrb[0].mxu0 %v4519
      %v4589 = vpop.f32.mrb[0].mxu0
      %v4590 = vadd.f32 0.0, %v4589
      %v4591 = vpop.f32.mrb[0].mxu0
      %4592 = vdwg.mxu0
      %v4594 = vsel %vm205, %v4513, 0
      %v4596 = vsel %vm209, %v4512, 0
      %4598 = vmatprep.subr.mxu0 0.0
      %4599 = vmatpush1.msra.mxu0 %v4596
      %4600 = vmatprep.subr.mxu0 0.0
      %4601 = vmatpush1.msra.mxu0 0.0
      %4602 = vmatprep.subr.mxu0 0.0
      %4603 = vmatpush1.msra.mxu0 0.0
      %4604 = vmatprep.subr.mxu0 0.0
      %4605 = vmatpush1.msra.mxu0 0.0
      %4606 = vmatprep.subr.mxu0 0.0
      %4607 = vmatpush1.msra.mxu0 0.0
      %4608 = vmatprep.subr.mxu0 0.0
      %4609 = vmatpush1.msra.mxu0 0.0
      %4610 = vmatprep.subr.mxu0 0.0
      %4611 = vmatpush1.msra.mxu0 0.0
      %4612 = vmatprep.subr.mxu0 0.0
      %4613 = vmatpush1.msra.mxu0 0.0
      %4614 = vmatprep.subr.mxu0 0.0
      %4615 = vmatpush1.msra.mxu0 0.0
      %4616 = vmatprep.subr.mxu0 0.0
      %4617 = vmatpush1.msra.mxu0 0.0
      %4618 = vmatprep.subr.mxu0 0.0
      %4619 = vmatpush1.msra.mxu0 0.0
      %4620 = vmatprep.subr.mxu0 0.0
      %4621 = vmatpush1.msra.mxu0 0.0
      %4622 = vmatprep.subr.mxu0 0.0
      %4623 = vmatpush1.msra.mxu0 0.0
      %4624 = vmatprep.subr.mxu0 0.0
      %4625 = vmatpush1.msra.mxu0 0.0
      %4626 = vmatprep.subr.mxu0 0.0
      %4627 = vmatpush1.msra.mxu0 0.0
      %4628 = vmatprep.subr.mxu0 0.0
      %4629 = vmatpush1.msra.mxu0 0.0
      %4630 = vmatprep.subr.mxu0 0.0
      %4631 = vmatpush1.msra.mxu0 0.0
      %4632 = vmatprep.subr.mxu0 0.0
      %4633 = vmatpush1.msra.mxu0 0.0
      %4634 = vmatprep.subr.mxu0 0.0
      %4635 = vmatpush1.msra.mxu0 0.0
      %4636 = vmatprep.subr.mxu0 0.0
      %4637 = vmatpush1.msra.mxu0 0.0
      %4638 = vmatprep.subr.mxu0 0.0
      %4639 = vmatpush1.msra.mxu0 0.0
      %4640 = vmatprep.subr.mxu0 0.0
      %4641 = vmatpush1.msra.mxu0 0.0
      %4642 = vmatprep.subr.mxu0 0.0
      %4643 = vmatpush1.msra.mxu0 0.0
      %4644 = vmatprep.subr.mxu0 0.0
      %4645 = vmatpush1.msra.mxu0 0.0
      %4646 = vmatprep.subr.mxu0 0.0
      %4647 = vmatpush1.msra.mxu0 0.0
      %4648 = vmatprep.subr.mxu0 0.0
      %4649 = vmatpush1.msra.mxu0 0.0
      %4650 = vmatprep.subr.mxu0 0.0
      %4651 = vmatpush1.msra.mxu0 0.0
      %4652 = vmatprep.subr.mxu0 0.0
      %4653 = vmatpush1.msra.mxu0 0.0
      %4654 = vmatprep.subr.mxu0 0.0
      %4655 = vmatpush1.msra.mxu0 0.0
      %4656 = vmatprep.subr.mxu0 0.0
      %4657 = vmatpush1.msra.mxu0 0.0
      %4658 = vmatprep.subr.mxu0 0.0
      %4659 = vmatpush1.msra.mxu0 0.0
      %4660 = vmatprep.subr.mxu0 0.0
      %4661 = vmatpush1.msra.mxu0 0.0
      %4662 = vmatprep.mubr.f32.mxu0 0.0
      %4663 = vmatmul.mubr.f32.gmra.mrb[0].mxu0 %v4594
      %v4664 = vpop.f32.mrb[0].mxu0
      %v4665 = vadd.f32 %v4590, %v4664
      %v4666 = vpop.f32.mrb[0].mxu0
      %4667 = vdwg.mxu0
      %v4668 = vld [vmem:[%s357] sm:$0xff]
      %4669 = vrot.lane.b32.xlu0 %v4512, 126
      %v4670 = vpop.permute.xlu0 %4669
      %v4672 = vsel %vm205, %v4668, 0
      %v4674 = vsel %vm209, %v4670, 0
      %4676 = vmatprep.subr.mxu0 0.0
      %4677 = vmatpush1.msra.mxu0 %v4674
      %4678 = vmatprep.subr.mxu0 0.0
      %4679 = vmatpush1.msra.mxu0 0.0
      %4680 = vmatprep.subr.mxu0 0.0
      %4681 = vmatpush1.msra.mxu0 0.0
      %4682 = vmatprep.subr.mxu0 0.0
      %4683 = vmatpush1.msra.mxu0 0.0
      %4684 = vmatprep.subr.mxu0 0.0
      %4685 = vmatpush1.msra.mxu0 0.0
      %4686 = vmatprep.subr.mxu0 0.0
      %4687 = vmatpush1.msra.mxu0 0.0
      %4688 = vmatprep.subr.mxu0 0.0
      %4689 = vmatpush1.msra.mxu0 0.0
      %4690 = vmatprep.subr.mxu0 0.0
      %4691 = vmatpush1.msra.mxu0 0.0
      %4692 = vmatprep.subr.mxu0 0.0
      %4693 = vmatpush1.msra.mxu0 0.0
      %4694 = vmatprep.subr.mxu0 0.0
      %4695 = vmatpush1.msra.mxu0 0.0
      %4696 = vmatprep.subr.mxu0 0.0
      %4697 = vmatpush1.msra.mxu0 0.0
      %4698 = vmatprep.subr.mxu0 0.0
      %4699 = vmatpush1.msra.mxu0 0.0
      %4700 = vmatprep.subr.mxu0 0.0
      %4701 = vmatpush1.msra.mxu0 0.0
      %4702 = vmatprep.subr.mxu0 0.0
      %4703 = vmatpush1.msra.mxu0 0.0
      %4704 = vmatprep.subr.mxu0 0.0
      %4705 = vmatpush1.msra.mxu0 0.0
      %4706 = vmatprep.subr.mxu0 0.0
      %4707 = vmatpush1.msra.mxu0 0.0
      %4708 = vmatprep.subr.mxu0 0.0
      %4709 = vmatpush1.msra.mxu0 0.0
      %4710 = vmatprep.subr.mxu0 0.0
      %4711 = vmatpush1.msra.mxu0 0.0
      %4712 = vmatprep.subr.mxu0 0.0
      %4713 = vmatpush1.msra.mxu0 0.0
      %4714 = vmatprep.subr.mxu0 0.0
      %4715 = vmatpush1.msra.mxu0 0.0
      %4716 = vmatprep.subr.mxu0 0.0
      %4717 = vmatpush1.msra.mxu0 0.0
      %4718 = vmatprep.subr.mxu0 0.0
      %4719 = vmatpush1.msra.mxu0 0.0
      %4720 = vmatprep.subr.mxu0 0.0
      %4721 = vmatpush1.msra.mxu0 0.0
      %4722 = vmatprep.subr.mxu0 0.0
      %4723 = vmatpush1.msra.mxu0 0.0
      %4724 = vmatprep.subr.mxu0 0.0
      %4725 = vmatpush1.msra.mxu0 0.0
      %4726 = vmatprep.subr.mxu0 0.0
      %4727 = vmatpush1.msra.mxu0 0.0
      %4728 = vmatprep.subr.mxu0 0.0
      %4729 = vmatpush1.msra.mxu0 0.0
      %4730 = vmatprep.subr.mxu0 0.0
      %4731 = vmatpush1.msra.mxu0 0.0
      %4732 = vmatprep.subr.mxu0 0.0
      %4733 = vmatpush1.msra.mxu0 0.0
      %4734 = vmatprep.subr.mxu0 0.0
      %4735 = vmatpush1.msra.mxu0 0.0
      %4736 = vmatprep.subr.mxu0 0.0
      %4737 = vmatpush1.msra.mxu0 0.0
      %4738 = vmatprep.subr.mxu0 0.0
      %4739 = vmatpush1.msra.mxu0 0.0
      %4740 = vmatprep.mubr.f32.mxu0 0.0
      %4741 = vmatmul.mubr.f32.gmra.mrb[0].mxu0 %v4672
      %v4742 = vpop.f32.mrb[0].mxu0
      %v4743 = vadd.f32 0.0, %v4742
      %v4744 = vpop.f32.mrb[0].mxu0
      %4745 = vdwg.mxu0
      %v4746 = vadd.f32 %v4665, %v4743
      %v4747 = vld [vmem:[%s4270] sm:$0xf]
      %v4748 = vld [vmem:[%s441] sm:$0xff]
      %v4750 = vsel %vm205, %v4748, 0
      %v4753 = vsel %vm209, %v4747, 0
      %4755 = vmatprep.subr.mxu0 0.0
      %4756 = vmatpush1.msra.mxu0 %v4753
      %4757 = vmatprep.subr.mxu0 0.0
      %4758 = vmatpush1.msra.mxu0 0.0
      %4759 = vmatprep.subr.mxu0 0.0
      %4760 = vmatpush1.msra.mxu0 0.0
      %4761 = vmatprep.subr.mxu0 0.0
      %4762 = vmatpush1.msra.mxu0 0.0
      %4763 = vmatprep.subr.mxu0 0.0
      %4764 = vmatpush1.msra.mxu0 0.0
      %4765 = vmatprep.subr.mxu0 0.0
      %4766 = vmatpush1.msra.mxu0 0.0
      %4767 = vmatprep.subr.mxu0 0.0
      %4768 = vmatpush1.msra.mxu0 0.0
      %4769 = vmatprep.subr.mxu0 0.0
      %4770 = vmatpush1.msra.mxu0 0.0
      %4771 = vmatprep.subr.mxu0 0.0
      %4772 = vmatpush1.msra.mxu0 0.0
      %4773 = vmatprep.subr.mxu0 0.0
      %4774 = vmatpush1.msra.mxu0 0.0
      %4775 = vmatprep.subr.mxu0 0.0
      %4776 = vmatpush1.msra.mxu0 0.0
      %4777 = vmatprep.subr.mxu0 0.0
      %4778 = vmatpush1.msra.mxu0 0.0
      %4779 = vmatprep.subr.mxu0 0.0
      %4780 = vmatpush1.msra.mxu0 0.0
      %4781 = vmatprep.subr.mxu0 0.0
      %4782 = vmatpush1.msra.mxu0 0.0
      %4783 = vmatprep.subr.mxu0 0.0
      %4784 = vmatpush1.msra.mxu0 0.0
      %4785 = vmatprep.subr.mxu0 0.0
      %4786 = vmatpush1.msra.mxu0 0.0
      %4787 = vmatprep.subr.mxu0 0.0
      %4788 = vmatpush1.msra.mxu0 0.0
      %4789 = vmatprep.subr.mxu0 0.0
      %4790 = vmatpush1.msra.mxu0 0.0
      %4791 = vmatprep.subr.mxu0 0.0
      %4792 = vmatpush1.msra.mxu0 0.0
      %4793 = vmatprep.subr.mxu0 0.0
      %4794 = vmatpush1.msra.mxu0 0.0
      %4795 = vmatprep.subr.mxu0 0.0
      %4796 = vmatpush1.msra.mxu0 0.0
      %4797 = vmatprep.subr.mxu0 0.0
      %4798 = vmatpush1.msra.mxu0 0.0
      %4799 = vmatprep.subr.mxu0 0.0
      %4800 = vmatpush1.msra.mxu0 0.0
      %4801 = vmatprep.subr.mxu0 0.0
      %4802 = vmatpush1.msra.mxu0 0.0
      %4803 = vmatprep.subr.mxu0 0.0
      %4804 = vmatpush1.msra.mxu0 0.0
      %4805 = vmatprep.subr.mxu0 0.0
      %4806 = vmatpush1.msra.mxu0 0.0
      %4807 = vmatprep.subr.mxu0 0.0
      %4808 = vmatpush1.msra.mxu0 0.0
      %4809 = vmatprep.subr.mxu0 0.0
      %4810 = vmatpush1.msra.mxu0 0.0
      %4811 = vmatprep.subr.mxu0 0.0
      %4812 = vmatpush1.msra.mxu0 0.0
      %4813 = vmatprep.subr.mxu0 0.0
      %4814 = vmatpush1.msra.mxu0 0.0
      %4815 = vmatprep.subr.mxu0 0.0
      %4816 = vmatpush1.msra.mxu0 0.0
      %4817 = vmatprep.subr.mxu0 0.0
      %4818 = vmatpush1.msra.mxu0 0.0
      %4819 = vmatprep.mubr.f32.mxu0 0.0
      %4820 = vmatmul.mubr.f32.gmra.mrb[0].mxu0 %v4750
      %v4821 = vpop.f32.mrb[0].mxu0
      %v4822 = vadd.f32 0.0, %v4821
      %v4823 = vpop.f32.mrb[0].mxu0
      %4824 = vdwg.mxu0
      %v4825 = vadd.f32 %v4746, %v4822
      %v4826 = vld [vmem:[%s520] sm:$0xff]
      %4827 = vrot.lane.b32.xlu0 %v4747, 127
      %v4828 = vpop.permute.xlu0 %4827
      %v4830 = vsel %vm205, %v4826, 0
      %v4832 = vsel %vm209, %v4828, 0
      %4834 = vmatprep.subr.mxu0 0.0
      %4835 = vmatpush1.msra.mxu0 %v4832
      %4836 = vmatprep.subr.mxu0 0.0
      %4837 = vmatpush1.msra.mxu0 0.0
      %4838 = vmatprep.subr.mxu0 0.0
      %4839 = vmatpush1.msra.mxu0 0.0
      %4840 = vmatprep.subr.mxu0 0.0
      %4841 = vmatpush1.msra.mxu0 0.0
      %4842 = vmatprep.subr.mxu0 0.0
      %4843 = vmatpush1.msra.mxu0 0.0
      %4844 = vmatprep.subr.mxu0 0.0
      %4845 = vmatpush1.msra.mxu0 0.0
      %4846 = vmatprep.subr.mxu0 0.0
      %4847 = vmatpush1.msra.mxu0 0.0
      %4848 = vmatprep.subr.mxu0 0.0
      %4849 = vmatpush1.msra.mxu0 0.0
      %4850 = vmatprep.subr.mxu0 0.0
      %4851 = vmatpush1.msra.mxu0 0.0
      %4852 = vmatprep.subr.mxu0 0.0
      %4853 = vmatpush1.msra.mxu0 0.0
      %4854 = vmatprep.subr.mxu0 0.0
      %4855 = vmatpush1.msra.mxu0 0.0
      %4856 = vmatprep.subr.mxu0 0.0
      %4857 = vmatpush1.msra.mxu0 0.0
      %4858 = vmatprep.subr.mxu0 0.0
      %4859 = vmatpush1.msra.mxu0 0.0
      %4860 = vmatprep.subr.mxu0 0.0
      %4861 = vmatpush1.msra.mxu0 0.0
      %4862 = vmatprep.subr.mxu0 0.0
      %4863 = vmatpush1.msra.mxu0 0.0
      %4864 = vmatprep.subr.mxu0 0.0
      %4865 = vmatpush1.msra.mxu0 0.0
      %4866 = vmatprep.subr.mxu0 0.0
      %4867 = vmatpush1.msra.mxu0 0.0
      %4868 = vmatprep.subr.mxu0 0.0
      %4869 = vmatpush1.msra.mxu0 0.0
      %4870 = vmatprep.subr.mxu0 0.0
      %4871 = vmatpush1.msra.mxu0 0.0
      %4872 = vmatprep.subr.mxu0 0.0
      %4873 = vmatpush1.msra.mxu0 0.0
      %4874 = vmatprep.subr.mxu0 0.0
      %4875 = vmatpush1.msra.mxu0 0.0
      %4876 = vmatprep.subr.mxu0 0.0
      %4877 = vmatpush1.msra.mxu0 0.0
      %4878 = vmatprep.subr.mxu0 0.0
      %4879 = vmatpush1.msra.mxu0 0.0
      %4880 = vmatprep.subr.mxu0 0.0
      %4881 = vmatpush1.msra.mxu0 0.0
      %4882 = vmatprep.subr.mxu0 0.0
      %4883 = vmatpush1.msra.mxu0 0.0
      %4884 = vmatprep.subr.mxu0 0.0
      %4885 = vmatpush1.msra.mxu0 0.0
      %4886 = vmatprep.subr.mxu0 0.0
      %4887 = vmatpush1.msra.mxu0 0.0
      %4888 = vmatprep.subr.mxu0 0.0
      %4889 = vmatpush1.msra.mxu0 0.0
      %4890 = vmatprep.subr.mxu0 0.0
      %4891 = vmatpush1.msra.mxu0 0.0
      %4892 = vmatprep.subr.mxu0 0.0
      %4893 = vmatpush1.msra.mxu0 0.0
      %4894 = vmatprep.subr.mxu0 0.0
      %4895 = vmatpush1.msra.mxu0 0.0
      %4896 = vmatprep.subr.mxu0 0.0
      %4897 = vmatpush1.msra.mxu0 0.0
      %4898 = vmatprep.mubr.f32.mxu0 0.0
      %4899 = vmatmul.mubr.f32.gmra.mrb[0].mxu0 %v4830
      %v4900 = vpop.f32.mrb[0].mxu0
      %v4901 = vadd.f32 0.0, %v4900
      %v4902 = vpop.f32.mrb[0].mxu0
      %4903 = vdwg.mxu0
      %v4904 = vadd.f32 %v4825, %v4901
      %v4905 = vld [vmem:[%s600] sm:$0xff]
      %4906 = vrot.lane.b32.xlu0 %v4747, 126
      %v4907 = vpop.permute.xlu0 %4906
      %v4909 = vsel %vm205, %v4905, 0
      %v4911 = vsel %vm209, %v4907, 0
      %4913 = vmatprep.subr.mxu0 0.0
      %4914 = vmatpush1.msra.mxu0 %v4911
      %4915 = vmatprep.subr.mxu0 0.0
      %4916 = vmatpush1.msra.mxu0 0.0
      %4917 = vmatprep.subr.mxu0 0.0
      %4918 = vmatpush1.msra.mxu0 0.0
      %4919 = vmatprep.subr.mxu0 0.0
      %4920 = vmatpush1.msra.mxu0 0.0
      %4921 = vmatprep.subr.mxu0 0.0
      %4922 = vmatpush1.msra.mxu0 0.0
      %4923 = vmatprep.subr.mxu0 0.0
      %4924 = vmatpush1.msra.mxu0 0.0
      %4925 = vmatprep.subr.mxu0 0.0
      %4926 = vmatpush1.msra.mxu0 0.0
      %4927 = vmatprep.subr.mxu0 0.0
      %4928 = vmatpush1.msra.mxu0 0.0
      %4929 = vmatprep.subr.mxu0 0.0
      %4930 = vmatpush1.msra.mxu0 0.0
      %4931 = vmatprep.subr.mxu0 0.0
      %4932 = vmatpush1.msra.mxu0 0.0
      %4933 = vmatprep.subr.mxu0 0.0
      %4934 = vmatpush1.msra.mxu0 0.0
      %4935 = vmatprep.subr.mxu0 0.0
      %4936 = vmatpush1.msra.mxu0 0.0
      %4937 = vmatprep.subr.mxu0 0.0
      %4938 = vmatpush1.msra.mxu0 0.0
      %4939 = vmatprep.subr.mxu0 0.0
      %4940 = vmatpush1.msra.mxu0 0.0
      %4941 = vmatprep.subr.mxu0 0.0
      %4942 = vmatpush1.msra.mxu0 0.0
      %4943 = vmatprep.subr.mxu0 0.0
      %4944 = vmatpush1.msra.mxu0 0.0
      %4945 = vmatprep.subr.mxu0 0.0
      %4946 = vmatpush1.msra.mxu0 0.0
      %4947 = vmatprep.subr.mxu0 0.0
      %4948 = vmatpush1.msra.mxu0 0.0
      %4949 = vmatprep.subr.mxu0 0.0
      %4950 = vmatpush1.msra.mxu0 0.0
      %4951 = vmatprep.subr.mxu0 0.0
      %4952 = vmatpush1.msra.mxu0 0.0
      %4953 = vmatprep.subr.mxu0 0.0
      %4954 = vmatpush1.msra.mxu0 0.0
      %4955 = vmatprep.subr.mxu0 0.0
      %4956 = vmatpush1.msra.mxu0 0.0
      %4957 = vmatprep.subr.mxu0 0.0
      %4958 = vmatpush1.msra.mxu0 0.0
      %4959 = vmatprep.subr.mxu0 0.0
      %4960 = vmatpush1.msra.mxu0 0.0
      %4961 = vmatprep.subr.mxu0 0.0
      %4962 = vmatpush1.msra.mxu0 0.0
      %4963 = vmatprep.subr.mxu0 0.0
      %4964 = vmatpush1.msra.mxu0 0.0
      %4965 = vmatprep.subr.mxu0 0.0
      %4966 = vmatpush1.msra.mxu0 0.0
      %4967 = vmatprep.subr.mxu0 0.0
      %4968 = vmatpush1.msra.mxu0 0.0
      %4969 = vmatprep.subr.mxu0 0.0
      %4970 = vmatpush1.msra.mxu0 0.0
      %4971 = vmatprep.subr.mxu0 0.0
      %4972 = vmatpush1.msra.mxu0 0.0
      %4973 = vmatprep.subr.mxu0 0.0
      %4974 = vmatpush1.msra.mxu0 0.0
      %4975 = vmatprep.subr.mxu0 0.0
      %4976 = vmatpush1.msra.mxu0 0.0
      %4977 = vmatprep.mubr.f32.mxu0 0.0
      %4978 = vmatmul.mubr.f32.gmra.mrb[0].mxu0 %v4909
      %v4979 = vpop.f32.mrb[0].mxu0
      %v4980 = vadd.f32 0.0, %v4979
      %v4981 = vpop.f32.mrb[0].mxu0
      %4982 = vdwg.mxu0
      %v4983 = vadd.f32 %v4904, %v4980
      %s4984 = sadd.s32 %s194, 8
      %s4985 = smul.u32 %s4984, 4
      %s4986 = scalar_lea.vmem %s183, %s4985
      %v4987 = vld [vmem:[%s4986] sm:$0xf]
      %v4988 = vld [vmem:[%s684] sm:$0xff]
      %v4990 = vsel %vm205, %v4988, 0
      %v4993 = vsel %vm209, %v4987, 0
      %4995 = vmatprep.subr.mxu0 0.0
      %4996 = vmatpush1.msra.mxu0 %v4993
      %4997 = vmatprep.subr.mxu0 0.0
      %4998 = vmatpush1.msra.mxu0 0.0
      %4999 = vmatprep.subr.mxu0 0.0
      %5000 = vmatpush1.msra.mxu0 0.0
      %5001 = vmatprep.subr.mxu0 0.0
      %5002 = vmatpush1.msra.mxu0 0.0
      %5003 = vmatprep.subr.mxu0 0.0
      %5004 = vmatpush1.msra.mxu0 0.0
      %5005 = vmatprep.subr.mxu0 0.0
      %5006 = vmatpush1.msra.mxu0 0.0
      %5007 = vmatprep.subr.mxu0 0.0
      %5008 = vmatpush1.msra.mxu0 0.0
      %5009 = vmatprep.subr.mxu0 0.0
      %5010 = vmatpush1.msra.mxu0 0.0
      %5011 = vmatprep.subr.mxu0 0.0
      %5012 = vmatpush1.msra.mxu0 0.0
      %5013 = vmatprep.subr.mxu0 0.0
      %5014 = vmatpush1.msra.mxu0 0.0
      %5015 = vmatprep.subr.mxu0 0.0
      %5016 = vmatpush1.msra.mxu0 0.0
      %5017 = vmatprep.subr.mxu0 0.0
      %5018 = vmatpush1.msra.mxu0 0.0
      %5019 = vmatprep.subr.mxu0 0.0
      %5020 = vmatpush1.msra.mxu0 0.0
      %5021 = vmatprep.subr.mxu0 0.0
      %5022 = vmatpush1.msra.mxu0 0.0
      %5023 = vmatprep.subr.mxu0 0.0
      %5024 = vmatpush1.msra.mxu0 0.0
      %5025 = vmatprep.subr.mxu0 0.0
      %5026 = vmatpush1.msra.mxu0 0.0
      %5027 = vmatprep.subr.mxu0 0.0
      %5028 = vmatpush1.msra.mxu0 0.0
      %5029 = vmatprep.subr.mxu0 0.0
      %5030 = vmatpush1.msra.mxu0 0.0
      %5031 = vmatprep.subr.mxu0 0.0
      %5032 = vmatpush1.msra.mxu0 0.0
      %5033 = vmatprep.subr.mxu0 0.0
      %5034 = vmatpush1.msra.mxu0 0.0
      %5035 = vmatprep.subr.mxu0 0.0
      %5036 = vmatpush1.msra.mxu0 0.0
      %5037 = vmatprep.subr.mxu0 0.0
      %5038 = vmatpush1.msra.mxu0 0.0
      %5039 = vmatprep.subr.mxu0 0.0
      %5040 = vmatpush1.msra.mxu0 0.0
      %5041 = vmatprep.subr.mxu0 0.0
      %5042 = vmatpush1.msra.mxu0 0.0
      %5043 = vmatprep.subr.mxu0 0.0
      %5044 = vmatpush1.msra.mxu0 0.0
      %5045 = vmatprep.subr.mxu0 0.0
      %5046 = vmatpush1.msra.mxu0 0.0
      %5047 = vmatprep.subr.mxu0 0.0
      %5048 = vmatpush1.msra.mxu0 0.0
      %5049 = vmatprep.subr.mxu0 0.0
      %5050 = vmatpush1.msra.mxu0 0.0
      %5051 = vmatprep.subr.mxu0 0.0
      %5052 = vmatpush1.msra.mxu0 0.0
      %5053 = vmatprep.subr.mxu0 0.0
      %5054 = vmatpush1.msra.mxu0 0.0
      %5055 = vmatprep.subr.mxu0 0.0
      %5056 = vmatpush1.msra.mxu0 0.0
      %5057 = vmatprep.subr.mxu0 0.0
      %5058 = vmatpush1.msra.mxu0 0.0
      %5059 = vmatprep.mubr.f32.mxu0 0.0
      %5060 = vmatmul.mubr.f32.gmra.mrb[0].mxu0 %v4990
      %v5061 = vpop.f32.mrb[0].mxu0
      %v5062 = vadd.f32 0.0, %v5061
      %v5063 = vpop.f32.mrb[0].mxu0
      %5064 = vdwg.mxu0
      %v5065 = vadd.f32 %v4983, %v5062
      %v5066 = vld [vmem:[%s763] sm:$0xff]
      %5067 = vrot.lane.b32.xlu0 %v4987, 127
      %v5068 = vpop.permute.xlu0 %5067
      %v5070 = vsel %vm205, %v5066, 0
      %v5072 = vsel %vm209, %v5068, 0
      %5074 = vmatprep.subr.mxu0 0.0
      %5075 = vmatpush1.msra.mxu0 %v5072
      %5076 = vmatprep.subr.mxu0 0.0
      %5077 = vmatpush1.msra.mxu0 0.0
      %5078 = vmatprep.subr.mxu0 0.0
      %5079 = vmatpush1.msra.mxu0 0.0
      %5080 = vmatprep.subr.mxu0 0.0
      %5081 = vmatpush1.msra.mxu0 0.0
      %5082 = vmatprep.subr.mxu0 0.0
      %5083 = vmatpush1.msra.mxu0 0.0
      %5084 = vmatprep.subr.mxu0 0.0
      %5085 = vmatpush1.msra.mxu0 0.0
      %5086 = vmatprep.subr.mxu0 0.0
      %5087 = vmatpush1.msra.mxu0 0.0
      %5088 = vmatprep.subr.mxu0 0.0
      %5089 = vmatpush1.msra.mxu0 0.0
      %5090 = vmatprep.subr.mxu0 0.0
      %5091 = vmatpush1.msra.mxu0 0.0
      %5092 = vmatprep.subr.mxu0 0.0
      %5093 = vmatpush1.msra.mxu0 0.0
      %5094 = vmatprep.subr.mxu0 0.0
      %5095 = vmatpush1.msra.mxu0 0.0
      %5096 = vmatprep.subr.mxu0 0.0
      %5097 = vmatpush1.msra.mxu0 0.0
      %5098 = vmatprep.subr.mxu0 0.0
      %5099 = vmatpush1.msra.mxu0 0.0
      %5100 = vmatprep.subr.mxu0 0.0
      %5101 = vmatpush1.msra.mxu0 0.0
      %5102 = vmatprep.subr.mxu0 0.0
      %5103 = vmatpush1.msra.mxu0 0.0
      %5104 = vmatprep.subr.mxu0 0.0
      %5105 = vmatpush1.msra.mxu0 0.0
      %5106 = vmatprep.subr.mxu0 0.0
      %5107 = vmatpush1.msra.mxu0 0.0
      %5108 = vmatprep.subr.mxu0 0.0
      %5109 = vmatpush1.msra.mxu0 0.0
      %5110 = vmatprep.subr.mxu0 0.0
      %5111 = vmatpush1.msra.mxu0 0.0
      %5112 = vmatprep.subr.mxu0 0.0
      %5113 = vmatpush1.msra.mxu0 0.0
      %5114 = vmatprep.subr.mxu0 0.0
      %5115 = vmatpush1.msra.mxu0 0.0
      %5116 = vmatprep.subr.mxu0 0.0
      %5117 = vmatpush1.msra.mxu0 0.0
      %5118 = vmatprep.subr.mxu0 0.0
      %5119 = vmatpush1.msra.mxu0 0.0
      %5120 = vmatprep.subr.mxu0 0.0
      %5121 = vmatpush1.msra.mxu0 0.0
      %5122 = vmatprep.subr.mxu0 0.0
      %5123 = vmatpush1.msra.mxu0 0.0
      %5124 = vmatprep.subr.mxu0 0.0
      %5125 = vmatpush1.msra.mxu0 0.0
      %5126 = vmatprep.subr.mxu0 0.0
      %5127 = vmatpush1.msra.mxu0 0.0
      %5128 = vmatprep.subr.mxu0 0.0
      %5129 = vmatpush1.msra.mxu0 0.0
      %5130 = vmatprep.subr.mxu0 0.0
      %5131 = vmatpush1.msra.mxu0 0.0
      %5132 = vmatprep.subr.mxu0 0.0
      %5133 = vmatpush1.msra.mxu0 0.0
      %5134 = vmatprep.subr.mxu0 0.0
      %5135 = vmatpush1.msra.mxu0 0.0
      %5136 = vmatprep.subr.mxu0 0.0
      %5137 = vmatpush1.msra.mxu0 0.0
      %5138 = vmatprep.mubr.f32.mxu0 0.0
      %5139 = vmatmul.mubr.f32.gmra.mrb[0].mxu0 %v5070
      %v5140 = vpop.f32.mrb[0].mxu0
      %v5141 = vadd.f32 0.0, %v5140
      %v5142 = vpop.f32.mrb[0].mxu0
      %5143 = vdwg.mxu0
      %v5144 = vadd.f32 %v5065, %v5141
      %v5145 = vld [vmem:[%s843] sm:$0xff]
      %5146 = vrot.lane.b32.xlu0 %v4987, 126
      %v5147 = vpop.permute.xlu0 %5146
      %v5149 = vsel %vm205, %v5145, 0
      %v5151 = vsel %vm209, %v5147, 0
      %5153 = vmatprep.subr.mxu0 0.0
      %5154 = vmatpush1.msra.mxu0 %v5151
      %5155 = vmatprep.subr.mxu0 0.0
      %5156 = vmatpush1.msra.mxu0 0.0
      %5157 = vmatprep.subr.mxu0 0.0
      %5158 = vmatpush1.msra.mxu0 0.0
      %5159 = vmatprep.subr.mxu0 0.0
      %5160 = vmatpush1.msra.mxu0 0.0
      %5161 = vmatprep.subr.mxu0 0.0
      %5162 = vmatpush1.msra.mxu0 0.0
      %5163 = vmatprep.subr.mxu0 0.0
      %5164 = vmatpush1.msra.mxu0 0.0
      %5165 = vmatprep.subr.mxu0 0.0
      %5166 = vmatpush1.msra.mxu0 0.0
      %5167 = vmatprep.subr.mxu0 0.0
      %5168 = vmatpush1.msra.mxu0 0.0
      %5169 = vmatprep.subr.mxu0 0.0
      %5170 = vmatpush1.msra.mxu0 0.0
      %5171 = vmatprep.subr.mxu0 0.0
      %5172 = vmatpush1.msra.mxu0 0.0
      %5173 = vmatprep.subr.mxu0 0.0
      %5174 = vmatpush1.msra.mxu0 0.0
      %5175 = vmatprep.subr.mxu0 0.0
      %5176 = vmatpush1.msra.mxu0 0.0
      %5177 = vmatprep.subr.mxu0 0.0
      %5178 = vmatpush1.msra.mxu0 0.0
      %5179 = vmatprep.subr.mxu0 0.0
      %5180 = vmatpush1.msra.mxu0 0.0
      %5181 = vmatprep.subr.mxu0 0.0
      %5182 = vmatpush1.msra.mxu0 0.0
      %5183 = vmatprep.subr.mxu0 0.0
      %5184 = vmatpush1.msra.mxu0 0.0
      %5185 = vmatprep.subr.mxu0 0.0
      %5186 = vmatpush1.msra.mxu0 0.0
      %5187 = vmatprep.subr.mxu0 0.0
      %5188 = vmatpush1.msra.mxu0 0.0
      %5189 = vmatprep.subr.mxu0 0.0
      %5190 = vmatpush1.msra.mxu0 0.0
      %5191 = vmatprep.subr.mxu0 0.0
      %5192 = vmatpush1.msra.mxu0 0.0
      %5193 = vmatprep.subr.mxu0 0.0
      %5194 = vmatpush1.msra.mxu0 0.0
      %5195 = vmatprep.subr.mxu0 0.0
      %5196 = vmatpush1.msra.mxu0 0.0
      %5197 = vmatprep.subr.mxu0 0.0
      %5198 = vmatpush1.msra.mxu0 0.0
      %5199 = vmatprep.subr.mxu0 0.0
      %5200 = vmatpush1.msra.mxu0 0.0
      %5201 = vmatprep.subr.mxu0 0.0
      %5202 = vmatpush1.msra.mxu0 0.0
      %5203 = vmatprep.subr.mxu0 0.0
      %5204 = vmatpush1.msra.mxu0 0.0
      %5205 = vmatprep.subr.mxu0 0.0
      %5206 = vmatpush1.msra.mxu0 0.0
      %5207 = vmatprep.subr.mxu0 0.0
      %5208 = vmatpush1.msra.mxu0 0.0
      %5209 = vmatprep.subr.mxu0 0.0
      %5210 = vmatpush1.msra.mxu0 0.0
      %5211 = vmatprep.subr.mxu0 0.0
      %5212 = vmatpush1.msra.mxu0 0.0
      %5213 = vmatprep.subr.mxu0 0.0
      %5214 = vmatpush1.msra.mxu0 0.0
      %5215 = vmatprep.subr.mxu0 0.0
      %5216 = vmatpush1.msra.mxu0 0.0
      %5217 = vmatprep.mubr.f32.mxu0 0.0
      %5218 = vmatmul.mubr.f32.gmra.mrb[0].mxu0 %v5149
      %v5219 = vpop.f32.mrb[0].mxu0
      %v5220 = vadd.f32 0.0, %v5219
      %v5221 = vpop.f32.mrb[0].mxu0
      %5222 = vdwg.mxu0
      %v5223 = vadd.f32 %v5144, %v5220
      %v5224 = vadd.f32 %v5223, %v926
      %v5225 = vmax.f32 %v5224, 0.0
      %s5226 = scalar_lea.vmem %s192, 48
      %5227 = vst.msk [vmem:[%s5226] sm:$0xff] %vm930, %v5225
      %v5228 = vld [vmem:[%s4270] sm:$0xf]
      %v5229 = vld [vmem:[%s1] sm:$0xff]
      %v5230 = vld [vmem:[%s200] sm:$0xff]
      %5232 = vrot.lane.b32.xlu0 %v5228, 127
      %v5233 = vpop.permute.xlu0 %5232
      %v5235 = vsel %vm205, %v5230, 0
      %v5237 = vsel %vm209, %v5233, 0
      %5239 = vmatprep.subr.mxu0 0.0
      %5240 = vmatpush1.msra.mxu0 %v5237
      %5241 = vmatprep.subr.mxu0 0.0
      %5242 = vmatpush1.msra.mxu0 0.0
      %5243 = vmatprep.subr.mxu0 0.0
      %5244 = vmatpush1.msra.mxu0 0.0
      %5245 = vmatprep.subr.mxu0 0.0
      %5246 = vmatpush1.msra.mxu0 0.0
      %5247 = vmatprep.subr.mxu0 0.0
      %5248 = vmatpush1.msra.mxu0 0.0
      %5249 = vmatprep.subr.mxu0 0.0
      %5250 = vmatpush1.msra.mxu0 0.0
      %5251 = vmatprep.subr.mxu0 0.0
      %5252 = vmatpush1.msra.mxu0 0.0
      %5253 = vmatprep.subr.mxu0 0.0
      %5254 = vmatpush1.msra.mxu0 0.0
      %5255 = vmatprep.subr.mxu0 0.0
      %5256 = vmatpush1.msra.mxu0 0.0
      %5257 = vmatprep.subr.mxu0 0.0
      %5258 = vmatpush1.msra.mxu0 0.0
      %5259 = vmatprep.subr.mxu0 0.0
      %5260 = vmatpush1.msra.mxu0 0.0
      %5261 = vmatprep.subr.mxu0 0.0
      %5262 = vmatpush1.msra.mxu0 0.0
      %5263 = vmatprep.subr.mxu0 0.0
      %5264 = vmatpush1.msra.mxu0 0.0
      %5265 = vmatprep.subr.mxu0 0.0
      %5266 = vmatpush1.msra.mxu0 0.0
      %5267 = vmatprep.subr.mxu0 0.0
      %5268 = vmatpush1.msra.mxu0 0.0
      %5269 = vmatprep.subr.mxu0 0.0
      %5270 = vmatpush1.msra.mxu0 0.0
      %5271 = vmatprep.subr.mxu0 0.0
      %5272 = vmatpush1.msra.mxu0 0.0
      %5273 = vmatprep.subr.mxu0 0.0
      %5274 = vmatpush1.msra.mxu0 0.0
      %5275 = vmatprep.subr.mxu0 0.0
      %5276 = vmatpush1.msra.mxu0 0.0
      %5277 = vmatprep.subr.mxu0 0.0
      %5278 = vmatpush1.msra.mxu0 0.0
      %5279 = vmatprep.subr.mxu0 0.0
      %5280 = vmatpush1.msra.mxu0 0.0
      %5281 = vmatprep.subr.mxu0 0.0
      %5282 = vmatpush1.msra.mxu0 0.0
      %5283 = vmatprep.subr.mxu0 0.0
      %5284 = vmatpush1.msra.mxu0 0.0
      %5285 = vmatprep.subr.mxu0 0.0
      %5286 = vmatpush1.msra.mxu0 0.0
      %5287 = vmatprep.subr.mxu0 0.0
      %5288 = vmatpush1.msra.mxu0 0.0
      %5289 = vmatprep.subr.mxu0 0.0
      %5290 = vmatpush1.msra.mxu0 0.0
      %5291 = vmatprep.subr.mxu0 0.0
      %5292 = vmatpush1.msra.mxu0 0.0
      %5293 = vmatprep.subr.mxu0 0.0
      %5294 = vmatpush1.msra.mxu0 0.0
      %5295 = vmatprep.subr.mxu0 0.0
      %5296 = vmatpush1.msra.mxu0 0.0
      %5297 = vmatprep.subr.mxu0 0.0
      %5298 = vmatpush1.msra.mxu0 0.0
      %5299 = vmatprep.subr.mxu0 0.0
      %5300 = vmatpush1.msra.mxu0 0.0
      %5301 = vmatprep.subr.mxu0 0.0
      %5302 = vmatpush1.msra.mxu0 0.0
      %5303 = vmatprep.mubr.f32.mxu0 0.0
      %5304 = vmatmul.mubr.f32.gmra.mrb[0].mxu0 %v5235
      %v5305 = vpop.f32.mrb[0].mxu0
      %v5306 = vadd.f32 0.0, %v5305
      %v5307 = vpop.f32.mrb[0].mxu0
      %5308 = vdwg.mxu0
      %v5310 = vsel %vm205, %v5229, 0
      %v5312 = vsel %vm209, %v5228, 0
      %5314 = vmatprep.subr.mxu0 0.0
      %5315 = vmatpush1.msra.mxu0 %v5312
      %5316 = vmatprep.subr.mxu0 0.0
      %5317 = vmatpush1.msra.mxu0 0.0
      %5318 = vmatprep.subr.mxu0 0.0
      %5319 = vmatpush1.msra.mxu0 0.0
      %5320 = vmatprep.subr.mxu0 0.0
      %5321 = vmatpush1.msra.mxu0 0.0
      %5322 = vmatprep.subr.mxu0 0.0
      %5323 = vmatpush1.msra.mxu0 0.0
      %5324 = vmatprep.subr.mxu0 0.0
      %5325 = vmatpush1.msra.mxu0 0.0
      %5326 = vmatprep.subr.mxu0 0.0
      %5327 = vmatpush1.msra.mxu0 0.0
      %5328 = vmatprep.subr.mxu0 0.0
      %5329 = vmatpush1.msra.mxu0 0.0
      %5330 = vmatprep.subr.mxu0 0.0
      %5331 = vmatpush1.msra.mxu0 0.0
      %5332 = vmatprep.subr.mxu0 0.0
      %5333 = vmatpush1.msra.mxu0 0.0
      %5334 = vmatprep.subr.mxu0 0.0
      %5335 = vmatpush1.msra.mxu0 0.0
      %5336 = vmatprep.subr.mxu0 0.0
      %5337 = vmatpush1.msra.mxu0 0.0
      %5338 = vmatprep.subr.mxu0 0.0
      %5339 = vmatpush1.msra.mxu0 0.0
      %5340 = vmatprep.subr.mxu0 0.0
      %5341 = vmatpush1.msra.mxu0 0.0
      %5342 = vmatprep.subr.mxu0 0.0
      %5343 = vmatpush1.msra.mxu0 0.0
      %5344 = vmatprep.subr.mxu0 0.0
      %5345 = vmatpush1.msra.mxu0 0.0
      %5346 = vmatprep.subr.mxu0 0.0
      %5347 = vmatpush1.msra.mxu0 0.0
      %5348 = vmatprep.subr.mxu0 0.0
      %5349 = vmatpush1.msra.mxu0 0.0
      %5350 = vmatprep.subr.mxu0 0.0
      %5351 = vmatpush1.msra.mxu0 0.0
      %5352 = vmatprep.subr.mxu0 0.0
      %5353 = vmatpush1.msra.mxu0 0.0
      %5354 = vmatprep.subr.mxu0 0.0
      %5355 = vmatpush1.msra.mxu0 0.0
      %5356 = vmatprep.subr.mxu0 0.0
      %5357 = vmatpush1.msra.mxu0 0.0
      %5358 = vmatprep.subr.mxu0 0.0
      %5359 = vmatpush1.msra.mxu0 0.0
      %5360 = vmatprep.subr.mxu0 0.0
      %5361 = vmatpush1.msra.mxu0 0.0
      %5362 = vmatprep.subr.mxu0 0.0
      %5363 = vmatpush1.msra.mxu0 0.0
      %5364 = vmatprep.subr.mxu0 0.0
      %5365 = vmatpush1.msra.mxu0 0.0
      %5366 = vmatprep.subr.mxu0 0.0
      %5367 = vmatpush1.msra.mxu0 0.0
      %5368 = vmatprep.subr.mxu0 0.0
      %5369 = vmatpush1.msra.mxu0 0.0
      %5370 = vmatprep.subr.mxu0 0.0
      %5371 = vmatpush1.msra.mxu0 0.0
      %5372 = vmatprep.subr.mxu0 0.0
      %5373 = vmatpush1.msra.mxu0 0.0
      %5374 = vmatprep.subr.mxu0 0.0
      %5375 = vmatpush1.msra.mxu0 0.0
      %5376 = vmatprep.subr.mxu0 0.0
      %5377 = vmatpush1.msra.mxu0 0.0
      %5378 = vmatprep.mubr.f32.mxu0 0.0
      %5379 = vmatmul.mubr.f32.gmra.mrb[0].mxu0 %v5310
      %v5380 = vpop.f32.mrb[0].mxu0
      %v5381 = vadd.f32 %v5306, %v5380
      %v5382 = vpop.f32.mrb[0].mxu0
      %5383 = vdwg.mxu0
      %v5384 = vld [vmem:[%s357] sm:$0xff]
      %5385 = vrot.lane.b32.xlu0 %v5228, 126
      %v5386 = vpop.permute.xlu0 %5385
      %v5388 = vsel %vm205, %v5384, 0
      %v5390 = vsel %vm209, %v5386, 0
      %5392 = vmatprep.subr.mxu0 0.0
      %5393 = vmatpush1.msra.mxu0 %v5390
      %5394 = vmatprep.subr.mxu0 0.0
      %5395 = vmatpush1.msra.mxu0 0.0
      %5396 = vmatprep.subr.mxu0 0.0
      %5397 = vmatpush1.msra.mxu0 0.0
      %5398 = vmatprep.subr.mxu0 0.0
      %5399 = vmatpush1.msra.mxu0 0.0
      %5400 = vmatprep.subr.mxu0 0.0
      %5401 = vmatpush1.msra.mxu0 0.0
      %5402 = vmatprep.subr.mxu0 0.0
      %5403 = vmatpush1.msra.mxu0 0.0
      %5404 = vmatprep.subr.mxu0 0.0
      %5405 = vmatpush1.msra.mxu0 0.0
      %5406 = vmatprep.subr.mxu0 0.0
      %5407 = vmatpush1.msra.mxu0 0.0
      %5408 = vmatprep.subr.mxu0 0.0
      %5409 = vmatpush1.msra.mxu0 0.0
      %5410 = vmatprep.subr.mxu0 0.0
      %5411 = vmatpush1.msra.mxu0 0.0
      %5412 = vmatprep.subr.mxu0 0.0
      %5413 = vmatpush1.msra.mxu0 0.0
      %5414 = vmatprep.subr.mxu0 0.0
      %5415 = vmatpush1.msra.mxu0 0.0
      %5416 = vmatprep.subr.mxu0 0.0
      %5417 = vmatpush1.msra.mxu0 0.0
      %5418 = vmatprep.subr.mxu0 0.0
      %5419 = vmatpush1.msra.mxu0 0.0
      %5420 = vmatprep.subr.mxu0 0.0
      %5421 = vmatpush1.msra.mxu0 0.0
      %5422 = vmatprep.subr.mxu0 0.0
      %5423 = vmatpush1.msra.mxu0 0.0
      %5424 = vmatprep.subr.mxu0 0.0
      %5425 = vmatpush1.msra.mxu0 0.0
      %5426 = vmatprep.subr.mxu0 0.0
      %5427 = vmatpush1.msra.mxu0 0.0
      %5428 = vmatprep.subr.mxu0 0.0
      %5429 = vmatpush1.msra.mxu0 0.0
      %5430 = vmatprep.subr.mxu0 0.0
      %5431 = vmatpush1.msra.mxu0 0.0
      %5432 = vmatprep.subr.mxu0 0.0
      %5433 = vmatpush1.msra.mxu0 0.0
      %5434 = vmatprep.subr.mxu0 0.0
      %5435 = vmatpush1.msra.mxu0 0.0
      %5436 = vmatprep.subr.mxu0 0.0
      %5437 = vmatpush1.msra.mxu0 0.0
      %5438 = vmatprep.subr.mxu0 0.0
      %5439 = vmatpush1.msra.mxu0 0.0
      %5440 = vmatprep.subr.mxu0 0.0
      %5441 = vmatpush1.msra.mxu0 0.0
      %5442 = vmatprep.subr.mxu0 0.0
      %5443 = vmatpush1.msra.mxu0 0.0
      %5444 = vmatprep.subr.mxu0 0.0
      %5445 = vmatpush1.msra.mxu0 0.0
      %5446 = vmatprep.subr.mxu0 0.0
      %5447 = vmatpush1.msra.mxu0 0.0
      %5448 = vmatprep.subr.mxu0 0.0
      %5449 = vmatpush1.msra.mxu0 0.0
      %5450 = vmatprep.subr.mxu0 0.0
      %5451 = vmatpush1.msra.mxu0 0.0
      %5452 = vmatprep.subr.mxu0 0.0
      %5453 = vmatpush1.msra.mxu0 0.0
      %5454 = vmatprep.subr.mxu0 0.0
      %5455 = vmatpush1.msra.mxu0 0.0
      %5456 = vmatprep.mubr.f32.mxu0 0.0
      %5457 = vmatmul.mubr.f32.gmra.mrb[0].mxu0 %v5388
      %v5458 = vpop.f32.mrb[0].mxu0
      %v5459 = vadd.f32 0.0, %v5458
      %v5460 = vpop.f32.mrb[0].mxu0
      %5461 = vdwg.mxu0
      %v5462 = vadd.f32 %v5381, %v5459
      %v5463 = vld [vmem:[%s4986] sm:$0xf]
      %v5464 = vld [vmem:[%s441] sm:$0xff]
      %v5466 = vsel %vm205, %v5464, 0
      %v5469 = vsel %vm209, %v5463, 0
      %5471 = vmatprep.subr.mxu0 0.0
      %5472 = vmatpush1.msra.mxu0 %v5469
      %5473 = vmatprep.subr.mxu0 0.0
      %5474 = vmatpush1.msra.mxu0 0.0
      %5475 = vmatprep.subr.mxu0 0.0
      %5476 = vmatpush1.msra.mxu0 0.0
      %5477 = vmatprep.subr.mxu0 0.0
      %5478 = vmatpush1.msra.mxu0 0.0
      %5479 = vmatprep.subr.mxu0 0.0
      %5480 = vmatpush1.msra.mxu0 0.0
      %5481 = vmatprep.subr.mxu0 0.0
      %5482 = vmatpush1.msra.mxu0 0.0
      %5483 = vmatprep.subr.mxu0 0.0
      %5484 = vmatpush1.msra.mxu0 0.0
      %5485 = vmatprep.subr.mxu0 0.0
      %5486 = vmatpush1.msra.mxu0 0.0
      %5487 = vmatprep.subr.mxu0 0.0
      %5488 = vmatpush1.msra.mxu0 0.0
      %5489 = vmatprep.subr.mxu0 0.0
      %5490 = vmatpush1.msra.mxu0 0.0
      %5491 = vmatprep.subr.mxu0 0.0
      %5492 = vmatpush1.msra.mxu0 0.0
      %5493 = vmatprep.subr.mxu0 0.0
      %5494 = vmatpush1.msra.mxu0 0.0
      %5495 = vmatprep.subr.mxu0 0.0
      %5496 = vmatpush1.msra.mxu0 0.0
      %5497 = vmatprep.subr.mxu0 0.0
      %5498 = vmatpush1.msra.mxu0 0.0
      %5499 = vmatprep.subr.mxu0 0.0
      %5500 = vmatpush1.msra.mxu0 0.0
      %5501 = vmatprep.subr.mxu0 0.0
      %5502 = vmatpush1.msra.mxu0 0.0
      %5503 = vmatprep.subr.mxu0 0.0
      %5504 = vmatpush1.msra.mxu0 0.0
      %5505 = vmatprep.subr.mxu0 0.0
      %5506 = vmatpush1.msra.mxu0 0.0
      %5507 = vmatprep.subr.mxu0 0.0
      %5508 = vmatpush1.msra.mxu0 0.0
      %5509 = vmatprep.subr.mxu0 0.0
      %5510 = vmatpush1.msra.mxu0 0.0
      %5511 = vmatprep.subr.mxu0 0.0
      %5512 = vmatpush1.msra.mxu0 0.0
      %5513 = vmatprep.subr.mxu0 0.0
      %5514 = vmatpush1.msra.mxu0 0.0
      %5515 = vmatprep.subr.mxu0 0.0
      %5516 = vmatpush1.msra.mxu0 0.0
      %5517 = vmatprep.subr.mxu0 0.0
      %5518 = vmatpush1.msra.mxu0 0.0
      %5519 = vmatprep.subr.mxu0 0.0
      %5520 = vmatpush1.msra.mxu0 0.0
      %5521 = vmatprep.subr.mxu0 0.0
      %5522 = vmatpush1.msra.mxu0 0.0
      %5523 = vmatprep.subr.mxu0 0.0
      %5524 = vmatpush1.msra.mxu0 0.0
      %5525 = vmatprep.subr.mxu0 0.0
      %5526 = vmatpush1.msra.mxu0 0.0
      %5527 = vmatprep.subr.mxu0 0.0
      %5528 = vmatpush1.msra.mxu0 0.0
      %5529 = vmatprep.subr.mxu0 0.0
      %5530 = vmatpush1.msra.mxu0 0.0
      %5531 = vmatprep.subr.mxu0 0.0
      %5532 = vmatpush1.msra.mxu0 0.0
      %5533 = vmatprep.subr.mxu0 0.0
      %5534 = vmatpush1.msra.mxu0 0.0
      %5535 = vmatprep.mubr.f32.mxu0 0.0
      %5536 = vmatmul.mubr.f32.gmra.mrb[0].mxu0 %v5466
      %v5537 = vpop.f32.mrb[0].mxu0
      %v5538 = vadd.f32 0.0, %v5537
      %v5539 = vpop.f32.mrb[0].mxu0
      %5540 = vdwg.mxu0
      %v5541 = vadd.f32 %v5462, %v5538
      %v5542 = vld [vmem:[%s520] sm:$0xff]
      %5543 = vrot.lane.b32.xlu0 %v5463, 127
      %v5544 = vpop.permute.xlu0 %5543
      %v5546 = vsel %vm205, %v5542, 0
      %v5548 = vsel %vm209, %v5544, 0
      %5550 = vmatprep.subr.mxu0 0.0
      %5551 = vmatpush1.msra.mxu0 %v5548
      %5552 = vmatprep.subr.mxu0 0.0
      %5553 = vmatpush1.msra.mxu0 0.0
      %5554 = vmatprep.subr.mxu0 0.0
      %5555 = vmatpush1.msra.mxu0 0.0
      %5556 = vmatprep.subr.mxu0 0.0
      %5557 = vmatpush1.msra.mxu0 0.0
      %5558 = vmatprep.subr.mxu0 0.0
      %5559 = vmatpush1.msra.mxu0 0.0
      %5560 = vmatprep.subr.mxu0 0.0
      %5561 = vmatpush1.msra.mxu0 0.0
      %5562 = vmatprep.subr.mxu0 0.0
      %5563 = vmatpush1.msra.mxu0 0.0
      %5564 = vmatprep.subr.mxu0 0.0
      %5565 = vmatpush1.msra.mxu0 0.0
      %5566 = vmatprep.subr.mxu0 0.0
      %5567 = vmatpush1.msra.mxu0 0.0
      %5568 = vmatprep.subr.mxu0 0.0
      %5569 = vmatpush1.msra.mxu0 0.0
      %5570 = vmatprep.subr.mxu0 0.0
      %5571 = vmatpush1.msra.mxu0 0.0
      %5572 = vmatprep.subr.mxu0 0.0
      %5573 = vmatpush1.msra.mxu0 0.0
      %5574 = vmatprep.subr.mxu0 0.0
      %5575 = vmatpush1.msra.mxu0 0.0
      %5576 = vmatprep.subr.mxu0 0.0
      %5577 = vmatpush1.msra.mxu0 0.0
      %5578 = vmatprep.subr.mxu0 0.0
      %5579 = vmatpush1.msra.mxu0 0.0
      %5580 = vmatprep.subr.mxu0 0.0
      %5581 = vmatpush1.msra.mxu0 0.0
      %5582 = vmatprep.subr.mxu0 0.0
      %5583 = vmatpush1.msra.mxu0 0.0
      %5584 = vmatprep.subr.mxu0 0.0
      %5585 = vmatpush1.msra.mxu0 0.0
      %5586 = vmatprep.subr.mxu0 0.0
      %5587 = vmatpush1.msra.mxu0 0.0
      %5588 = vmatprep.subr.mxu0 0.0
      %5589 = vmatpush1.msra.mxu0 0.0
      %5590 = vmatprep.subr.mxu0 0.0
      %5591 = vmatpush1.msra.mxu0 0.0
      %5592 = vmatprep.subr.mxu0 0.0
      %5593 = vmatpush1.msra.mxu0 0.0
      %5594 = vmatprep.subr.mxu0 0.0
      %5595 = vmatpush1.msra.mxu0 0.0
      %5596 = vmatprep.subr.mxu0 0.0
      %5597 = vmatpush1.msra.mxu0 0.0
      %5598 = vmatprep.subr.mxu0 0.0
      %5599 = vmatpush1.msra.mxu0 0.0
      %5600 = vmatprep.subr.mxu0 0.0
      %5601 = vmatpush1.msra.mxu0 0.0
      %5602 = vmatprep.subr.mxu0 0.0
      %5603 = vmatpush1.msra.mxu0 0.0
      %5604 = vmatprep.subr.mxu0 0.0
      %5605 = vmatpush1.msra.mxu0 0.0
      %5606 = vmatprep.subr.mxu0 0.0
      %5607 = vmatpush1.msra.mxu0 0.0
      %5608 = vmatprep.subr.mxu0 0.0
      %5609 = vmatpush1.msra.mxu0 0.0
      %5610 = vmatprep.subr.mxu0 0.0
      %5611 = vmatpush1.msra.mxu0 0.0
      %5612 = vmatprep.subr.mxu0 0.0
      %5613 = vmatpush1.msra.mxu0 0.0
      %5614 = vmatprep.mubr.f32.mxu0 0.0
      %5615 = vmatmul.mubr.f32.gmra.mrb[0].mxu0 %v5546
      %v5616 = vpop.f32.mrb[0].mxu0
      %v5617 = vadd.f32 0.0, %v5616
      %v5618 = vpop.f32.mrb[0].mxu0
      %5619 = vdwg.mxu0
      %v5620 = vadd.f32 %v5541, %v5617
      %v5621 = vld [vmem:[%s600] sm:$0xff]
      %5622 = vrot.lane.b32.xlu0 %v5463, 126
      %v5623 = vpop.permute.xlu0 %5622
      %v5625 = vsel %vm205, %v5621, 0
      %v5627 = vsel %vm209, %v5623, 0
      %5629 = vmatprep.subr.mxu0 0.0
      %5630 = vmatpush1.msra.mxu0 %v5627
      %5631 = vmatprep.subr.mxu0 0.0
      %5632 = vmatpush1.msra.mxu0 0.0
      %5633 = vmatprep.subr.mxu0 0.0
      %5634 = vmatpush1.msra.mxu0 0.0
      %5635 = vmatprep.subr.mxu0 0.0
      %5636 = vmatpush1.msra.mxu0 0.0
      %5637 = vmatprep.subr.mxu0 0.0
      %5638 = vmatpush1.msra.mxu0 0.0
      %5639 = vmatprep.subr.mxu0 0.0
      %5640 = vmatpush1.msra.mxu0 0.0
      %5641 = vmatprep.subr.mxu0 0.0
      %5642 = vmatpush1.msra.mxu0 0.0
      %5643 = vmatprep.subr.mxu0 0.0
      %5644 = vmatpush1.msra.mxu0 0.0
      %5645 = vmatprep.subr.mxu0 0.0
      %5646 = vmatpush1.msra.mxu0 0.0
      %5647 = vmatprep.subr.mxu0 0.0
      %5648 = vmatpush1.msra.mxu0 0.0
      %5649 = vmatprep.subr.mxu0 0.0
      %5650 = vmatpush1.msra.mxu0 0.0
      %5651 = vmatprep.subr.mxu0 0.0
      %5652 = vmatpush1.msra.mxu0 0.0
      %5653 = vmatprep.subr.mxu0 0.0
      %5654 = vmatpush1.msra.mxu0 0.0
      %5655 = vmatprep.subr.mxu0 0.0
      %5656 = vmatpush1.msra.mxu0 0.0
      %5657 = vmatprep.subr.mxu0 0.0
      %5658 = vmatpush1.msra.mxu0 0.0
      %5659 = vmatprep.subr.mxu0 0.0
      %5660 = vmatpush1.msra.mxu0 0.0
      %5661 = vmatprep.subr.mxu0 0.0
      %5662 = vmatpush1.msra.mxu0 0.0
      %5663 = vmatprep.subr.mxu0 0.0
      %5664 = vmatpush1.msra.mxu0 0.0
      %5665 = vmatprep.subr.mxu0 0.0
      %5666 = vmatpush1.msra.mxu0 0.0
      %5667 = vmatprep.subr.mxu0 0.0
      %5668 = vmatpush1.msra.mxu0 0.0
      %5669 = vmatprep.subr.mxu0 0.0
      %5670 = vmatpush1.msra.mxu0 0.0
      %5671 = vmatprep.subr.mxu0 0.0
      %5672 = vmatpush1.msra.mxu0 0.0
      %5673 = vmatprep.subr.mxu0 0.0
      %5674 = vmatpush1.msra.mxu0 0.0
      %5675 = vmatprep.subr.mxu0 0.0
      %5676 = vmatpush1.msra.mxu0 0.0
      %5677 = vmatprep.subr.mxu0 0.0
      %5678 = vmatpush1.msra.mxu0 0.0
      %5679 = vmatprep.subr.mxu0 0.0
      %5680 = vmatpush1.msra.mxu0 0.0
      %5681 = vmatprep.subr.mxu0 0.0
      %5682 = vmatpush1.msra.mxu0 0.0
      %5683 = vmatprep.subr.mxu0 0.0
      %5684 = vmatpush1.msra.mxu0 0.0
      %5685 = vmatprep.subr.mxu0 0.0
      %5686 = vmatpush1.msra.mxu0 0.0
      %5687 = vmatprep.subr.mxu0 0.0
      %5688 = vmatpush1.msra.mxu0 0.0
      %5689 = vmatprep.subr.mxu0 0.0
      %5690 = vmatpush1.msra.mxu0 0.0
      %5691 = vmatprep.subr.mxu0 0.0
      %5692 = vmatpush1.msra.mxu0 0.0
      %5693 = vmatprep.mubr.f32.mxu0 0.0
      %5694 = vmatmul.mubr.f32.gmra.mrb[0].mxu0 %v5625
      %v5695 = vpop.f32.mrb[0].mxu0
      %v5696 = vadd.f32 0.0, %v5695
      %v5697 = vpop.f32.mrb[0].mxu0
      %5698 = vdwg.mxu0
      %v5699 = vadd.f32 %v5620, %v5696
      %s5700 = sadd.s32 %s194, 9
      %s5701 = smul.u32 %s5700, 4
      %s5702 = scalar_lea.vmem %s183, %s5701
      %v5703 = vld [vmem:[%s5702] sm:$0xf]
      %v5704 = vld [vmem:[%s684] sm:$0xff]
      %v5706 = vsel %vm205, %v5704, 0
      %v5709 = vsel %vm209, %v5703, 0
      %5711 = vmatprep.subr.mxu0 0.0
      %5712 = vmatpush1.msra.mxu0 %v5709
      %5713 = vmatprep.subr.mxu0 0.0
      %5714 = vmatpush1.msra.mxu0 0.0
      %5715 = vmatprep.subr.mxu0 0.0
      %5716 = vmatpush1.msra.mxu0 0.0
      %5717 = vmatprep.subr.mxu0 0.0
      %5718 = vmatpush1.msra.mxu0 0.0
      %5719 = vmatprep.subr.mxu0 0.0
      %5720 = vmatpush1.msra.mxu0 0.0
      %5721 = vmatprep.subr.mxu0 0.0
      %5722 = vmatpush1.msra.mxu0 0.0
      %5723 = vmatprep.subr.mxu0 0.0
      %5724 = vmatpush1.msra.mxu0 0.0
      %5725 = vmatprep.subr.mxu0 0.0
      %5726 = vmatpush1.msra.mxu0 0.0
      %5727 = vmatprep.subr.mxu0 0.0
      %5728 = vmatpush1.msra.mxu0 0.0
      %5729 = vmatprep.subr.mxu0 0.0
      %5730 = vmatpush1.msra.mxu0 0.0
      %5731 = vmatprep.subr.mxu0 0.0
      %5732 = vmatpush1.msra.mxu0 0.0
      %5733 = vmatprep.subr.mxu0 0.0
      %5734 = vmatpush1.msra.mxu0 0.0
      %5735 = vmatprep.subr.mxu0 0.0
      %5736 = vmatpush1.msra.mxu0 0.0
      %5737 = vmatprep.subr.mxu0 0.0
      %5738 = vmatpush1.msra.mxu0 0.0
      %5739 = vmatprep.subr.mxu0 0.0
      %5740 = vmatpush1.msra.mxu0 0.0
      %5741 = vmatprep.subr.mxu0 0.0
      %5742 = vmatpush1.msra.mxu0 0.0
      %5743 = vmatprep.subr.mxu0 0.0
      %5744 = vmatpush1.msra.mxu0 0.0
      %5745 = vmatprep.subr.mxu0 0.0
      %5746 = vmatpush1.msra.mxu0 0.0
      %5747 = vmatprep.subr.mxu0 0.0
      %5748 = vmatpush1.msra.mxu0 0.0
      %5749 = vmatprep.subr.mxu0 0.0
      %5750 = vmatpush1.msra.mxu0 0.0
      %5751 = vmatprep.subr.mxu0 0.0
      %5752 = vmatpush1.msra.mxu0 0.0
      %5753 = vmatprep.subr.mxu0 0.0
      %5754 = vmatpush1.msra.mxu0 0.0
      %5755 = vmatprep.subr.mxu0 0.0
      %5756 = vmatpush1.msra.mxu0 0.0
      %5757 = vmatprep.subr.mxu0 0.0
      %5758 = vmatpush1.msra.mxu0 0.0
      %5759 = vmatprep.subr.mxu0 0.0
      %5760 = vmatpush1.msra.mxu0 0.0
      %5761 = vmatprep.subr.mxu0 0.0
      %5762 = vmatpush1.msra.mxu0 0.0
      %5763 = vmatprep.subr.mxu0 0.0
      %5764 = vmatpush1.msra.mxu0 0.0
      %5765 = vmatprep.subr.mxu0 0.0
      %5766 = vmatpush1.msra.mxu0 0.0
      %5767 = vmatprep.subr.mxu0 0.0
      %5768 = vmatpush1.msra.mxu0 0.0
      %5769 = vmatprep.subr.mxu0 0.0
      %5770 = vmatpush1.msra.mxu0 0.0
      %5771 = vmatprep.subr.mxu0 0.0
      %5772 = vmatpush1.msra.mxu0 0.0
      %5773 = vmatprep.subr.mxu0 0.0
      %5774 = vmatpush1.msra.mxu0 0.0
      %5775 = vmatprep.mubr.f32.mxu0 0.0
      %5776 = vmatmul.mubr.f32.gmra.mrb[0].mxu0 %v5706
      %v5777 = vpop.f32.mrb[0].mxu0
      %v5778 = vadd.f32 0.0, %v5777
      %v5779 = vpop.f32.mrb[0].mxu0
      %5780 = vdwg.mxu0
      %v5781 = vadd.f32 %v5699, %v5778
      %v5782 = vld [vmem:[%s763] sm:$0xff]
      %5783 = vrot.lane.b32.xlu0 %v5703, 127
      %v5784 = vpop.permute.xlu0 %5783
      %v5786 = vsel %vm205, %v5782, 0
      %v5788 = vsel %vm209, %v5784, 0
      %5790 = vmatprep.subr.mxu0 0.0
      %5791 = vmatpush1.msra.mxu0 %v5788
      %5792 = vmatprep.subr.mxu0 0.0
      %5793 = vmatpush1.msra.mxu0 0.0
      %5794 = vmatprep.subr.mxu0 0.0
      %5795 = vmatpush1.msra.mxu0 0.0
      %5796 = vmatprep.subr.mxu0 0.0
      %5797 = vmatpush1.msra.mxu0 0.0
      %5798 = vmatprep.subr.mxu0 0.0
      %5799 = vmatpush1.msra.mxu0 0.0
      %5800 = vmatprep.subr.mxu0 0.0
      %5801 = vmatpush1.msra.mxu0 0.0
      %5802 = vmatprep.subr.mxu0 0.0
      %5803 = vmatpush1.msra.mxu0 0.0
      %5804 = vmatprep.subr.mxu0 0.0
      %5805 = vmatpush1.msra.mxu0 0.0
      %5806 = vmatprep.subr.mxu0 0.0
      %5807 = vmatpush1.msra.mxu0 0.0
      %5808 = vmatprep.subr.mxu0 0.0
      %5809 = vmatpush1.msra.mxu0 0.0
      %5810 = vmatprep.subr.mxu0 0.0
      %5811 = vmatpush1.msra.mxu0 0.0
      %5812 = vmatprep.subr.mxu0 0.0
      %5813 = vmatpush1.msra.mxu0 0.0
      %5814 = vmatprep.subr.mxu0 0.0
      %5815 = vmatpush1.msra.mxu0 0.0
      %5816 = vmatprep.subr.mxu0 0.0
      %5817 = vmatpush1.msra.mxu0 0.0
      %5818 = vmatprep.subr.mxu0 0.0
      %5819 = vmatpush1.msra.mxu0 0.0
      %5820 = vmatprep.subr.mxu0 0.0
      %5821 = vmatpush1.msra.mxu0 0.0
      %5822 = vmatprep.subr.mxu0 0.0
      %5823 = vmatpush1.msra.mxu0 0.0
      %5824 = vmatprep.subr.mxu0 0.0
      %5825 = vmatpush1.msra.mxu0 0.0
      %5826 = vmatprep.subr.mxu0 0.0
      %5827 = vmatpush1.msra.mxu0 0.0
      %5828 = vmatprep.subr.mxu0 0.0
      %5829 = vmatpush1.msra.mxu0 0.0
      %5830 = vmatprep.subr.mxu0 0.0
      %5831 = vmatpush1.msra.mxu0 0.0
      %5832 = vmatprep.subr.mxu0 0.0
      %5833 = vmatpush1.msra.mxu0 0.0
      %5834 = vmatprep.subr.mxu0 0.0
      %5835 = vmatpush1.msra.mxu0 0.0
      %5836 = vmatprep.subr.mxu0 0.0
      %5837 = vmatpush1.msra.mxu0 0.0
      %5838 = vmatprep.subr.mxu0 0.0
      %5839 = vmatpush1.msra.mxu0 0.0
      %5840 = vmatprep.subr.mxu0 0.0
      %5841 = vmatpush1.msra.mxu0 0.0
      %5842 = vmatprep.subr.mxu0 0.0
      %5843 = vmatpush1.msra.mxu0 0.0
      %5844 = vmatprep.subr.mxu0 0.0
      %5845 = vmatpush1.msra.mxu0 0.0
      %5846 = vmatprep.subr.mxu0 0.0
      %5847 = vmatpush1.msra.mxu0 0.0
      %5848 = vmatprep.subr.mxu0 0.0
      %5849 = vmatpush1.msra.mxu0 0.0
      %5850 = vmatprep.subr.mxu0 0.0
      %5851 = vmatpush1.msra.mxu0 0.0
      %5852 = vmatprep.subr.mxu0 0.0
      %5853 = vmatpush1.msra.mxu0 0.0
      %5854 = vmatprep.mubr.f32.mxu0 0.0
      %5855 = vmatmul.mubr.f32.gmra.mrb[0].mxu0 %v5786
      %v5856 = vpop.f32.mrb[0].mxu0
      %v5857 = vadd.f32 0.0, %v5856
      %v5858 = vpop.f32.mrb[0].mxu0
      %5859 = vdwg.mxu0
      %v5860 = vadd.f32 %v5781, %v5857
      %v5861 = vld [vmem:[%s843] sm:$0xff]
      %5862 = vrot.lane.b32.xlu0 %v5703, 126
      %v5863 = vpop.permute.xlu0 %5862
      %v5865 = vsel %vm205, %v5861, 0
      %v5867 = vsel %vm209, %v5863, 0
      %5869 = vmatprep.subr.mxu0 0.0
      %5870 = vmatpush1.msra.mxu0 %v5867
      %5871 = vmatprep.subr.mxu0 0.0
      %5872 = vmatpush1.msra.mxu0 0.0
      %5873 = vmatprep.subr.mxu0 0.0
      %5874 = vmatpush1.msra.mxu0 0.0
      %5875 = vmatprep.subr.mxu0 0.0
      %5876 = vmatpush1.msra.mxu0 0.0
      %5877 = vmatprep.subr.mxu0 0.0
      %5878 = vmatpush1.msra.mxu0 0.0
      %5879 = vmatprep.subr.mxu0 0.0
      %5880 = vmatpush1.msra.mxu0 0.0
      %5881 = vmatprep.subr.mxu0 0.0
      %5882 = vmatpush1.msra.mxu0 0.0
      %5883 = vmatprep.subr.mxu0 0.0
      %5884 = vmatpush1.msra.mxu0 0.0
      %5885 = vmatprep.subr.mxu0 0.0
      %5886 = vmatpush1.msra.mxu0 0.0
      %5887 = vmatprep.subr.mxu0 0.0
      %5888 = vmatpush1.msra.mxu0 0.0
      %5889 = vmatprep.subr.mxu0 0.0
      %5890 = vmatpush1.msra.mxu0 0.0
      %5891 = vmatprep.subr.mxu0 0.0
      %5892 = vmatpush1.msra.mxu0 0.0
      %5893 = vmatprep.subr.mxu0 0.0
      %5894 = vmatpush1.msra.mxu0 0.0
      %5895 = vmatprep.subr.mxu0 0.0
      %5896 = vmatpush1.msra.mxu0 0.0
      %5897 = vmatprep.subr.mxu0 0.0
      %5898 = vmatpush1.msra.mxu0 0.0
      %5899 = vmatprep.subr.mxu0 0.0
      %5900 = vmatpush1.msra.mxu0 0.0
      %5901 = vmatprep.subr.mxu0 0.0
      %5902 = vmatpush1.msra.mxu0 0.0
      %5903 = vmatprep.subr.mxu0 0.0
      %5904 = vmatpush1.msra.mxu0 0.0
      %5905 = vmatprep.subr.mxu0 0.0
      %5906 = vmatpush1.msra.mxu0 0.0
      %5907 = vmatprep.subr.mxu0 0.0
      %5908 = vmatpush1.msra.mxu0 0.0
      %5909 = vmatprep.subr.mxu0 0.0
      %5910 = vmatpush1.msra.mxu0 0.0
      %5911 = vmatprep.subr.mxu0 0.0
      %5912 = vmatpush1.msra.mxu0 0.0
      %5913 = vmatprep.subr.mxu0 0.0
      %5914 = vmatpush1.msra.mxu0 0.0
      %5915 = vmatprep.subr.mxu0 0.0
      %5916 = vmatpush1.msra.mxu0 0.0
      %5917 = vmatprep.subr.mxu0 0.0
      %5918 = vmatpush1.msra.mxu0 0.0
      %5919 = vmatprep.subr.mxu0 0.0
      %5920 = vmatpush1.msra.mxu0 0.0
      %5921 = vmatprep.subr.mxu0 0.0
      %5922 = vmatpush1.msra.mxu0 0.0
      %5923 = vmatprep.subr.mxu0 0.0
      %5924 = vmatpush1.msra.mxu0 0.0
      %5925 = vmatprep.subr.mxu0 0.0
      %5926 = vmatpush1.msra.mxu0 0.0
      %5927 = vmatprep.subr.mxu0 0.0
      %5928 = vmatpush1.msra.mxu0 0.0
      %5929 = vmatprep.subr.mxu0 0.0
      %5930 = vmatpush1.msra.mxu0 0.0
      %5931 = vmatprep.subr.mxu0 0.0
      %5932 = vmatpush1.msra.mxu0 0.0
      %5933 = vmatprep.mubr.f32.mxu0 0.0
      %5934 = vmatmul.mubr.f32.gmra.mrb[0].mxu0 %v5865
      %v5935 = vpop.f32.mrb[0].mxu0
      %v5936 = vadd.f32 0.0, %v5935
      %v5937 = vpop.f32.mrb[0].mxu0
      %5938 = vdwg.mxu0
      %v5939 = vadd.f32 %v5860, %v5936
      %v5940 = vadd.f32 %v5939, %v926
      %v5941 = vmax.f32 %v5940, 0.0
      %s5942 = scalar_lea.vmem %s192, 56
      %5943 = vst.msk [vmem:[%s5942] sm:$0xff] %vm930, %v5941
      %s5944 = smul.u32 8, %s19
      %p5945 = scmp.lt.s32.totalorder %s18, 1
      %s5946 = scalar_select %p5945, %s18, 1
      %p5947 = scmp.lt.s32.totalorder %s5944, 31
      %s5948 = scalar_select %p5947, %s5944, 31
      %s5949 = smul.addr %s5946, 32
      %s5950 = sadd.s32 %s5948, %s5949
      %s5951 = smul.addr %s5950, 8
      %s5952 = scalar_lea.vmem %s3, %s5951
      // Predicated region
      $region33: #{unet_decoder_block.1} parent=31 // pred_check
        %p5953 = pneg %p114
      $region34: #{unet_decoder_block.1} parent=31 // pred_check_branch
        %5955 = sbr.rel (%p5953) target = $region36
      $region35: #{unet_decoder_block.1} parent=31 // pred_region
        %s5956 = smul.u32 8, %s19
      $region36: #{unet_decoder_block.1} parent=31 // pred_fallthru
        _
    $region32: #{unet_decoder_block.1} parent=5 // pred_fallthru
      _
    %p5957 = scmp.le.s32.totalorder 2, %s9
    // Predicated region
    $region37: #{unet_decoder_block.1} parent=5 // pred_check
      %p5958 = pneg %p5957
    $region38: #{unet_decoder_block.1} parent=5 // pred_check_branch
      %5960 = sbr.rel (%p5958) target = $region40
    $region39: #{unet_decoder_block.1} parent=5 // pred_region
      %s5961 = ssub.s32 %s9, 2
      // Predicated region
      $region41: #{unet_decoder_block.1} parent=39 // pred_check
        %p5962 = pneg %p120
      $region42: #{unet_decoder_block.1} parent=39 // pred_check_branch
        %5964 = sbr.rel (%p5962) target = $region44
      $region43: #{unet_decoder_block.1} parent=39 // pred_region
        %s5965 = smul.u32 8, %s21
        %p5966 = scmp.lt.s32.totalorder %s20, 1
        %s5967 = scalar_select %p5966, %s20, 1
        %p5968 = scmp.lt.s32.totalorder %s5965, 31
        %s5969 = scalar_select %p5968, %s5965, 31
        %s5970 = smul.addr %s5967, 32
        %s5971 = sadd.s32 %s5969, %s5970
        %s5972 = smul.addr %s5971, 8
        %s5973 = scalar_lea.vmem %s3, %s5972
      $region44: #{unet_decoder_block.1} parent=39 // pred_fallthru
        _
    $region40: #{unet_decoder_block.1} parent=5 // pred_fallthru
      _
  $region6: #{unet_decoder_block.1} parent=0 // loop_footer
    %s13 = sadd.s32 1, %s9
  $region7: #{unet_decoder_block.1} parent=0 // loop_footer_branch
    %8 = sbr.rel target = $region3
  $region8: #{unet_decoder_block.1} parent=0 // loop_exit
    _

</llo_original>
